<compile_context>
chip_gen: v7x
topology: tpu7x:2x2x1
jax: 0.10.0
libtpu: 0.0.40
codegen_flags: <defaults>
</compile_context>

<pallas_src>
import jax
import jax.numpy as jnp
from jax.experimental import pallas as pl
from jax.experimental.pallas import tpu as pltpu

D = 768            # GCN hidden size fixed by the module (GCNConv(768, 768))
NUM_CLASSES = 2    # DropoutClassifier(768 * 2, 2)
C_PAD = 128        # classifier output padded to one full lane group (lane-dense store)
NUM_LAYERS = 3


# ---------------------------------------------------------------------------
# Fused kernel: one grid step per GCN layer, classifier fused into the last step
# ---------------------------------------------------------------------------
def gcn_lexicon_kernel(a_ref, x_ref, w_ref, b_ref, wc_ref, bc_ref, out_ref, h_ref):
    layer = pl.program_id(0)

    @pl.when(layer == 0)
    def _init():
        h_ref[...] = x_ref[...]                     # carry-in: raw node features

    # GCN layer: H' = tanh(A_hat @ (H @ W) + b), bf16 MXU operands, f32 accumulation.
    h = h_ref[...]                                  # [BN, D] f32
    hw = jnp.dot(h.astype(jnp.bfloat16), w_ref[0],
                 preferred_element_type=jnp.float32)            # [BN, D] f32
    h_new = jnp.tanh(
        jnp.dot(a_ref[...], hw.astype(jnp.bfloat16),
                preferred_element_type=jnp.float32) + b_ref[0])  # [BN, D] f32
    h_ref[...] = h_new

    @pl.when(layer == pl.num_programs(0) - 1)
    def _classify():
        # logits[i] = h[i] @ Wl + h[i+1] @ Wr + bc, without materializing the concat.
        hb = h_new.astype(jnp.bfloat16)
        pq = jnp.dot(hb, wc_ref[...], preferred_element_type=jnp.float32)  # [BN, 2*C_PAD]
        p = pq[:, :C_PAD]                            # h[i]   @ Wl (padded to 128 lanes)
        q = pq[:, C_PAD:]                            # h[i]   @ Wr (padded to 128 lanes)
        bn = pq.shape[0]
        # q_next[i] = q[i+1]: sublane rotate on the XLU (== jnp.roll(q, -1, axis=0)).
        # The wrapped last row of each graph is garbage and is dropped by the wrapper.
        q_next = pltpu.roll(q, shift=bn - 1, axis=0)
        out_ref[...] = p + q_next + bc_ref[...]      # [BN, C_PAD] f32, lane-dense store


# ---------------------------------------------------------------------------
# Wrapper: batched graphs, layer grid, classifier output sliced to [B, N-1, 2]
# ---------------------------------------------------------------------------
def gcn_lexicon_forward(a_hat, x, w_stack, b_stack, wc_fused, bc_pad, batch, n_tokens):
    bn, d = x.shape
    num_layers = w_stack.shape[0]

    cost = pl.CostEstimate(
        flops=int(2 * num_layers * (bn * d * d + bn * bn * d)
                  + 2 * bn * d * (2 * C_PAD)),
        transcendentals=int(num_layers * bn * d),
        bytes_accessed=int(a_hat.size * 2 + x.size * 4 + w_stack.size * 2
                           + b_stack.size * 4 + wc_fused.size * 2
                           + bc_pad.size * 4 + bn * C_PAD * 4),
    )

    out_pad = pl.pallas_call(
        gcn_lexicon_kernel,
        out_shape=jax.ShapeDtypeStruct((bn, C_PAD), jnp.float32),
        grid_spec=pltpu.PrefetchScalarGridSpec(
            num_scalar_prefetch=0,
            grid=(num_layers,),
            in_specs=[
                pl.BlockSpec((bn, bn), lambda l: (0, 0)),        # block-diag A_hat (bf16), resident
                pl.BlockSpec((bn, d), lambda l: (0, 0)),         # node features x (f32), resident
                pl.BlockSpec((1, d, d), lambda l: (l, 0, 0)),    # per-layer W (bf16), streamed/double-buffered
                pl.BlockSpec((1, 1, d), lambda l: (l, 0, 0)),    # per-layer bias (f32)
                pl.BlockSpec((d, 2 * C_PAD), lambda l: (0, 0)),  # fused [Wl|Wr] classifier RHS (bf16)
                pl.BlockSpec((1, C_PAD), lambda l: (0, 0)),      # classifier bias (f32, padded)
            ],
            out_specs=pl.BlockSpec((bn, C_PAD), lambda l: (0, 0)),
            scratch_shapes=[pltpu.VMEM((bn, d), jnp.float32)],   # carried activation h
        ),
        compiler_params=pltpu.CompilerParams(dimension_semantics=("arbitrary",)),
        cost_estimate=cost,
    )(a_hat, x, w_stack, b_stack, wc_fused, bc_pad)

    # Drop padded output lanes and the last (invalid) pair row of every graph.
    return out_pad.reshape(batch, n_tokens, C_PAD)[:, : n_tokens - 1, :NUM_CLASSES]


# ---------------------------------------------------------------------------
# Plain-JAX glue: GCN normalized adjacency and synthetic lexicon edges
# ---------------------------------------------------------------------------
def build_normalized_adj(edge_index, n):
    """edge_index: int32 [2, E]; A_hat = D^-1/2 (A + I) D^-1/2 (edge multiplicity kept)."""
    src, dst = edge_index[0], edge_index[1]
    a = jnp.zeros((n, n), jnp.float32).at[dst, src].add(1.0)   # message j -> i in row i
    a = a + jnp.eye(n, dtype=jnp.float32)                      # add_self_loops
    deg = jnp.sum(a, axis=1)
    d_inv_sqrt = 1.0 / jnp.sqrt(jnp.maximum(deg, 1e-12))
    return d_inv_sqrt[:, None] * a * d_inv_sqrt[None, :]


def make_synthetic_edges(n, offset=0):
    """Deterministic stand-in for the jieba lexicon edges: bidirectional links
    between character i and i+span-1 for spans 2 and 3 (the module emits
    [start, end] and [end, start] for every multi-char lexicon word)."""
    edges = []
    for span in (2, 3):
        for i in range(offset % span, n - span + 1, span):
            edges.append([i, i + span - 1])
            edges.append([i + span - 1, i])
    return jnp.asarray(edges, dtype=jnp.int32).T   # [2, E]


def reference_forward(a_hat, x, w_stack, b_stack, wc_fused, bc_pad, batch, n_tokens):
    """Plain-JAX reference with the same bf16 operand casts (tolerance check only)."""
    h = x
    for l in range(w_stack.shape[0]):
        hw = jnp.dot(h.astype(jnp.bfloat16), w_stack[l],
                     preferred_element_type=jnp.float32)
        h = jnp.tanh(jnp.dot(a_hat, hw.astype(jnp.bfloat16),
                             preferred_element_type=jnp.float32) + b_stack[l])
    pq = jnp.dot(h.astype(jnp.bfloat16), wc_fused, preferred_element_type=jnp.float32)
    p, q = pq[:, :C_PAD], pq[:, C_PAD:]
    out = p + jnp.roll(q, -1, axis=0) + bc_pad
    return out.reshape(batch, n_tokens, C_PAD)[:, : n_tokens - 1, :NUM_CLASSES]


# ---------------------------------------------------------------------------
if __name__ == "__main__":
    key = jax.random.PRNGKey(0)
    B = 16   # synthetic batch of sentences (graphs) -> fills MXU rows, amortizes weights
    N = 16   # tokens per sentence (GCN nodes per graph)
    BN = B * N

    (k_x, k_w1, k_b1, k_w2, k_b2, k_w3, k_b3, k_wc, k_bc) = jax.random.split(key, 9)

    # Stand-in for BERT hidden_states[0][0] for each sentence -> [BN, 768]
    x = 0.5 * jax.random.normal(k_x, (BN, D), jnp.float32)

    # GCNConv weights (768 -> 768) stacked [3, D, D] in bf16; biases f32 [3, 1, D].
    scale = 0.05
    w_stack = jnp.stack([
        (scale * jax.random.normal(k, (D, D), jnp.float32)).astype(jnp.bfloat16)
        for k in (k_w1, k_w2, k_w3)])
    b_stack = jnp.stack([
        scale * jax.random.normal(k, (1, D), jnp.float32)
        for k in (k_b1, k_b2, k_b3)])

    # Classifier Linear(1536, 2): left/right halves of the concat fused into one
    # [768, 256] bf16 RHS (cols [0:2] = Wl, cols [128:130] = Wr, rest zero-padded).
    wc = scale * jax.random.normal(k_wc, (2 * D, NUM_CLASSES), jnp.float32)
    wc_fused = (jnp.zeros((D, 2 * C_PAD), jnp.float32)
                .at[:, :NUM_CLASSES].set(wc[:D])
                .at[:, C_PAD:C_PAD + NUM_CLASSES].set(wc[D:])
                ).astype(jnp.bfloat16)
    bc = scale * jax.random.normal(k_bc, (1, NUM_CLASSES), jnp.float32)
    bc_pad = jnp.zeros((1, C_PAD), jnp.float32).at[:, :NUM_CLASSES].set(bc)

    # Per-graph synthetic lexicon edges -> normalized adjacency -> block-diagonal
    # [BN, BN] A_hat (cast bf16 for the aggregation matmul).
    a_full = jnp.zeros((BN, BN), jnp.float32)
    for g in range(B):
        a_g = build_normalized_adj(make_synthetic_edges(N, offset=g), N)
        a_full = a_full.at[g * N:(g + 1) * N, g * N:(g + 1) * N].set(a_g)
    a_hat = a_full.astype(jnp.bfloat16)

    # Fused hot path: 3 GCN layers + tanh + pairwise-concat classifier, one launch.
    logits = gcn_lexicon_forward(a_hat, x, w_stack, b_stack, wc_fused, bc_pad, B, N)
    jax.block_until_ready(logits)

    assert logits.shape == (B, N - 1, NUM_CLASSES)
    assert bool(jnp.all(jnp.isfinite(logits)))

    ref = reference_forward(a_hat, x, w_stack, b_stack, wc_fused, bc_pad, B, N)
    max_err = float(jnp.max(jnp.abs(logits - ref)))
    assert max_err < 2e-2, f"kernel/reference mismatch: max |diff| = {max_err}"

    print("KERNEL_OK")
</pallas_src>

<mosaic_0001>
module attributes {stable_mosaic.version = 11 : i64} {
  func.func @gcn_lexicon_kernel(%arg0: i32, %arg1: memref<256x256xbf16, #tpu.memory_space<vmem>>, %arg2: memref<256x768xf32, #tpu.memory_space<vmem>>, %arg3: memref<1x768x768xbf16, #tpu.memory_space<vmem>>, %arg4: memref<1x1x768xf32, #tpu.memory_space<vmem>>, %arg5: memref<768x256xbf16, #tpu.memory_space<vmem>>, %arg6: memref<1x128xf32, #tpu.memory_space<vmem>>, %arg7: memref<256x128xf32, #tpu.memory_space<vmem>>, %arg8: memref<256x768xf32, #tpu.memory_space<vmem>>) attributes {dimension_semantics = [#tpu.dimension_semantics<arbitrary>], iteration_bounds = array<i64: 3>, scalar_prefetch = 0 : i64, scratch_operands = 1 : i64, tpu.core_type = #tpu.core_type<tc>, window_params = [{pipeline_mode = #tpu.pipeline_mode<synchronous>, transform_indices = @transform_0, window_bounds = array<i64: 256, 256>}, {pipeline_mode = #tpu.pipeline_mode<synchronous>, transform_indices = @transform_1, window_bounds = array<i64: 256, 768>}, {transform_indices = @transform_2, window_bounds = array<i64: 1, 768, 768>}, {transform_indices = @transform_3, window_bounds = array<i64: 1, 1, 768>}, {pipeline_mode = #tpu.pipeline_mode<synchronous>, transform_indices = @transform_4, window_bounds = array<i64: 768, 256>}, {pipeline_mode = #tpu.pipeline_mode<synchronous>, transform_indices = @transform_5, window_bounds = array<i64: 1, 128>}, {pipeline_mode = #tpu.pipeline_mode<synchronous>, transform_indices = @transform_6, window_bounds = array<i64: 256, 128>}]} {
    %c0_i32 = arith.constant 0 : i32
    %0 = arith.cmpi eq, %arg0, %c0_i32 : i32
    %1 = arith.extui %0 : i1 to i32
    %c0_i32_0 = arith.constant 0 : i32
    %2 = arith.cmpi ne, %1, %c0_i32_0 : i32
    scf.if %2 {
      %c0_14 = arith.constant 0 : index
      %c0_15 = arith.constant 0 : index
      %20 = vector.load %arg2[%c0_14, %c0_15] : memref<256x768xf32, #tpu.memory_space<vmem>>, vector<256x768xf32>
      %c0_16 = arith.constant 0 : index
      %c0_17 = arith.constant 0 : index
      %21 = vector.load %arg8[%c0_16, %c0_17] : memref<256x768xf32, #tpu.memory_space<vmem>>, vector<256x768xf32>
      tpu.vector_store %arg8[%c0_16, %c0_17], %20 {strides = array<i32>} : memref<256x768xf32, #tpu.memory_space<vmem>>, vector<256x768xf32>,
    } else {
    }
    %c0 = arith.constant 0 : index
    %c0_1 = arith.constant 0 : index
    %3 = vector.load %arg8[%c0, %c0_1] : memref<256x768xf32, #tpu.memory_space<vmem>>, vector<256x768xf32>
    %4 = arith.truncf %3 : vector<256x768xf32> to vector<256x768xbf16>
    %c0_2 = arith.constant 0 : index
    %c0_3 = arith.constant 0 : index
    %c0_4 = arith.constant 0 : index
    %5 = vector.load %arg3[%c0_2, %c0_3, %c0_4] : memref<1x768x768xbf16, #tpu.memory_space<vmem>>, vector<1x768x768xbf16>
    %6 = vector.shape_cast %5 : vector<1x768x768xbf16> to vector<768x768xbf16>
    %cst = arith.constant dense<0.000000e+00> : vector<256x768xf32>
    %7 = tpu.matmul %4, %6, %cst {dimension_numbers = #tpu.dot_dimension_numbers<[1], [0], [0], [1], [0, 0, 1, 1], [], []>} : vector<256x768xbf16>, vector<768x768xbf16>, vector<256x768xf32> -> vector<256x768xf32>
    %c0_5 = arith.constant 0 : index
    %c0_6 = arith.constant 0 : index
    %8 = vector.load %arg1[%c0_5, %c0_6] : memref<256x256xbf16, #tpu.memory_space<vmem>>, vector<256x256xbf16>
    %9 = arith.truncf %7 : vector<256x768xf32> to vector<256x768xbf16>
    %cst_7 = arith.constant dense<0.000000e+00> : vector<256x768xf32>
    %10 = tpu.matmul %8, %9, %cst_7 {dimension_numbers = #tpu.dot_dimension_numbers<[1], [0], [0], [1], [0, 0, 1, 1], [], []>} : vector<256x256xbf16>, vector<256x768xbf16>, vector<256x768xf32> -> vector<256x768xf32>
    %c0_8 = arith.constant 0 : index
    %c0_9 = arith.constant 0 : index
    %c0_10 = arith.constant 0 : index
    %11 = vector.load %arg4[%c0_8, %c0_9, %c0_10] : memref<1x1x768xf32, #tpu.memory_space<vmem>>, vector<1x1x768xf32>
    %12 = vector.shape_cast %11 : vector<1x1x768xf32> to vector<1x768xf32>
    %13 = vector.broadcast %12 : vector<1x768xf32> to vector<256x768xf32>
    %14 = arith.addf %10, %13 : vector<256x768xf32>
    %15 = math.tanh %14 : vector<256x768xf32>
    %c0_11 = arith.constant 0 : index
    %c0_12 = arith.constant 0 : index
    %16 = vector.load %arg8[%c0_11, %c0_12] : memref<256x768xf32, #tpu.memory_space<vmem>>, vector<256x768xf32>
    tpu.vector_store %arg8[%c0_11, %c0_12], %15 {strides = array<i32>} : memref<256x768xf32, #tpu.memory_space<vmem>>, vector<256x768xf32>,
    %c2_i32 = arith.constant 2 : i32
    %17 = arith.cmpi eq, %arg0, %c2_i32 : i32
    %18 = arith.extui %17 : i1 to i32
    %c0_i32_13 = arith.constant 0 : i32
    %19 = arith.cmpi ne, %18, %c0_i32_13 : i32
    scf.if %19 {
      %20 = arith.truncf %15 : vector<256x768xf32> to vector<256x768xbf16>
      %c0_14 = arith.constant 0 : index
      %c0_15 = arith.constant 0 : index
      %21 = vector.load %arg5[%c0_14, %c0_15] : memref<768x256xbf16, #tpu.memory_space<vmem>>, vector<768x256xbf16>
      %cst_16 = arith.constant dense<0.000000e+00> : vector<256x256xf32>
      %22 = tpu.matmul %20, %21, %cst_16 {dimension_numbers = #tpu.dot_dimension_numbers<[1], [0], [0], [1], [0, 0, 1, 1], [], []>} : vector<256x768xbf16>, vector<768x256xbf16>, vector<256x256xf32> -> vector<256x256xf32>
      %23 = vector.extract_strided_slice %22 {offsets = [0, 0], sizes = [256, 128], strides = [1, 1]} : vector<256x256xf32> to vector<256x128xf32>
      %24 = vector.extract_strided_slice %22 {offsets = [0, 128], sizes = [256, 128], strides = [1, 1]} : vector<256x256xf32> to vector<256x128xf32>
      %c255_i32 = arith.constant 255 : i32
      %25 = tpu.dynamic_rotate %24 by %c255_i32 dim 0 : vector<256x128xf32>, i32 -> vector<256x128xf32>
      %26 = arith.addf %23, %25 : vector<256x128xf32>
      %c0_17 = arith.constant 0 : index
      %c0_18 = arith.constant 0 : index
      %27 = vector.load %arg6[%c0_17, %c0_18] : memref<1x128xf32, #tpu.memory_space<vmem>>, vector<1x128xf32>
      %28 = vector.broadcast %27 : vector<1x128xf32> to vector<256x128xf32>
      %29 = arith.addf %26, %28 : vector<256x128xf32>
      %c0_19 = arith.constant 0 : index
      %c0_20 = arith.constant 0 : index
      %30 = vector.load %arg7[%c0_19, %c0_20] : memref<256x128xf32, #tpu.memory_space<vmem>>, vector<256x128xf32>
      tpu.vector_store %arg7[%c0_19, %c0_20], %29 {strides = array<i32>} : memref<256x128xf32, #tpu.memory_space<vmem>>, vector<256x128xf32>,
    } else {
    }
    return
  }
  func.func @transform_0(%arg0: i32) -> (i32, i32) {
    %c0_i32 = arith.constant 0 : i32
    %c0_i32_0 = arith.constant 0 : i32
    %c0_i32_1 = arith.constant 0 : i32
    return %c0_i32, %c0_i32_0 : i32, i32
  }
  func.func @transform_1(%arg0: i32) -> (i32, i32) {
    %c0_i32 = arith.constant 0 : i32
    %c0_i32_0 = arith.constant 0 : i32
    %c0_i32_1 = arith.constant 0 : i32
    return %c0_i32, %c0_i32_0 : i32, i32
  }
  func.func @transform_2(%arg0: i32) -> (i32, i32, i32) {
    %c0_i32 = arith.constant 0 : i32
    %c0_i32_0 = arith.constant 0 : i32
    %c0_i32_1 = arith.constant 0 : i32
    return %arg0, %c0_i32, %c0_i32_0 : i32, i32, i32
  }
  func.func @transform_3(%arg0: i32) -> (i32, i32, i32) {
    %c0_i32 = arith.constant 0 : i32
    %c0_i32_0 = arith.constant 0 : i32
    %c0_i32_1 = arith.constant 0 : i32
    return %arg0, %c0_i32, %c0_i32_0 : i32, i32, i32
  }
  func.func @transform_4(%arg0: i32) -> (i32, i32) {
    %c0_i32 = arith.constant 0 : i32
    %c0_i32_0 = arith.constant 0 : i32
    %c0_i32_1 = arith.constant 0 : i32
    return %c0_i32, %c0_i32_0 : i32, i32
  }
  func.func @transform_5(%arg0: i32) -> (i32, i32) {
    %c0_i32 = arith.constant 0 : i32
    %c0_i32_0 = arith.constant 0 : i32
    %c0_i32_1 = arith.constant 0 : i32
    return %c0_i32, %c0_i32_0 : i32, i32
  }
  func.func @transform_6(%arg0: i32) -> (i32, i32) {
    %c0_i32 = arith.constant 0 : i32
    %c0_i32_0 = arith.constant 0 : i32
    %c0_i32_1 = arith.constant 0 : i32
    return %c0_i32, %c0_i32_0 : i32, i32
  }
}

</mosaic_0001>

<llo_original>
// kernel: tpu_custom_call.1
$region0: #{tpu_custom_call.1}
  #allocation0 [shape = 'u32[]', space=smem, size = 0x4, offset = 0x4, fixed_abs, tag = 'smem constant byte address 0x4 - core index']
  #allocation1 [shape = 'u32[144,128]{1,0:T(1,128)}', space=vmem, size = 0x12000, scoped, tag = 'internal scratch']
  #allocation2 [shape = 'f32[256,768]{1,0:T(8,128)}', space=vmem, size = 0xc0000, scoped, tag = 'scratch operand']
  %s0 = inlined_call_operand.hbm [shape: bf16[256,256], index: 0, kind: input, shape index: {}]
  %s1 = inlined_call_operand.hbm [shape: f32[256,768], index: 1, kind: input, shape index: {}]
  %s2 = inlined_call_operand.hbm [shape: bf16[3,768,768], index: 2, kind: input, shape index: {}]
  %s3 = inlined_call_operand.hbm [shape: f32[3,1,768], index: 3, kind: input, shape index: {}]
  %s4 = inlined_call_operand.hbm [shape: bf16[768,256], index: 4, kind: input, shape index: {}]
  %s5 = inlined_call_operand.hbm [shape: f32[1,128], index: 5, kind: input, shape index: {}]
  %s6 = inlined_call_operand.hbm [shape: f32[256,128], index: 6, kind: output, shape index: {}]
  %s7 = sld [smem:[#allocation0]]
  $region89: #{tpu_custom_call.1} parent=0
    _
  %s9 = ssub.s32 1, %s7
  %s10 = scalar_select 0, %s9, %s7
  $region1: #{tpu_custom_call.1} parent=0
    #allocation3 [shape = 'u8[131072]{0}', space=vmem, size = 0x20000, scoped, tag = 'input window, operand 0, single buffered']
    #allocation4 [shape = 's32[2]{0}', space=sflag, size = 0x8, scoped, tag = 'scoped memory for tpu_custom_call.1']
    #allocation5 [shape = 's32[2]{0}', space=sflag, size = 0x8, scoped, tag = 'scoped memory for tpu_custom_call.1']
    #allocation6 [shape = 'u8[786432]{0}', space=vmem, size = 0xc0000, scoped, tag = 'input window, operand 1, single buffered']
    #allocation7 [shape = 's32[1]{0}', space=sflag, size = 0x4, scoped, tag = 'scoped memory for tpu_custom_call.1']
    #allocation8 [shape = 'u8[2359296]{0}', space=vmem, size = 0x240000, scoped, tag = 'input window, operand 2']
    #allocation9 [shape = 'u8[6144]{0}', space=vmem, size = 0x1800, scoped, tag = 'input window, operand 3']
    #allocation10 [shape = 'u8[393216]{0}', space=vmem, size = 0x60000, scoped, tag = 'input window, operand 4, single buffered']
    #allocation11 [shape = 'u8[512]{0}', space=vmem, size = 0x400, scoped, tag = 'input window, operand 5, single buffered']
    #allocation12 [shape = 's32[1]{0}', space=sflag, size = 0x4, scoped, tag = 'scoped memory for tpu_custom_call.1']
    #allocation13 [shape = 'u8[131072]{0}', space=vmem, size = 0x20000, scoped, tag = 'output window, operand 0, single buffered']
    %11 = vsyncpa [#allocation4], 0
    %12 = vsyncpa [#allocation7], 0
    %13 = vsyncpa [#allocation12], 0
    %14 = vsyncpa [#allocation5], 0
    loop: start=0, step=1, limit=5
    $region2: #{tpu_custom_call.1} parent=1 // loop_pre_header
      _
    $region3: #{tpu_custom_call.1} parent=1 // loop_header
      %s16 = sphi 0, %s20
      %p17 = scmp.ge.s32.totalorder %s16, 5
      %s24 = sphi 0, %s24
      %s26 = sphi 0, %s24
      %s27 = sphi 0, %s26
      %s41 = sphi 0, %s27
      %s45 = sphi 0, %s45
      %s47 = sphi 0, %s45
      %s48 = sphi 0, %s47
      %s62 = sphi 0, %s48
      %s68 = sphi 0, %s70
      %s71 = sphi 0, %s68
      %s72 = sphi 0, %s71
      %s88 = sphi 0, %s72
      %s94 = sphi 0, %s96
      %s97 = sphi 0, %s94
      %s98 = sphi 0, %s97
      %s114 = sphi 0, %s98
      %s118 = sphi 0, %s118
      %s120 = sphi 0, %s118
      %s121 = sphi 0, %s120
      %s135 = sphi 0, %s121
      %s139 = sphi 0, %s139
      %s141 = sphi 0, %s139
      %s142 = sphi 0, %s141
      %s156 = sphi 0, %s142
      %s160 = sphi 0, %s160
      %s162 = sphi 0, %s160
      %s163 = sphi 0, %s162
      %s177 = sphi 0, %s163
    $region4: #{tpu_custom_call.1} parent=1 // loop_header_branch
      %19 = sbr.rel (%p17) target = $region8
    $region5: #{tpu_custom_call.1} parent=1 // loop_body
      %s21 = ssub.s32 %s16, 1
      %s22 = ssub.s32 %s16, 2
      %s23 = sadd.s32 %s16, 1
      %s25 = sadd.s32 %s24, 1
      %p28 = scmp.eq.s32.totalorder %s16, 2
      %p29 = scmp.ne.s32.totalorder %s24, %s26
      %p30 = scmp.eq.s32.totalorder %s16, 0
      %p31 = por %p29, %p30
      %p32 = scmp.ne.s32.totalorder %s24, %s26
      %p33 = scmp.eq.s32.totalorder %s21, 2
      %p34 = por %p32, %p33
      %p35 = scmp.ne.s32.totalorder %s26, %s27
      %p36 = scmp.eq.s32.totalorder %s21, 0
      %p37 = por %p35, %p36
      %p38 = scmp.ne.s32.totalorder %s26, %s27
      %p39 = scmp.eq.s32.totalorder %s22, 2
      %p40 = por %p38, %p39
      %p42 = scmp.ne.s32.totalorder %s27, %s41
      %p43 = scmp.eq.s32.totalorder %s22, 0
      %p44 = por %p42, %p43
      %s46 = sadd.s32 %s45, 1
      %p49 = scmp.eq.s32.totalorder %s16, 2
      %p50 = scmp.ne.s32.totalorder %s45, %s47
      %p51 = scmp.eq.s32.totalorder %s16, 0
      %p52 = por %p50, %p51
      %p53 = scmp.ne.s32.totalorder %s45, %s47
      %p54 = scmp.eq.s32.totalorder %s21, 2
      %p55 = por %p53, %p54
      %p56 = scmp.ne.s32.totalorder %s47, %s48
      %p57 = scmp.eq.s32.totalorder %s21, 0
      %p58 = por %p56, %p57
      %p59 = scmp.ne.s32.totalorder %s47, %s48
      %p60 = scmp.eq.s32.totalorder %s22, 2
      %p61 = por %p59, %p60
      %p63 = scmp.ne.s32.totalorder %s48, %s62
      %p64 = scmp.eq.s32.totalorder %s22, 0
      %p65 = por %p63, %p64
      %s66 = ssub.s32 %s16, %s23
      %p67 = scmp.eq.s32.totalorder %s66, 0
      %s69 = sadd.s32 %s68, 1
      %s70 = scalar_select %p67, %s68, %s69
      %p73 = pneg %p67
      %p74 = scmp.eq.s32.totalorder %s16, 2
      %p75 = por %p73, %p74
      %p76 = scmp.ne.s32.totalorder %s68, %s71
      %p77 = scmp.eq.s32.totalorder %s16, 0
      %p78 = por %p76, %p77
      %p79 = scmp.ne.s32.totalorder %s68, %s71
      %p80 = scmp.eq.s32.totalorder %s21, 2
      %p81 = por %p79, %p80
      %p82 = scmp.ne.s32.totalorder %s71, %s72
      %p83 = scmp.eq.s32.totalorder %s21, 0
      %p84 = por %p82, %p83
      %p85 = scmp.ne.s32.totalorder %s71, %s72
      %p86 = scmp.eq.s32.totalorder %s22, 2
      %p87 = por %p85, %p86
      %p89 = scmp.ne.s32.totalorder %s72, %s88
      %p90 = scmp.eq.s32.totalorder %s22, 0
      %p91 = por %p89, %p90
      %s92 = ssub.s32 %s16, %s23
      %p93 = scmp.eq.s32.totalorder %s92, 0
      %s95 = sadd.s32 %s94, 1
      %s96 = scalar_select %p93, %s94, %s95
      %p99 = pneg %p93
      %p100 = scmp.eq.s32.totalorder %s16, 2
      %p101 = por %p99, %p100
      %p102 = scmp.ne.s32.totalorder %s94, %s97
      %p103 = scmp.eq.s32.totalorder %s16, 0
      %p104 = por %p102, %p103
      %p105 = scmp.ne.s32.totalorder %s94, %s97
      %p106 = scmp.eq.s32.totalorder %s21, 2
      %p107 = por %p105, %p106
      %p108 = scmp.ne.s32.totalorder %s97, %s98
      %p109 = scmp.eq.s32.totalorder %s21, 0
      %p110 = por %p108, %p109
      %p111 = scmp.ne.s32.totalorder %s97, %s98
      %p112 = scmp.eq.s32.totalorder %s22, 2
      %p113 = por %p111, %p112
      %p115 = scmp.ne.s32.totalorder %s98, %s114
      %p116 = scmp.eq.s32.totalorder %s22, 0
      %p117 = por %p115, %p116
      %s119 = sadd.s32 %s118, 1
      %p122 = scmp.eq.s32.totalorder %s16, 2
      %p123 = scmp.ne.s32.totalorder %s118, %s120
      %p124 = scmp.eq.s32.totalorder %s16, 0
      %p125 = por %p123, %p124
      %p126 = scmp.ne.s32.totalorder %s118, %s120
      %p127 = scmp.eq.s32.totalorder %s21, 2
      %p128 = por %p126, %p127
      %p129 = scmp.ne.s32.totalorder %s120, %s121
      %p130 = scmp.eq.s32.totalorder %s21, 0
      %p131 = por %p129, %p130
      %p132 = scmp.ne.s32.totalorder %s120, %s121
      %p133 = scmp.eq.s32.totalorder %s22, 2
      %p134 = por %p132, %p133
      %p136 = scmp.ne.s32.totalorder %s121, %s135
      %p137 = scmp.eq.s32.totalorder %s22, 0
      %p138 = por %p136, %p137
      %s140 = sadd.s32 %s139, 1
      %p143 = scmp.eq.s32.totalorder %s16, 2
      %p144 = scmp.ne.s32.totalorder %s139, %s141
      %p145 = scmp.eq.s32.totalorder %s16, 0
      %p146 = por %p144, %p145
      %p147 = scmp.ne.s32.totalorder %s139, %s141
      %p148 = scmp.eq.s32.totalorder %s21, 2
      %p149 = por %p147, %p148
      %p150 = scmp.ne.s32.totalorder %s141, %s142
      %p151 = scmp.eq.s32.totalorder %s21, 0
      %p152 = por %p150, %p151
      %p153 = scmp.ne.s32.totalorder %s141, %s142
      %p154 = scmp.eq.s32.totalorder %s22, 2
      %p155 = por %p153, %p154
      %p157 = scmp.ne.s32.totalorder %s142, %s156
      %p158 = scmp.eq.s32.totalorder %s22, 0
      %p159 = por %p157, %p158
      %s161 = sadd.s32 %s160, 1
      %p164 = scmp.eq.s32.totalorder %s16, 2
      %p165 = scmp.ne.s32.totalorder %s160, %s162
      %p166 = scmp.eq.s32.totalorder %s16, 0
      %p167 = por %p165, %p166
      %p168 = scmp.ne.s32.totalorder %s160, %s162
      %p169 = scmp.eq.s32.totalorder %s21, 2
      %p170 = por %p168, %p169
      %p171 = scmp.ne.s32.totalorder %s162, %s163
      %p172 = scmp.eq.s32.totalorder %s21, 0
      %p173 = por %p171, %p172
      %p174 = scmp.ne.s32.totalorder %s162, %s163
      %p175 = scmp.eq.s32.totalorder %s22, 2
      %p176 = por %p174, %p175
      %p178 = scmp.ne.s32.totalorder %s163, %s177
      %p179 = scmp.eq.s32.totalorder %s22, 0
      %p180 = por %p178, %p179
      %p181 = scmp.le.s32.totalorder 1, %s16
      %p182 = scmp.lt.s32.totalorder %s16, 4
      %p183 = pnand %p181, %p182
      %p184 = pneg %p183
      // Predicated region
      $region9: #{tpu_custom_call.1} parent=5 // pred_check
        _
      $region10: #{tpu_custom_call.1} parent=5 // pred_check_branch
        %186 = sbr.rel (%p183) target = $region12
      $region11: #{tpu_custom_call.1} parent=5 // pred_region
        %s187 = ssub.s32 %s16, 1
        // Predicated region
        $region13: #{tpu_custom_call.1} parent=11 // pred_check
          %p188 = pneg %p37
        $region14: #{tpu_custom_call.1} parent=11 // pred_check_branch
          %190 = sbr.rel (%p188) target = $region16
        $region15: #{tpu_custom_call.1} parent=11 // pred_region
          %s192 = ssub.s32 4096, 4096
          %193 = vsyncadd [#allocation4], %s192
          %s194 = sshll.u32 [#allocation3], 4
          %s195 = int_to_ptr.vmem [resolvable:$true] %s194
          %200 = dma.hbm_to_vmem [thread:$0]  %s0, 4096, %s195, [#allocation4], 128, 128, 8
        $region16: #{tpu_custom_call.1} parent=11 // pred_fallthru
          _
        // Predicated region
        $region17: #{tpu_custom_call.1} parent=11 // pred_check
          %p201 = pneg %p58
        $region18: #{tpu_custom_call.1} parent=11 // pred_check_branch
          %203 = sbr.rel (%p201) target = $region20
        $region19: #{tpu_custom_call.1} parent=11 // pred_region
          %s205 = ssub.s32 24576, 24576
          %206 = vsyncadd [#allocation7], %s205
          %s207 = sshll.u32 [#allocation6], 4
          %s208 = int_to_ptr.vmem [resolvable:$true] %s207
          %213 = dma.hbm_to_vmem [thread:$0]  %s1, 24576, %s208, [#allocation7], 768, 768, 48
        $region20: #{tpu_custom_call.1} parent=11 // pred_fallthru
          _
        // Predicated region
        $region21: #{tpu_custom_call.1} parent=11 // pred_check
          %p214 = pneg %p131
        $region22: #{tpu_custom_call.1} parent=11 // pred_check_branch
          %216 = sbr.rel (%p214) target = $region24
        $region23: #{tpu_custom_call.1} parent=11 // pred_region
          %s218 = ssub.s32 12288, 12288
          %219 = vsyncadd [#allocation7], %s218
          %s220 = sshll.u32 [#allocation10], 4
          %s221 = int_to_ptr.vmem [resolvable:$true] %s220
          %226 = dma.hbm_to_vmem [thread:$0]  %s4, 12288, %s221, [#allocation7], 128, 128, 8
        $region24: #{tpu_custom_call.1} parent=11 // pred_fallthru
          _
        // Predicated region
        $region25: #{tpu_custom_call.1} parent=11 // pred_check
          %p227 = pneg %p152
        $region26: #{tpu_custom_call.1} parent=11 // pred_check_branch
          %229 = sbr.rel (%p227) target = $region28
        $region27: #{tpu_custom_call.1} parent=11 // pred_region
          %s231 = ssub.s32 16, 16
          %232 = vsyncadd [#allocation12], %s231
          %s234 = sshll.u32 [#allocation11], 4
          %s235 = int_to_ptr.vmem [resolvable:$true] %s234
          %237 = dma.hbm_to_vmem [thread:$0]  %s5, 16, %s235, [#allocation12]
        $region28: #{tpu_custom_call.1} parent=11 // pred_fallthru
          _
      $region12: #{tpu_custom_call.1} parent=5 // pred_fallthru
        _
      %p238 = scmp.lt.s32.totalorder %s16, 3
      // Predicated region
      $region29: #{tpu_custom_call.1} parent=5 // pred_check
        %p239 = pneg %p238
      $region30: #{tpu_custom_call.1} parent=5 // pred_check_branch
        %241 = sbr.rel (%p239) target = $region32
      $region31: #{tpu_custom_call.1} parent=5 // pred_region
        // Predicated region
        $region33: #{tpu_custom_call.1} parent=31 // pred_check
          %p242 = pneg %p78
        $region34: #{tpu_custom_call.1} parent=31 // pred_check_branch
          %244 = sbr.rel (%p242) target = $region36
        $region35: #{tpu_custom_call.1} parent=31 // pred_region
          %s245 = sand.u32 %s16, 1
          %s246 = scalar_lea.sflag [#allocation4], %s245
          %s247 = sand.u32 %s68, 1
          %s248 = smul.addr %s247, 2304
          %s249 = scalar_lea.vmem [#allocation8], %s248
          %s251 = ssub.s32 36864, 36864
          %252 = vsyncadd %s246, %s251
          %s253 = smul.addr %s16, 576
          %s254 = smul.addr %s253, 64
          %s255 = scalar_lea.hbm %s2, %s254
          %s256 = sshll.u32 %s249, 4
          %s257 = int_to_ptr.vmem [resolvable:$true] %s256
          %262 = dma.hbm_to_vmem [thread:$0]  %s255, 36864, %s257, %s246, 384, 384, 24
        $region36: #{tpu_custom_call.1} parent=31 // pred_fallthru
          _
        // Predicated region
        $region37: #{tpu_custom_call.1} parent=31 // pred_check
          %p263 = pneg %p104
        $region38: #{tpu_custom_call.1} parent=31 // pred_check_branch
          %265 = sbr.rel (%p263) target = $region40
        $region39: #{tpu_custom_call.1} parent=31 // pred_region
          %s266 = sand.u32 %s16, 1
          %s267 = scalar_lea.sflag [#allocation4], %s266
          %s268 = sand.u32 %s94, 1
          %s269 = smul.addr %s268, 6
          %s270 = scalar_lea.vmem [#allocation9], %s269
          %s272 = ssub.s32 96, 96
          %273 = vsyncadd %s267, %s272
          %s274 = smul.addr %s16, 6
          %s275 = smul.addr %s274, 16
          %s276 = scalar_lea.hbm %s3, %s275
          %s278 = sshll.u32 %s270, 4
          %s279 = int_to_ptr.vmem [resolvable:$true] %s278
          %281 = dma.hbm_to_vmem [thread:$0]  %s276, 96, %s279, %s267
        $region40: #{tpu_custom_call.1} parent=31 // pred_fallthru
          _
      $region32: #{tpu_custom_call.1} parent=5 // pred_fallthru
        _
      %p282 = scmp.le.s32.totalorder 1, %s16
      %p283 = scmp.lt.s32.totalorder %s16, 4
      %p284 = pnand %p282, %p283
      %p285 = pneg %p284
      // Predicated region
      $region41: #{tpu_custom_call.1} parent=5 // pred_check
        _
      $region42: #{tpu_custom_call.1} parent=5 // pred_check_branch
        %287 = sbr.rel (%p284) target = $region44
      $region43: #{tpu_custom_call.1} parent=5 // pred_region
        %s288 = ssub.s32 %s16, 1
        // Predicated region
        $region45: #{tpu_custom_call.1} parent=43 // pred_check
          %p289 = pneg %p37
        $region46: #{tpu_custom_call.1} parent=43 // pred_check_branch
          %291 = sbr.rel (%p289) target = $region48
        $region47: #{tpu_custom_call.1} parent=43 // pred_region
          %292 = dma.done [#allocation4], 4096
        $region48: #{tpu_custom_call.1} parent=43 // pred_fallthru
          _
        // Predicated region
        $region49: #{tpu_custom_call.1} parent=43 // pred_check
          %p293 = pneg %p58
        $region50: #{tpu_custom_call.1} parent=43 // pred_check_branch
          %295 = sbr.rel (%p293) target = $region52
        $region51: #{tpu_custom_call.1} parent=43 // pred_region
          %296 = dma.done [#allocation7], 24576
        $region52: #{tpu_custom_call.1} parent=43 // pred_fallthru
          _
        %s297 = sand.u32 %s21, 1
        %s298 = scalar_lea.sflag [#allocation4], %s297
        %s299 = sand.u32 %s71, 1
        %s300 = smul.addr %s299, 2304
        %s301 = scalar_lea.vmem [#allocation8], %s300
        // Predicated region
        $region53: #{tpu_custom_call.1} parent=43 // pred_check
          %p302 = pneg %p84
        $region54: #{tpu_custom_call.1} parent=43 // pred_check_branch
          %304 = sbr.rel (%p302) target = $region56
        $region55: #{tpu_custom_call.1} parent=43 // pred_region
          %305 = dma.done %s298, 36864
        $region56: #{tpu_custom_call.1} parent=43 // pred_fallthru
          _
        %s306 = sand.u32 %s21, 1
        %s307 = scalar_lea.sflag [#allocation4], %s306
        %s308 = sand.u32 %s97, 1
        %s309 = smul.addr %s308, 6
        %s310 = scalar_lea.vmem [#allocation9], %s309
        // Predicated region
        $region57: #{tpu_custom_call.1} parent=43 // pred_check
          %p311 = pneg %p110
        $region58: #{tpu_custom_call.1} parent=43 // pred_check_branch
          %313 = sbr.rel (%p311) target = $region60
        $region59: #{tpu_custom_call.1} parent=43 // pred_region
          %314 = dma.done %s307, 96
        $region60: #{tpu_custom_call.1} parent=43 // pred_fallthru
          _
        // Predicated region
        $region61: #{tpu_custom_call.1} parent=43 // pred_check
          %p315 = pneg %p131
        $region62: #{tpu_custom_call.1} parent=43 // pred_check_branch
          %317 = sbr.rel (%p315) target = $region64
        $region63: #{tpu_custom_call.1} parent=43 // pred_region
          %318 = dma.done [#allocation7], 12288
        $region64: #{tpu_custom_call.1} parent=43 // pred_fallthru
          _
        // Predicated region
        $region65: #{tpu_custom_call.1} parent=43 // pred_check
          %p319 = pneg %p152
        $region66: #{tpu_custom_call.1} parent=43 // pred_check_branch
          %321 = sbr.rel (%p319) target = $region68
        $region67: #{tpu_custom_call.1} parent=43 // pred_region
          %322 = dma.done [#allocation12], 16
        $region68: #{tpu_custom_call.1} parent=43 // pred_fallthru
          _
        %p323 = pneg %p37
        %p324 = pneg %p34
        %p325 = pneg %p58
        %p326 = pneg %p55
        %s327 = sand.u32 %s21, 1
        %s328 = scalar_lea.sflag [#allocation4], %s327
        %s329 = sand.u32 %s71, 1
        %s330 = smul.addr %s329, 2304
        %s331 = scalar_lea.vmem [#allocation8], %s330
        %p332 = pneg %p84
        %p333 = pneg %p81
        %s334 = sand.u32 %s21, 1
        %s335 = scalar_lea.sflag [#allocation4], %s334
        %s336 = sand.u32 %s97, 1
        %s337 = smul.addr %s336, 6
        %s338 = scalar_lea.vmem [#allocation9], %s337
        %p339 = pneg %p110
        %p340 = pneg %p107
        %p341 = pneg %p131
        %p342 = pneg %p128
        %p343 = pneg %p152
        %p344 = pneg %p149
        %p345 = pneg %p173
        %p346 = pneg %p170
        %p347 = scmp.eq.s32.totalorder %s21, 0
        // Predicated region
        $region69: #{tpu_custom_call.1} parent=43 // pred_check
          %p348 = pneg %p347
        $region70: #{tpu_custom_call.1} parent=43 // pred_check_branch
          %350 = sbr.rel (%p348) target = $region72
        $region71: #{tpu_custom_call.1} parent=43 // pred_region
          %v351 = vld [vmem:[#allocation6] sm:$0xff]
          %v352 = vld [vmem:[#allocation6 + $0x8] sm:$0xff]
          %v353 = vld [vmem:[#allocation6 + $0x10] sm:$0xff]
          %v354 = vld [vmem:[#allocation6 + $0x18] sm:$0xff]
          %v355 = vld [vmem:[#allocation6 + $0x20] sm:$0xff]
          %v356 = vld [vmem:[#allocation6 + $0x28] sm:$0xff]
          %v357 = vld [vmem:[#allocation6 + $0x30] sm:$0xff]
          %v358 = vld [vmem:[#allocation6 + $0x38] sm:$0xff]
          %v359 = vld [vmem:[#allocation6 + $0x40] sm:$0xff]
          %v360 = vld [vmem:[#allocation6 + $0x48] sm:$0xff]
          %v361 = vld [vmem:[#allocation6 + $0x50] sm:$0xff]
          %v362 = vld [vmem:[#allocation6 + $0x58] sm:$0xff]
          %v363 = vld [vmem:[#allocation6 + $0x60] sm:$0xff]
          %v364 = vld [vmem:[#allocation6 + $0x68] sm:$0xff]
          %v365 = vld [vmem:[#allocation6 + $0x70] sm:$0xff]
          %v366 = vld [vmem:[#allocation6 + $0x78] sm:$0xff]
          %v367 = vld [vmem:[#allocation6 + $0x80] sm:$0xff]
          %v368 = vld [vmem:[#allocation6 + $0x88] sm:$0xff]
          %v369 = vld [vmem:[#allocation6 + $0x90] sm:$0xff]
          %v370 = vld [vmem:[#allocation6 + $0x98] sm:$0xff]
          %v371 = vld [vmem:[#allocation6 + $0xa0] sm:$0xff]
          %v372 = vld [vmem:[#allocation6 + $0xa8] sm:$0xff]
          %v373 = vld [vmem:[#allocation6 + $0xb0] sm:$0xff]
          %v374 = vld [vmem:[#allocation6 + $0xb8] sm:$0xff]
          %v375 = vld [vmem:[#allocation6 + $0xc0] sm:$0xff]
          %v376 = vld [vmem:[#allocation6 + $0xc8] sm:$0xff]
          %v377 = vld [vmem:[#allocation6 + $0xd0] sm:$0xff]
          %v378 = vld [vmem:[#allocation6 + $0xd8] sm:$0xff]
          %v379 = vld [vmem:[#allocation6 + $0xe0] sm:$0xff]
          %v380 = vld [vmem:[#allocation6 + $0xe8] sm:$0xff]
          %v381 = vld [vmem:[#allocation6 + $0xf0] sm:$0xff]
          %v382 = vld [vmem:[#allocation6 + $0xf8] sm:$0xff]
          %v383 = vld [vmem:[#allocation6 + $0x100] sm:$0xff]
          %v384 = vld [vmem:[#allocation6 + $0x108] sm:$0xff]
          %v385 = vld [vmem:[#allocation6 + $0x110] sm:$0xff]
          %v386 = vld [vmem:[#allocation6 + $0x118] sm:$0xff]
          %v387 = vld [vmem:[#allocation6 + $0x120] sm:$0xff]
          %v388 = vld [vmem:[#allocation6 + $0x128] sm:$0xff]
          %v389 = vld [vmem:[#allocation6 + $0x130] sm:$0xff]
          %v390 = vld [vmem:[#allocation6 + $0x138] sm:$0xff]
          %v391 = vld [vmem:[#allocation6 + $0x140] sm:$0xff]
          %v392 = vld [vmem:[#allocation6 + $0x148] sm:$0xff]
          %v393 = vld [vmem:[#allocation6 + $0x150] sm:$0xff]
          %v394 = vld [vmem:[#allocation6 + $0x158] sm:$0xff]
          %v395 = vld [vmem:[#allocation6 + $0x160] sm:$0xff]
          %v396 = vld [vmem:[#allocation6 + $0x168] sm:$0xff]
          %v397 = vld [vmem:[#allocation6 + $0x170] sm:$0xff]
          %v398 = vld [vmem:[#allocation6 + $0x178] sm:$0xff]
          %v399 = vld [vmem:[#allocation6 + $0x180] sm:$0xff]
          %v400 = vld [vmem:[#allocation6 + $0x188] sm:$0xff]
          %v401 = vld [vmem:[#allocation6 + $0x190] sm:$0xff]
          %v402 = vld [vmem:[#allocation6 + $0x198] sm:$0xff]
          %v403 = vld [vmem:[#allocation6 + $0x1a0] sm:$0xff]
          %v404 = vld [vmem:[#allocation6 + $0x1a8] sm:$0xff]
          %v405 = vld [vmem:[#allocation6 + $0x1b0] sm:$0xff]
          %v406 = vld [vmem:[#allocation6 + $0x1b8] sm:$0xff]
          %v407 = vld [vmem:[#allocation6 + $0x1c0] sm:$0xff]
          %v408 = vld [vmem:[#allocation6 + $0x1c8] sm:$0xff]
          %v409 = vld [vmem:[#allocation6 + $0x1d0] sm:$0xff]
          %v410 = vld [vmem:[#allocation6 + $0x1d8] sm:$0xff]
          %v411 = vld [vmem:[#allocation6 + $0x1e0] sm:$0xff]
          %v412 = vld [vmem:[#allocation6 + $0x1e8] sm:$0xff]
          %v413 = vld [vmem:[#allocation6 + $0x1f0] sm:$0xff]
          %v414 = vld [vmem:[#allocation6 + $0x1f8] sm:$0xff]
          %v415 = vld [vmem:[#allocation6 + $0x200] sm:$0xff]
          %v416 = vld [vmem:[#allocation6 + $0x208] sm:$0xff]
          %v417 = vld [vmem:[#allocation6 + $0x210] sm:$0xff]
          %v418 = vld [vmem:[#allocation6 + $0x218] sm:$0xff]
          %v419 = vld [vmem:[#allocation6 + $0x220] sm:$0xff]
          %v420 = vld [vmem:[#allocation6 + $0x228] sm:$0xff]
          %v421 = vld [vmem:[#allocation6 + $0x230] sm:$0xff]
          %v422 = vld [vmem:[#allocation6 + $0x238] sm:$0xff]
          %v423 = vld [vmem:[#allocation6 + $0x240] sm:$0xff]
          %v424 = vld [vmem:[#allocation6 + $0x248] sm:$0xff]
          %v425 = vld [vmem:[#allocation6 + $0x250] sm:$0xff]
          %v426 = vld [vmem:[#allocation6 + $0x258] sm:$0xff]
          %v427 = vld [vmem:[#allocation6 + $0x260] sm:$0xff]
          %v428 = vld [vmem:[#allocation6 + $0x268] sm:$0xff]
          %v429 = vld [vmem:[#allocation6 + $0x270] sm:$0xff]
          %v430 = vld [vmem:[#allocation6 + $0x278] sm:$0xff]
          %v431 = vld [vmem:[#allocation6 + $0x280] sm:$0xff]
          %v432 = vld [vmem:[#allocation6 + $0x288] sm:$0xff]
          %v433 = vld [vmem:[#allocation6 + $0x290] sm:$0xff]
          %v434 = vld [vmem:[#allocation6 + $0x298] sm:$0xff]
          %v435 = vld [vmem:[#allocation6 + $0x2a0] sm:$0xff]
          %v436 = vld [vmem:[#allocation6 + $0x2a8] sm:$0xff]
          %v437 = vld [vmem:[#allocation6 + $0x2b0] sm:$0xff]
          %v438 = vld [vmem:[#allocation6 + $0x2b8] sm:$0xff]
          %v439 = vld [vmem:[#allocation6 + $0x2c0] sm:$0xff]
          %v440 = vld [vmem:[#allocation6 + $0x2c8] sm:$0xff]
          %v441 = vld [vmem:[#allocation6 + $0x2d0] sm:$0xff]
          %v442 = vld [vmem:[#allocation6 + $0x2d8] sm:$0xff]
          %v443 = vld [vmem:[#allocation6 + $0x2e0] sm:$0xff]
          %v444 = vld [vmem:[#allocation6 + $0x2e8] sm:$0xff]
          %v445 = vld [vmem:[#allocation6 + $0x2f0] sm:$0xff]
          %v446 = vld [vmem:[#allocation6 + $0x2f8] sm:$0xff]
          %v447 = vld [vmem:[#allocation6 + $0x300] sm:$0xff]
          %v448 = vld [vmem:[#allocation6 + $0x308] sm:$0xff]
          %v449 = vld [vmem:[#allocation6 + $0x310] sm:$0xff]
          %v450 = vld [vmem:[#allocation6 + $0x318] sm:$0xff]
          %v451 = vld [vmem:[#allocation6 + $0x320] sm:$0xff]
          %v452 = vld [vmem:[#allocation6 + $0x328] sm:$0xff]
          %v453 = vld [vmem:[#allocation6 + $0x330] sm:$0xff]
          %v454 = vld [vmem:[#allocation6 + $0x338] sm:$0xff]
          %v455 = vld [vmem:[#allocation6 + $0x340] sm:$0xff]
          %v456 = vld [vmem:[#allocation6 + $0x348] sm:$0xff]
          %v457 = vld [vmem:[#allocation6 + $0x350] sm:$0xff]
          %v458 = vld [vmem:[#allocation6 + $0x358] sm:$0xff]
          %v459 = vld [vmem:[#allocation6 + $0x360] sm:$0xff]
          %v460 = vld [vmem:[#allocation6 + $0x368] sm:$0xff]
          %v461 = vld [vmem:[#allocation6 + $0x370] sm:$0xff]
          %v462 = vld [vmem:[#allocation6 + $0x378] sm:$0xff]
          %v463 = vld [vmem:[#allocation6 + $0x380] sm:$0xff]
          %v464 = vld [vmem:[#allocation6 + $0x388] sm:$0xff]
          %v465 = vld [vmem:[#allocation6 + $0x390] sm:$0xff]
          %v466 = vld [vmem:[#allocation6 + $0x398] sm:$0xff]
          %v467 = vld [vmem:[#allocation6 + $0x3a0] sm:$0xff]
          %v468 = vld [vmem:[#allocation6 + $0x3a8] sm:$0xff]
          %v469 = vld [vmem:[#allocation6 + $0x3b0] sm:$0xff]
          %v470 = vld [vmem:[#allocation6 + $0x3b8] sm:$0xff]
          %v471 = vld [vmem:[#allocation6 + $0x3c0] sm:$0xff]
          %v472 = vld [vmem:[#allocation6 + $0x3c8] sm:$0xff]
          %v473 = vld [vmem:[#allocation6 + $0x3d0] sm:$0xff]
          %v474 = vld [vmem:[#allocation6 + $0x3d8] sm:$0xff]
          %v475 = vld [vmem:[#allocation6 + $0x3e0] sm:$0xff]
          %v476 = vld [vmem:[#allocation6 + $0x3e8] sm:$0xff]
          %v477 = vld [vmem:[#allocation6 + $0x3f0] sm:$0xff]
          %v478 = vld [vmem:[#allocation6 + $0x3f8] sm:$0xff]
          %v479 = vld [vmem:[#allocation6 + $0x400] sm:$0xff]
          %v480 = vld [vmem:[#allocation6 + $0x408] sm:$0xff]
          %v481 = vld [vmem:[#allocation6 + $0x410] sm:$0xff]
          %v482 = vld [vmem:[#allocation6 + $0x418] sm:$0xff]
          %v483 = vld [vmem:[#allocation6 + $0x420] sm:$0xff]
          %v484 = vld [vmem:[#allocation6 + $0x428] sm:$0xff]
          %v485 = vld [vmem:[#allocation6 + $0x430] sm:$0xff]
          %v486 = vld [vmem:[#allocation6 + $0x438] sm:$0xff]
          %v487 = vld [vmem:[#allocation6 + $0x440] sm:$0xff]
          %v488 = vld [vmem:[#allocation6 + $0x448] sm:$0xff]
          %v489 = vld [vmem:[#allocation6 + $0x450] sm:$0xff]
          %v490 = vld [vmem:[#allocation6 + $0x458] sm:$0xff]
          %v491 = vld [vmem:[#allocation6 + $0x460] sm:$0xff]
          %v492 = vld [vmem:[#allocation6 + $0x468] sm:$0xff]
          %v493 = vld [vmem:[#allocation6 + $0x470] sm:$0xff]
          %v494 = vld [vmem:[#allocation6 + $0x478] sm:$0xff]
          %v495 = vld [vmem:[#allocation6 + $0x480] sm:$0xff]
          %v496 = vld [vmem:[#allocation6 + $0x488] sm:$0xff]
          %v497 = vld [vmem:[#allocation6 + $0x490] sm:$0xff]
          %v498 = vld [vmem:[#allocation6 + $0x498] sm:$0xff]
          %v499 = vld [vmem:[#allocation6 + $0x4a0] sm:$0xff]
          %v500 = vld [vmem:[#allocation6 + $0x4a8] sm:$0xff]
          %v501 = vld [vmem:[#allocation6 + $0x4b0] sm:$0xff]
          %v502 = vld [vmem:[#allocation6 + $0x4b8] sm:$0xff]
          %v503 = vld [vmem:[#allocation6 + $0x4c0] sm:$0xff]
          %v504 = vld [vmem:[#allocation6 + $0x4c8] sm:$0xff]
          %v505 = vld [vmem:[#allocation6 + $0x4d0] sm:$0xff]
          %v506 = vld [vmem:[#allocation6 + $0x4d8] sm:$0xff]
          %v507 = vld [vmem:[#allocation6 + $0x4e0] sm:$0xff]
          %v508 = vld [vmem:[#allocation6 + $0x4e8] sm:$0xff]
          %v509 = vld [vmem:[#allocation6 + $0x4f0] sm:$0xff]
          %v510 = vld [vmem:[#allocation6 + $0x4f8] sm:$0xff]
          %v511 = vld [vmem:[#allocation6 + $0x500] sm:$0xff]
          %v512 = vld [vmem:[#allocation6 + $0x508] sm:$0xff]
          %v513 = vld [vmem:[#allocation6 + $0x510] sm:$0xff]
          %v514 = vld [vmem:[#allocation6 + $0x518] sm:$0xff]
          %v515 = vld [vmem:[#allocation6 + $0x520] sm:$0xff]
          %v516 = vld [vmem:[#allocation6 + $0x528] sm:$0xff]
          %v517 = vld [vmem:[#allocation6 + $0x530] sm:$0xff]
          %v518 = vld [vmem:[#allocation6 + $0x538] sm:$0xff]
          %v519 = vld [vmem:[#allocation6 + $0x540] sm:$0xff]
          %v520 = vld [vmem:[#allocation6 + $0x548] sm:$0xff]
          %v521 = vld [vmem:[#allocation6 + $0x550] sm:$0xff]
          %v522 = vld [vmem:[#allocation6 + $0x558] sm:$0xff]
          %v523 = vld [vmem:[#allocation6 + $0x560] sm:$0xff]
          %v524 = vld [vmem:[#allocation6 + $0x568] sm:$0xff]
          %v525 = vld [vmem:[#allocation6 + $0x570] sm:$0xff]
          %v526 = vld [vmem:[#allocation6 + $0x578] sm:$0xff]
          %v527 = vld [vmem:[#allocation6 + $0x580] sm:$0xff]
          %v528 = vld [vmem:[#allocation6 + $0x588] sm:$0xff]
          %v529 = vld [vmem:[#allocation6 + $0x590] sm:$0xff]
          %v530 = vld [vmem:[#allocation6 + $0x598] sm:$0xff]
          %v531 = vld [vmem:[#allocation6 + $0x5a0] sm:$0xff]
          %v532 = vld [vmem:[#allocation6 + $0x5a8] sm:$0xff]
          %v533 = vld [vmem:[#allocation6 + $0x5b0] sm:$0xff]
          %v534 = vld [vmem:[#allocation6 + $0x5b8] sm:$0xff]
          %v535 = vld [vmem:[#allocation6 + $0x5c0] sm:$0xff]
          %v536 = vld [vmem:[#allocation6 + $0x5c8] sm:$0xff]
          %v537 = vld [vmem:[#allocation6 + $0x5d0] sm:$0xff]
          %v538 = vld [vmem:[#allocation6 + $0x5d8] sm:$0xff]
          %v539 = vld [vmem:[#allocation6 + $0x5e0] sm:$0xff]
          %v540 = vld [vmem:[#allocation6 + $0x5e8] sm:$0xff]
          %v541 = vld [vmem:[#allocation6 + $0x5f0] sm:$0xff]
          %v542 = vld [vmem:[#allocation6 + $0x5f8] sm:$0xff]
          %543 = vst [vmem:[#allocation2] sm:$0xff] %v351
          %544 = vst [vmem:[#allocation2 + $0x8] sm:$0xff] %v352
          %545 = vst [vmem:[#allocation2 + $0x10] sm:$0xff] %v353
          %546 = vst [vmem:[#allocation2 + $0x18] sm:$0xff] %v354
          %547 = vst [vmem:[#allocation2 + $0x20] sm:$0xff] %v355
          %548 = vst [vmem:[#allocation2 + $0x28] sm:$0xff] %v356
          %549 = vst [vmem:[#allocation2 + $0x30] sm:$0xff] %v357
          %550 = vst [vmem:[#allocation2 + $0x38] sm:$0xff] %v358
          %551 = vst [vmem:[#allocation2 + $0x40] sm:$0xff] %v359
          %552 = vst [vmem:[#allocation2 + $0x48] sm:$0xff] %v360
          %553 = vst [vmem:[#allocation2 + $0x50] sm:$0xff] %v361
          %554 = vst [vmem:[#allocation2 + $0x58] sm:$0xff] %v362
          %555 = vst [vmem:[#allocation2 + $0x60] sm:$0xff] %v363
          %556 = vst [vmem:[#allocation2 + $0x68] sm:$0xff] %v364
          %557 = vst [vmem:[#allocation2 + $0x70] sm:$0xff] %v365
          %558 = vst [vmem:[#allocation2 + $0x78] sm:$0xff] %v366
          %559 = vst [vmem:[#allocation2 + $0x80] sm:$0xff] %v367
          %560 = vst [vmem:[#allocation2 + $0x88] sm:$0xff] %v368
          %561 = vst [vmem:[#allocation2 + $0x90] sm:$0xff] %v369
          %562 = vst [vmem:[#allocation2 + $0x98] sm:$0xff] %v370
          %563 = vst [vmem:[#allocation2 + $0xa0] sm:$0xff] %v371
          %564 = vst [vmem:[#allocation2 + $0xa8] sm:$0xff] %v372
          %565 = vst [vmem:[#allocation2 + $0xb0] sm:$0xff] %v373
          %566 = vst [vmem:[#allocation2 + $0xb8] sm:$0xff] %v374
          %567 = vst [vmem:[#allocation2 + $0xc0] sm:$0xff] %v375
          %568 = vst [vmem:[#allocation2 + $0xc8] sm:$0xff] %v376
          %569 = vst [vmem:[#allocation2 + $0xd0] sm:$0xff] %v377
          %570 = vst [vmem:[#allocation2 + $0xd8] sm:$0xff] %v378
          %571 = vst [vmem:[#allocation2 + $0xe0] sm:$0xff] %v379
          %572 = vst [vmem:[#allocation2 + $0xe8] sm:$0xff] %v380
          %573 = vst [vmem:[#allocation2 + $0xf0] sm:$0xff] %v381
          %574 = vst [vmem:[#allocation2 + $0xf8] sm:$0xff] %v382
          %575 = vst [vmem:[#allocation2 + $0x100] sm:$0xff] %v383
          %576 = vst [vmem:[#allocation2 + $0x108] sm:$0xff] %v384
          %577 = vst [vmem:[#allocation2 + $0x110] sm:$0xff] %v385
          %578 = vst [vmem:[#allocation2 + $0x118] sm:$0xff] %v386
          %579 = vst [vmem:[#allocation2 + $0x120] sm:$0xff] %v387
          %580 = vst [vmem:[#allocation2 + $0x128] sm:$0xff] %v388
          %581 = vst [vmem:[#allocation2 + $0x130] sm:$0xff] %v389
          %582 = vst [vmem:[#allocation2 + $0x138] sm:$0xff] %v390
          %583 = vst [vmem:[#allocation2 + $0x140] sm:$0xff] %v391
          %584 = vst [vmem:[#allocation2 + $0x148] sm:$0xff] %v392
          %585 = vst [vmem:[#allocation2 + $0x150] sm:$0xff] %v393
          %586 = vst [vmem:[#allocation2 + $0x158] sm:$0xff] %v394
          %587 = vst [vmem:[#allocation2 + $0x160] sm:$0xff] %v395
          %588 = vst [vmem:[#allocation2 + $0x168] sm:$0xff] %v396
          %589 = vst [vmem:[#allocation2 + $0x170] sm:$0xff] %v397
          %590 = vst [vmem:[#allocation2 + $0x178] sm:$0xff] %v398
          %591 = vst [vmem:[#allocation2 + $0x180] sm:$0xff] %v399
          %592 = vst [vmem:[#allocation2 + $0x188] sm:$0xff] %v400
          %593 = vst [vmem:[#allocation2 + $0x190] sm:$0xff] %v401
          %594 = vst [vmem:[#allocation2 + $0x198] sm:$0xff] %v402
          %595 = vst [vmem:[#allocation2 + $0x1a0] sm:$0xff] %v403
          %596 = vst [vmem:[#allocation2 + $0x1a8] sm:$0xff] %v404
          %597 = vst [vmem:[#allocation2 + $0x1b0] sm:$0xff] %v405
          %598 = vst [vmem:[#allocation2 + $0x1b8] sm:$0xff] %v406
          %599 = vst [vmem:[#allocation2 + $0x1c0] sm:$0xff] %v407
          %600 = vst [vmem:[#allocation2 + $0x1c8] sm:$0xff] %v408
          %601 = vst [vmem:[#allocation2 + $0x1d0] sm:$0xff] %v409
          %602 = vst [vmem:[#allocation2 + $0x1d8] sm:$0xff] %v410
          %603 = vst [vmem:[#allocation2 + $0x1e0] sm:$0xff] %v411
          %604 = vst [vmem:[#allocation2 + $0x1e8] sm:$0xff] %v412
          %605 = vst [vmem:[#allocation2 + $0x1f0] sm:$0xff] %v413
          %606 = vst [vmem:[#allocation2 + $0x1f8] sm:$0xff] %v414
          %607 = vst [vmem:[#allocation2 + $0x200] sm:$0xff] %v415
          %608 = vst [vmem:[#allocation2 + $0x208] sm:$0xff] %v416
          %609 = vst [vmem:[#allocation2 + $0x210] sm:$0xff] %v417
          %610 = vst [vmem:[#allocation2 + $0x218] sm:$0xff] %v418
          %611 = vst [vmem:[#allocation2 + $0x220] sm:$0xff] %v419
          %612 = vst [vmem:[#allocation2 + $0x228] sm:$0xff] %v420
          %613 = vst [vmem:[#allocation2 + $0x230] sm:$0xff] %v421
          %614 = vst [vmem:[#allocation2 + $0x238] sm:$0xff] %v422
          %615 = vst [vmem:[#allocation2 + $0x240] sm:$0xff] %v423
          %616 = vst [vmem:[#allocation2 + $0x248] sm:$0xff] %v424
          %617 = vst [vmem:[#allocation2 + $0x250] sm:$0xff] %v425
          %618 = vst [vmem:[#allocation2 + $0x258] sm:$0xff] %v426
          %619 = vst [vmem:[#allocation2 + $0x260] sm:$0xff] %v427
          %620 = vst [vmem:[#allocation2 + $0x268] sm:$0xff] %v428
          %621 = vst [vmem:[#allocation2 + $0x270] sm:$0xff] %v429
          %622 = vst [vmem:[#allocation2 + $0x278] sm:$0xff] %v430
          %623 = vst [vmem:[#allocation2 + $0x280] sm:$0xff] %v431
          %624 = vst [vmem:[#allocation2 + $0x288] sm:$0xff] %v432
          %625 = vst [vmem:[#allocation2 + $0x290] sm:$0xff] %v433
          %626 = vst [vmem:[#allocation2 + $0x298] sm:$0xff] %v434
          %627 = vst [vmem:[#allocation2 + $0x2a0] sm:$0xff] %v435
          %628 = vst [vmem:[#allocation2 + $0x2a8] sm:$0xff] %v436
          %629 = vst [vmem:[#allocation2 + $0x2b0] sm:$0xff] %v437
          %630 = vst [vmem:[#allocation2 + $0x2b8] sm:$0xff] %v438
          %631 = vst [vmem:[#allocation2 + $0x2c0] sm:$0xff] %v439
          %632 = vst [vmem:[#allocation2 + $0x2c8] sm:$0xff] %v440
          %633 = vst [vmem:[#allocation2 + $0x2d0] sm:$0xff] %v441
          %634 = vst [vmem:[#allocation2 + $0x2d8] sm:$0xff] %v442
          %635 = vst [vmem:[#allocation2 + $0x2e0] sm:$0xff] %v443
          %636 = vst [vmem:[#allocation2 + $0x2e8] sm:$0xff] %v444
          %637 = vst [vmem:[#allocation2 + $0x2f0] sm:$0xff] %v445
          %638 = vst [vmem:[#allocation2 + $0x2f8] sm:$0xff] %v446
          %639 = vst [vmem:[#allocation2 + $0x300] sm:$0xff] %v447
          %640 = vst [vmem:[#allocation2 + $0x308] sm:$0xff] %v448
          %641 = vst [vmem:[#allocation2 + $0x310] sm:$0xff] %v449
          %642 = vst [vmem:[#allocation2 + $0x318] sm:$0xff] %v450
          %643 = vst [vmem:[#allocation2 + $0x320] sm:$0xff] %v451
          %644 = vst [vmem:[#allocation2 + $0x328] sm:$0xff] %v452
          %645 = vst [vmem:[#allocation2 + $0x330] sm:$0xff] %v453
          %646 = vst [vmem:[#allocation2 + $0x338] sm:$0xff] %v454
          %647 = vst [vmem:[#allocation2 + $0x340] sm:$0xff] %v455
          %648 = vst [vmem:[#allocation2 + $0x348] sm:$0xff] %v456
          %649 = vst [vmem:[#allocation2 + $0x350] sm:$0xff] %v457
          %650 = vst [vmem:[#allocation2 + $0x358] sm:$0xff] %v458
          %651 = vst [vmem:[#allocation2 + $0x360] sm:$0xff] %v459
          %652 = vst [vmem:[#allocation2 + $0x368] sm:$0xff] %v460
          %653 = vst [vmem:[#allocation2 + $0x370] sm:$0xff] %v461
          %654 = vst [vmem:[#allocation2 + $0x378] sm:$0xff] %v462
          %655 = vst [vmem:[#allocation2 + $0x380] sm:$0xff] %v463
          %656 = vst [vmem:[#allocation2 + $0x388] sm:$0xff] %v464
          %657 = vst [vmem:[#allocation2 + $0x390] sm:$0xff] %v465
          %658 = vst [vmem:[#allocation2 + $0x398] sm:$0xff] %v466
          %659 = vst [vmem:[#allocation2 + $0x3a0] sm:$0xff] %v467
          %660 = vst [vmem:[#allocation2 + $0x3a8] sm:$0xff] %v468
          %661 = vst [vmem:[#allocation2 + $0x3b0] sm:$0xff] %v469
          %662 = vst [vmem:[#allocation2 + $0x3b8] sm:$0xff] %v470
          %663 = vst [vmem:[#allocation2 + $0x3c0] sm:$0xff] %v471
          %664 = vst [vmem:[#allocation2 + $0x3c8] sm:$0xff] %v472
          %665 = vst [vmem:[#allocation2 + $0x3d0] sm:$0xff] %v473
          %666 = vst [vmem:[#allocation2 + $0x3d8] sm:$0xff] %v474
          %667 = vst [vmem:[#allocation2 + $0x3e0] sm:$0xff] %v475
          %668 = vst [vmem:[#allocation2 + $0x3e8] sm:$0xff] %v476
          %669 = vst [vmem:[#allocation2 + $0x3f0] sm:$0xff] %v477
          %670 = vst [vmem:[#allocation2 + $0x3f8] sm:$0xff] %v478
          %671 = vst [vmem:[#allocation2 + $0x400] sm:$0xff] %v479
          %672 = vst [vmem:[#allocation2 + $0x408] sm:$0xff] %v480
          %673 = vst [vmem:[#allocation2 + $0x410] sm:$0xff] %v481
          %674 = vst [vmem:[#allocation2 + $0x418] sm:$0xff] %v482
          %675 = vst [vmem:[#allocation2 + $0x420] sm:$0xff] %v483
          %676 = vst [vmem:[#allocation2 + $0x428] sm:$0xff] %v484
          %677 = vst [vmem:[#allocation2 + $0x430] sm:$0xff] %v485
          %678 = vst [vmem:[#allocation2 + $0x438] sm:$0xff] %v486
          %679 = vst [vmem:[#allocation2 + $0x440] sm:$0xff] %v487
          %680 = vst [vmem:[#allocation2 + $0x448] sm:$0xff] %v488
          %681 = vst [vmem:[#allocation2 + $0x450] sm:$0xff] %v489
          %682 = vst [vmem:[#allocation2 + $0x458] sm:$0xff] %v490
          %683 = vst [vmem:[#allocation2 + $0x460] sm:$0xff] %v491
          %684 = vst [vmem:[#allocation2 + $0x468] sm:$0xff] %v492
          %685 = vst [vmem:[#allocation2 + $0x470] sm:$0xff] %v493
          %686 = vst [vmem:[#allocation2 + $0x478] sm:$0xff] %v494
          %687 = vst [vmem:[#allocation2 + $0x480] sm:$0xff] %v495
          %688 = vst [vmem:[#allocation2 + $0x488] sm:$0xff] %v496
          %689 = vst [vmem:[#allocation2 + $0x490] sm:$0xff] %v497
          %690 = vst [vmem:[#allocation2 + $0x498] sm:$0xff] %v498
          %691 = vst [vmem:[#allocation2 + $0x4a0] sm:$0xff] %v499
          %692 = vst [vmem:[#allocation2 + $0x4a8] sm:$0xff] %v500
          %693 = vst [vmem:[#allocation2 + $0x4b0] sm:$0xff] %v501
          %694 = vst [vmem:[#allocation2 + $0x4b8] sm:$0xff] %v502
          %695 = vst [vmem:[#allocation2 + $0x4c0] sm:$0xff] %v503
          %696 = vst [vmem:[#allocation2 + $0x4c8] sm:$0xff] %v504
          %697 = vst [vmem:[#allocation2 + $0x4d0] sm:$0xff] %v505
          %698 = vst [vmem:[#allocation2 + $0x4d8] sm:$0xff] %v506
          %699 = vst [vmem:[#allocation2 + $0x4e0] sm:$0xff] %v507
          %700 = vst [vmem:[#allocation2 + $0x4e8] sm:$0xff] %v508
          %701 = vst [vmem:[#allocation2 + $0x4f0] sm:$0xff] %v509
          %702 = vst [vmem:[#allocation2 + $0x4f8] sm:$0xff] %v510
          %703 = vst [vmem:[#allocation2 + $0x500] sm:$0xff] %v511
          %704 = vst [vmem:[#allocation2 + $0x508] sm:$0xff] %v512
          %705 = vst [vmem:[#allocation2 + $0x510] sm:$0xff] %v513
          %706 = vst [vmem:[#allocation2 + $0x518] sm:$0xff] %v514
          %707 = vst [vmem:[#allocation2 + $0x520] sm:$0xff] %v515
          %708 = vst [vmem:[#allocation2 + $0x528] sm:$0xff] %v516
          %709 = vst [vmem:[#allocation2 + $0x530] sm:$0xff] %v517
          %710 = vst [vmem:[#allocation2 + $0x538] sm:$0xff] %v518
          %711 = vst [vmem:[#allocation2 + $0x540] sm:$0xff] %v519
          %712 = vst [vmem:[#allocation2 + $0x548] sm:$0xff] %v520
          %713 = vst [vmem:[#allocation2 + $0x550] sm:$0xff] %v521
          %714 = vst [vmem:[#allocation2 + $0x558] sm:$0xff] %v522
          %715 = vst [vmem:[#allocation2 + $0x560] sm:$0xff] %v523
          %716 = vst [vmem:[#allocation2 + $0x568] sm:$0xff] %v524
          %717 = vst [vmem:[#allocation2 + $0x570] sm:$0xff] %v525
          %718 = vst [vmem:[#allocation2 + $0x578] sm:$0xff] %v526
          %719 = vst [vmem:[#allocation2 + $0x580] sm:$0xff] %v527
          %720 = vst [vmem:[#allocation2 + $0x588] sm:$0xff] %v528
          %721 = vst [vmem:[#allocation2 + $0x590] sm:$0xff] %v529
          %722 = vst [vmem:[#allocation2 + $0x598] sm:$0xff] %v530
          %723 = vst [vmem:[#allocation2 + $0x5a0] sm:$0xff] %v531
          %724 = vst [vmem:[#allocation2 + $0x5a8] sm:$0xff] %v532
          %725 = vst [vmem:[#allocation2 + $0x5b0] sm:$0xff] %v533
          %726 = vst [vmem:[#allocation2 + $0x5b8] sm:$0xff] %v534
          %727 = vst [vmem:[#allocation2 + $0x5c0] sm:$0xff] %v535
          %728 = vst [vmem:[#allocation2 + $0x5c8] sm:$0xff] %v536
          %729 = vst [vmem:[#allocation2 + $0x5d0] sm:$0xff] %v537
          %730 = vst [vmem:[#allocation2 + $0x5d8] sm:$0xff] %v538
          %731 = vst [vmem:[#allocation2 + $0x5e0] sm:$0xff] %v539
          %732 = vst [vmem:[#allocation2 + $0x5e8] sm:$0xff] %v540
          %733 = vst [vmem:[#allocation2 + $0x5f0] sm:$0xff] %v541
          %734 = vst [vmem:[#allocation2 + $0x5f8] sm:$0xff] %v542
        $region72: #{tpu_custom_call.1} parent=43 // pred_fallthru
          _
        %v735 = vld [vmem:[#allocation2] sm:$0xff]
        %v736 = vld [vmem:[#allocation2 + $0x8] sm:$0xff]
        %v737 = vld [vmem:[#allocation2 + $0x10] sm:$0xff]
        %v738 = vld [vmem:[#allocation2 + $0x18] sm:$0xff]
        %v739 = vld [vmem:[#allocation2 + $0x20] sm:$0xff]
        %v740 = vld [vmem:[#allocation2 + $0x28] sm:$0xff]
        %v741 = vld [vmem:[#allocation2 + $0x30] sm:$0xff]
        %v742 = vld [vmem:[#allocation2 + $0x38] sm:$0xff]
        %v743 = vld [vmem:[#allocation2 + $0x40] sm:$0xff]
        %v744 = vld [vmem:[#allocation2 + $0x48] sm:$0xff]
        %v745 = vld [vmem:[#allocation2 + $0x50] sm:$0xff]
        %v746 = vld [vmem:[#allocation2 + $0x58] sm:$0xff]
        %v747 = vld [vmem:[#allocation2 + $0x60] sm:$0xff]
        %v748 = vld [vmem:[#allocation2 + $0x68] sm:$0xff]
        %v749 = vld [vmem:[#allocation2 + $0x70] sm:$0xff]
        %v750 = vld [vmem:[#allocation2 + $0x78] sm:$0xff]
        %v751 = vld [vmem:[#allocation2 + $0x80] sm:$0xff]
        %v752 = vld [vmem:[#allocation2 + $0x88] sm:$0xff]
        %v753 = vld [vmem:[#allocation2 + $0x90] sm:$0xff]
        %v754 = vld [vmem:[#allocation2 + $0x98] sm:$0xff]
        %v755 = vld [vmem:[#allocation2 + $0xa0] sm:$0xff]
        %v756 = vld [vmem:[#allocation2 + $0xa8] sm:$0xff]
        %v757 = vld [vmem:[#allocation2 + $0xb0] sm:$0xff]
        %v758 = vld [vmem:[#allocation2 + $0xb8] sm:$0xff]
        %v759 = vld [vmem:[#allocation2 + $0xc0] sm:$0xff]
        %v760 = vld [vmem:[#allocation2 + $0xc8] sm:$0xff]
        %v761 = vld [vmem:[#allocation2 + $0xd0] sm:$0xff]
        %v762 = vld [vmem:[#allocation2 + $0xd8] sm:$0xff]
        %v763 = vld [vmem:[#allocation2 + $0xe0] sm:$0xff]
        %v764 = vld [vmem:[#allocation2 + $0xe8] sm:$0xff]
        %v765 = vld [vmem:[#allocation2 + $0xf0] sm:$0xff]
        %v766 = vld [vmem:[#allocation2 + $0xf8] sm:$0xff]
        %v767 = vld [vmem:[#allocation2 + $0x100] sm:$0xff]
        %v768 = vld [vmem:[#allocation2 + $0x108] sm:$0xff]
        %v769 = vld [vmem:[#allocation2 + $0x110] sm:$0xff]
        %v770 = vld [vmem:[#allocation2 + $0x118] sm:$0xff]
        %v771 = vld [vmem:[#allocation2 + $0x120] sm:$0xff]
        %v772 = vld [vmem:[#allocation2 + $0x128] sm:$0xff]
        %v773 = vld [vmem:[#allocation2 + $0x130] sm:$0xff]
        %v774 = vld [vmem:[#allocation2 + $0x138] sm:$0xff]
        %v775 = vld [vmem:[#allocation2 + $0x140] sm:$0xff]
        %v776 = vld [vmem:[#allocation2 + $0x148] sm:$0xff]
        %v777 = vld [vmem:[#allocation2 + $0x150] sm:$0xff]
        %v778 = vld [vmem:[#allocation2 + $0x158] sm:$0xff]
        %v779 = vld [vmem:[#allocation2 + $0x160] sm:$0xff]
        %v780 = vld [vmem:[#allocation2 + $0x168] sm:$0xff]
        %v781 = vld [vmem:[#allocation2 + $0x170] sm:$0xff]
        %v782 = vld [vmem:[#allocation2 + $0x178] sm:$0xff]
        %v783 = vld [vmem:[#allocation2 + $0x180] sm:$0xff]
        %v784 = vld [vmem:[#allocation2 + $0x188] sm:$0xff]
        %v785 = vld [vmem:[#allocation2 + $0x190] sm:$0xff]
        %v786 = vld [vmem:[#allocation2 + $0x198] sm:$0xff]
        %v787 = vld [vmem:[#allocation2 + $0x1a0] sm:$0xff]
        %v788 = vld [vmem:[#allocation2 + $0x1a8] sm:$0xff]
        %v789 = vld [vmem:[#allocation2 + $0x1b0] sm:$0xff]
        %v790 = vld [vmem:[#allocation2 + $0x1b8] sm:$0xff]
        %v791 = vld [vmem:[#allocation2 + $0x1c0] sm:$0xff]
        %v792 = vld [vmem:[#allocation2 + $0x1c8] sm:$0xff]
        %v793 = vld [vmem:[#allocation2 + $0x1d0] sm:$0xff]
        %v794 = vld [vmem:[#allocation2 + $0x1d8] sm:$0xff]
        %v795 = vld [vmem:[#allocation2 + $0x1e0] sm:$0xff]
        %v796 = vld [vmem:[#allocation2 + $0x1e8] sm:$0xff]
        %v797 = vld [vmem:[#allocation2 + $0x1f0] sm:$0xff]
        %v798 = vld [vmem:[#allocation2 + $0x1f8] sm:$0xff]
        %v799 = vld [vmem:[#allocation2 + $0x200] sm:$0xff]
        %v800 = vld [vmem:[#allocation2 + $0x208] sm:$0xff]
        %v801 = vld [vmem:[#allocation2 + $0x210] sm:$0xff]
        %v802 = vld [vmem:[#allocation2 + $0x218] sm:$0xff]
        %v803 = vld [vmem:[#allocation2 + $0x220] sm:$0xff]
        %v804 = vld [vmem:[#allocation2 + $0x228] sm:$0xff]
        %v805 = vld [vmem:[#allocation2 + $0x230] sm:$0xff]
        %v806 = vld [vmem:[#allocation2 + $0x238] sm:$0xff]
        %v807 = vld [vmem:[#allocation2 + $0x240] sm:$0xff]
        %v808 = vld [vmem:[#allocation2 + $0x248] sm:$0xff]
        %v809 = vld [vmem:[#allocation2 + $0x250] sm:$0xff]
        %v810 = vld [vmem:[#allocation2 + $0x258] sm:$0xff]
        %v811 = vld [vmem:[#allocation2 + $0x260] sm:$0xff]
        %v812 = vld [vmem:[#allocation2 + $0x268] sm:$0xff]
        %v813 = vld [vmem:[#allocation2 + $0x270] sm:$0xff]
        %v814 = vld [vmem:[#allocation2 + $0x278] sm:$0xff]
        %v815 = vld [vmem:[#allocation2 + $0x280] sm:$0xff]
        %v816 = vld [vmem:[#allocation2 + $0x288] sm:$0xff]
        %v817 = vld [vmem:[#allocation2 + $0x290] sm:$0xff]
        %v818 = vld [vmem:[#allocation2 + $0x298] sm:$0xff]
        %v819 = vld [vmem:[#allocation2 + $0x2a0] sm:$0xff]
        %v820 = vld [vmem:[#allocation2 + $0x2a8] sm:$0xff]
        %v821 = vld [vmem:[#allocation2 + $0x2b0] sm:$0xff]
        %v822 = vld [vmem:[#allocation2 + $0x2b8] sm:$0xff]
        %v823 = vld [vmem:[#allocation2 + $0x2c0] sm:$0xff]
        %v824 = vld [vmem:[#allocation2 + $0x2c8] sm:$0xff]
        %v825 = vld [vmem:[#allocation2 + $0x2d0] sm:$0xff]
        %v826 = vld [vmem:[#allocation2 + $0x2d8] sm:$0xff]
        %v827 = vld [vmem:[#allocation2 + $0x2e0] sm:$0xff]
        %v828 = vld [vmem:[#allocation2 + $0x2e8] sm:$0xff]
        %v829 = vld [vmem:[#allocation2 + $0x2f0] sm:$0xff]
        %v830 = vld [vmem:[#allocation2 + $0x2f8] sm:$0xff]
        %v831 = vld [vmem:[#allocation2 + $0x300] sm:$0xff]
        %v832 = vld [vmem:[#allocation2 + $0x308] sm:$0xff]
        %v833 = vld [vmem:[#allocation2 + $0x310] sm:$0xff]
        %v834 = vld [vmem:[#allocation2 + $0x318] sm:$0xff]
        %v835 = vld [vmem:[#allocation2 + $0x320] sm:$0xff]
        %v836 = vld [vmem:[#allocation2 + $0x328] sm:$0xff]
        %v837 = vld [vmem:[#allocation2 + $0x330] sm:$0xff]
        %v838 = vld [vmem:[#allocation2 + $0x338] sm:$0xff]
        %v839 = vld [vmem:[#allocation2 + $0x340] sm:$0xff]
        %v840 = vld [vmem:[#allocation2 + $0x348] sm:$0xff]
        %v841 = vld [vmem:[#allocation2 + $0x350] sm:$0xff]
        %v842 = vld [vmem:[#allocation2 + $0x358] sm:$0xff]
        %v843 = vld [vmem:[#allocation2 + $0x360] sm:$0xff]
        %v844 = vld [vmem:[#allocation2 + $0x368] sm:$0xff]
        %v845 = vld [vmem:[#allocation2 + $0x370] sm:$0xff]
        %v846 = vld [vmem:[#allocation2 + $0x378] sm:$0xff]
        %v847 = vld [vmem:[#allocation2 + $0x380] sm:$0xff]
        %v848 = vld [vmem:[#allocation2 + $0x388] sm:$0xff]
        %v849 = vld [vmem:[#allocation2 + $0x390] sm:$0xff]
        %v850 = vld [vmem:[#allocation2 + $0x398] sm:$0xff]
        %v851 = vld [vmem:[#allocation2 + $0x3a0] sm:$0xff]
        %v852 = vld [vmem:[#allocation2 + $0x3a8] sm:$0xff]
        %v853 = vld [vmem:[#allocation2 + $0x3b0] sm:$0xff]
        %v854 = vld [vmem:[#allocation2 + $0x3b8] sm:$0xff]
        %v855 = vld [vmem:[#allocation2 + $0x3c0] sm:$0xff]
        %v856 = vld [vmem:[#allocation2 + $0x3c8] sm:$0xff]
        %v857 = vld [vmem:[#allocation2 + $0x3d0] sm:$0xff]
        %v858 = vld [vmem:[#allocation2 + $0x3d8] sm:$0xff]
        %v859 = vld [vmem:[#allocation2 + $0x3e0] sm:$0xff]
        %v860 = vld [vmem:[#allocation2 + $0x3e8] sm:$0xff]
        %v861 = vld [vmem:[#allocation2 + $0x3f0] sm:$0xff]
        %v862 = vld [vmem:[#allocation2 + $0x3f8] sm:$0xff]
        %v863 = vld [vmem:[#allocation2 + $0x400] sm:$0xff]
        %v864 = vld [vmem:[#allocation2 + $0x408] sm:$0xff]
        %v865 = vld [vmem:[#allocation2 + $0x410] sm:$0xff]
        %v866 = vld [vmem:[#allocation2 + $0x418] sm:$0xff]
        %v867 = vld [vmem:[#allocation2 + $0x420] sm:$0xff]
        %v868 = vld [vmem:[#allocation2 + $0x428] sm:$0xff]
        %v869 = vld [vmem:[#allocation2 + $0x430] sm:$0xff]
        %v870 = vld [vmem:[#allocation2 + $0x438] sm:$0xff]
        %v871 = vld [vmem:[#allocation2 + $0x440] sm:$0xff]
        %v872 = vld [vmem:[#allocation2 + $0x448] sm:$0xff]
        %v873 = vld [vmem:[#allocation2 + $0x450] sm:$0xff]
        %v874 = vld [vmem:[#allocation2 + $0x458] sm:$0xff]
        %v875 = vld [vmem:[#allocation2 + $0x460] sm:$0xff]
        %v876 = vld [vmem:[#allocation2 + $0x468] sm:$0xff]
        %v877 = vld [vmem:[#allocation2 + $0x470] sm:$0xff]
        %v878 = vld [vmem:[#allocation2 + $0x478] sm:$0xff]
        %v879 = vld [vmem:[#allocation2 + $0x480] sm:$0xff]
        %v880 = vld [vmem:[#allocation2 + $0x488] sm:$0xff]
        %v881 = vld [vmem:[#allocation2 + $0x490] sm:$0xff]
        %v882 = vld [vmem:[#allocation2 + $0x498] sm:$0xff]
        %v883 = vld [vmem:[#allocation2 + $0x4a0] sm:$0xff]
        %v884 = vld [vmem:[#allocation2 + $0x4a8] sm:$0xff]
        %v885 = vld [vmem:[#allocation2 + $0x4b0] sm:$0xff]
        %v886 = vld [vmem:[#allocation2 + $0x4b8] sm:$0xff]
        %v887 = vld [vmem:[#allocation2 + $0x4c0] sm:$0xff]
        %v888 = vld [vmem:[#allocation2 + $0x4c8] sm:$0xff]
        %v889 = vld [vmem:[#allocation2 + $0x4d0] sm:$0xff]
        %v890 = vld [vmem:[#allocation2 + $0x4d8] sm:$0xff]
        %v891 = vld [vmem:[#allocation2 + $0x4e0] sm:$0xff]
        %v892 = vld [vmem:[#allocation2 + $0x4e8] sm:$0xff]
        %v893 = vld [vmem:[#allocation2 + $0x4f0] sm:$0xff]
        %v894 = vld [vmem:[#allocation2 + $0x4f8] sm:$0xff]
        %v895 = vld [vmem:[#allocation2 + $0x500] sm:$0xff]
        %v896 = vld [vmem:[#allocation2 + $0x508] sm:$0xff]
        %v897 = vld [vmem:[#allocation2 + $0x510] sm:$0xff]
        %v898 = vld [vmem:[#allocation2 + $0x518] sm:$0xff]
        %v899 = vld [vmem:[#allocation2 + $0x520] sm:$0xff]
        %v900 = vld [vmem:[#allocation2 + $0x528] sm:$0xff]
        %v901 = vld [vmem:[#allocation2 + $0x530] sm:$0xff]
        %v902 = vld [vmem:[#allocation2 + $0x538] sm:$0xff]
        %v903 = vld [vmem:[#allocation2 + $0x540] sm:$0xff]
        %v904 = vld [vmem:[#allocation2 + $0x548] sm:$0xff]
        %v905 = vld [vmem:[#allocation2 + $0x550] sm:$0xff]
        %v906 = vld [vmem:[#allocation2 + $0x558] sm:$0xff]
        %v907 = vld [vmem:[#allocation2 + $0x560] sm:$0xff]
        %v908 = vld [vmem:[#allocation2 + $0x568] sm:$0xff]
        %v909 = vld [vmem:[#allocation2 + $0x570] sm:$0xff]
        %v910 = vld [vmem:[#allocation2 + $0x578] sm:$0xff]
        %v911 = vld [vmem:[#allocation2 + $0x580] sm:$0xff]
        %v912 = vld [vmem:[#allocation2 + $0x588] sm:$0xff]
        %v913 = vld [vmem:[#allocation2 + $0x590] sm:$0xff]
        %v914 = vld [vmem:[#allocation2 + $0x598] sm:$0xff]
        %v915 = vld [vmem:[#allocation2 + $0x5a0] sm:$0xff]
        %v916 = vld [vmem:[#allocation2 + $0x5a8] sm:$0xff]
        %v917 = vld [vmem:[#allocation2 + $0x5b0] sm:$0xff]
        %v918 = vld [vmem:[#allocation2 + $0x5b8] sm:$0xff]
        %v919 = vld [vmem:[#allocation2 + $0x5c0] sm:$0xff]
        %v920 = vld [vmem:[#allocation2 + $0x5c8] sm:$0xff]
        %v921 = vld [vmem:[#allocation2 + $0x5d0] sm:$0xff]
        %v922 = vld [vmem:[#allocation2 + $0x5d8] sm:$0xff]
        %v923 = vld [vmem:[#allocation2 + $0x5e0] sm:$0xff]
        %v924 = vld [vmem:[#allocation2 + $0x5e8] sm:$0xff]
        %v925 = vld [vmem:[#allocation2 + $0x5f0] sm:$0xff]
        %v926 = vld [vmem:[#allocation2 + $0x5f8] sm:$0xff]
        %v927 = vpack.c.bf16 %v741, %v735
        %v928 = vpack.c.bf16 %v742, %v736
        %v929 = vpack.c.bf16 %v743, %v737
        %v930 = vpack.c.bf16 %v744, %v738
        %v931 = vpack.c.bf16 %v745, %v739
        %v932 = vpack.c.bf16 %v746, %v740
        %v933 = vpack.c.bf16 %v753, %v747
        %v934 = vpack.c.bf16 %v754, %v748
        %v935 = vpack.c.bf16 %v755, %v749
        %v936 = vpack.c.bf16 %v756, %v750
        %v937 = vpack.c.bf16 %v757, %v751
        %v938 = vpack.c.bf16 %v758, %v752
        %v939 = vpack.c.bf16 %v765, %v759
        %v940 = vpack.c.bf16 %v766, %v760
        %v941 = vpack.c.bf16 %v767, %v761
        %v942 = vpack.c.bf16 %v768, %v762
        %v943 = vpack.c.bf16 %v769, %v763
        %v944 = vpack.c.bf16 %v770, %v764
        %v945 = vpack.c.bf16 %v777, %v771
        %v946 = vpack.c.bf16 %v778, %v772
        %v947 = vpack.c.bf16 %v779, %v773
        %v948 = vpack.c.bf16 %v780, %v774
        %v949 = vpack.c.bf16 %v781, %v775
        %v950 = vpack.c.bf16 %v782, %v776
        %v951 = vpack.c.bf16 %v789, %v783
        %v952 = vpack.c.bf16 %v790, %v784
        %v953 = vpack.c.bf16 %v791, %v785
        %v954 = vpack.c.bf16 %v792, %v786
        %v955 = vpack.c.bf16 %v793, %v787
        %v956 = vpack.c.bf16 %v794, %v788
        %v957 = vpack.c.bf16 %v801, %v795
        %v958 = vpack.c.bf16 %v802, %v796
        %v959 = vpack.c.bf16 %v803, %v797
        %v960 = vpack.c.bf16 %v804, %v798
        %v961 = vpack.c.bf16 %v805, %v799
        %v962 = vpack.c.bf16 %v806, %v800
        %v963 = vpack.c.bf16 %v813, %v807
        %v964 = vpack.c.bf16 %v814, %v808
        %v965 = vpack.c.bf16 %v815, %v809
        %v966 = vpack.c.bf16 %v816, %v810
        %v967 = vpack.c.bf16 %v817, %v811
        %v968 = vpack.c.bf16 %v818, %v812
        %v969 = vpack.c.bf16 %v825, %v819
        %v970 = vpack.c.bf16 %v826, %v820
        %v971 = vpack.c.bf16 %v827, %v821
        %v972 = vpack.c.bf16 %v828, %v822
        %v973 = vpack.c.bf16 %v829, %v823
        %v974 = vpack.c.bf16 %v830, %v824
        %v975 = vpack.c.bf16 %v837, %v831
        %v976 = vpack.c.bf16 %v838, %v832
        %v977 = vpack.c.bf16 %v839, %v833
        %v978 = vpack.c.bf16 %v840, %v834
        %v979 = vpack.c.bf16 %v841, %v835
        %v980 = vpack.c.bf16 %v842, %v836
        %v981 = vpack.c.bf16 %v849, %v843
        %v982 = vpack.c.bf16 %v850, %v844
        %v983 = vpack.c.bf16 %v851, %v845
        %v984 = vpack.c.bf16 %v852, %v846
        %v985 = vpack.c.bf16 %v853, %v847
        %v986 = vpack.c.bf16 %v854, %v848
        %v987 = vpack.c.bf16 %v861, %v855
        %v988 = vpack.c.bf16 %v862, %v856
        %v989 = vpack.c.bf16 %v863, %v857
        %v990 = vpack.c.bf16 %v864, %v858
        %v991 = vpack.c.bf16 %v865, %v859
        %v992 = vpack.c.bf16 %v866, %v860
        %v993 = vpack.c.bf16 %v873, %v867
        %v994 = vpack.c.bf16 %v874, %v868
        %v995 = vpack.c.bf16 %v875, %v869
        %v996 = vpack.c.bf16 %v876, %v870
        %v997 = vpack.c.bf16 %v877, %v871
        %v998 = vpack.c.bf16 %v878, %v872
        %v999 = vpack.c.bf16 %v885, %v879
        %v1000 = vpack.c.bf16 %v886, %v880
        %v1001 = vpack.c.bf16 %v887, %v881
        %v1002 = vpack.c.bf16 %v888, %v882
        %v1003 = vpack.c.bf16 %v889, %v883
        %v1004 = vpack.c.bf16 %v890, %v884
        %v1005 = vpack.c.bf16 %v897, %v891
        %v1006 = vpack.c.bf16 %v898, %v892
        %v1007 = vpack.c.bf16 %v899, %v893
        %v1008 = vpack.c.bf16 %v900, %v894
        %v1009 = vpack.c.bf16 %v901, %v895
        %v1010 = vpack.c.bf16 %v902, %v896
        %v1011 = vpack.c.bf16 %v909, %v903
        %v1012 = vpack.c.bf16 %v910, %v904
        %v1013 = vpack.c.bf16 %v911, %v905
        %v1014 = vpack.c.bf16 %v912, %v906
        %v1015 = vpack.c.bf16 %v913, %v907
        %v1016 = vpack.c.bf16 %v914, %v908
        %v1017 = vpack.c.bf16 %v921, %v915
        %v1018 = vpack.c.bf16 %v922, %v916
        %v1019 = vpack.c.bf16 %v923, %v917
        %v1020 = vpack.c.bf16 %v924, %v918
        %v1021 = vpack.c.bf16 %v925, %v919
        %v1022 = vpack.c.bf16 %v926, %v920
        %v1023 = vld [vmem:[%s301] sm:$0xff]
        %v1024 = vld [vmem:[%s301 + $0x8] sm:$0xff]
        %v1025 = vld [vmem:[%s301 + $0x10] sm:$0xff]
        %v1026 = vld [vmem:[%s301 + $0x18] sm:$0xff]
        %v1027 = vld [vmem:[%s301 + $0x20] sm:$0xff]
        %v1028 = vld [vmem:[%s301 + $0x28] sm:$0xff]
        %v1029 = vld [vmem:[%s301 + $0x30] sm:$0xff]
        %v1030 = vld [vmem:[%s301 + $0x38] sm:$0xff]
        %v1031 = vld [vmem:[%s301 + $0x40] sm:$0xff]
        %v1032 = vld [vmem:[%s301 + $0x48] sm:$0xff]
        %v1033 = vld [vmem:[%s301 + $0x50] sm:$0xff]
        %v1034 = vld [vmem:[%s301 + $0x58] sm:$0xff]
        %v1035 = vld [vmem:[%s301 + $0x60] sm:$0xff]
        %v1036 = vld [vmem:[%s301 + $0x68] sm:$0xff]
        %v1037 = vld [vmem:[%s301 + $0x70] sm:$0xff]
        %v1038 = vld [vmem:[%s301 + $0x78] sm:$0xff]
        %v1039 = vld [vmem:[%s301 + $0x80] sm:$0xff]
        %v1040 = vld [vmem:[%s301 + $0x88] sm:$0xff]
        %v1041 = vld [vmem:[%s301 + $0x90] sm:$0xff]
        %v1042 = vld [vmem:[%s301 + $0x98] sm:$0xff]
        %v1043 = vld [vmem:[%s301 + $0xa0] sm:$0xff]
        %v1044 = vld [vmem:[%s301 + $0xa8] sm:$0xff]
        %v1045 = vld [vmem:[%s301 + $0xb0] sm:$0xff]
        %v1046 = vld [vmem:[%s301 + $0xb8] sm:$0xff]
        %v1047 = vld [vmem:[%s301 + $0xc0] sm:$0xff]
        %v1048 = vld [vmem:[%s301 + $0xc8] sm:$0xff]
        %v1049 = vld [vmem:[%s301 + $0xd0] sm:$0xff]
        %v1050 = vld [vmem:[%s301 + $0xd8] sm:$0xff]
        %v1051 = vld [vmem:[%s301 + $0xe0] sm:$0xff]
        %v1052 = vld [vmem:[%s301 + $0xe8] sm:$0xff]
        %v1053 = vld [vmem:[%s301 + $0xf0] sm:$0xff]
        %v1054 = vld [vmem:[%s301 + $0xf8] sm:$0xff]
        %v1055 = vld [vmem:[%s301 + $0x100] sm:$0xff]
        %v1056 = vld [vmem:[%s301 + $0x108] sm:$0xff]
        %v1057 = vld [vmem:[%s301 + $0x110] sm:$0xff]
        %v1058 = vld [vmem:[%s301 + $0x118] sm:$0xff]
        %v1059 = vld [vmem:[%s301 + $0x120] sm:$0xff]
        %v1060 = vld [vmem:[%s301 + $0x128] sm:$0xff]
        %v1061 = vld [vmem:[%s301 + $0x130] sm:$0xff]
        %v1062 = vld [vmem:[%s301 + $0x138] sm:$0xff]
        %v1063 = vld [vmem:[%s301 + $0x140] sm:$0xff]
        %v1064 = vld [vmem:[%s301 + $0x148] sm:$0xff]
        %v1065 = vld [vmem:[%s301 + $0x150] sm:$0xff]
        %v1066 = vld [vmem:[%s301 + $0x158] sm:$0xff]
        %v1067 = vld [vmem:[%s301 + $0x160] sm:$0xff]
        %v1068 = vld [vmem:[%s301 + $0x168] sm:$0xff]
        %v1069 = vld [vmem:[%s301 + $0x170] sm:$0xff]
        %v1070 = vld [vmem:[%s301 + $0x178] sm:$0xff]
        %v1071 = vld [vmem:[%s301 + $0x180] sm:$0xff]
        %v1072 = vld [vmem:[%s301 + $0x188] sm:$0xff]
        %v1073 = vld [vmem:[%s301 + $0x190] sm:$0xff]
        %v1074 = vld [vmem:[%s301 + $0x198] sm:$0xff]
        %v1075 = vld [vmem:[%s301 + $0x1a0] sm:$0xff]
        %v1076 = vld [vmem:[%s301 + $0x1a8] sm:$0xff]
        %v1077 = vld [vmem:[%s301 + $0x1b0] sm:$0xff]
        %v1078 = vld [vmem:[%s301 + $0x1b8] sm:$0xff]
        %v1079 = vld [vmem:[%s301 + $0x1c0] sm:$0xff]
        %v1080 = vld [vmem:[%s301 + $0x1c8] sm:$0xff]
        %v1081 = vld [vmem:[%s301 + $0x1d0] sm:$0xff]
        %v1082 = vld [vmem:[%s301 + $0x1d8] sm:$0xff]
        %v1083 = vld [vmem:[%s301 + $0x1e0] sm:$0xff]
        %v1084 = vld [vmem:[%s301 + $0x1e8] sm:$0xff]
        %v1085 = vld [vmem:[%s301 + $0x1f0] sm:$0xff]
        %v1086 = vld [vmem:[%s301 + $0x1f8] sm:$0xff]
        %v1087 = vld [vmem:[%s301 + $0x200] sm:$0xff]
        %v1088 = vld [vmem:[%s301 + $0x208] sm:$0xff]
        %v1089 = vld [vmem:[%s301 + $0x210] sm:$0xff]
        %v1090 = vld [vmem:[%s301 + $0x218] sm:$0xff]
        %v1091 = vld [vmem:[%s301 + $0x220] sm:$0xff]
        %v1092 = vld [vmem:[%s301 + $0x228] sm:$0xff]
        %v1093 = vld [vmem:[%s301 + $0x230] sm:$0xff]
        %v1094 = vld [vmem:[%s301 + $0x238] sm:$0xff]
        %v1095 = vld [vmem:[%s301 + $0x240] sm:$0xff]
        %v1096 = vld [vmem:[%s301 + $0x248] sm:$0xff]
        %v1097 = vld [vmem:[%s301 + $0x250] sm:$0xff]
        %v1098 = vld [vmem:[%s301 + $0x258] sm:$0xff]
        %v1099 = vld [vmem:[%s301 + $0x260] sm:$0xff]
        %v1100 = vld [vmem:[%s301 + $0x268] sm:$0xff]
        %v1101 = vld [vmem:[%s301 + $0x270] sm:$0xff]
        %v1102 = vld [vmem:[%s301 + $0x278] sm:$0xff]
        %v1103 = vld [vmem:[%s301 + $0x280] sm:$0xff]
        %v1104 = vld [vmem:[%s301 + $0x288] sm:$0xff]
        %v1105 = vld [vmem:[%s301 + $0x290] sm:$0xff]
        %v1106 = vld [vmem:[%s301 + $0x298] sm:$0xff]
        %v1107 = vld [vmem:[%s301 + $0x2a0] sm:$0xff]
        %v1108 = vld [vmem:[%s301 + $0x2a8] sm:$0xff]
        %v1109 = vld [vmem:[%s301 + $0x2b0] sm:$0xff]
        %v1110 = vld [vmem:[%s301 + $0x2b8] sm:$0xff]
        %v1111 = vld [vmem:[%s301 + $0x2c0] sm:$0xff]
        %v1112 = vld [vmem:[%s301 + $0x2c8] sm:$0xff]
        %v1113 = vld [vmem:[%s301 + $0x2d0] sm:$0xff]
        %v1114 = vld [vmem:[%s301 + $0x2d8] sm:$0xff]
        %v1115 = vld [vmem:[%s301 + $0x2e0] sm:$0xff]
        %v1116 = vld [vmem:[%s301 + $0x2e8] sm:$0xff]
        %v1117 = vld [vmem:[%s301 + $0x2f0] sm:$0xff]
        %v1118 = vld [vmem:[%s301 + $0x2f8] sm:$0xff]
        %v1119 = vld [vmem:[%s301 + $0x300] sm:$0xff]
        %v1120 = vld [vmem:[%s301 + $0x308] sm:$0xff]
        %v1121 = vld [vmem:[%s301 + $0x310] sm:$0xff]
        %v1122 = vld [vmem:[%s301 + $0x318] sm:$0xff]
        %v1123 = vld [vmem:[%s301 + $0x320] sm:$0xff]
        %v1124 = vld [vmem:[%s301 + $0x328] sm:$0xff]
        %v1125 = vld [vmem:[%s301 + $0x330] sm:$0xff]
        %v1126 = vld [vmem:[%s301 + $0x338] sm:$0xff]
        %v1127 = vld [vmem:[%s301 + $0x340] sm:$0xff]
        %v1128 = vld [vmem:[%s301 + $0x348] sm:$0xff]
        %v1129 = vld [vmem:[%s301 + $0x350] sm:$0xff]
        %v1130 = vld [vmem:[%s301 + $0x358] sm:$0xff]
        %v1131 = vld [vmem:[%s301 + $0x360] sm:$0xff]
        %v1132 = vld [vmem:[%s301 + $0x368] sm:$0xff]
        %v1133 = vld [vmem:[%s301 + $0x370] sm:$0xff]
        %v1134 = vld [vmem:[%s301 + $0x378] sm:$0xff]
        %v1135 = vld [vmem:[%s301 + $0x380] sm:$0xff]
        %v1136 = vld [vmem:[%s301 + $0x388] sm:$0xff]
        %v1137 = vld [vmem:[%s301 + $0x390] sm:$0xff]
        %v1138 = vld [vmem:[%s301 + $0x398] sm:$0xff]
        %v1139 = vld [vmem:[%s301 + $0x3a0] sm:$0xff]
        %v1140 = vld [vmem:[%s301 + $0x3a8] sm:$0xff]
        %v1141 = vld [vmem:[%s301 + $0x3b0] sm:$0xff]
        %v1142 = vld [vmem:[%s301 + $0x3b8] sm:$0xff]
        %v1143 = vld [vmem:[%s301 + $0x3c0] sm:$0xff]
        %v1144 = vld [vmem:[%s301 + $0x3c8] sm:$0xff]
        %v1145 = vld [vmem:[%s301 + $0x3d0] sm:$0xff]
        %v1146 = vld [vmem:[%s301 + $0x3d8] sm:$0xff]
        %v1147 = vld [vmem:[%s301 + $0x3e0] sm:$0xff]
        %v1148 = vld [vmem:[%s301 + $0x3e8] sm:$0xff]
        %v1149 = vld [vmem:[%s301 + $0x3f0] sm:$0xff]
        %v1150 = vld [vmem:[%s301 + $0x3f8] sm:$0xff]
        %v1151 = vld [vmem:[%s301 + $0x400] sm:$0xff]
        %v1152 = vld [vmem:[%s301 + $0x408] sm:$0xff]
        %v1153 = vld [vmem:[%s301 + $0x410] sm:$0xff]
        %v1154 = vld [vmem:[%s301 + $0x418] sm:$0xff]
        %v1155 = vld [vmem:[%s301 + $0x420] sm:$0xff]
        %v1156 = vld [vmem:[%s301 + $0x428] sm:$0xff]
        %v1157 = vld [vmem:[%s301 + $0x430] sm:$0xff]
        %v1158 = vld [vmem:[%s301 + $0x438] sm:$0xff]
        %v1159 = vld [vmem:[%s301 + $0x440] sm:$0xff]
        %v1160 = vld [vmem:[%s301 + $0x448] sm:$0xff]
        %v1161 = vld [vmem:[%s301 + $0x450] sm:$0xff]
        %v1162 = vld [vmem:[%s301 + $0x458] sm:$0xff]
        %v1163 = vld [vmem:[%s301 + $0x460] sm:$0xff]
        %v1164 = vld [vmem:[%s301 + $0x468] sm:$0xff]
        %v1165 = vld [vmem:[%s301 + $0x470] sm:$0xff]
        %v1166 = vld [vmem:[%s301 + $0x478] sm:$0xff]
        %v1167 = vld [vmem:[%s301 + $0x480] sm:$0xff]
        %v1168 = vld [vmem:[%s301 + $0x488] sm:$0xff]
        %v1169 = vld [vmem:[%s301 + $0x490] sm:$0xff]
        %v1170 = vld [vmem:[%s301 + $0x498] sm:$0xff]
        %v1171 = vld [vmem:[%s301 + $0x4a0] sm:$0xff]
        %v1172 = vld [vmem:[%s301 + $0x4a8] sm:$0xff]
        %v1173 = vld [vmem:[%s301 + $0x4b0] sm:$0xff]
        %v1174 = vld [vmem:[%s301 + $0x4b8] sm:$0xff]
        %v1175 = vld [vmem:[%s301 + $0x4c0] sm:$0xff]
        %v1176 = vld [vmem:[%s301 + $0x4c8] sm:$0xff]
        %v1177 = vld [vmem:[%s301 + $0x4d0] sm:$0xff]
        %v1178 = vld [vmem:[%s301 + $0x4d8] sm:$0xff]
        %v1179 = vld [vmem:[%s301 + $0x4e0] sm:$0xff]
        %v1180 = vld [vmem:[%s301 + $0x4e8] sm:$0xff]
        %v1181 = vld [vmem:[%s301 + $0x4f0] sm:$0xff]
        %v1182 = vld [vmem:[%s301 + $0x4f8] sm:$0xff]
        %v1183 = vld [vmem:[%s301 + $0x500] sm:$0xff]
        %v1184 = vld [vmem:[%s301 + $0x508] sm:$0xff]
        %v1185 = vld [vmem:[%s301 + $0x510] sm:$0xff]
        %v1186 = vld [vmem:[%s301 + $0x518] sm:$0xff]
        %v1187 = vld [vmem:[%s301 + $0x520] sm:$0xff]
        %v1188 = vld [vmem:[%s301 + $0x528] sm:$0xff]
        %v1189 = vld [vmem:[%s301 + $0x530] sm:$0xff]
        %v1190 = vld [vmem:[%s301 + $0x538] sm:$0xff]
        %v1191 = vld [vmem:[%s301 + $0x540] sm:$0xff]
        %v1192 = vld [vmem:[%s301 + $0x548] sm:$0xff]
        %v1193 = vld [vmem:[%s301 + $0x550] sm:$0xff]
        %v1194 = vld [vmem:[%s301 + $0x558] sm:$0xff]
        %v1195 = vld [vmem:[%s301 + $0x560] sm:$0xff]
        %v1196 = vld [vmem:[%s301 + $0x568] sm:$0xff]
        %v1197 = vld [vmem:[%s301 + $0x570] sm:$0xff]
        %v1198 = vld [vmem:[%s301 + $0x578] sm:$0xff]
        %v1199 = vld [vmem:[%s301 + $0x580] sm:$0xff]
        %v1200 = vld [vmem:[%s301 + $0x588] sm:$0xff]
        %v1201 = vld [vmem:[%s301 + $0x590] sm:$0xff]
        %v1202 = vld [vmem:[%s301 + $0x598] sm:$0xff]
        %v1203 = vld [vmem:[%s301 + $0x5a0] sm:$0xff]
        %v1204 = vld [vmem:[%s301 + $0x5a8] sm:$0xff]
        %v1205 = vld [vmem:[%s301 + $0x5b0] sm:$0xff]
        %v1206 = vld [vmem:[%s301 + $0x5b8] sm:$0xff]
        %v1207 = vld [vmem:[%s301 + $0x5c0] sm:$0xff]
        %v1208 = vld [vmem:[%s301 + $0x5c8] sm:$0xff]
        %v1209 = vld [vmem:[%s301 + $0x5d0] sm:$0xff]
        %v1210 = vld [vmem:[%s301 + $0x5d8] sm:$0xff]
        %v1211 = vld [vmem:[%s301 + $0x5e0] sm:$0xff]
        %v1212 = vld [vmem:[%s301 + $0x5e8] sm:$0xff]
        %v1213 = vld [vmem:[%s301 + $0x5f0] sm:$0xff]
        %v1214 = vld [vmem:[%s301 + $0x5f8] sm:$0xff]
        %v1215 = vld [vmem:[%s301 + $0x600] sm:$0xff]
        %v1216 = vld [vmem:[%s301 + $0x608] sm:$0xff]
        %v1217 = vld [vmem:[%s301 + $0x610] sm:$0xff]
        %v1218 = vld [vmem:[%s301 + $0x618] sm:$0xff]
        %v1219 = vld [vmem:[%s301 + $0x620] sm:$0xff]
        %v1220 = vld [vmem:[%s301 + $0x628] sm:$0xff]
        %v1221 = vld [vmem:[%s301 + $0x630] sm:$0xff]
        %v1222 = vld [vmem:[%s301 + $0x638] sm:$0xff]
        %v1223 = vld [vmem:[%s301 + $0x640] sm:$0xff]
        %v1224 = vld [vmem:[%s301 + $0x648] sm:$0xff]
        %v1225 = vld [vmem:[%s301 + $0x650] sm:$0xff]
        %v1226 = vld [vmem:[%s301 + $0x658] sm:$0xff]
        %v1227 = vld [vmem:[%s301 + $0x660] sm:$0xff]
        %v1228 = vld [vmem:[%s301 + $0x668] sm:$0xff]
        %v1229 = vld [vmem:[%s301 + $0x670] sm:$0xff]
        %v1230 = vld [vmem:[%s301 + $0x678] sm:$0xff]
        %v1231 = vld [vmem:[%s301 + $0x680] sm:$0xff]
        %v1232 = vld [vmem:[%s301 + $0x688] sm:$0xff]
        %v1233 = vld [vmem:[%s301 + $0x690] sm:$0xff]
        %v1234 = vld [vmem:[%s301 + $0x698] sm:$0xff]
        %v1235 = vld [vmem:[%s301 + $0x6a0] sm:$0xff]
        %v1236 = vld [vmem:[%s301 + $0x6a8] sm:$0xff]
        %v1237 = vld [vmem:[%s301 + $0x6b0] sm:$0xff]
        %v1238 = vld [vmem:[%s301 + $0x6b8] sm:$0xff]
        %v1239 = vld [vmem:[%s301 + $0x6c0] sm:$0xff]
        %v1240 = vld [vmem:[%s301 + $0x6c8] sm:$0xff]
        %v1241 = vld [vmem:[%s301 + $0x6d0] sm:$0xff]
        %v1242 = vld [vmem:[%s301 + $0x6d8] sm:$0xff]
        %v1243 = vld [vmem:[%s301 + $0x6e0] sm:$0xff]
        %v1244 = vld [vmem:[%s301 + $0x6e8] sm:$0xff]
        %v1245 = vld [vmem:[%s301 + $0x6f0] sm:$0xff]
        %v1246 = vld [vmem:[%s301 + $0x6f8] sm:$0xff]
        %v1247 = vld [vmem:[%s301 + $0x700] sm:$0xff]
        %v1248 = vld [vmem:[%s301 + $0x708] sm:$0xff]
        %v1249 = vld [vmem:[%s301 + $0x710] sm:$0xff]
        %v1250 = vld [vmem:[%s301 + $0x718] sm:$0xff]
        %v1251 = vld [vmem:[%s301 + $0x720] sm:$0xff]
        %v1252 = vld [vmem:[%s301 + $0x728] sm:$0xff]
        %v1253 = vld [vmem:[%s301 + $0x730] sm:$0xff]
        %v1254 = vld [vmem:[%s301 + $0x738] sm:$0xff]
        %v1255 = vld [vmem:[%s301 + $0x740] sm:$0xff]
        %v1256 = vld [vmem:[%s301 + $0x748] sm:$0xff]
        %v1257 = vld [vmem:[%s301 + $0x750] sm:$0xff]
        %v1258 = vld [vmem:[%s301 + $0x758] sm:$0xff]
        %v1259 = vld [vmem:[%s301 + $0x760] sm:$0xff]
        %v1260 = vld [vmem:[%s301 + $0x768] sm:$0xff]
        %v1261 = vld [vmem:[%s301 + $0x770] sm:$0xff]
        %v1262 = vld [vmem:[%s301 + $0x778] sm:$0xff]
        %v1263 = vld [vmem:[%s301 + $0x780] sm:$0xff]
        %v1264 = vld [vmem:[%s301 + $0x788] sm:$0xff]
        %v1265 = vld [vmem:[%s301 + $0x790] sm:$0xff]
        %v1266 = vld [vmem:[%s301 + $0x798] sm:$0xff]
        %v1267 = vld [vmem:[%s301 + $0x7a0] sm:$0xff]
        %v1268 = vld [vmem:[%s301 + $0x7a8] sm:$0xff]
        %v1269 = vld [vmem:[%s301 + $0x7b0] sm:$0xff]
        %v1270 = vld [vmem:[%s301 + $0x7b8] sm:$0xff]
        %v1271 = vld [vmem:[%s301 + $0x7c0] sm:$0xff]
        %v1272 = vld [vmem:[%s301 + $0x7c8] sm:$0xff]
        %v1273 = vld [vmem:[%s301 + $0x7d0] sm:$0xff]
        %v1274 = vld [vmem:[%s301 + $0x7d8] sm:$0xff]
        %v1275 = vld [vmem:[%s301 + $0x7e0] sm:$0xff]
        %v1276 = vld [vmem:[%s301 + $0x7e8] sm:$0xff]
        %v1277 = vld [vmem:[%s301 + $0x7f0] sm:$0xff]
        %v1278 = vld [vmem:[%s301 + $0x7f8] sm:$0xff]
        %v1279 = vld [vmem:[%s301 + $0x800] sm:$0xff]
        %v1280 = vld [vmem:[%s301 + $0x808] sm:$0xff]
        %v1281 = vld [vmem:[%s301 + $0x810] sm:$0xff]
        %v1282 = vld [vmem:[%s301 + $0x818] sm:$0xff]
        %v1283 = vld [vmem:[%s301 + $0x820] sm:$0xff]
        %v1284 = vld [vmem:[%s301 + $0x828] sm:$0xff]
        %v1285 = vld [vmem:[%s301 + $0x830] sm:$0xff]
        %v1286 = vld [vmem:[%s301 + $0x838] sm:$0xff]
        %v1287 = vld [vmem:[%s301 + $0x840] sm:$0xff]
        %v1288 = vld [vmem:[%s301 + $0x848] sm:$0xff]
        %v1289 = vld [vmem:[%s301 + $0x850] sm:$0xff]
        %v1290 = vld [vmem:[%s301 + $0x858] sm:$0xff]
        %v1291 = vld [vmem:[%s301 + $0x860] sm:$0xff]
        %v1292 = vld [vmem:[%s301 + $0x868] sm:$0xff]
        %v1293 = vld [vmem:[%s301 + $0x870] sm:$0xff]
        %v1294 = vld [vmem:[%s301 + $0x878] sm:$0xff]
        %v1295 = vld [vmem:[%s301 + $0x880] sm:$0xff]
        %v1296 = vld [vmem:[%s301 + $0x888] sm:$0xff]
        %v1297 = vld [vmem:[%s301 + $0x890] sm:$0xff]
        %v1298 = vld [vmem:[%s301 + $0x898] sm:$0xff]
        %v1299 = vld [vmem:[%s301 + $0x8a0] sm:$0xff]
        %v1300 = vld [vmem:[%s301 + $0x8a8] sm:$0xff]
        %v1301 = vld [vmem:[%s301 + $0x8b0] sm:$0xff]
        %v1302 = vld [vmem:[%s301 + $0x8b8] sm:$0xff]
        %v1303 = vld [vmem:[%s301 + $0x8c0] sm:$0xff]
        %v1304 = vld [vmem:[%s301 + $0x8c8] sm:$0xff]
        %v1305 = vld [vmem:[%s301 + $0x8d0] sm:$0xff]
        %v1306 = vld [vmem:[%s301 + $0x8d8] sm:$0xff]
        %v1307 = vld [vmem:[%s301 + $0x8e0] sm:$0xff]
        %v1308 = vld [vmem:[%s301 + $0x8e8] sm:$0xff]
        %v1309 = vld [vmem:[%s301 + $0x8f0] sm:$0xff]
        %v1310 = vld [vmem:[%s301 + $0x8f8] sm:$0xff]
        %v1599 = vunpack.c.l.b16 %v1023
        %v1600 = vunpack.c.h.b16 %v1023
        %v1601 = vunpack.c.l.b16 %v1024
        %v1602 = vunpack.c.h.b16 %v1024
        %v1603 = vunpack.c.l.b16 %v1025
        %v1604 = vunpack.c.h.b16 %v1025
        %v1605 = vunpack.c.l.b16 %v1026
        %v1606 = vunpack.c.h.b16 %v1026
        %v1607 = vunpack.c.l.b16 %v1027
        %v1608 = vunpack.c.h.b16 %v1027
        %v1609 = vunpack.c.l.b16 %v1028
        %v1610 = vunpack.c.h.b16 %v1028
        %v1611 = vunpack.c.l.b16 %v1029
        %v1612 = vunpack.c.h.b16 %v1029
        %v1613 = vunpack.c.l.b16 %v1030
        %v1614 = vunpack.c.h.b16 %v1030
        %v1615 = vunpack.c.l.b16 %v1031
        %v1616 = vunpack.c.h.b16 %v1031
        %v1617 = vunpack.c.l.b16 %v1032
        %v1618 = vunpack.c.h.b16 %v1032
        %v1619 = vunpack.c.l.b16 %v1033
        %v1620 = vunpack.c.h.b16 %v1033
        %v1621 = vunpack.c.l.b16 %v1034
        %v1622 = vunpack.c.h.b16 %v1034
        %v1623 = vunpack.c.l.b16 %v1035
        %v1624 = vunpack.c.h.b16 %v1035
        %v1625 = vunpack.c.l.b16 %v1036
        %v1626 = vunpack.c.h.b16 %v1036
        %v1627 = vunpack.c.l.b16 %v1037
        %v1628 = vunpack.c.h.b16 %v1037
        %v1629 = vunpack.c.l.b16 %v1038
        %v1630 = vunpack.c.h.b16 %v1038
        %v1631 = vunpack.c.l.b16 %v1039
        %v1632 = vunpack.c.h.b16 %v1039
        %v1633 = vunpack.c.l.b16 %v1040
        %v1634 = vunpack.c.h.b16 %v1040
        %v1635 = vunpack.c.l.b16 %v1041
        %v1636 = vunpack.c.h.b16 %v1041
        %v1637 = vunpack.c.l.b16 %v1042
        %v1638 = vunpack.c.h.b16 %v1042
        %v1639 = vunpack.c.l.b16 %v1043
        %v1640 = vunpack.c.h.b16 %v1043
        %v1641 = vunpack.c.l.b16 %v1044
        %v1642 = vunpack.c.h.b16 %v1044
        %v1643 = vunpack.c.l.b16 %v1045
        %v1644 = vunpack.c.h.b16 %v1045
        %v1645 = vunpack.c.l.b16 %v1046
        %v1646 = vunpack.c.h.b16 %v1046
        %v1647 = vunpack.c.l.b16 %v1047
        %v1648 = vunpack.c.h.b16 %v1047
        %v1649 = vunpack.c.l.b16 %v1048
        %v1650 = vunpack.c.h.b16 %v1048
        %v1651 = vunpack.c.l.b16 %v1049
        %v1652 = vunpack.c.h.b16 %v1049
        %v1653 = vunpack.c.l.b16 %v1050
        %v1654 = vunpack.c.h.b16 %v1050
        %v1655 = vunpack.c.l.b16 %v1051
        %v1656 = vunpack.c.h.b16 %v1051
        %v1657 = vunpack.c.l.b16 %v1052
        %v1658 = vunpack.c.h.b16 %v1052
        %v1659 = vunpack.c.l.b16 %v1053
        %v1660 = vunpack.c.h.b16 %v1053
        %v1661 = vunpack.c.l.b16 %v1054
        %v1662 = vunpack.c.h.b16 %v1054
        %v1663 = vunpack.c.l.b16 %v1055
        %v1664 = vunpack.c.h.b16 %v1055
        %v1665 = vunpack.c.l.b16 %v1056
        %v1666 = vunpack.c.h.b16 %v1056
        %v1667 = vunpack.c.l.b16 %v1057
        %v1668 = vunpack.c.h.b16 %v1057
        %v1669 = vunpack.c.l.b16 %v1058
        %v1670 = vunpack.c.h.b16 %v1058
        %v1671 = vunpack.c.l.b16 %v1059
        %v1672 = vunpack.c.h.b16 %v1059
        %v1673 = vunpack.c.l.b16 %v1060
        %v1674 = vunpack.c.h.b16 %v1060
        %v1675 = vunpack.c.l.b16 %v1061
        %v1676 = vunpack.c.h.b16 %v1061
        %v1677 = vunpack.c.l.b16 %v1062
        %v1678 = vunpack.c.h.b16 %v1062
        %v1679 = vunpack.c.l.b16 %v1063
        %v1680 = vunpack.c.h.b16 %v1063
        %v1681 = vunpack.c.l.b16 %v1064
        %v1682 = vunpack.c.h.b16 %v1064
        %v1683 = vunpack.c.l.b16 %v1065
        %v1684 = vunpack.c.h.b16 %v1065
        %v1685 = vunpack.c.l.b16 %v1066
        %v1686 = vunpack.c.h.b16 %v1066
        %v1687 = vunpack.c.l.b16 %v1067
        %v1688 = vunpack.c.h.b16 %v1067
        %v1689 = vunpack.c.l.b16 %v1068
        %v1690 = vunpack.c.h.b16 %v1068
        %v1691 = vunpack.c.l.b16 %v1069
        %v1692 = vunpack.c.h.b16 %v1069
        %v1693 = vunpack.c.l.b16 %v1070
        %v1694 = vunpack.c.h.b16 %v1070
        %v1695 = vunpack.c.l.b16 %v1071
        %v1696 = vunpack.c.h.b16 %v1071
        %v1697 = vunpack.c.l.b16 %v1072
        %v1698 = vunpack.c.h.b16 %v1072
        %v1699 = vunpack.c.l.b16 %v1073
        %v1700 = vunpack.c.h.b16 %v1073
        %v1701 = vunpack.c.l.b16 %v1074
        %v1702 = vunpack.c.h.b16 %v1074
        %v1703 = vunpack.c.l.b16 %v1075
        %v1704 = vunpack.c.h.b16 %v1075
        %v1705 = vunpack.c.l.b16 %v1076
        %v1706 = vunpack.c.h.b16 %v1076
        %v1707 = vunpack.c.l.b16 %v1077
        %v1708 = vunpack.c.h.b16 %v1077
        %v1709 = vunpack.c.l.b16 %v1078
        %v1710 = vunpack.c.h.b16 %v1078
        %v1711 = vunpack.c.l.b16 %v1079
        %v1712 = vunpack.c.h.b16 %v1079
        %v1713 = vunpack.c.l.b16 %v1080
        %v1714 = vunpack.c.h.b16 %v1080
        %v1715 = vunpack.c.l.b16 %v1081
        %v1716 = vunpack.c.h.b16 %v1081
        %v1717 = vunpack.c.l.b16 %v1082
        %v1718 = vunpack.c.h.b16 %v1082
        %v1719 = vunpack.c.l.b16 %v1083
        %v1720 = vunpack.c.h.b16 %v1083
        %v1721 = vunpack.c.l.b16 %v1084
        %v1722 = vunpack.c.h.b16 %v1084
        %v1723 = vunpack.c.l.b16 %v1085
        %v1724 = vunpack.c.h.b16 %v1085
        %v1725 = vunpack.c.l.b16 %v1086
        %v1726 = vunpack.c.h.b16 %v1086
        %v1727 = vunpack.c.l.b16 %v1087
        %v1728 = vunpack.c.h.b16 %v1087
        %v1729 = vunpack.c.l.b16 %v1088
        %v1730 = vunpack.c.h.b16 %v1088
        %v1731 = vunpack.c.l.b16 %v1089
        %v1732 = vunpack.c.h.b16 %v1089
        %v1733 = vunpack.c.l.b16 %v1090
        %v1734 = vunpack.c.h.b16 %v1090
        %v1735 = vunpack.c.l.b16 %v1091
        %v1736 = vunpack.c.h.b16 %v1091
        %v1737 = vunpack.c.l.b16 %v1092
        %v1738 = vunpack.c.h.b16 %v1092
        %v1739 = vunpack.c.l.b16 %v1093
        %v1740 = vunpack.c.h.b16 %v1093
        %v1741 = vunpack.c.l.b16 %v1094
        %v1742 = vunpack.c.h.b16 %v1094
        %v1743 = vunpack.c.l.b16 %v1095
        %v1744 = vunpack.c.h.b16 %v1095
        %v1745 = vunpack.c.l.b16 %v1096
        %v1746 = vunpack.c.h.b16 %v1096
        %v1747 = vunpack.c.l.b16 %v1097
        %v1748 = vunpack.c.h.b16 %v1097
        %v1749 = vunpack.c.l.b16 %v1098
        %v1750 = vunpack.c.h.b16 %v1098
        %v1751 = vunpack.c.l.b16 %v1099
        %v1752 = vunpack.c.h.b16 %v1099
        %v1753 = vunpack.c.l.b16 %v1100
        %v1754 = vunpack.c.h.b16 %v1100
        %v1755 = vunpack.c.l.b16 %v1101
        %v1756 = vunpack.c.h.b16 %v1101
        %v1757 = vunpack.c.l.b16 %v1102
        %v1758 = vunpack.c.h.b16 %v1102
        %v1759 = vunpack.c.l.b16 %v1103
        %v1760 = vunpack.c.h.b16 %v1103
        %v1761 = vunpack.c.l.b16 %v1104
        %v1762 = vunpack.c.h.b16 %v1104
        %v1763 = vunpack.c.l.b16 %v1105
        %v1764 = vunpack.c.h.b16 %v1105
        %v1765 = vunpack.c.l.b16 %v1106
        %v1766 = vunpack.c.h.b16 %v1106
        %v1767 = vunpack.c.l.b16 %v1107
        %v1768 = vunpack.c.h.b16 %v1107
        %v1769 = vunpack.c.l.b16 %v1108
        %v1770 = vunpack.c.h.b16 %v1108
        %v1771 = vunpack.c.l.b16 %v1109
        %v1772 = vunpack.c.h.b16 %v1109
        %v1773 = vunpack.c.l.b16 %v1110
        %v1774 = vunpack.c.h.b16 %v1110
        %v1775 = vunpack.c.l.b16 %v1111
        %v1776 = vunpack.c.h.b16 %v1111
        %v1777 = vunpack.c.l.b16 %v1112
        %v1778 = vunpack.c.h.b16 %v1112
        %v1779 = vunpack.c.l.b16 %v1113
        %v1780 = vunpack.c.h.b16 %v1113
        %v1781 = vunpack.c.l.b16 %v1114
        %v1782 = vunpack.c.h.b16 %v1114
        %v1783 = vunpack.c.l.b16 %v1115
        %v1784 = vunpack.c.h.b16 %v1115
        %v1785 = vunpack.c.l.b16 %v1116
        %v1786 = vunpack.c.h.b16 %v1116
        %v1787 = vunpack.c.l.b16 %v1117
        %v1788 = vunpack.c.h.b16 %v1117
        %v1789 = vunpack.c.l.b16 %v1118
        %v1790 = vunpack.c.h.b16 %v1118
        %v1791 = vunpack.c.l.b16 %v1119
        %v1792 = vunpack.c.h.b16 %v1119
        %v1793 = vunpack.c.l.b16 %v1120
        %v1794 = vunpack.c.h.b16 %v1120
        %v1795 = vunpack.c.l.b16 %v1121
        %v1796 = vunpack.c.h.b16 %v1121
        %v1797 = vunpack.c.l.b16 %v1122
        %v1798 = vunpack.c.h.b16 %v1122
        %v1799 = vunpack.c.l.b16 %v1123
        %v1800 = vunpack.c.h.b16 %v1123
        %v1801 = vunpack.c.l.b16 %v1124
        %v1802 = vunpack.c.h.b16 %v1124
        %v1803 = vunpack.c.l.b16 %v1125
        %v1804 = vunpack.c.h.b16 %v1125
        %v1805 = vunpack.c.l.b16 %v1126
        %v1806 = vunpack.c.h.b16 %v1126
        %v1807 = vunpack.c.l.b16 %v1127
        %v1808 = vunpack.c.h.b16 %v1127
        %v1809 = vunpack.c.l.b16 %v1128
        %v1810 = vunpack.c.h.b16 %v1128
        %v1811 = vunpack.c.l.b16 %v1129
        %v1812 = vunpack.c.h.b16 %v1129
        %v1813 = vunpack.c.l.b16 %v1130
        %v1814 = vunpack.c.h.b16 %v1130
        %v1815 = vunpack.c.l.b16 %v1131
        %v1816 = vunpack.c.h.b16 %v1131
        %v1817 = vunpack.c.l.b16 %v1132
        %v1818 = vunpack.c.h.b16 %v1132
        %v1819 = vunpack.c.l.b16 %v1133
        %v1820 = vunpack.c.h.b16 %v1133
        %v1821 = vunpack.c.l.b16 %v1134
        %v1822 = vunpack.c.h.b16 %v1134
        %v1823 = vunpack.c.l.b16 %v1135
        %v1824 = vunpack.c.h.b16 %v1135
        %v1825 = vunpack.c.l.b16 %v1136
        %v1826 = vunpack.c.h.b16 %v1136
        %v1827 = vunpack.c.l.b16 %v1137
        %v1828 = vunpack.c.h.b16 %v1137
        %v1829 = vunpack.c.l.b16 %v1138
        %v1830 = vunpack.c.h.b16 %v1138
        %v1831 = vunpack.c.l.b16 %v1139
        %v1832 = vunpack.c.h.b16 %v1139
        %v1833 = vunpack.c.l.b16 %v1140
        %v1834 = vunpack.c.h.b16 %v1140
        %v1835 = vunpack.c.l.b16 %v1141
        %v1836 = vunpack.c.h.b16 %v1141
        %v1837 = vunpack.c.l.b16 %v1142
        %v1838 = vunpack.c.h.b16 %v1142
        %v1839 = vunpack.c.l.b16 %v1143
        %v1840 = vunpack.c.h.b16 %v1143
        %v1841 = vunpack.c.l.b16 %v1144
        %v1842 = vunpack.c.h.b16 %v1144
        %v1843 = vunpack.c.l.b16 %v1145
        %v1844 = vunpack.c.h.b16 %v1145
        %v1845 = vunpack.c.l.b16 %v1146
        %v1846 = vunpack.c.h.b16 %v1146
        %v1847 = vunpack.c.l.b16 %v1147
        %v1848 = vunpack.c.h.b16 %v1147
        %v1849 = vunpack.c.l.b16 %v1148
        %v1850 = vunpack.c.h.b16 %v1148
        %v1851 = vunpack.c.l.b16 %v1149
        %v1852 = vunpack.c.h.b16 %v1149
        %v1853 = vunpack.c.l.b16 %v1150
        %v1854 = vunpack.c.h.b16 %v1150
        %v1855 = vunpack.c.l.b16 %v1151
        %v1856 = vunpack.c.h.b16 %v1151
        %v1857 = vunpack.c.l.b16 %v1152
        %v1858 = vunpack.c.h.b16 %v1152
        %v1859 = vunpack.c.l.b16 %v1153
        %v1860 = vunpack.c.h.b16 %v1153
        %v1861 = vunpack.c.l.b16 %v1154
        %v1862 = vunpack.c.h.b16 %v1154
        %v1863 = vunpack.c.l.b16 %v1155
        %v1864 = vunpack.c.h.b16 %v1155
        %v1865 = vunpack.c.l.b16 %v1156
        %v1866 = vunpack.c.h.b16 %v1156
        %v1867 = vunpack.c.l.b16 %v1157
        %v1868 = vunpack.c.h.b16 %v1157
        %v1869 = vunpack.c.l.b16 %v1158
        %v1870 = vunpack.c.h.b16 %v1158
        %v1871 = vunpack.c.l.b16 %v1159
        %v1872 = vunpack.c.h.b16 %v1159
        %v1873 = vunpack.c.l.b16 %v1160
        %v1874 = vunpack.c.h.b16 %v1160
        %v1875 = vunpack.c.l.b16 %v1161
        %v1876 = vunpack.c.h.b16 %v1161
        %v1877 = vunpack.c.l.b16 %v1162
        %v1878 = vunpack.c.h.b16 %v1162
        %v1879 = vunpack.c.l.b16 %v1163
        %v1880 = vunpack.c.h.b16 %v1163
        %v1881 = vunpack.c.l.b16 %v1164
        %v1882 = vunpack.c.h.b16 %v1164
        %v1883 = vunpack.c.l.b16 %v1165
        %v1884 = vunpack.c.h.b16 %v1165
        %v1885 = vunpack.c.l.b16 %v1166
        %v1886 = vunpack.c.h.b16 %v1166
        %v1887 = vunpack.c.l.b16 %v1167
        %v1888 = vunpack.c.h.b16 %v1167
        %v1889 = vunpack.c.l.b16 %v1168
        %v1890 = vunpack.c.h.b16 %v1168
        %v1891 = vunpack.c.l.b16 %v1169
        %v1892 = vunpack.c.h.b16 %v1169
        %v1893 = vunpack.c.l.b16 %v1170
        %v1894 = vunpack.c.h.b16 %v1170
        %v1895 = vunpack.c.l.b16 %v1171
        %v1896 = vunpack.c.h.b16 %v1171
        %v1897 = vunpack.c.l.b16 %v1172
        %v1898 = vunpack.c.h.b16 %v1172
        %v1899 = vunpack.c.l.b16 %v1173
        %v1900 = vunpack.c.h.b16 %v1173
        %v1901 = vunpack.c.l.b16 %v1174
        %v1902 = vunpack.c.h.b16 %v1174
        %v1903 = vunpack.c.l.b16 %v1175
        %v1904 = vunpack.c.h.b16 %v1175
        %v1905 = vunpack.c.l.b16 %v1176
        %v1906 = vunpack.c.h.b16 %v1176
        %v1907 = vunpack.c.l.b16 %v1177
        %v1908 = vunpack.c.h.b16 %v1177
        %v1909 = vunpack.c.l.b16 %v1178
        %v1910 = vunpack.c.h.b16 %v1178
        %v1911 = vunpack.c.l.b16 %v1179
        %v1912 = vunpack.c.h.b16 %v1179
        %v1913 = vunpack.c.l.b16 %v1180
        %v1914 = vunpack.c.h.b16 %v1180
        %v1915 = vunpack.c.l.b16 %v1181
        %v1916 = vunpack.c.h.b16 %v1181
        %v1917 = vunpack.c.l.b16 %v1182
        %v1918 = vunpack.c.h.b16 %v1182
        %v1919 = vunpack.c.l.b16 %v1183
        %v1920 = vunpack.c.h.b16 %v1183
        %v1921 = vunpack.c.l.b16 %v1184
        %v1922 = vunpack.c.h.b16 %v1184
        %v1923 = vunpack.c.l.b16 %v1185
        %v1924 = vunpack.c.h.b16 %v1185
        %v1925 = vunpack.c.l.b16 %v1186
        %v1926 = vunpack.c.h.b16 %v1186
        %v1927 = vunpack.c.l.b16 %v1187
        %v1928 = vunpack.c.h.b16 %v1187
        %v1929 = vunpack.c.l.b16 %v1188
        %v1930 = vunpack.c.h.b16 %v1188
        %v1931 = vunpack.c.l.b16 %v1189
        %v1932 = vunpack.c.h.b16 %v1189
        %v1933 = vunpack.c.l.b16 %v1190
        %v1934 = vunpack.c.h.b16 %v1190
        %v1935 = vunpack.c.l.b16 %v1191
        %v1936 = vunpack.c.h.b16 %v1191
        %v1937 = vunpack.c.l.b16 %v1192
        %v1938 = vunpack.c.h.b16 %v1192
        %v1939 = vunpack.c.l.b16 %v1193
        %v1940 = vunpack.c.h.b16 %v1193
        %v1941 = vunpack.c.l.b16 %v1194
        %v1942 = vunpack.c.h.b16 %v1194
        %v1943 = vunpack.c.l.b16 %v1195
        %v1944 = vunpack.c.h.b16 %v1195
        %v1945 = vunpack.c.l.b16 %v1196
        %v1946 = vunpack.c.h.b16 %v1196
        %v1947 = vunpack.c.l.b16 %v1197
        %v1948 = vunpack.c.h.b16 %v1197
        %v1949 = vunpack.c.l.b16 %v1198
        %v1950 = vunpack.c.h.b16 %v1198
        %v1951 = vunpack.c.l.b16 %v1199
        %v1952 = vunpack.c.h.b16 %v1199
        %v1953 = vunpack.c.l.b16 %v1200
        %v1954 = vunpack.c.h.b16 %v1200
        %v1955 = vunpack.c.l.b16 %v1201
        %v1956 = vunpack.c.h.b16 %v1201
        %v1957 = vunpack.c.l.b16 %v1202
        %v1958 = vunpack.c.h.b16 %v1202
        %v1959 = vunpack.c.l.b16 %v1203
        %v1960 = vunpack.c.h.b16 %v1203
        %v1961 = vunpack.c.l.b16 %v1204
        %v1962 = vunpack.c.h.b16 %v1204
        %v1963 = vunpack.c.l.b16 %v1205
        %v1964 = vunpack.c.h.b16 %v1205
        %v1965 = vunpack.c.l.b16 %v1206
        %v1966 = vunpack.c.h.b16 %v1206
        %v1967 = vunpack.c.l.b16 %v1207
        %v1968 = vunpack.c.h.b16 %v1207
        %v1969 = vunpack.c.l.b16 %v1208
        %v1970 = vunpack.c.h.b16 %v1208
        %v1971 = vunpack.c.l.b16 %v1209
        %v1972 = vunpack.c.h.b16 %v1209
        %v1973 = vunpack.c.l.b16 %v1210
        %v1974 = vunpack.c.h.b16 %v1210
        %v1975 = vunpack.c.l.b16 %v1211
        %v1976 = vunpack.c.h.b16 %v1211
        %v1977 = vunpack.c.l.b16 %v1212
        %v1978 = vunpack.c.h.b16 %v1212
        %v1979 = vunpack.c.l.b16 %v1213
        %v1980 = vunpack.c.h.b16 %v1213
        %v1981 = vunpack.c.l.b16 %v1214
        %v1982 = vunpack.c.h.b16 %v1214
        %v1983 = vunpack.c.l.b16 %v1215
        %v1984 = vunpack.c.h.b16 %v1215
        %v1985 = vunpack.c.l.b16 %v1216
        %v1986 = vunpack.c.h.b16 %v1216
        %v1987 = vunpack.c.l.b16 %v1217
        %v1988 = vunpack.c.h.b16 %v1217
        %v1989 = vunpack.c.l.b16 %v1218
        %v1990 = vunpack.c.h.b16 %v1218
        %v1991 = vunpack.c.l.b16 %v1219
        %v1992 = vunpack.c.h.b16 %v1219
        %v1993 = vunpack.c.l.b16 %v1220
        %v1994 = vunpack.c.h.b16 %v1220
        %v1995 = vunpack.c.l.b16 %v1221
        %v1996 = vunpack.c.h.b16 %v1221
        %v1997 = vunpack.c.l.b16 %v1222
        %v1998 = vunpack.c.h.b16 %v1222
        %v1999 = vunpack.c.l.b16 %v1223
        %v2000 = vunpack.c.h.b16 %v1223
        %v2001 = vunpack.c.l.b16 %v1224
        %v2002 = vunpack.c.h.b16 %v1224
        %v2003 = vunpack.c.l.b16 %v1225
        %v2004 = vunpack.c.h.b16 %v1225
        %v2005 = vunpack.c.l.b16 %v1226
        %v2006 = vunpack.c.h.b16 %v1226
        %v2007 = vunpack.c.l.b16 %v1227
        %v2008 = vunpack.c.h.b16 %v1227
        %v2009 = vunpack.c.l.b16 %v1228
        %v2010 = vunpack.c.h.b16 %v1228
        %v2011 = vunpack.c.l.b16 %v1229
        %v2012 = vunpack.c.h.b16 %v1229
        %v2013 = vunpack.c.l.b16 %v1230
        %v2014 = vunpack.c.h.b16 %v1230
        %v2015 = vunpack.c.l.b16 %v1231
        %v2016 = vunpack.c.h.b16 %v1231
        %v2017 = vunpack.c.l.b16 %v1232
        %v2018 = vunpack.c.h.b16 %v1232
        %v2019 = vunpack.c.l.b16 %v1233
        %v2020 = vunpack.c.h.b16 %v1233
        %v2021 = vunpack.c.l.b16 %v1234
        %v2022 = vunpack.c.h.b16 %v1234
        %v2023 = vunpack.c.l.b16 %v1235
        %v2024 = vunpack.c.h.b16 %v1235
        %v2025 = vunpack.c.l.b16 %v1236
        %v2026 = vunpack.c.h.b16 %v1236
        %v2027 = vunpack.c.l.b16 %v1237
        %v2028 = vunpack.c.h.b16 %v1237
        %v2029 = vunpack.c.l.b16 %v1238
        %v2030 = vunpack.c.h.b16 %v1238
        %v2031 = vunpack.c.l.b16 %v1239
        %v2032 = vunpack.c.h.b16 %v1239
        %v2033 = vunpack.c.l.b16 %v1240
        %v2034 = vunpack.c.h.b16 %v1240
        %v2035 = vunpack.c.l.b16 %v1241
        %v2036 = vunpack.c.h.b16 %v1241
        %v2037 = vunpack.c.l.b16 %v1242
        %v2038 = vunpack.c.h.b16 %v1242
        %v2039 = vunpack.c.l.b16 %v1243
        %v2040 = vunpack.c.h.b16 %v1243
        %v2041 = vunpack.c.l.b16 %v1244
        %v2042 = vunpack.c.h.b16 %v1244
        %v2043 = vunpack.c.l.b16 %v1245
        %v2044 = vunpack.c.h.b16 %v1245
        %v2045 = vunpack.c.l.b16 %v1246
        %v2046 = vunpack.c.h.b16 %v1246
        %v2047 = vunpack.c.l.b16 %v1247
        %v2048 = vunpack.c.h.b16 %v1247
        %v2049 = vunpack.c.l.b16 %v1248
        %v2050 = vunpack.c.h.b16 %v1248
        %v2051 = vunpack.c.l.b16 %v1249
        %v2052 = vunpack.c.h.b16 %v1249
        %v2053 = vunpack.c.l.b16 %v1250
        %v2054 = vunpack.c.h.b16 %v1250
        %v2055 = vunpack.c.l.b16 %v1251
        %v2056 = vunpack.c.h.b16 %v1251
        %v2057 = vunpack.c.l.b16 %v1252
        %v2058 = vunpack.c.h.b16 %v1252
        %v2059 = vunpack.c.l.b16 %v1253
        %v2060 = vunpack.c.h.b16 %v1253
        %v2061 = vunpack.c.l.b16 %v1254
        %v2062 = vunpack.c.h.b16 %v1254
        %v2063 = vunpack.c.l.b16 %v1255
        %v2064 = vunpack.c.h.b16 %v1255
        %v2065 = vunpack.c.l.b16 %v1256
        %v2066 = vunpack.c.h.b16 %v1256
        %v2067 = vunpack.c.l.b16 %v1257
        %v2068 = vunpack.c.h.b16 %v1257
        %v2069 = vunpack.c.l.b16 %v1258
        %v2070 = vunpack.c.h.b16 %v1258
        %v2071 = vunpack.c.l.b16 %v1259
        %v2072 = vunpack.c.h.b16 %v1259
        %v2073 = vunpack.c.l.b16 %v1260
        %v2074 = vunpack.c.h.b16 %v1260
        %v2075 = vunpack.c.l.b16 %v1261
        %v2076 = vunpack.c.h.b16 %v1261
        %v2077 = vunpack.c.l.b16 %v1262
        %v2078 = vunpack.c.h.b16 %v1262
        %v2079 = vunpack.c.l.b16 %v1263
        %v2080 = vunpack.c.h.b16 %v1263
        %v2081 = vunpack.c.l.b16 %v1264
        %v2082 = vunpack.c.h.b16 %v1264
        %v2083 = vunpack.c.l.b16 %v1265
        %v2084 = vunpack.c.h.b16 %v1265
        %v2085 = vunpack.c.l.b16 %v1266
        %v2086 = vunpack.c.h.b16 %v1266
        %v2087 = vunpack.c.l.b16 %v1267
        %v2088 = vunpack.c.h.b16 %v1267
        %v2089 = vunpack.c.l.b16 %v1268
        %v2090 = vunpack.c.h.b16 %v1268
        %v2091 = vunpack.c.l.b16 %v1269
        %v2092 = vunpack.c.h.b16 %v1269
        %v2093 = vunpack.c.l.b16 %v1270
        %v2094 = vunpack.c.h.b16 %v1270
        %v2095 = vunpack.c.l.b16 %v1271
        %v2096 = vunpack.c.h.b16 %v1271
        %v2097 = vunpack.c.l.b16 %v1272
        %v2098 = vunpack.c.h.b16 %v1272
        %v2099 = vunpack.c.l.b16 %v1273
        %v2100 = vunpack.c.h.b16 %v1273
        %v2101 = vunpack.c.l.b16 %v1274
        %v2102 = vunpack.c.h.b16 %v1274
        %v2103 = vunpack.c.l.b16 %v1275
        %v2104 = vunpack.c.h.b16 %v1275
        %v2105 = vunpack.c.l.b16 %v1276
        %v2106 = vunpack.c.h.b16 %v1276
        %v2107 = vunpack.c.l.b16 %v1277
        %v2108 = vunpack.c.h.b16 %v1277
        %v2109 = vunpack.c.l.b16 %v1278
        %v2110 = vunpack.c.h.b16 %v1278
        %v2111 = vunpack.c.l.b16 %v1279
        %v2112 = vunpack.c.h.b16 %v1279
        %v2113 = vunpack.c.l.b16 %v1280
        %v2114 = vunpack.c.h.b16 %v1280
        %v2115 = vunpack.c.l.b16 %v1281
        %v2116 = vunpack.c.h.b16 %v1281
        %v2117 = vunpack.c.l.b16 %v1282
        %v2118 = vunpack.c.h.b16 %v1282
        %v2119 = vunpack.c.l.b16 %v1283
        %v2120 = vunpack.c.h.b16 %v1283
        %v2121 = vunpack.c.l.b16 %v1284
        %v2122 = vunpack.c.h.b16 %v1284
        %v2123 = vunpack.c.l.b16 %v1285
        %v2124 = vunpack.c.h.b16 %v1285
        %v2125 = vunpack.c.l.b16 %v1286
        %v2126 = vunpack.c.h.b16 %v1286
        %v2127 = vunpack.c.l.b16 %v1287
        %v2128 = vunpack.c.h.b16 %v1287
        %v2129 = vunpack.c.l.b16 %v1288
        %v2130 = vunpack.c.h.b16 %v1288
        %v2131 = vunpack.c.l.b16 %v1289
        %v2132 = vunpack.c.h.b16 %v1289
        %v2133 = vunpack.c.l.b16 %v1290
        %v2134 = vunpack.c.h.b16 %v1290
        %v2135 = vunpack.c.l.b16 %v1291
        %v2136 = vunpack.c.h.b16 %v1291
        %v2137 = vunpack.c.l.b16 %v1292
        %v2138 = vunpack.c.h.b16 %v1292
        %v2139 = vunpack.c.l.b16 %v1293
        %v2140 = vunpack.c.h.b16 %v1293
        %v2141 = vunpack.c.l.b16 %v1294
        %v2142 = vunpack.c.h.b16 %v1294
        %v2143 = vunpack.c.l.b16 %v1295
        %v2144 = vunpack.c.h.b16 %v1295
        %v2145 = vunpack.c.l.b16 %v1296
        %v2146 = vunpack.c.h.b16 %v1296
        %v2147 = vunpack.c.l.b16 %v1297
        %v2148 = vunpack.c.h.b16 %v1297
        %v2149 = vunpack.c.l.b16 %v1298
        %v2150 = vunpack.c.h.b16 %v1298
        %v2151 = vunpack.c.l.b16 %v1299
        %v2152 = vunpack.c.h.b16 %v1299
        %v2153 = vunpack.c.l.b16 %v1300
        %v2154 = vunpack.c.h.b16 %v1300
        %v2155 = vunpack.c.l.b16 %v1301
        %v2156 = vunpack.c.h.b16 %v1301
        %v2157 = vunpack.c.l.b16 %v1302
        %v2158 = vunpack.c.h.b16 %v1302
        %v2159 = vunpack.c.l.b16 %v1303
        %v2160 = vunpack.c.h.b16 %v1303
        %v2161 = vunpack.c.l.b16 %v1304
        %v2162 = vunpack.c.h.b16 %v1304
        %v2163 = vunpack.c.l.b16 %v1305
        %v2164 = vunpack.c.h.b16 %v1305
        %v2165 = vunpack.c.l.b16 %v1306
        %v2166 = vunpack.c.h.b16 %v1306
        %v2167 = vunpack.c.l.b16 %v1307
        %v2168 = vunpack.c.h.b16 %v1307
        %v2169 = vunpack.c.l.b16 %v1308
        %v2170 = vunpack.c.h.b16 %v1308
        %v2171 = vunpack.c.l.b16 %v1309
        %v2172 = vunpack.c.h.b16 %v1309
        %v2173 = vunpack.c.l.b16 %v1310
        %v2174 = vunpack.c.h.b16 %v1310
        %v2175 = vpack.c.b16 %v1605, %v1599
        %v2176 = vpack.c.b16 %v1606, %v1600
        %v2177 = vpack.c.b16 %v1607, %v1601
        %v2178 = vpack.c.b16 %v1608, %v1602
        %v2179 = vpack.c.b16 %v1609, %v1603
        %v2180 = vpack.c.b16 %v1610, %v1604
        %v2181 = vpack.c.b16 %v1617, %v1611
        %v2182 = vpack.c.b16 %v1618, %v1612
        %v2183 = vpack.c.b16 %v1619, %v1613
        %v2184 = vpack.c.b16 %v1620, %v1614
        %v2185 = vpack.c.b16 %v1621, %v1615
        %v2186 = vpack.c.b16 %v1622, %v1616
        %v2187 = vpack.c.b16 %v1629, %v1623
        %v2188 = vpack.c.b16 %v1630, %v1624
        %v2189 = vpack.c.b16 %v1631, %v1625
        %v2190 = vpack.c.b16 %v1632, %v1626
        %v2191 = vpack.c.b16 %v1633, %v1627
        %v2192 = vpack.c.b16 %v1634, %v1628
        %v2193 = vpack.c.b16 %v1641, %v1635
        %v2194 = vpack.c.b16 %v1642, %v1636
        %v2195 = vpack.c.b16 %v1643, %v1637
        %v2196 = vpack.c.b16 %v1644, %v1638
        %v2197 = vpack.c.b16 %v1645, %v1639
        %v2198 = vpack.c.b16 %v1646, %v1640
        %v2199 = vpack.c.b16 %v1653, %v1647
        %v2200 = vpack.c.b16 %v1654, %v1648
        %v2201 = vpack.c.b16 %v1655, %v1649
        %v2202 = vpack.c.b16 %v1656, %v1650
        %v2203 = vpack.c.b16 %v1657, %v1651
        %v2204 = vpack.c.b16 %v1658, %v1652
        %v2205 = vpack.c.b16 %v1665, %v1659
        %v2206 = vpack.c.b16 %v1666, %v1660
        %v2207 = vpack.c.b16 %v1667, %v1661
        %v2208 = vpack.c.b16 %v1668, %v1662
        %v2209 = vpack.c.b16 %v1669, %v1663
        %v2210 = vpack.c.b16 %v1670, %v1664
        %v2211 = vpack.c.b16 %v1677, %v1671
        %v2212 = vpack.c.b16 %v1678, %v1672
        %v2213 = vpack.c.b16 %v1679, %v1673
        %v2214 = vpack.c.b16 %v1680, %v1674
        %v2215 = vpack.c.b16 %v1681, %v1675
        %v2216 = vpack.c.b16 %v1682, %v1676
        %v2217 = vpack.c.b16 %v1689, %v1683
        %v2218 = vpack.c.b16 %v1690, %v1684
        %v2219 = vpack.c.b16 %v1691, %v1685
        %v2220 = vpack.c.b16 %v1692, %v1686
        %v2221 = vpack.c.b16 %v1693, %v1687
        %v2222 = vpack.c.b16 %v1694, %v1688
        %v2223 = vpack.c.b16 %v1701, %v1695
        %v2224 = vpack.c.b16 %v1702, %v1696
        %v2225 = vpack.c.b16 %v1703, %v1697
        %v2226 = vpack.c.b16 %v1704, %v1698
        %v2227 = vpack.c.b16 %v1705, %v1699
        %v2228 = vpack.c.b16 %v1706, %v1700
        %v2229 = vpack.c.b16 %v1713, %v1707
        %v2230 = vpack.c.b16 %v1714, %v1708
        %v2231 = vpack.c.b16 %v1715, %v1709
        %v2232 = vpack.c.b16 %v1716, %v1710
        %v2233 = vpack.c.b16 %v1717, %v1711
        %v2234 = vpack.c.b16 %v1718, %v1712
        %v2235 = vpack.c.b16 %v1725, %v1719
        %v2236 = vpack.c.b16 %v1726, %v1720
        %v2237 = vpack.c.b16 %v1727, %v1721
        %v2238 = vpack.c.b16 %v1728, %v1722
        %v2239 = vpack.c.b16 %v1729, %v1723
        %v2240 = vpack.c.b16 %v1730, %v1724
        %v2241 = vpack.c.b16 %v1737, %v1731
        %v2242 = vpack.c.b16 %v1738, %v1732
        %v2243 = vpack.c.b16 %v1739, %v1733
        %v2244 = vpack.c.b16 %v1740, %v1734
        %v2245 = vpack.c.b16 %v1741, %v1735
        %v2246 = vpack.c.b16 %v1742, %v1736
        %v2247 = vpack.c.b16 %v1749, %v1743
        %v2248 = vpack.c.b16 %v1750, %v1744
        %v2249 = vpack.c.b16 %v1751, %v1745
        %v2250 = vpack.c.b16 %v1752, %v1746
        %v2251 = vpack.c.b16 %v1753, %v1747
        %v2252 = vpack.c.b16 %v1754, %v1748
        %v2253 = vpack.c.b16 %v1761, %v1755
        %v2254 = vpack.c.b16 %v1762, %v1756
        %v2255 = vpack.c.b16 %v1763, %v1757
        %v2256 = vpack.c.b16 %v1764, %v1758
        %v2257 = vpack.c.b16 %v1765, %v1759
        %v2258 = vpack.c.b16 %v1766, %v1760
        %v2259 = vpack.c.b16 %v1773, %v1767
        %v2260 = vpack.c.b16 %v1774, %v1768
        %v2261 = vpack.c.b16 %v1775, %v1769
        %v2262 = vpack.c.b16 %v1776, %v1770
        %v2263 = vpack.c.b16 %v1777, %v1771
        %v2264 = vpack.c.b16 %v1778, %v1772
        %v2265 = vpack.c.b16 %v1785, %v1779
        %v2266 = vpack.c.b16 %v1786, %v1780
        %v2267 = vpack.c.b16 %v1787, %v1781
        %v2268 = vpack.c.b16 %v1788, %v1782
        %v2269 = vpack.c.b16 %v1789, %v1783
        %v2270 = vpack.c.b16 %v1790, %v1784
        %v2271 = vpack.c.b16 %v1797, %v1791
        %v2272 = vpack.c.b16 %v1798, %v1792
        %v2273 = vpack.c.b16 %v1799, %v1793
        %v2274 = vpack.c.b16 %v1800, %v1794
        %v2275 = vpack.c.b16 %v1801, %v1795
        %v2276 = vpack.c.b16 %v1802, %v1796
        %v2277 = vpack.c.b16 %v1809, %v1803
        %v2278 = vpack.c.b16 %v1810, %v1804
        %v2279 = vpack.c.b16 %v1811, %v1805
        %v2280 = vpack.c.b16 %v1812, %v1806
        %v2281 = vpack.c.b16 %v1813, %v1807
        %v2282 = vpack.c.b16 %v1814, %v1808
        %v2283 = vpack.c.b16 %v1821, %v1815
        %v2284 = vpack.c.b16 %v1822, %v1816
        %v2285 = vpack.c.b16 %v1823, %v1817
        %v2286 = vpack.c.b16 %v1824, %v1818
        %v2287 = vpack.c.b16 %v1825, %v1819
        %v2288 = vpack.c.b16 %v1826, %v1820
        %v2289 = vpack.c.b16 %v1833, %v1827
        %v2290 = vpack.c.b16 %v1834, %v1828
        %v2291 = vpack.c.b16 %v1835, %v1829
        %v2292 = vpack.c.b16 %v1836, %v1830
        %v2293 = vpack.c.b16 %v1837, %v1831
        %v2294 = vpack.c.b16 %v1838, %v1832
        %v2295 = vpack.c.b16 %v1845, %v1839
        %v2296 = vpack.c.b16 %v1846, %v1840
        %v2297 = vpack.c.b16 %v1847, %v1841
        %v2298 = vpack.c.b16 %v1848, %v1842
        %v2299 = vpack.c.b16 %v1849, %v1843
        %v2300 = vpack.c.b16 %v1850, %v1844
        %v2301 = vpack.c.b16 %v1857, %v1851
        %v2302 = vpack.c.b16 %v1858, %v1852
        %v2303 = vpack.c.b16 %v1859, %v1853
        %v2304 = vpack.c.b16 %v1860, %v1854
        %v2305 = vpack.c.b16 %v1861, %v1855
        %v2306 = vpack.c.b16 %v1862, %v1856
        %v2307 = vpack.c.b16 %v1869, %v1863
        %v2308 = vpack.c.b16 %v1870, %v1864
        %v2309 = vpack.c.b16 %v1871, %v1865
        %v2310 = vpack.c.b16 %v1872, %v1866
        %v2311 = vpack.c.b16 %v1873, %v1867
        %v2312 = vpack.c.b16 %v1874, %v1868
        %v2313 = vpack.c.b16 %v1881, %v1875
        %v2314 = vpack.c.b16 %v1882, %v1876
        %v2315 = vpack.c.b16 %v1883, %v1877
        %v2316 = vpack.c.b16 %v1884, %v1878
        %v2317 = vpack.c.b16 %v1885, %v1879
        %v2318 = vpack.c.b16 %v1886, %v1880
        %v2319 = vpack.c.b16 %v1893, %v1887
        %v2320 = vpack.c.b16 %v1894, %v1888
        %v2321 = vpack.c.b16 %v1895, %v1889
        %v2322 = vpack.c.b16 %v1896, %v1890
        %v2323 = vpack.c.b16 %v1897, %v1891
        %v2324 = vpack.c.b16 %v1898, %v1892
        %v2325 = vpack.c.b16 %v1905, %v1899
        %v2326 = vpack.c.b16 %v1906, %v1900
        %v2327 = vpack.c.b16 %v1907, %v1901
        %v2328 = vpack.c.b16 %v1908, %v1902
        %v2329 = vpack.c.b16 %v1909, %v1903
        %v2330 = vpack.c.b16 %v1910, %v1904
        %v2331 = vpack.c.b16 %v1917, %v1911
        %v2332 = vpack.c.b16 %v1918, %v1912
        %v2333 = vpack.c.b16 %v1919, %v1913
        %v2334 = vpack.c.b16 %v1920, %v1914
        %v2335 = vpack.c.b16 %v1921, %v1915
        %v2336 = vpack.c.b16 %v1922, %v1916
        %v2337 = vpack.c.b16 %v1929, %v1923
        %v2338 = vpack.c.b16 %v1930, %v1924
        %v2339 = vpack.c.b16 %v1931, %v1925
        %v2340 = vpack.c.b16 %v1932, %v1926
        %v2341 = vpack.c.b16 %v1933, %v1927
        %v2342 = vpack.c.b16 %v1934, %v1928
        %v2343 = vpack.c.b16 %v1941, %v1935
        %v2344 = vpack.c.b16 %v1942, %v1936
        %v2345 = vpack.c.b16 %v1943, %v1937
        %v2346 = vpack.c.b16 %v1944, %v1938
        %v2347 = vpack.c.b16 %v1945, %v1939
        %v2348 = vpack.c.b16 %v1946, %v1940
        %v2349 = vpack.c.b16 %v1953, %v1947
        %v2350 = vpack.c.b16 %v1954, %v1948
        %v2351 = vpack.c.b16 %v1955, %v1949
        %v2352 = vpack.c.b16 %v1956, %v1950
        %v2353 = vpack.c.b16 %v1957, %v1951
        %v2354 = vpack.c.b16 %v1958, %v1952
        %v2355 = vpack.c.b16 %v1965, %v1959
        %v2356 = vpack.c.b16 %v1966, %v1960
        %v2357 = vpack.c.b16 %v1967, %v1961
        %v2358 = vpack.c.b16 %v1968, %v1962
        %v2359 = vpack.c.b16 %v1969, %v1963
        %v2360 = vpack.c.b16 %v1970, %v1964
        %v2361 = vpack.c.b16 %v1977, %v1971
        %v2362 = vpack.c.b16 %v1978, %v1972
        %v2363 = vpack.c.b16 %v1979, %v1973
        %v2364 = vpack.c.b16 %v1980, %v1974
        %v2365 = vpack.c.b16 %v1981, %v1975
        %v2366 = vpack.c.b16 %v1982, %v1976
        %v2367 = vpack.c.b16 %v1989, %v1983
        %v2368 = vpack.c.b16 %v1990, %v1984
        %v2369 = vpack.c.b16 %v1991, %v1985
        %v2370 = vpack.c.b16 %v1992, %v1986
        %v2371 = vpack.c.b16 %v1993, %v1987
        %v2372 = vpack.c.b16 %v1994, %v1988
        %v2373 = vpack.c.b16 %v2001, %v1995
        %v2374 = vpack.c.b16 %v2002, %v1996
        %v2375 = vpack.c.b16 %v2003, %v1997
        %v2376 = vpack.c.b16 %v2004, %v1998
        %v2377 = vpack.c.b16 %v2005, %v1999
        %v2378 = vpack.c.b16 %v2006, %v2000
        %v2379 = vpack.c.b16 %v2013, %v2007
        %v2380 = vpack.c.b16 %v2014, %v2008
        %v2381 = vpack.c.b16 %v2015, %v2009
        %v2382 = vpack.c.b16 %v2016, %v2010
        %v2383 = vpack.c.b16 %v2017, %v2011
        %v2384 = vpack.c.b16 %v2018, %v2012
        %v2385 = vpack.c.b16 %v2025, %v2019
        %v2386 = vpack.c.b16 %v2026, %v2020
        %v2387 = vpack.c.b16 %v2027, %v2021
        %v2388 = vpack.c.b16 %v2028, %v2022
        %v2389 = vpack.c.b16 %v2029, %v2023
        %v2390 = vpack.c.b16 %v2030, %v2024
        %v2391 = vpack.c.b16 %v2037, %v2031
        %v2392 = vpack.c.b16 %v2038, %v2032
        %v2393 = vpack.c.b16 %v2039, %v2033
        %v2394 = vpack.c.b16 %v2040, %v2034
        %v2395 = vpack.c.b16 %v2041, %v2035
        %v2396 = vpack.c.b16 %v2042, %v2036
        %v2397 = vpack.c.b16 %v2049, %v2043
        %v2398 = vpack.c.b16 %v2050, %v2044
        %v2399 = vpack.c.b16 %v2051, %v2045
        %v2400 = vpack.c.b16 %v2052, %v2046
        %v2401 = vpack.c.b16 %v2053, %v2047
        %v2402 = vpack.c.b16 %v2054, %v2048
        %v2403 = vpack.c.b16 %v2061, %v2055
        %v2404 = vpack.c.b16 %v2062, %v2056
        %v2405 = vpack.c.b16 %v2063, %v2057
        %v2406 = vpack.c.b16 %v2064, %v2058
        %v2407 = vpack.c.b16 %v2065, %v2059
        %v2408 = vpack.c.b16 %v2066, %v2060
        %v2409 = vpack.c.b16 %v2073, %v2067
        %v2410 = vpack.c.b16 %v2074, %v2068
        %v2411 = vpack.c.b16 %v2075, %v2069
        %v2412 = vpack.c.b16 %v2076, %v2070
        %v2413 = vpack.c.b16 %v2077, %v2071
        %v2414 = vpack.c.b16 %v2078, %v2072
        %v2415 = vpack.c.b16 %v2085, %v2079
        %v2416 = vpack.c.b16 %v2086, %v2080
        %v2417 = vpack.c.b16 %v2087, %v2081
        %v2418 = vpack.c.b16 %v2088, %v2082
        %v2419 = vpack.c.b16 %v2089, %v2083
        %v2420 = vpack.c.b16 %v2090, %v2084
        %v2421 = vpack.c.b16 %v2097, %v2091
        %v2422 = vpack.c.b16 %v2098, %v2092
        %v2423 = vpack.c.b16 %v2099, %v2093
        %v2424 = vpack.c.b16 %v2100, %v2094
        %v2425 = vpack.c.b16 %v2101, %v2095
        %v2426 = vpack.c.b16 %v2102, %v2096
        %v2427 = vpack.c.b16 %v2109, %v2103
        %v2428 = vpack.c.b16 %v2110, %v2104
        %v2429 = vpack.c.b16 %v2111, %v2105
        %v2430 = vpack.c.b16 %v2112, %v2106
        %v2431 = vpack.c.b16 %v2113, %v2107
        %v2432 = vpack.c.b16 %v2114, %v2108
        %v2433 = vpack.c.b16 %v2121, %v2115
        %v2434 = vpack.c.b16 %v2122, %v2116
        %v2435 = vpack.c.b16 %v2123, %v2117
        %v2436 = vpack.c.b16 %v2124, %v2118
        %v2437 = vpack.c.b16 %v2125, %v2119
        %v2438 = vpack.c.b16 %v2126, %v2120
        %v2439 = vpack.c.b16 %v2133, %v2127
        %v2440 = vpack.c.b16 %v2134, %v2128
        %v2441 = vpack.c.b16 %v2135, %v2129
        %v2442 = vpack.c.b16 %v2136, %v2130
        %v2443 = vpack.c.b16 %v2137, %v2131
        %v2444 = vpack.c.b16 %v2138, %v2132
        %v2445 = vpack.c.b16 %v2145, %v2139
        %v2446 = vpack.c.b16 %v2146, %v2140
        %v2447 = vpack.c.b16 %v2147, %v2141
        %v2448 = vpack.c.b16 %v2148, %v2142
        %v2449 = vpack.c.b16 %v2149, %v2143
        %v2450 = vpack.c.b16 %v2150, %v2144
        %v2451 = vpack.c.b16 %v2157, %v2151
        %v2452 = vpack.c.b16 %v2158, %v2152
        %v2453 = vpack.c.b16 %v2159, %v2153
        %v2454 = vpack.c.b16 %v2160, %v2154
        %v2455 = vpack.c.b16 %v2161, %v2155
        %v2456 = vpack.c.b16 %v2162, %v2156
        %v2457 = vpack.c.b16 %v2169, %v2163
        %v2458 = vpack.c.b16 %v2170, %v2164
        %v2459 = vpack.c.b16 %v2171, %v2165
        %v2460 = vpack.c.b16 %v2172, %v2166
        %v2461 = vpack.c.b16 %v2173, %v2167
        %v2462 = vpack.c.b16 %v2174, %v2168
        %2751 = vmatprep.subr.bf16.mxu0 %v2176
        %2752 = vmatpush1.bf16.msra.mxu0 %v2175
        %2753 = vmatprep.subr.bf16.mxu0 %v2182
        %2754 = vmatpush1.bf16.msra.mxu0 %v2181
        %2755 = vmatprep.subr.bf16.mxu0 %v2188
        %2756 = vmatpush1.bf16.msra.mxu0 %v2187
        %2757 = vmatprep.subr.bf16.mxu0 %v2194
        %2758 = vmatpush1.bf16.msra.mxu0 %v2193
        %2759 = vmatprep.subr.bf16.mxu0 %v2200
        %2760 = vmatpush1.bf16.msra.mxu0 %v2199
        %2761 = vmatprep.subr.bf16.mxu0 %v2206
        %2762 = vmatpush1.bf16.msra.mxu0 %v2205
        %2763 = vmatprep.subr.bf16.mxu0 %v2212
        %2764 = vmatpush1.bf16.msra.mxu0 %v2211
        %2765 = vmatprep.subr.bf16.mxu0 %v2218
        %2766 = vmatpush1.bf16.msra.mxu0 %v2217
        %2767 = vmatprep.subr.bf16.mxu0 %v2224
        %2768 = vmatpush1.bf16.msra.mxu0 %v2223
        %2769 = vmatprep.subr.bf16.mxu0 %v2230
        %2770 = vmatpush1.bf16.msra.mxu0 %v2229
        %2771 = vmatprep.subr.bf16.mxu0 %v2236
        %2772 = vmatpush1.bf16.msra.mxu0 %v2235
        %2773 = vmatprep.subr.bf16.mxu0 %v2242
        %2774 = vmatpush1.bf16.msra.mxu0 %v2241
        %2775 = vmatprep.subr.bf16.mxu0 %v2248
        %2776 = vmatpush1.bf16.msra.mxu0 %v2247
        %2777 = vmatprep.subr.bf16.mxu0 %v2254
        %2778 = vmatpush1.bf16.msra.mxu0 %v2253
        %2779 = vmatprep.subr.bf16.mxu0 %v2260
        %2780 = vmatpush1.bf16.msra.mxu0 %v2259
        %2781 = vmatprep.subr.bf16.mxu0 %v2266
        %2782 = vmatpush1.bf16.msra.mxu0 %v2265
        %2783 = vmatprep.mubr.bf16.mxu0 %v928
        %2784 = vmatmul.mubr.bf16.gmra.mrb[0].mxu0 %v927
        %v2785 = vpop.f32.mrb[0].mxu0
        %v2786 = vadd.f32 0.0, %v2785
        %v2787 = vpop.f32.mrb[0].mxu0
        %v2788 = vadd.f32 0.0, %v2787
        %v2789 = vpop.f32.mrb[0].mxu0
        %v2790 = vadd.f32 0.0, %v2789
        %v2791 = vpop.f32.mrb[0].mxu0
        %v2792 = vadd.f32 0.0, %v2791
        %2793 = vmatprep.mubr.bf16.mxu0 %v934
        %2794 = vmatmul.mubr.bf16.gmra.mrb[0].mxu0 %v933
        %v2795 = vpop.f32.mrb[0].mxu0
        %v2796 = vadd.f32 0.0, %v2795
        %v2797 = vpop.f32.mrb[0].mxu0
        %v2798 = vadd.f32 0.0, %v2797
        %v2799 = vpop.f32.mrb[0].mxu0
        %v2800 = vadd.f32 0.0, %v2799
        %v2801 = vpop.f32.mrb[0].mxu0
        %v2802 = vadd.f32 0.0, %v2801
        %2803 = vmatprep.mubr.bf16.mxu0 %v940
        %2804 = vmatmul.mubr.bf16.gmra.mrb[0].mxu0 %v939
        %v2805 = vpop.f32.mrb[0].mxu0
        %v2806 = vadd.f32 0.0, %v2805
        %v2807 = vpop.f32.mrb[0].mxu0
        %v2808 = vadd.f32 0.0, %v2807
        %v2809 = vpop.f32.mrb[0].mxu0
        %v2810 = vadd.f32 0.0, %v2809
        %v2811 = vpop.f32.mrb[0].mxu0
        %v2812 = vadd.f32 0.0, %v2811
        %2813 = vmatprep.mubr.bf16.mxu0 %v946
        %2814 = vmatmul.mubr.bf16.gmra.mrb[0].mxu0 %v945
        %v2815 = vpop.f32.mrb[0].mxu0
        %v2816 = vadd.f32 0.0, %v2815
        %v2817 = vpop.f32.mrb[0].mxu0
        %v2818 = vadd.f32 0.0, %v2817
        %v2819 = vpop.f32.mrb[0].mxu0
        %v2820 = vadd.f32 0.0, %v2819
        %v2821 = vpop.f32.mrb[0].mxu0
        %v2822 = vadd.f32 0.0, %v2821
        %2823 = vmatprep.mubr.bf16.mxu0 %v952
        %2824 = vmatmul.mubr.bf16.gmra.mrb[0].mxu0 %v951
        %v2825 = vpop.f32.mrb[0].mxu0
        %v2826 = vadd.f32 0.0, %v2825
        %v2827 = vpop.f32.mrb[0].mxu0
        %v2828 = vadd.f32 0.0, %v2827
        %v2829 = vpop.f32.mrb[0].mxu0
        %v2830 = vadd.f32 0.0, %v2829
        %v2831 = vpop.f32.mrb[0].mxu0
        %v2832 = vadd.f32 0.0, %v2831
        %2833 = vmatprep.mubr.bf16.mxu0 %v958
        %2834 = vmatmul.mubr.bf16.gmra.mrb[0].mxu0 %v957
        %v2835 = vpop.f32.mrb[0].mxu0
        %v2836 = vadd.f32 0.0, %v2835
        %v2837 = vpop.f32.mrb[0].mxu0
        %v2838 = vadd.f32 0.0, %v2837
        %v2839 = vpop.f32.mrb[0].mxu0
        %v2840 = vadd.f32 0.0, %v2839
        %v2841 = vpop.f32.mrb[0].mxu0
        %v2842 = vadd.f32 0.0, %v2841
        %2843 = vmatprep.mubr.bf16.mxu0 %v964
        %2844 = vmatmul.mubr.bf16.gmra.mrb[0].mxu0 %v963
        %v2845 = vpop.f32.mrb[0].mxu0
        %v2846 = vadd.f32 0.0, %v2845
        %v2847 = vpop.f32.mrb[0].mxu0
        %v2848 = vadd.f32 0.0, %v2847
        %v2849 = vpop.f32.mrb[0].mxu0
        %v2850 = vadd.f32 0.0, %v2849
        %v2851 = vpop.f32.mrb[0].mxu0
        %v2852 = vadd.f32 0.0, %v2851
        %2853 = vmatprep.mubr.bf16.mxu0 %v970
        %2854 = vmatmul.mubr.bf16.gmra.mrb[0].mxu0 %v969
        %v2855 = vpop.f32.mrb[0].mxu0
        %v2856 = vadd.f32 0.0, %v2855
        %v2857 = vpop.f32.mrb[0].mxu0
        %v2858 = vadd.f32 0.0, %v2857
        %v2859 = vpop.f32.mrb[0].mxu0
        %v2860 = vadd.f32 0.0, %v2859
        %v2861 = vpop.f32.mrb[0].mxu0
        %v2862 = vadd.f32 0.0, %v2861
        %2863 = vmatprep.mubr.bf16.mxu0 %v976
        %2864 = vmatmul.mubr.bf16.gmra.mrb[0].mxu0 %v975
        %v2865 = vpop.f32.mrb[0].mxu0
        %v2866 = vadd.f32 0.0, %v2865
        %v2867 = vpop.f32.mrb[0].mxu0
        %v2868 = vadd.f32 0.0, %v2867
        %v2869 = vpop.f32.mrb[0].mxu0
        %v2870 = vadd.f32 0.0, %v2869
        %v2871 = vpop.f32.mrb[0].mxu0
        %v2872 = vadd.f32 0.0, %v2871
        %2873 = vmatprep.mubr.bf16.mxu0 %v982
        %2874 = vmatmul.mubr.bf16.gmra.mrb[0].mxu0 %v981
        %v2875 = vpop.f32.mrb[0].mxu0
        %v2876 = vadd.f32 0.0, %v2875
        %v2877 = vpop.f32.mrb[0].mxu0
        %v2878 = vadd.f32 0.0, %v2877
        %v2879 = vpop.f32.mrb[0].mxu0
        %v2880 = vadd.f32 0.0, %v2879
        %v2881 = vpop.f32.mrb[0].mxu0
        %v2882 = vadd.f32 0.0, %v2881
        %2883 = vmatprep.mubr.bf16.mxu0 %v988
        %2884 = vmatmul.mubr.bf16.gmra.mrb[0].mxu0 %v987
        %v2885 = vpop.f32.mrb[0].mxu0
        %v2886 = vadd.f32 0.0, %v2885
        %v2887 = vpop.f32.mrb[0].mxu0
        %v2888 = vadd.f32 0.0, %v2887
        %v2889 = vpop.f32.mrb[0].mxu0
        %v2890 = vadd.f32 0.0, %v2889
        %v2891 = vpop.f32.mrb[0].mxu0
        %v2892 = vadd.f32 0.0, %v2891
        %2893 = vmatprep.mubr.bf16.mxu0 %v994
        %2894 = vmatmul.mubr.bf16.gmra.mrb[0].mxu0 %v993
        %v2895 = vpop.f32.mrb[0].mxu0
        %v2896 = vadd.f32 0.0, %v2895
        %v2897 = vpop.f32.mrb[0].mxu0
        %v2898 = vadd.f32 0.0, %v2897
        %v2899 = vpop.f32.mrb[0].mxu0
        %v2900 = vadd.f32 0.0, %v2899
        %v2901 = vpop.f32.mrb[0].mxu0
        %v2902 = vadd.f32 0.0, %v2901
        %2903 = vmatprep.mubr.bf16.mxu0 %v1000
        %2904 = vmatmul.mubr.bf16.gmra.mrb[0].mxu0 %v999
        %v2905 = vpop.f32.mrb[0].mxu0
        %v2906 = vadd.f32 0.0, %v2905
        %v2907 = vpop.f32.mrb[0].mxu0
        %v2908 = vadd.f32 0.0, %v2907
        %v2909 = vpop.f32.mrb[0].mxu0
        %v2910 = vadd.f32 0.0, %v2909
        %v2911 = vpop.f32.mrb[0].mxu0
        %v2912 = vadd.f32 0.0, %v2911
        %2913 = vmatprep.mubr.bf16.mxu0 %v1006
        %2914 = vmatmul.mubr.bf16.gmra.mrb[0].mxu0 %v1005
        %v2915 = vpop.f32.mrb[0].mxu0
        %v2916 = vadd.f32 0.0, %v2915
        %v2917 = vpop.f32.mrb[0].mxu0
        %v2918 = vadd.f32 0.0, %v2917
        %v2919 = vpop.f32.mrb[0].mxu0
        %v2920 = vadd.f32 0.0, %v2919
        %v2921 = vpop.f32.mrb[0].mxu0
        %v2922 = vadd.f32 0.0, %v2921
        %2923 = vmatprep.mubr.bf16.mxu0 %v1012
        %2924 = vmatmul.mubr.bf16.gmra.mrb[0].mxu0 %v1011
        %v2925 = vpop.f32.mrb[0].mxu0
        %v2926 = vadd.f32 0.0, %v2925
        %v2927 = vpop.f32.mrb[0].mxu0
        %v2928 = vadd.f32 0.0, %v2927
        %v2929 = vpop.f32.mrb[0].mxu0
        %v2930 = vadd.f32 0.0, %v2929
        %v2931 = vpop.f32.mrb[0].mxu0
        %v2932 = vadd.f32 0.0, %v2931
        %2933 = vmatprep.mubr.bf16.mxu0 %v1018
        %2934 = vmatmul.mubr.bf16.gmra.mrb[0].mxu0 %v1017
        %v2935 = vpop.f32.mrb[0].mxu0
        %v2936 = vadd.f32 0.0, %v2935
        %v2937 = vpop.f32.mrb[0].mxu0
        %v2938 = vadd.f32 0.0, %v2937
        %v2939 = vpop.f32.mrb[0].mxu0
        %v2940 = vadd.f32 0.0, %v2939
        %v2941 = vpop.f32.mrb[0].mxu0
        %v2942 = vadd.f32 0.0, %v2941
        %2943 = vdwg.mxu0
        %2944 = vmatprep.subr.bf16.mxu0 %v2272
        %2945 = vmatpush1.bf16.msra.mxu0 %v2271
        %2946 = vmatprep.subr.bf16.mxu0 %v2278
        %2947 = vmatpush1.bf16.msra.mxu0 %v2277
        %2948 = vmatprep.subr.bf16.mxu0 %v2284
        %2949 = vmatpush1.bf16.msra.mxu0 %v2283
        %2950 = vmatprep.subr.bf16.mxu0 %v2290
        %2951 = vmatpush1.bf16.msra.mxu0 %v2289
        %2952 = vmatprep.subr.bf16.mxu0 %v2296
        %2953 = vmatpush1.bf16.msra.mxu0 %v2295
        %2954 = vmatprep.subr.bf16.mxu0 %v2302
        %2955 = vmatpush1.bf16.msra.mxu0 %v2301
        %2956 = vmatprep.subr.bf16.mxu0 %v2308
        %2957 = vmatpush1.bf16.msra.mxu0 %v2307
        %2958 = vmatprep.subr.bf16.mxu0 %v2314
        %2959 = vmatpush1.bf16.msra.mxu0 %v2313
        %2960 = vmatprep.subr.bf16.mxu0 %v2320
        %2961 = vmatpush1.bf16.msra.mxu0 %v2319
        %2962 = vmatprep.subr.bf16.mxu0 %v2326
        %2963 = vmatpush1.bf16.msra.mxu0 %v2325
        %2964 = vmatprep.subr.bf16.mxu0 %v2332
        %2965 = vmatpush1.bf16.msra.mxu0 %v2331
        %2966 = vmatprep.subr.bf16.mxu0 %v2338
        %2967 = vmatpush1.bf16.msra.mxu0 %v2337
        %2968 = vmatprep.subr.bf16.mxu0 %v2344
        %2969 = vmatpush1.bf16.msra.mxu0 %v2343
        %2970 = vmatprep.subr.bf16.mxu0 %v2350
        %2971 = vmatpush1.bf16.msra.mxu0 %v2349
        %2972 = vmatprep.subr.bf16.mxu0 %v2356
        %2973 = vmatpush1.bf16.msra.mxu0 %v2355
        %2974 = vmatprep.subr.bf16.mxu0 %v2362
        %2975 = vmatpush1.bf16.msra.mxu0 %v2361
        %2976 = vmatprep.mubr.bf16.mxu0 %v930
        %2977 = vmatmul.mubr.bf16.gmra.mrb[0].mxu0 %v929
        %v2978 = vpop.f32.mrb[0].mxu0
        %v2979 = vadd.f32 %v2786, %v2978
        %v2980 = vpop.f32.mrb[0].mxu0
        %v2981 = vadd.f32 %v2788, %v2980
        %v2982 = vpop.f32.mrb[0].mxu0
        %v2983 = vadd.f32 %v2790, %v2982
        %v2984 = vpop.f32.mrb[0].mxu0
        %v2985 = vadd.f32 %v2792, %v2984
        %2986 = vmatprep.mubr.bf16.mxu0 %v936
        %2987 = vmatmul.mubr.bf16.gmra.mrb[0].mxu0 %v935
        %v2988 = vpop.f32.mrb[0].mxu0
        %v2989 = vadd.f32 %v2796, %v2988
        %v2990 = vpop.f32.mrb[0].mxu0
        %v2991 = vadd.f32 %v2798, %v2990
        %v2992 = vpop.f32.mrb[0].mxu0
        %v2993 = vadd.f32 %v2800, %v2992
        %v2994 = vpop.f32.mrb[0].mxu0
        %v2995 = vadd.f32 %v2802, %v2994
        %2996 = vmatprep.mubr.bf16.mxu0 %v942
        %2997 = vmatmul.mubr.bf16.gmra.mrb[0].mxu0 %v941
        %v2998 = vpop.f32.mrb[0].mxu0
        %v2999 = vadd.f32 %v2806, %v2998
        %v3000 = vpop.f32.mrb[0].mxu0
        %v3001 = vadd.f32 %v2808, %v3000
        %v3002 = vpop.f32.mrb[0].mxu0
        %v3003 = vadd.f32 %v2810, %v3002
        %v3004 = vpop.f32.mrb[0].mxu0
        %v3005 = vadd.f32 %v2812, %v3004
        %3006 = vmatprep.mubr.bf16.mxu0 %v948
        %3007 = vmatmul.mubr.bf16.gmra.mrb[0].mxu0 %v947
        %v3008 = vpop.f32.mrb[0].mxu0
        %v3009 = vadd.f32 %v2816, %v3008
        %v3010 = vpop.f32.mrb[0].mxu0
        %v3011 = vadd.f32 %v2818, %v3010
        %v3012 = vpop.f32.mrb[0].mxu0
        %v3013 = vadd.f32 %v2820, %v3012
        %v3014 = vpop.f32.mrb[0].mxu0
        %v3015 = vadd.f32 %v2822, %v3014
        %3016 = vmatprep.mubr.bf16.mxu0 %v954
        %3017 = vmatmul.mubr.bf16.gmra.mrb[0].mxu0 %v953
        %v3018 = vpop.f32.mrb[0].mxu0
        %v3019 = vadd.f32 %v2826, %v3018
        %v3020 = vpop.f32.mrb[0].mxu0
        %v3021 = vadd.f32 %v2828, %v3020
        %v3022 = vpop.f32.mrb[0].mxu0
        %v3023 = vadd.f32 %v2830, %v3022
        %v3024 = vpop.f32.mrb[0].mxu0
        %v3025 = vadd.f32 %v2832, %v3024
        %3026 = vmatprep.mubr.bf16.mxu0 %v960
        %3027 = vmatmul.mubr.bf16.gmra.mrb[0].mxu0 %v959
        %v3028 = vpop.f32.mrb[0].mxu0
        %v3029 = vadd.f32 %v2836, %v3028
        %v3030 = vpop.f32.mrb[0].mxu0
        %v3031 = vadd.f32 %v2838, %v3030
        %v3032 = vpop.f32.mrb[0].mxu0
        %v3033 = vadd.f32 %v2840, %v3032
        %v3034 = vpop.f32.mrb[0].mxu0
        %v3035 = vadd.f32 %v2842, %v3034
        %3036 = vmatprep.mubr.bf16.mxu0 %v966
        %3037 = vmatmul.mubr.bf16.gmra.mrb[0].mxu0 %v965
        %v3038 = vpop.f32.mrb[0].mxu0
        %v3039 = vadd.f32 %v2846, %v3038
        %v3040 = vpop.f32.mrb[0].mxu0
        %v3041 = vadd.f32 %v2848, %v3040
        %v3042 = vpop.f32.mrb[0].mxu0
        %v3043 = vadd.f32 %v2850, %v3042
        %v3044 = vpop.f32.mrb[0].mxu0
        %v3045 = vadd.f32 %v2852, %v3044
        %3046 = vmatprep.mubr.bf16.mxu0 %v972
        %3047 = vmatmul.mubr.bf16.gmra.mrb[0].mxu0 %v971
        %v3048 = vpop.f32.mrb[0].mxu0
        %v3049 = vadd.f32 %v2856, %v3048
        %v3050 = vpop.f32.mrb[0].mxu0
        %v3051 = vadd.f32 %v2858, %v3050
        %v3052 = vpop.f32.mrb[0].mxu0
        %v3053 = vadd.f32 %v2860, %v3052
        %v3054 = vpop.f32.mrb[0].mxu0
        %v3055 = vadd.f32 %v2862, %v3054
        %3056 = vmatprep.mubr.bf16.mxu0 %v978
        %3057 = vmatmul.mubr.bf16.gmra.mrb[0].mxu0 %v977
        %v3058 = vpop.f32.mrb[0].mxu0
        %v3059 = vadd.f32 %v2866, %v3058
        %v3060 = vpop.f32.mrb[0].mxu0
        %v3061 = vadd.f32 %v2868, %v3060
        %v3062 = vpop.f32.mrb[0].mxu0
        %v3063 = vadd.f32 %v2870, %v3062
        %v3064 = vpop.f32.mrb[0].mxu0
        %v3065 = vadd.f32 %v2872, %v3064
        %3066 = vmatprep.mubr.bf16.mxu0 %v984
        %3067 = vmatmul.mubr.bf16.gmra.mrb[0].mxu0 %v983
        %v3068 = vpop.f32.mrb[0].mxu0
        %v3069 = vadd.f32 %v2876, %v3068
        %v3070 = vpop.f32.mrb[0].mxu0
        %v3071 = vadd.f32 %v2878, %v3070
        %v3072 = vpop.f32.mrb[0].mxu0
        %v3073 = vadd.f32 %v2880, %v3072
        %v3074 = vpop.f32.mrb[0].mxu0
        %v3075 = vadd.f32 %v2882, %v3074
        %3076 = vmatprep.mubr.bf16.mxu0 %v990
        %3077 = vmatmul.mubr.bf16.gmra.mrb[0].mxu0 %v989
        %v3078 = vpop.f32.mrb[0].mxu0
        %v3079 = vadd.f32 %v2886, %v3078
        %v3080 = vpop.f32.mrb[0].mxu0
        %v3081 = vadd.f32 %v2888, %v3080
        %v3082 = vpop.f32.mrb[0].mxu0
        %v3083 = vadd.f32 %v2890, %v3082
        %v3084 = vpop.f32.mrb[0].mxu0
        %v3085 = vadd.f32 %v2892, %v3084
        %3086 = vmatprep.mubr.bf16.mxu0 %v996
        %3087 = vmatmul.mubr.bf16.gmra.mrb[0].mxu0 %v995
        %v3088 = vpop.f32.mrb[0].mxu0
        %v3089 = vadd.f32 %v2896, %v3088
        %v3090 = vpop.f32.mrb[0].mxu0
        %v3091 = vadd.f32 %v2898, %v3090
        %v3092 = vpop.f32.mrb[0].mxu0
        %v3093 = vadd.f32 %v2900, %v3092
        %v3094 = vpop.f32.mrb[0].mxu0
        %v3095 = vadd.f32 %v2902, %v3094
        %3096 = vmatprep.mubr.bf16.mxu0 %v1002
        %3097 = vmatmul.mubr.bf16.gmra.mrb[0].mxu0 %v1001
        %v3098 = vpop.f32.mrb[0].mxu0
        %v3099 = vadd.f32 %v2906, %v3098
        %v3100 = vpop.f32.mrb[0].mxu0
        %v3101 = vadd.f32 %v2908, %v3100
        %v3102 = vpop.f32.mrb[0].mxu0
        %v3103 = vadd.f32 %v2910, %v3102
        %v3104 = vpop.f32.mrb[0].mxu0
        %v3105 = vadd.f32 %v2912, %v3104
        %3106 = vmatprep.mubr.bf16.mxu0 %v1008
        %3107 = vmatmul.mubr.bf16.gmra.mrb[0].mxu0 %v1007
        %v3108 = vpop.f32.mrb[0].mxu0
        %v3109 = vadd.f32 %v2916, %v3108
        %v3110 = vpop.f32.mrb[0].mxu0
        %v3111 = vadd.f32 %v2918, %v3110
        %v3112 = vpop.f32.mrb[0].mxu0
        %v3113 = vadd.f32 %v2920, %v3112
        %v3114 = vpop.f32.mrb[0].mxu0
        %v3115 = vadd.f32 %v2922, %v3114
        %3116 = vmatprep.mubr.bf16.mxu0 %v1014
        %3117 = vmatmul.mubr.bf16.gmra.mrb[0].mxu0 %v1013
        %v3118 = vpop.f32.mrb[0].mxu0
        %v3119 = vadd.f32 %v2926, %v3118
        %v3120 = vpop.f32.mrb[0].mxu0
        %v3121 = vadd.f32 %v2928, %v3120
        %v3122 = vpop.f32.mrb[0].mxu0
        %v3123 = vadd.f32 %v2930, %v3122
        %v3124 = vpop.f32.mrb[0].mxu0
        %v3125 = vadd.f32 %v2932, %v3124
        %3126 = vmatprep.mubr.bf16.mxu0 %v1020
        %3127 = vmatmul.mubr.bf16.gmra.mrb[0].mxu0 %v1019
        %v3128 = vpop.f32.mrb[0].mxu0
        %v3129 = vadd.f32 %v2936, %v3128
        %v3130 = vpop.f32.mrb[0].mxu0
        %v3131 = vadd.f32 %v2938, %v3130
        %v3132 = vpop.f32.mrb[0].mxu0
        %v3133 = vadd.f32 %v2940, %v3132
        %v3134 = vpop.f32.mrb[0].mxu0
        %v3135 = vadd.f32 %v2942, %v3134
        %3136 = vdwg.mxu0
        %3137 = vmatprep.subr.bf16.mxu0 %v2368
        %3138 = vmatpush1.bf16.msra.mxu0 %v2367
        %3139 = vmatprep.subr.bf16.mxu0 %v2374
        %3140 = vmatpush1.bf16.msra.mxu0 %v2373
        %3141 = vmatprep.subr.bf16.mxu0 %v2380
        %3142 = vmatpush1.bf16.msra.mxu0 %v2379
        %3143 = vmatprep.subr.bf16.mxu0 %v2386
        %3144 = vmatpush1.bf16.msra.mxu0 %v2385
        %3145 = vmatprep.subr.bf16.mxu0 %v2392
        %3146 = vmatpush1.bf16.msra.mxu0 %v2391
        %3147 = vmatprep.subr.bf16.mxu0 %v2398
        %3148 = vmatpush1.bf16.msra.mxu0 %v2397
        %3149 = vmatprep.subr.bf16.mxu0 %v2404
        %3150 = vmatpush1.bf16.msra.mxu0 %v2403
        %3151 = vmatprep.subr.bf16.mxu0 %v2410
        %3152 = vmatpush1.bf16.msra.mxu0 %v2409
        %3153 = vmatprep.subr.bf16.mxu0 %v2416
        %3154 = vmatpush1.bf16.msra.mxu0 %v2415
        %3155 = vmatprep.subr.bf16.mxu0 %v2422
        %3156 = vmatpush1.bf16.msra.mxu0 %v2421
        %3157 = vmatprep.subr.bf16.mxu0 %v2428
        %3158 = vmatpush1.bf16.msra.mxu0 %v2427
        %3159 = vmatprep.subr.bf16.mxu0 %v2434
        %3160 = vmatpush1.bf16.msra.mxu0 %v2433
        %3161 = vmatprep.subr.bf16.mxu0 %v2440
        %3162 = vmatpush1.bf16.msra.mxu0 %v2439
        %3163 = vmatprep.subr.bf16.mxu0 %v2446
        %3164 = vmatpush1.bf16.msra.mxu0 %v2445
        %3165 = vmatprep.subr.bf16.mxu0 %v2452
        %3166 = vmatpush1.bf16.msra.mxu0 %v2451
        %3167 = vmatprep.subr.bf16.mxu0 %v2458
        %3168 = vmatpush1.bf16.msra.mxu0 %v2457
        %3169 = vmatprep.mubr.bf16.mxu0 %v932
        %3170 = vmatmul.mubr.bf16.gmra.mrb[0].mxu0 %v931
        %v3171 = vpop.f32.mrb[0].mxu0
        %v3172 = vadd.f32 %v2979, %v3171
        %v3173 = vpop.f32.mrb[0].mxu0
        %v3174 = vadd.f32 %v2981, %v3173
        %v3175 = vpop.f32.mrb[0].mxu0
        %v3176 = vadd.f32 %v2983, %v3175
        %v3177 = vpop.f32.mrb[0].mxu0
        %v3178 = vadd.f32 %v2985, %v3177
        %3179 = vmatprep.mubr.bf16.mxu0 %v938
        %3180 = vmatmul.mubr.bf16.gmra.mrb[0].mxu0 %v937
        %v3181 = vpop.f32.mrb[0].mxu0
        %v3182 = vadd.f32 %v2989, %v3181
        %v3183 = vpop.f32.mrb[0].mxu0
        %v3184 = vadd.f32 %v2991, %v3183
        %v3185 = vpop.f32.mrb[0].mxu0
        %v3186 = vadd.f32 %v2993, %v3185
        %v3187 = vpop.f32.mrb[0].mxu0
        %v3188 = vadd.f32 %v2995, %v3187
        %3189 = vmatprep.mubr.bf16.mxu0 %v944
        %3190 = vmatmul.mubr.bf16.gmra.mrb[0].mxu0 %v943
        %v3191 = vpop.f32.mrb[0].mxu0
        %v3192 = vadd.f32 %v2999, %v3191
        %v3193 = vpop.f32.mrb[0].mxu0
        %v3194 = vadd.f32 %v3001, %v3193
        %v3195 = vpop.f32.mrb[0].mxu0
        %v3196 = vadd.f32 %v3003, %v3195
        %v3197 = vpop.f32.mrb[0].mxu0
        %v3198 = vadd.f32 %v3005, %v3197
        %3199 = vmatprep.mubr.bf16.mxu0 %v950
        %3200 = vmatmul.mubr.bf16.gmra.mrb[0].mxu0 %v949
        %v3201 = vpop.f32.mrb[0].mxu0
        %v3202 = vadd.f32 %v3009, %v3201
        %v3203 = vpop.f32.mrb[0].mxu0
        %v3204 = vadd.f32 %v3011, %v3203
        %v3205 = vpop.f32.mrb[0].mxu0
        %v3206 = vadd.f32 %v3013, %v3205
        %v3207 = vpop.f32.mrb[0].mxu0
        %v3208 = vadd.f32 %v3015, %v3207
        %3209 = vmatprep.mubr.bf16.mxu0 %v956
        %3210 = vmatmul.mubr.bf16.gmra.mrb[0].mxu0 %v955
        %v3211 = vpop.f32.mrb[0].mxu0
        %v3212 = vadd.f32 %v3019, %v3211
        %v3213 = vpop.f32.mrb[0].mxu0
        %v3214 = vadd.f32 %v3021, %v3213
        %v3215 = vpop.f32.mrb[0].mxu0
        %v3216 = vadd.f32 %v3023, %v3215
        %v3217 = vpop.f32.mrb[0].mxu0
        %v3218 = vadd.f32 %v3025, %v3217
        %3219 = vmatprep.mubr.bf16.mxu0 %v962
        %3220 = vmatmul.mubr.bf16.gmra.mrb[0].mxu0 %v961
        %v3221 = vpop.f32.mrb[0].mxu0
        %v3222 = vadd.f32 %v3029, %v3221
        %v3223 = vpop.f32.mrb[0].mxu0
        %v3224 = vadd.f32 %v3031, %v3223
        %v3225 = vpop.f32.mrb[0].mxu0
        %v3226 = vadd.f32 %v3033, %v3225
        %v3227 = vpop.f32.mrb[0].mxu0
        %v3228 = vadd.f32 %v3035, %v3227
        %3229 = vmatprep.mubr.bf16.mxu0 %v968
        %3230 = vmatmul.mubr.bf16.gmra.mrb[0].mxu0 %v967
        %v3231 = vpop.f32.mrb[0].mxu0
        %v3232 = vadd.f32 %v3039, %v3231
        %v3233 = vpop.f32.mrb[0].mxu0
        %v3234 = vadd.f32 %v3041, %v3233
        %v3235 = vpop.f32.mrb[0].mxu0
        %v3236 = vadd.f32 %v3043, %v3235
        %v3237 = vpop.f32.mrb[0].mxu0
        %v3238 = vadd.f32 %v3045, %v3237
        %3239 = vmatprep.mubr.bf16.mxu0 %v974
        %3240 = vmatmul.mubr.bf16.gmra.mrb[0].mxu0 %v973
        %v3241 = vpop.f32.mrb[0].mxu0
        %v3242 = vadd.f32 %v3049, %v3241
        %v3243 = vpop.f32.mrb[0].mxu0
        %v3244 = vadd.f32 %v3051, %v3243
        %v3245 = vpop.f32.mrb[0].mxu0
        %v3246 = vadd.f32 %v3053, %v3245
        %v3247 = vpop.f32.mrb[0].mxu0
        %v3248 = vadd.f32 %v3055, %v3247
        %3249 = vmatprep.mubr.bf16.mxu0 %v980
        %3250 = vmatmul.mubr.bf16.gmra.mrb[0].mxu0 %v979
        %v3251 = vpop.f32.mrb[0].mxu0
        %v3252 = vadd.f32 %v3059, %v3251
        %v3253 = vpop.f32.mrb[0].mxu0
        %v3254 = vadd.f32 %v3061, %v3253
        %v3255 = vpop.f32.mrb[0].mxu0
        %v3256 = vadd.f32 %v3063, %v3255
        %v3257 = vpop.f32.mrb[0].mxu0
        %v3258 = vadd.f32 %v3065, %v3257
        %3259 = vmatprep.mubr.bf16.mxu0 %v986
        %3260 = vmatmul.mubr.bf16.gmra.mrb[0].mxu0 %v985
        %v3261 = vpop.f32.mrb[0].mxu0
        %v3262 = vadd.f32 %v3069, %v3261
        %v3263 = vpop.f32.mrb[0].mxu0
        %v3264 = vadd.f32 %v3071, %v3263
        %v3265 = vpop.f32.mrb[0].mxu0
        %v3266 = vadd.f32 %v3073, %v3265
        %v3267 = vpop.f32.mrb[0].mxu0
        %v3268 = vadd.f32 %v3075, %v3267
        %3269 = vmatprep.mubr.bf16.mxu0 %v992
        %3270 = vmatmul.mubr.bf16.gmra.mrb[0].mxu0 %v991
        %v3271 = vpop.f32.mrb[0].mxu0
        %v3272 = vadd.f32 %v3079, %v3271
        %v3273 = vpop.f32.mrb[0].mxu0
        %v3274 = vadd.f32 %v3081, %v3273
        %v3275 = vpop.f32.mrb[0].mxu0
        %v3276 = vadd.f32 %v3083, %v3275
        %v3277 = vpop.f32.mrb[0].mxu0
        %v3278 = vadd.f32 %v3085, %v3277
        %3279 = vmatprep.mubr.bf16.mxu0 %v998
        %3280 = vmatmul.mubr.bf16.gmra.mrb[0].mxu0 %v997
        %v3281 = vpop.f32.mrb[0].mxu0
        %v3282 = vadd.f32 %v3089, %v3281
        %v3283 = vpop.f32.mrb[0].mxu0
        %v3284 = vadd.f32 %v3091, %v3283
        %v3285 = vpop.f32.mrb[0].mxu0
        %v3286 = vadd.f32 %v3093, %v3285
        %v3287 = vpop.f32.mrb[0].mxu0
        %v3288 = vadd.f32 %v3095, %v3287
        %3289 = vmatprep.mubr.bf16.mxu0 %v1004
        %3290 = vmatmul.mubr.bf16.gmra.mrb[0].mxu0 %v1003
        %v3291 = vpop.f32.mrb[0].mxu0
        %v3292 = vadd.f32 %v3099, %v3291
        %v3293 = vpop.f32.mrb[0].mxu0
        %v3294 = vadd.f32 %v3101, %v3293
        %v3295 = vpop.f32.mrb[0].mxu0
        %v3296 = vadd.f32 %v3103, %v3295
        %v3297 = vpop.f32.mrb[0].mxu0
        %v3298 = vadd.f32 %v3105, %v3297
        %3299 = vmatprep.mubr.bf16.mxu0 %v1010
        %3300 = vmatmul.mubr.bf16.gmra.mrb[0].mxu0 %v1009
        %v3301 = vpop.f32.mrb[0].mxu0
        %v3302 = vadd.f32 %v3109, %v3301
        %v3303 = vpop.f32.mrb[0].mxu0
        %v3304 = vadd.f32 %v3111, %v3303
        %v3305 = vpop.f32.mrb[0].mxu0
        %v3306 = vadd.f32 %v3113, %v3305
        %v3307 = vpop.f32.mrb[0].mxu0
        %v3308 = vadd.f32 %v3115, %v3307
        %3309 = vmatprep.mubr.bf16.mxu0 %v1016
        %3310 = vmatmul.mubr.bf16.gmra.mrb[0].mxu0 %v1015
        %v3311 = vpop.f32.mrb[0].mxu0
        %v3312 = vadd.f32 %v3119, %v3311
        %v3313 = vpop.f32.mrb[0].mxu0
        %v3314 = vadd.f32 %v3121, %v3313
        %v3315 = vpop.f32.mrb[0].mxu0
        %v3316 = vadd.f32 %v3123, %v3315
        %v3317 = vpop.f32.mrb[0].mxu0
        %v3318 = vadd.f32 %v3125, %v3317
        %3319 = vmatprep.mubr.bf16.mxu0 %v1022
        %3320 = vmatmul.mubr.bf16.gmra.mrb[0].mxu0 %v1021
        %v3321 = vpop.f32.mrb[0].mxu0
        %v3322 = vadd.f32 %v3129, %v3321
        %v3323 = vpop.f32.mrb[0].mxu0
        %v3324 = vadd.f32 %v3131, %v3323
        %v3325 = vpop.f32.mrb[0].mxu0
        %v3326 = vadd.f32 %v3133, %v3325
        %v3327 = vpop.f32.mrb[0].mxu0
        %v3328 = vadd.f32 %v3135, %v3327
        %3329 = vdwg.mxu0
        %3330 = vmatprep.subr.bf16.mxu0 %v2178
        %3331 = vmatpush1.bf16.msra.mxu0 %v2177
        %3332 = vmatprep.subr.bf16.mxu0 %v2184
        %3333 = vmatpush1.bf16.msra.mxu0 %v2183
        %3334 = vmatprep.subr.bf16.mxu0 %v2190
        %3335 = vmatpush1.bf16.msra.mxu0 %v2189
        %3336 = vmatprep.subr.bf16.mxu0 %v2196
        %3337 = vmatpush1.bf16.msra.mxu0 %v2195
        %3338 = vmatprep.subr.bf16.mxu0 %v2202
        %3339 = vmatpush1.bf16.msra.mxu0 %v2201
        %3340 = vmatprep.subr.bf16.mxu0 %v2208
        %3341 = vmatpush1.bf16.msra.mxu0 %v2207
        %3342 = vmatprep.subr.bf16.mxu0 %v2214
        %3343 = vmatpush1.bf16.msra.mxu0 %v2213
        %3344 = vmatprep.subr.bf16.mxu0 %v2220
        %3345 = vmatpush1.bf16.msra.mxu0 %v2219
        %3346 = vmatprep.subr.bf16.mxu0 %v2226
        %3347 = vmatpush1.bf16.msra.mxu0 %v2225
        %3348 = vmatprep.subr.bf16.mxu0 %v2232
        %3349 = vmatpush1.bf16.msra.mxu0 %v2231
        %3350 = vmatprep.subr.bf16.mxu0 %v2238
        %3351 = vmatpush1.bf16.msra.mxu0 %v2237
        %3352 = vmatprep.subr.bf16.mxu0 %v2244
        %3353 = vmatpush1.bf16.msra.mxu0 %v2243
        %3354 = vmatprep.subr.bf16.mxu0 %v2250
        %3355 = vmatpush1.bf16.msra.mxu0 %v2249
        %3356 = vmatprep.subr.bf16.mxu0 %v2256
        %3357 = vmatpush1.bf16.msra.mxu0 %v2255
        %3358 = vmatprep.subr.bf16.mxu0 %v2262
        %3359 = vmatpush1.bf16.msra.mxu0 %v2261
        %3360 = vmatprep.subr.bf16.mxu0 %v2268
        %3361 = vmatpush1.bf16.msra.mxu0 %v2267
        %3362 = vmatprep.mubr.bf16.mxu0 %v928
        %3363 = vmatmul.mubr.bf16.gmra.mrb[0].mxu0 %v927
        %v3364 = vpop.f32.mrb[0].mxu0
        %v3365 = vadd.f32 0.0, %v3364
        %v3366 = vpop.f32.mrb[0].mxu0
        %v3367 = vadd.f32 0.0, %v3366
        %v3368 = vpop.f32.mrb[0].mxu0
        %v3369 = vadd.f32 0.0, %v3368
        %v3370 = vpop.f32.mrb[0].mxu0
        %v3371 = vadd.f32 0.0, %v3370
        %3372 = vmatprep.mubr.bf16.mxu0 %v934
        %3373 = vmatmul.mubr.bf16.gmra.mrb[0].mxu0 %v933
        %v3374 = vpop.f32.mrb[0].mxu0
        %v3375 = vadd.f32 0.0, %v3374
        %v3376 = vpop.f32.mrb[0].mxu0
        %v3377 = vadd.f32 0.0, %v3376
        %v3378 = vpop.f32.mrb[0].mxu0
        %v3379 = vadd.f32 0.0, %v3378
        %v3380 = vpop.f32.mrb[0].mxu0
        %v3381 = vadd.f32 0.0, %v3380
        %3382 = vmatprep.mubr.bf16.mxu0 %v940
        %3383 = vmatmul.mubr.bf16.gmra.mrb[0].mxu0 %v939
        %v3384 = vpop.f32.mrb[0].mxu0
        %v3385 = vadd.f32 0.0, %v3384
        %v3386 = vpop.f32.mrb[0].mxu0
        %v3387 = vadd.f32 0.0, %v3386
        %v3388 = vpop.f32.mrb[0].mxu0
        %v3389 = vadd.f32 0.0, %v3388
        %v3390 = vpop.f32.mrb[0].mxu0
        %v3391 = vadd.f32 0.0, %v3390
        %3392 = vmatprep.mubr.bf16.mxu0 %v946
        %3393 = vmatmul.mubr.bf16.gmra.mrb[0].mxu0 %v945
        %v3394 = vpop.f32.mrb[0].mxu0
        %v3395 = vadd.f32 0.0, %v3394
        %v3396 = vpop.f32.mrb[0].mxu0
        %v3397 = vadd.f32 0.0, %v3396
        %v3398 = vpop.f32.mrb[0].mxu0
        %v3399 = vadd.f32 0.0, %v3398
        %v3400 = vpop.f32.mrb[0].mxu0
        %v3401 = vadd.f32 0.0, %v3400
        %3402 = vmatprep.mubr.bf16.mxu0 %v952
        %3403 = vmatmul.mubr.bf16.gmra.mrb[0].mxu0 %v951
        %v3404 = vpop.f32.mrb[0].mxu0
        %v3405 = vadd.f32 0.0, %v3404
        %v3406 = vpop.f32.mrb[0].mxu0
        %v3407 = vadd.f32 0.0, %v3406
        %v3408 = vpop.f32.mrb[0].mxu0
        %v3409 = vadd.f32 0.0, %v3408
        %v3410 = vpop.f32.mrb[0].mxu0
        %v3411 = vadd.f32 0.0, %v3410
        %3412 = vmatprep.mubr.bf16.mxu0 %v958
        %3413 = vmatmul.mubr.bf16.gmra.mrb[0].mxu0 %v957
        %v3414 = vpop.f32.mrb[0].mxu0
        %v3415 = vadd.f32 0.0, %v3414
        %v3416 = vpop.f32.mrb[0].mxu0
        %v3417 = vadd.f32 0.0, %v3416
        %v3418 = vpop.f32.mrb[0].mxu0
        %v3419 = vadd.f32 0.0, %v3418
        %v3420 = vpop.f32.mrb[0].mxu0
        %v3421 = vadd.f32 0.0, %v3420
        %3422 = vmatprep.mubr.bf16.mxu0 %v964
        %3423 = vmatmul.mubr.bf16.gmra.mrb[0].mxu0 %v963
        %v3424 = vpop.f32.mrb[0].mxu0
        %v3425 = vadd.f32 0.0, %v3424
        %v3426 = vpop.f32.mrb[0].mxu0
        %v3427 = vadd.f32 0.0, %v3426
        %v3428 = vpop.f32.mrb[0].mxu0
        %v3429 = vadd.f32 0.0, %v3428
        %v3430 = vpop.f32.mrb[0].mxu0
        %v3431 = vadd.f32 0.0, %v3430
        %3432 = vmatprep.mubr.bf16.mxu0 %v970
        %3433 = vmatmul.mubr.bf16.gmra.mrb[0].mxu0 %v969
        %v3434 = vpop.f32.mrb[0].mxu0
        %v3435 = vadd.f32 0.0, %v3434
        %v3436 = vpop.f32.mrb[0].mxu0
        %v3437 = vadd.f32 0.0, %v3436
        %v3438 = vpop.f32.mrb[0].mxu0
        %v3439 = vadd.f32 0.0, %v3438
        %v3440 = vpop.f32.mrb[0].mxu0
        %v3441 = vadd.f32 0.0, %v3440
        %3442 = vmatprep.mubr.bf16.mxu0 %v976
        %3443 = vmatmul.mubr.bf16.gmra.mrb[0].mxu0 %v975
        %v3444 = vpop.f32.mrb[0].mxu0
        %v3445 = vadd.f32 0.0, %v3444
        %v3446 = vpop.f32.mrb[0].mxu0
        %v3447 = vadd.f32 0.0, %v3446
        %v3448 = vpop.f32.mrb[0].mxu0
        %v3449 = vadd.f32 0.0, %v3448
        %v3450 = vpop.f32.mrb[0].mxu0
        %v3451 = vadd.f32 0.0, %v3450
        %3452 = vmatprep.mubr.bf16.mxu0 %v982
        %3453 = vmatmul.mubr.bf16.gmra.mrb[0].mxu0 %v981
        %v3454 = vpop.f32.mrb[0].mxu0
        %v3455 = vadd.f32 0.0, %v3454
        %v3456 = vpop.f32.mrb[0].mxu0
        %v3457 = vadd.f32 0.0, %v3456
        %v3458 = vpop.f32.mrb[0].mxu0
        %v3459 = vadd.f32 0.0, %v3458
        %v3460 = vpop.f32.mrb[0].mxu0
        %v3461 = vadd.f32 0.0, %v3460
        %3462 = vmatprep.mubr.bf16.mxu0 %v988
        %3463 = vmatmul.mubr.bf16.gmra.mrb[0].mxu0 %v987
        %v3464 = vpop.f32.mrb[0].mxu0
        %v3465 = vadd.f32 0.0, %v3464
        %v3466 = vpop.f32.mrb[0].mxu0
        %v3467 = vadd.f32 0.0, %v3466
        %v3468 = vpop.f32.mrb[0].mxu0
        %v3469 = vadd.f32 0.0, %v3468
        %v3470 = vpop.f32.mrb[0].mxu0
        %v3471 = vadd.f32 0.0, %v3470
        %3472 = vmatprep.mubr.bf16.mxu0 %v994
        %3473 = vmatmul.mubr.bf16.gmra.mrb[0].mxu0 %v993
        %v3474 = vpop.f32.mrb[0].mxu0
        %v3475 = vadd.f32 0.0, %v3474
        %v3476 = vpop.f32.mrb[0].mxu0
        %v3477 = vadd.f32 0.0, %v3476
        %v3478 = vpop.f32.mrb[0].mxu0
        %v3479 = vadd.f32 0.0, %v3478
        %v3480 = vpop.f32.mrb[0].mxu0
        %v3481 = vadd.f32 0.0, %v3480
        %3482 = vmatprep.mubr.bf16.mxu0 %v1000
        %3483 = vmatmul.mubr.bf16.gmra.mrb[0].mxu0 %v999
        %v3484 = vpop.f32.mrb[0].mxu0
        %v3485 = vadd.f32 0.0, %v3484
        %v3486 = vpop.f32.mrb[0].mxu0
        %v3487 = vadd.f32 0.0, %v3486
        %v3488 = vpop.f32.mrb[0].mxu0
        %v3489 = vadd.f32 0.0, %v3488
        %v3490 = vpop.f32.mrb[0].mxu0
        %v3491 = vadd.f32 0.0, %v3490
        %3492 = vmatprep.mubr.bf16.mxu0 %v1006
        %3493 = vmatmul.mubr.bf16.gmra.mrb[0].mxu0 %v1005
        %v3494 = vpop.f32.mrb[0].mxu0
        %v3495 = vadd.f32 0.0, %v3494
        %v3496 = vpop.f32.mrb[0].mxu0
        %v3497 = vadd.f32 0.0, %v3496
        %v3498 = vpop.f32.mrb[0].mxu0
        %v3499 = vadd.f32 0.0, %v3498
        %v3500 = vpop.f32.mrb[0].mxu0
        %v3501 = vadd.f32 0.0, %v3500
        %3502 = vmatprep.mubr.bf16.mxu0 %v1012
        %3503 = vmatmul.mubr.bf16.gmra.mrb[0].mxu0 %v1011
        %v3504 = vpop.f32.mrb[0].mxu0
        %v3505 = vadd.f32 0.0, %v3504
        %v3506 = vpop.f32.mrb[0].mxu0
        %v3507 = vadd.f32 0.0, %v3506
        %v3508 = vpop.f32.mrb[0].mxu0
        %v3509 = vadd.f32 0.0, %v3508
        %v3510 = vpop.f32.mrb[0].mxu0
        %v3511 = vadd.f32 0.0, %v3510
        %3512 = vmatprep.mubr.bf16.mxu0 %v1018
        %3513 = vmatmul.mubr.bf16.gmra.mrb[0].mxu0 %v1017
        %v3514 = vpop.f32.mrb[0].mxu0
        %v3515 = vadd.f32 0.0, %v3514
        %v3516 = vpop.f32.mrb[0].mxu0
        %v3517 = vadd.f32 0.0, %v3516
        %v3518 = vpop.f32.mrb[0].mxu0
        %v3519 = vadd.f32 0.0, %v3518
        %v3520 = vpop.f32.mrb[0].mxu0
        %v3521 = vadd.f32 0.0, %v3520
        %3522 = vdwg.mxu0
        %3523 = vmatprep.subr.bf16.mxu0 %v2274
        %3524 = vmatpush1.bf16.msra.mxu0 %v2273
        %3525 = vmatprep.subr.bf16.mxu0 %v2280
        %3526 = vmatpush1.bf16.msra.mxu0 %v2279
        %3527 = vmatprep.subr.bf16.mxu0 %v2286
        %3528 = vmatpush1.bf16.msra.mxu0 %v2285
        %3529 = vmatprep.subr.bf16.mxu0 %v2292
        %3530 = vmatpush1.bf16.msra.mxu0 %v2291
        %3531 = vmatprep.subr.bf16.mxu0 %v2298
        %3532 = vmatpush1.bf16.msra.mxu0 %v2297
        %3533 = vmatprep.subr.bf16.mxu0 %v2304
        %3534 = vmatpush1.bf16.msra.mxu0 %v2303
        %3535 = vmatprep.subr.bf16.mxu0 %v2310
        %3536 = vmatpush1.bf16.msra.mxu0 %v2309
        %3537 = vmatprep.subr.bf16.mxu0 %v2316
        %3538 = vmatpush1.bf16.msra.mxu0 %v2315
        %3539 = vmatprep.subr.bf16.mxu0 %v2322
        %3540 = vmatpush1.bf16.msra.mxu0 %v2321
        %3541 = vmatprep.subr.bf16.mxu0 %v2328
        %3542 = vmatpush1.bf16.msra.mxu0 %v2327
        %3543 = vmatprep.subr.bf16.mxu0 %v2334
        %3544 = vmatpush1.bf16.msra.mxu0 %v2333
        %3545 = vmatprep.subr.bf16.mxu0 %v2340
        %3546 = vmatpush1.bf16.msra.mxu0 %v2339
        %3547 = vmatprep.subr.bf16.mxu0 %v2346
        %3548 = vmatpush1.bf16.msra.mxu0 %v2345
        %3549 = vmatprep.subr.bf16.mxu0 %v2352
        %3550 = vmatpush1.bf16.msra.mxu0 %v2351
        %3551 = vmatprep.subr.bf16.mxu0 %v2358
        %3552 = vmatpush1.bf16.msra.mxu0 %v2357
        %3553 = vmatprep.subr.bf16.mxu0 %v2364
        %3554 = vmatpush1.bf16.msra.mxu0 %v2363
        %3555 = vmatprep.mubr.bf16.mxu0 %v930
        %3556 = vmatmul.mubr.bf16.gmra.mrb[0].mxu0 %v929
        %v3557 = vpop.f32.mrb[0].mxu0
        %v3558 = vadd.f32 %v3365, %v3557
        %v3559 = vpop.f32.mrb[0].mxu0
        %v3560 = vadd.f32 %v3367, %v3559
        %v3561 = vpop.f32.mrb[0].mxu0
        %v3562 = vadd.f32 %v3369, %v3561
        %v3563 = vpop.f32.mrb[0].mxu0
        %v3564 = vadd.f32 %v3371, %v3563
        %3565 = vmatprep.mubr.bf16.mxu0 %v936
        %3566 = vmatmul.mubr.bf16.gmra.mrb[0].mxu0 %v935
        %v3567 = vpop.f32.mrb[0].mxu0
        %v3568 = vadd.f32 %v3375, %v3567
        %v3569 = vpop.f32.mrb[0].mxu0
        %v3570 = vadd.f32 %v3377, %v3569
        %v3571 = vpop.f32.mrb[0].mxu0
        %v3572 = vadd.f32 %v3379, %v3571
        %v3573 = vpop.f32.mrb[0].mxu0
        %v3574 = vadd.f32 %v3381, %v3573
        %3575 = vmatprep.mubr.bf16.mxu0 %v942
        %3576 = vmatmul.mubr.bf16.gmra.mrb[0].mxu0 %v941
        %v3577 = vpop.f32.mrb[0].mxu0
        %v3578 = vadd.f32 %v3385, %v3577
        %v3579 = vpop.f32.mrb[0].mxu0
        %v3580 = vadd.f32 %v3387, %v3579
        %v3581 = vpop.f32.mrb[0].mxu0
        %v3582 = vadd.f32 %v3389, %v3581
        %v3583 = vpop.f32.mrb[0].mxu0
        %v3584 = vadd.f32 %v3391, %v3583
        %3585 = vmatprep.mubr.bf16.mxu0 %v948
        %3586 = vmatmul.mubr.bf16.gmra.mrb[0].mxu0 %v947
        %v3587 = vpop.f32.mrb[0].mxu0
        %v3588 = vadd.f32 %v3395, %v3587
        %v3589 = vpop.f32.mrb[0].mxu0
        %v3590 = vadd.f32 %v3397, %v3589
        %v3591 = vpop.f32.mrb[0].mxu0
        %v3592 = vadd.f32 %v3399, %v3591
        %v3593 = vpop.f32.mrb[0].mxu0
        %v3594 = vadd.f32 %v3401, %v3593
        %3595 = vmatprep.mubr.bf16.mxu0 %v954
        %3596 = vmatmul.mubr.bf16.gmra.mrb[0].mxu0 %v953
        %v3597 = vpop.f32.mrb[0].mxu0
        %v3598 = vadd.f32 %v3405, %v3597
        %v3599 = vpop.f32.mrb[0].mxu0
        %v3600 = vadd.f32 %v3407, %v3599
        %v3601 = vpop.f32.mrb[0].mxu0
        %v3602 = vadd.f32 %v3409, %v3601
        %v3603 = vpop.f32.mrb[0].mxu0
        %v3604 = vadd.f32 %v3411, %v3603
        %3605 = vmatprep.mubr.bf16.mxu0 %v960
        %3606 = vmatmul.mubr.bf16.gmra.mrb[0].mxu0 %v959
        %v3607 = vpop.f32.mrb[0].mxu0
        %v3608 = vadd.f32 %v3415, %v3607
        %v3609 = vpop.f32.mrb[0].mxu0
        %v3610 = vadd.f32 %v3417, %v3609
        %v3611 = vpop.f32.mrb[0].mxu0
        %v3612 = vadd.f32 %v3419, %v3611
        %v3613 = vpop.f32.mrb[0].mxu0
        %v3614 = vadd.f32 %v3421, %v3613
        %3615 = vmatprep.mubr.bf16.mxu0 %v966
        %3616 = vmatmul.mubr.bf16.gmra.mrb[0].mxu0 %v965
        %v3617 = vpop.f32.mrb[0].mxu0
        %v3618 = vadd.f32 %v3425, %v3617
        %v3619 = vpop.f32.mrb[0].mxu0
        %v3620 = vadd.f32 %v3427, %v3619
        %v3621 = vpop.f32.mrb[0].mxu0
        %v3622 = vadd.f32 %v3429, %v3621
        %v3623 = vpop.f32.mrb[0].mxu0
        %v3624 = vadd.f32 %v3431, %v3623
        %3625 = vmatprep.mubr.bf16.mxu0 %v972
        %3626 = vmatmul.mubr.bf16.gmra.mrb[0].mxu0 %v971
        %v3627 = vpop.f32.mrb[0].mxu0
        %v3628 = vadd.f32 %v3435, %v3627
        %v3629 = vpop.f32.mrb[0].mxu0
        %v3630 = vadd.f32 %v3437, %v3629
        %v3631 = vpop.f32.mrb[0].mxu0
        %v3632 = vadd.f32 %v3439, %v3631
        %v3633 = vpop.f32.mrb[0].mxu0
        %v3634 = vadd.f32 %v3441, %v3633
        %3635 = vmatprep.mubr.bf16.mxu0 %v978
        %3636 = vmatmul.mubr.bf16.gmra.mrb[0].mxu0 %v977
        %v3637 = vpop.f32.mrb[0].mxu0
        %v3638 = vadd.f32 %v3445, %v3637
        %v3639 = vpop.f32.mrb[0].mxu0
        %v3640 = vadd.f32 %v3447, %v3639
        %v3641 = vpop.f32.mrb[0].mxu0
        %v3642 = vadd.f32 %v3449, %v3641
        %v3643 = vpop.f32.mrb[0].mxu0
        %v3644 = vadd.f32 %v3451, %v3643
        %3645 = vmatprep.mubr.bf16.mxu0 %v984
        %3646 = vmatmul.mubr.bf16.gmra.mrb[0].mxu0 %v983
        %v3647 = vpop.f32.mrb[0].mxu0
        %v3648 = vadd.f32 %v3455, %v3647
        %v3649 = vpop.f32.mrb[0].mxu0
        %v3650 = vadd.f32 %v3457, %v3649
        %v3651 = vpop.f32.mrb[0].mxu0
        %v3652 = vadd.f32 %v3459, %v3651
        %v3653 = vpop.f32.mrb[0].mxu0
        %v3654 = vadd.f32 %v3461, %v3653
        %3655 = vmatprep.mubr.bf16.mxu0 %v990
        %3656 = vmatmul.mubr.bf16.gmra.mrb[0].mxu0 %v989
        %v3657 = vpop.f32.mrb[0].mxu0
        %v3658 = vadd.f32 %v3465, %v3657
        %v3659 = vpop.f32.mrb[0].mxu0
        %v3660 = vadd.f32 %v3467, %v3659
        %v3661 = vpop.f32.mrb[0].mxu0
        %v3662 = vadd.f32 %v3469, %v3661
        %v3663 = vpop.f32.mrb[0].mxu0
        %v3664 = vadd.f32 %v3471, %v3663
        %3665 = vmatprep.mubr.bf16.mxu0 %v996
        %3666 = vmatmul.mubr.bf16.gmra.mrb[0].mxu0 %v995
        %v3667 = vpop.f32.mrb[0].mxu0
        %v3668 = vadd.f32 %v3475, %v3667
        %v3669 = vpop.f32.mrb[0].mxu0
        %v3670 = vadd.f32 %v3477, %v3669
        %v3671 = vpop.f32.mrb[0].mxu0
        %v3672 = vadd.f32 %v3479, %v3671
        %v3673 = vpop.f32.mrb[0].mxu0
        %v3674 = vadd.f32 %v3481, %v3673
        %3675 = vmatprep.mubr.bf16.mxu0 %v1002
        %3676 = vmatmul.mubr.bf16.gmra.mrb[0].mxu0 %v1001
        %v3677 = vpop.f32.mrb[0].mxu0
        %v3678 = vadd.f32 %v3485, %v3677
        %v3679 = vpop.f32.mrb[0].mxu0
        %v3680 = vadd.f32 %v3487, %v3679
        %v3681 = vpop.f32.mrb[0].mxu0
        %v3682 = vadd.f32 %v3489, %v3681
        %v3683 = vpop.f32.mrb[0].mxu0
        %v3684 = vadd.f32 %v3491, %v3683
        %3685 = vmatprep.mubr.bf16.mxu0 %v1008
        %3686 = vmatmul.mubr.bf16.gmra.mrb[0].mxu0 %v1007
        %v3687 = vpop.f32.mrb[0].mxu0
        %v3688 = vadd.f32 %v3495, %v3687
        %v3689 = vpop.f32.mrb[0].mxu0
        %v3690 = vadd.f32 %v3497, %v3689
        %v3691 = vpop.f32.mrb[0].mxu0
        %v3692 = vadd.f32 %v3499, %v3691
        %v3693 = vpop.f32.mrb[0].mxu0
        %v3694 = vadd.f32 %v3501, %v3693
        %3695 = vmatprep.mubr.bf16.mxu0 %v1014
        %3696 = vmatmul.mubr.bf16.gmra.mrb[0].mxu0 %v1013
        %v3697 = vpop.f32.mrb[0].mxu0
        %v3698 = vadd.f32 %v3505, %v3697
        %v3699 = vpop.f32.mrb[0].mxu0
        %v3700 = vadd.f32 %v3507, %v3699
        %v3701 = vpop.f32.mrb[0].mxu0
        %v3702 = vadd.f32 %v3509, %v3701
        %v3703 = vpop.f32.mrb[0].mxu0
        %v3704 = vadd.f32 %v3511, %v3703
        %3705 = vmatprep.mubr.bf16.mxu0 %v1020
        %3706 = vmatmul.mubr.bf16.gmra.mrb[0].mxu0 %v1019
        %v3707 = vpop.f32.mrb[0].mxu0
        %v3708 = vadd.f32 %v3515, %v3707
        %v3709 = vpop.f32.mrb[0].mxu0
        %v3710 = vadd.f32 %v3517, %v3709
        %v3711 = vpop.f32.mrb[0].mxu0
        %v3712 = vadd.f32 %v3519, %v3711
        %v3713 = vpop.f32.mrb[0].mxu0
        %v3714 = vadd.f32 %v3521, %v3713
        %3715 = vdwg.mxu0
        %3716 = vmatprep.subr.bf16.mxu0 %v2370
        %3717 = vmatpush1.bf16.msra.mxu0 %v2369
        %3718 = vmatprep.subr.bf16.mxu0 %v2376
        %3719 = vmatpush1.bf16.msra.mxu0 %v2375
        %3720 = vmatprep.subr.bf16.mxu0 %v2382
        %3721 = vmatpush1.bf16.msra.mxu0 %v2381
        %3722 = vmatprep.subr.bf16.mxu0 %v2388
        %3723 = vmatpush1.bf16.msra.mxu0 %v2387
        %3724 = vmatprep.subr.bf16.mxu0 %v2394
        %3725 = vmatpush1.bf16.msra.mxu0 %v2393
        %3726 = vmatprep.subr.bf16.mxu0 %v2400
        %3727 = vmatpush1.bf16.msra.mxu0 %v2399
        %3728 = vmatprep.subr.bf16.mxu0 %v2406
        %3729 = vmatpush1.bf16.msra.mxu0 %v2405
        %3730 = vmatprep.subr.bf16.mxu0 %v2412
        %3731 = vmatpush1.bf16.msra.mxu0 %v2411
        %3732 = vmatprep.subr.bf16.mxu0 %v2418
        %3733 = vmatpush1.bf16.msra.mxu0 %v2417
        %3734 = vmatprep.subr.bf16.mxu0 %v2424
        %3735 = vmatpush1.bf16.msra.mxu0 %v2423
        %3736 = vmatprep.subr.bf16.mxu0 %v2430
        %3737 = vmatpush1.bf16.msra.mxu0 %v2429
        %3738 = vmatprep.subr.bf16.mxu0 %v2436
        %3739 = vmatpush1.bf16.msra.mxu0 %v2435
        %3740 = vmatprep.subr.bf16.mxu0 %v2442
        %3741 = vmatpush1.bf16.msra.mxu0 %v2441
        %3742 = vmatprep.subr.bf16.mxu0 %v2448
        %3743 = vmatpush1.bf16.msra.mxu0 %v2447
        %3744 = vmatprep.subr.bf16.mxu0 %v2454
        %3745 = vmatpush1.bf16.msra.mxu0 %v2453
        %3746 = vmatprep.subr.bf16.mxu0 %v2460
        %3747 = vmatpush1.bf16.msra.mxu0 %v2459
        %3748 = vmatprep.mubr.bf16.mxu0 %v932
        %3749 = vmatmul.mubr.bf16.gmra.mrb[0].mxu0 %v931
        %v3750 = vpop.f32.mrb[0].mxu0
        %v3751 = vadd.f32 %v3558, %v3750
        %v3752 = vpop.f32.mrb[0].mxu0
        %v3753 = vadd.f32 %v3560, %v3752
        %v3754 = vpop.f32.mrb[0].mxu0
        %v3755 = vadd.f32 %v3562, %v3754
        %v3756 = vpop.f32.mrb[0].mxu0
        %v3757 = vadd.f32 %v3564, %v3756
        %3758 = vmatprep.mubr.bf16.mxu0 %v938
        %3759 = vmatmul.mubr.bf16.gmra.mrb[0].mxu0 %v937
        %v3760 = vpop.f32.mrb[0].mxu0
        %v3761 = vadd.f32 %v3568, %v3760
        %v3762 = vpop.f32.mrb[0].mxu0
        %v3763 = vadd.f32 %v3570, %v3762
        %v3764 = vpop.f32.mrb[0].mxu0
        %v3765 = vadd.f32 %v3572, %v3764
        %v3766 = vpop.f32.mrb[0].mxu0
        %v3767 = vadd.f32 %v3574, %v3766
        %3768 = vmatprep.mubr.bf16.mxu0 %v944
        %3769 = vmatmul.mubr.bf16.gmra.mrb[0].mxu0 %v943
        %v3770 = vpop.f32.mrb[0].mxu0
        %v3771 = vadd.f32 %v3578, %v3770
        %v3772 = vpop.f32.mrb[0].mxu0
        %v3773 = vadd.f32 %v3580, %v3772
        %v3774 = vpop.f32.mrb[0].mxu0
        %v3775 = vadd.f32 %v3582, %v3774
        %v3776 = vpop.f32.mrb[0].mxu0
        %v3777 = vadd.f32 %v3584, %v3776
        %3778 = vmatprep.mubr.bf16.mxu0 %v950
        %3779 = vmatmul.mubr.bf16.gmra.mrb[0].mxu0 %v949
        %v3780 = vpop.f32.mrb[0].mxu0
        %v3781 = vadd.f32 %v3588, %v3780
        %v3782 = vpop.f32.mrb[0].mxu0
        %v3783 = vadd.f32 %v3590, %v3782
        %v3784 = vpop.f32.mrb[0].mxu0
        %v3785 = vadd.f32 %v3592, %v3784
        %v3786 = vpop.f32.mrb[0].mxu0
        %v3787 = vadd.f32 %v3594, %v3786
        %3788 = vmatprep.mubr.bf16.mxu0 %v956
        %3789 = vmatmul.mubr.bf16.gmra.mrb[0].mxu0 %v955
        %v3790 = vpop.f32.mrb[0].mxu0
        %v3791 = vadd.f32 %v3598, %v3790
        %v3792 = vpop.f32.mrb[0].mxu0
        %v3793 = vadd.f32 %v3600, %v3792
        %v3794 = vpop.f32.mrb[0].mxu0
        %v3795 = vadd.f32 %v3602, %v3794
        %v3796 = vpop.f32.mrb[0].mxu0
        %v3797 = vadd.f32 %v3604, %v3796
        %3798 = vmatprep.mubr.bf16.mxu0 %v962
        %3799 = vmatmul.mubr.bf16.gmra.mrb[0].mxu0 %v961
        %v3800 = vpop.f32.mrb[0].mxu0
        %v3801 = vadd.f32 %v3608, %v3800
        %v3802 = vpop.f32.mrb[0].mxu0
        %v3803 = vadd.f32 %v3610, %v3802
        %v3804 = vpop.f32.mrb[0].mxu0
        %v3805 = vadd.f32 %v3612, %v3804
        %v3806 = vpop.f32.mrb[0].mxu0
        %v3807 = vadd.f32 %v3614, %v3806
        %3808 = vmatprep.mubr.bf16.mxu0 %v968
        %3809 = vmatmul.mubr.bf16.gmra.mrb[0].mxu0 %v967
        %v3810 = vpop.f32.mrb[0].mxu0
        %v3811 = vadd.f32 %v3618, %v3810
        %v3812 = vpop.f32.mrb[0].mxu0
        %v3813 = vadd.f32 %v3620, %v3812
        %v3814 = vpop.f32.mrb[0].mxu0
        %v3815 = vadd.f32 %v3622, %v3814
        %v3816 = vpop.f32.mrb[0].mxu0
        %v3817 = vadd.f32 %v3624, %v3816
        %3818 = vmatprep.mubr.bf16.mxu0 %v974
        %3819 = vmatmul.mubr.bf16.gmra.mrb[0].mxu0 %v973
        %v3820 = vpop.f32.mrb[0].mxu0
        %v3821 = vadd.f32 %v3628, %v3820
        %v3822 = vpop.f32.mrb[0].mxu0
        %v3823 = vadd.f32 %v3630, %v3822
        %v3824 = vpop.f32.mrb[0].mxu0
        %v3825 = vadd.f32 %v3632, %v3824
        %v3826 = vpop.f32.mrb[0].mxu0
        %v3827 = vadd.f32 %v3634, %v3826
        %3828 = vmatprep.mubr.bf16.mxu0 %v980
        %3829 = vmatmul.mubr.bf16.gmra.mrb[0].mxu0 %v979
        %v3830 = vpop.f32.mrb[0].mxu0
        %v3831 = vadd.f32 %v3638, %v3830
        %v3832 = vpop.f32.mrb[0].mxu0
        %v3833 = vadd.f32 %v3640, %v3832
        %v3834 = vpop.f32.mrb[0].mxu0
        %v3835 = vadd.f32 %v3642, %v3834
        %v3836 = vpop.f32.mrb[0].mxu0
        %v3837 = vadd.f32 %v3644, %v3836
        %3838 = vmatprep.mubr.bf16.mxu0 %v986
        %3839 = vmatmul.mubr.bf16.gmra.mrb[0].mxu0 %v985
        %v3840 = vpop.f32.mrb[0].mxu0
        %v3841 = vadd.f32 %v3648, %v3840
        %v3842 = vpop.f32.mrb[0].mxu0
        %v3843 = vadd.f32 %v3650, %v3842
        %v3844 = vpop.f32.mrb[0].mxu0
        %v3845 = vadd.f32 %v3652, %v3844
        %v3846 = vpop.f32.mrb[0].mxu0
        %v3847 = vadd.f32 %v3654, %v3846
        %3848 = vmatprep.mubr.bf16.mxu0 %v992
        %3849 = vmatmul.mubr.bf16.gmra.mrb[0].mxu0 %v991
        %v3850 = vpop.f32.mrb[0].mxu0
        %v3851 = vadd.f32 %v3658, %v3850
        %v3852 = vpop.f32.mrb[0].mxu0
        %v3853 = vadd.f32 %v3660, %v3852
        %v3854 = vpop.f32.mrb[0].mxu0
        %v3855 = vadd.f32 %v3662, %v3854
        %v3856 = vpop.f32.mrb[0].mxu0
        %v3857 = vadd.f32 %v3664, %v3856
        %3858 = vmatprep.mubr.bf16.mxu0 %v998
        %3859 = vmatmul.mubr.bf16.gmra.mrb[0].mxu0 %v997
        %v3860 = vpop.f32.mrb[0].mxu0
        %v3861 = vadd.f32 %v3668, %v3860
        %v3862 = vpop.f32.mrb[0].mxu0
        %v3863 = vadd.f32 %v3670, %v3862
        %v3864 = vpop.f32.mrb[0].mxu0
        %v3865 = vadd.f32 %v3672, %v3864
        %v3866 = vpop.f32.mrb[0].mxu0
        %v3867 = vadd.f32 %v3674, %v3866
        %3868 = vmatprep.mubr.bf16.mxu0 %v1004
        %3869 = vmatmul.mubr.bf16.gmra.mrb[0].mxu0 %v1003
        %v3870 = vpop.f32.mrb[0].mxu0
        %v3871 = vadd.f32 %v3678, %v3870
        %v3872 = vpop.f32.mrb[0].mxu0
        %v3873 = vadd.f32 %v3680, %v3872
        %v3874 = vpop.f32.mrb[0].mxu0
        %v3875 = vadd.f32 %v3682, %v3874
        %v3876 = vpop.f32.mrb[0].mxu0
        %v3877 = vadd.f32 %v3684, %v3876
        %3878 = vmatprep.mubr.bf16.mxu0 %v1010
        %3879 = vmatmul.mubr.bf16.gmra.mrb[0].mxu0 %v1009
        %v3880 = vpop.f32.mrb[0].mxu0
        %v3881 = vadd.f32 %v3688, %v3880
        %v3882 = vpop.f32.mrb[0].mxu0
        %v3883 = vadd.f32 %v3690, %v3882
        %v3884 = vpop.f32.mrb[0].mxu0
        %v3885 = vadd.f32 %v3692, %v3884
        %v3886 = vpop.f32.mrb[0].mxu0
        %v3887 = vadd.f32 %v3694, %v3886
        %3888 = vmatprep.mubr.bf16.mxu0 %v1016
        %3889 = vmatmul.mubr.bf16.gmra.mrb[0].mxu0 %v1015
        %v3890 = vpop.f32.mrb[0].mxu0
        %v3891 = vadd.f32 %v3698, %v3890
        %v3892 = vpop.f32.mrb[0].mxu0
        %v3893 = vadd.f32 %v3700, %v3892
        %v3894 = vpop.f32.mrb[0].mxu0
        %v3895 = vadd.f32 %v3702, %v3894
        %v3896 = vpop.f32.mrb[0].mxu0
        %v3897 = vadd.f32 %v3704, %v3896
        %3898 = vmatprep.mubr.bf16.mxu0 %v1022
        %3899 = vmatmul.mubr.bf16.gmra.mrb[0].mxu0 %v1021
        %v3900 = vpop.f32.mrb[0].mxu0
        %v3901 = vadd.f32 %v3708, %v3900
        %v3902 = vpop.f32.mrb[0].mxu0
        %v3903 = vadd.f32 %v3710, %v3902
        %v3904 = vpop.f32.mrb[0].mxu0
        %v3905 = vadd.f32 %v3712, %v3904
        %v3906 = vpop.f32.mrb[0].mxu0
        %v3907 = vadd.f32 %v3714, %v3906
        %3908 = vdwg.mxu0
        %3909 = vmatprep.subr.bf16.mxu0 %v2180
        %3910 = vmatpush1.bf16.msra.mxu0 %v2179
        %3911 = vmatprep.subr.bf16.mxu0 %v2186
        %3912 = vmatpush1.bf16.msra.mxu0 %v2185
        %3913 = vmatprep.subr.bf16.mxu0 %v2192
        %3914 = vmatpush1.bf16.msra.mxu0 %v2191
        %3915 = vmatprep.subr.bf16.mxu0 %v2198
        %3916 = vmatpush1.bf16.msra.mxu0 %v2197
        %3917 = vmatprep.subr.bf16.mxu0 %v2204
        %3918 = vmatpush1.bf16.msra.mxu0 %v2203
        %3919 = vmatprep.subr.bf16.mxu0 %v2210
        %3920 = vmatpush1.bf16.msra.mxu0 %v2209
        %3921 = vmatprep.subr.bf16.mxu0 %v2216
        %3922 = vmatpush1.bf16.msra.mxu0 %v2215
        %3923 = vmatprep.subr.bf16.mxu0 %v2222
        %3924 = vmatpush1.bf16.msra.mxu0 %v2221
        %3925 = vmatprep.subr.bf16.mxu0 %v2228
        %3926 = vmatpush1.bf16.msra.mxu0 %v2227
        %3927 = vmatprep.subr.bf16.mxu0 %v2234
        %3928 = vmatpush1.bf16.msra.mxu0 %v2233
        %3929 = vmatprep.subr.bf16.mxu0 %v2240
        %3930 = vmatpush1.bf16.msra.mxu0 %v2239
        %3931 = vmatprep.subr.bf16.mxu0 %v2246
        %3932 = vmatpush1.bf16.msra.mxu0 %v2245
        %3933 = vmatprep.subr.bf16.mxu0 %v2252
        %3934 = vmatpush1.bf16.msra.mxu0 %v2251
        %3935 = vmatprep.subr.bf16.mxu0 %v2258
        %3936 = vmatpush1.bf16.msra.mxu0 %v2257
        %3937 = vmatprep.subr.bf16.mxu0 %v2264
        %3938 = vmatpush1.bf16.msra.mxu0 %v2263
        %3939 = vmatprep.subr.bf16.mxu0 %v2270
        %3940 = vmatpush1.bf16.msra.mxu0 %v2269
        %3941 = vmatprep.mubr.bf16.mxu0 %v928
        %3942 = vmatmul.mubr.bf16.gmra.mrb[0].mxu0 %v927
        %v3943 = vpop.f32.mrb[0].mxu0
        %v3944 = vadd.f32 0.0, %v3943
        %v3945 = vpop.f32.mrb[0].mxu0
        %v3946 = vadd.f32 0.0, %v3945
        %v3947 = vpop.f32.mrb[0].mxu0
        %v3948 = vadd.f32 0.0, %v3947
        %v3949 = vpop.f32.mrb[0].mxu0
        %v3950 = vadd.f32 0.0, %v3949
        %3951 = vmatprep.mubr.bf16.mxu0 %v934
        %3952 = vmatmul.mubr.bf16.gmra.mrb[0].mxu0 %v933
        %v3953 = vpop.f32.mrb[0].mxu0
        %v3954 = vadd.f32 0.0, %v3953
        %v3955 = vpop.f32.mrb[0].mxu0
        %v3956 = vadd.f32 0.0, %v3955
        %v3957 = vpop.f32.mrb[0].mxu0
        %v3958 = vadd.f32 0.0, %v3957
        %v3959 = vpop.f32.mrb[0].mxu0
        %v3960 = vadd.f32 0.0, %v3959
        %3961 = vmatprep.mubr.bf16.mxu0 %v940
        %3962 = vmatmul.mubr.bf16.gmra.mrb[0].mxu0 %v939
        %v3963 = vpop.f32.mrb[0].mxu0
        %v3964 = vadd.f32 0.0, %v3963
        %v3965 = vpop.f32.mrb[0].mxu0
        %v3966 = vadd.f32 0.0, %v3965
        %v3967 = vpop.f32.mrb[0].mxu0
        %v3968 = vadd.f32 0.0, %v3967
        %v3969 = vpop.f32.mrb[0].mxu0
        %v3970 = vadd.f32 0.0, %v3969
        %3971 = vmatprep.mubr.bf16.mxu0 %v946
        %3972 = vmatmul.mubr.bf16.gmra.mrb[0].mxu0 %v945
        %v3973 = vpop.f32.mrb[0].mxu0
        %v3974 = vadd.f32 0.0, %v3973
        %v3975 = vpop.f32.mrb[0].mxu0
        %v3976 = vadd.f32 0.0, %v3975
        %v3977 = vpop.f32.mrb[0].mxu0
        %v3978 = vadd.f32 0.0, %v3977
        %v3979 = vpop.f32.mrb[0].mxu0
        %v3980 = vadd.f32 0.0, %v3979
        %3981 = vmatprep.mubr.bf16.mxu0 %v952
        %3982 = vmatmul.mubr.bf16.gmra.mrb[0].mxu0 %v951
        %v3983 = vpop.f32.mrb[0].mxu0
        %v3984 = vadd.f32 0.0, %v3983
        %v3985 = vpop.f32.mrb[0].mxu0
        %v3986 = vadd.f32 0.0, %v3985
        %v3987 = vpop.f32.mrb[0].mxu0
        %v3988 = vadd.f32 0.0, %v3987
        %v3989 = vpop.f32.mrb[0].mxu0
        %v3990 = vadd.f32 0.0, %v3989
        %3991 = vmatprep.mubr.bf16.mxu0 %v958
        %3992 = vmatmul.mubr.bf16.gmra.mrb[0].mxu0 %v957
        %v3993 = vpop.f32.mrb[0].mxu0
        %v3994 = vadd.f32 0.0, %v3993
        %v3995 = vpop.f32.mrb[0].mxu0
        %v3996 = vadd.f32 0.0, %v3995
        %v3997 = vpop.f32.mrb[0].mxu0
        %v3998 = vadd.f32 0.0, %v3997
        %v3999 = vpop.f32.mrb[0].mxu0
        %v4000 = vadd.f32 0.0, %v3999
        %4001 = vmatprep.mubr.bf16.mxu0 %v964
        %4002 = vmatmul.mubr.bf16.gmra.mrb[0].mxu0 %v963
        %v4003 = vpop.f32.mrb[0].mxu0
        %v4004 = vadd.f32 0.0, %v4003
        %v4005 = vpop.f32.mrb[0].mxu0
        %v4006 = vadd.f32 0.0, %v4005
        %v4007 = vpop.f32.mrb[0].mxu0
        %v4008 = vadd.f32 0.0, %v4007
        %v4009 = vpop.f32.mrb[0].mxu0
        %v4010 = vadd.f32 0.0, %v4009
        %4011 = vmatprep.mubr.bf16.mxu0 %v970
        %4012 = vmatmul.mubr.bf16.gmra.mrb[0].mxu0 %v969
        %v4013 = vpop.f32.mrb[0].mxu0
        %v4014 = vadd.f32 0.0, %v4013
        %v4015 = vpop.f32.mrb[0].mxu0
        %v4016 = vadd.f32 0.0, %v4015
        %v4017 = vpop.f32.mrb[0].mxu0
        %v4018 = vadd.f32 0.0, %v4017
        %v4019 = vpop.f32.mrb[0].mxu0
        %v4020 = vadd.f32 0.0, %v4019
        %4021 = vmatprep.mubr.bf16.mxu0 %v976
        %4022 = vmatmul.mubr.bf16.gmra.mrb[0].mxu0 %v975
        %v4023 = vpop.f32.mrb[0].mxu0
        %v4024 = vadd.f32 0.0, %v4023
        %v4025 = vpop.f32.mrb[0].mxu0
        %v4026 = vadd.f32 0.0, %v4025
        %v4027 = vpop.f32.mrb[0].mxu0
        %v4028 = vadd.f32 0.0, %v4027
        %v4029 = vpop.f32.mrb[0].mxu0
        %v4030 = vadd.f32 0.0, %v4029
        %4031 = vmatprep.mubr.bf16.mxu0 %v982
        %4032 = vmatmul.mubr.bf16.gmra.mrb[0].mxu0 %v981
        %v4033 = vpop.f32.mrb[0].mxu0
        %v4034 = vadd.f32 0.0, %v4033
        %v4035 = vpop.f32.mrb[0].mxu0
        %v4036 = vadd.f32 0.0, %v4035
        %v4037 = vpop.f32.mrb[0].mxu0
        %v4038 = vadd.f32 0.0, %v4037
        %v4039 = vpop.f32.mrb[0].mxu0
        %v4040 = vadd.f32 0.0, %v4039
        %4041 = vmatprep.mubr.bf16.mxu0 %v988
        %4042 = vmatmul.mubr.bf16.gmra.mrb[0].mxu0 %v987
        %v4043 = vpop.f32.mrb[0].mxu0
        %v4044 = vadd.f32 0.0, %v4043
        %v4045 = vpop.f32.mrb[0].mxu0
        %v4046 = vadd.f32 0.0, %v4045
        %v4047 = vpop.f32.mrb[0].mxu0
        %v4048 = vadd.f32 0.0, %v4047
        %v4049 = vpop.f32.mrb[0].mxu0
        %v4050 = vadd.f32 0.0, %v4049
        %4051 = vmatprep.mubr.bf16.mxu0 %v994
        %4052 = vmatmul.mubr.bf16.gmra.mrb[0].mxu0 %v993
        %v4053 = vpop.f32.mrb[0].mxu0
        %v4054 = vadd.f32 0.0, %v4053
        %v4055 = vpop.f32.mrb[0].mxu0
        %v4056 = vadd.f32 0.0, %v4055
        %v4057 = vpop.f32.mrb[0].mxu0
        %v4058 = vadd.f32 0.0, %v4057
        %v4059 = vpop.f32.mrb[0].mxu0
        %v4060 = vadd.f32 0.0, %v4059
        %4061 = vmatprep.mubr.bf16.mxu0 %v1000
        %4062 = vmatmul.mubr.bf16.gmra.mrb[0].mxu0 %v999
        %v4063 = vpop.f32.mrb[0].mxu0
        %v4064 = vadd.f32 0.0, %v4063
        %v4065 = vpop.f32.mrb[0].mxu0
        %v4066 = vadd.f32 0.0, %v4065
        %v4067 = vpop.f32.mrb[0].mxu0
        %v4068 = vadd.f32 0.0, %v4067
        %v4069 = vpop.f32.mrb[0].mxu0
        %v4070 = vadd.f32 0.0, %v4069
        %4071 = vmatprep.mubr.bf16.mxu0 %v1006
        %4072 = vmatmul.mubr.bf16.gmra.mrb[0].mxu0 %v1005
        %v4073 = vpop.f32.mrb[0].mxu0
        %v4074 = vadd.f32 0.0, %v4073
        %v4075 = vpop.f32.mrb[0].mxu0
        %v4076 = vadd.f32 0.0, %v4075
        %v4077 = vpop.f32.mrb[0].mxu0
        %v4078 = vadd.f32 0.0, %v4077
        %v4079 = vpop.f32.mrb[0].mxu0
        %v4080 = vadd.f32 0.0, %v4079
        %4081 = vmatprep.mubr.bf16.mxu0 %v1012
        %4082 = vmatmul.mubr.bf16.gmra.mrb[0].mxu0 %v1011
        %v4083 = vpop.f32.mrb[0].mxu0
        %v4084 = vadd.f32 0.0, %v4083
        %v4085 = vpop.f32.mrb[0].mxu0
        %v4086 = vadd.f32 0.0, %v4085
        %v4087 = vpop.f32.mrb[0].mxu0
        %v4088 = vadd.f32 0.0, %v4087
        %v4089 = vpop.f32.mrb[0].mxu0
        %v4090 = vadd.f32 0.0, %v4089
        %4091 = vmatprep.mubr.bf16.mxu0 %v1018
        %4092 = vmatmul.mubr.bf16.gmra.mrb[0].mxu0 %v1017
        %v4093 = vpop.f32.mrb[0].mxu0
        %v4094 = vadd.f32 0.0, %v4093
        %v4095 = vpop.f32.mrb[0].mxu0
        %v4096 = vadd.f32 0.0, %v4095
        %v4097 = vpop.f32.mrb[0].mxu0
        %v4098 = vadd.f32 0.0, %v4097
        %v4099 = vpop.f32.mrb[0].mxu0
        %v4100 = vadd.f32 0.0, %v4099
        %4101 = vdwg.mxu0
        %4102 = vmatprep.subr.bf16.mxu0 %v2276
        %4103 = vmatpush1.bf16.msra.mxu0 %v2275
        %4104 = vmatprep.subr.bf16.mxu0 %v2282
        %4105 = vmatpush1.bf16.msra.mxu0 %v2281
        %4106 = vmatprep.subr.bf16.mxu0 %v2288
        %4107 = vmatpush1.bf16.msra.mxu0 %v2287
        %4108 = vmatprep.subr.bf16.mxu0 %v2294
        %4109 = vmatpush1.bf16.msra.mxu0 %v2293
        %4110 = vmatprep.subr.bf16.mxu0 %v2300
        %4111 = vmatpush1.bf16.msra.mxu0 %v2299
        %4112 = vmatprep.subr.bf16.mxu0 %v2306
        %4113 = vmatpush1.bf16.msra.mxu0 %v2305
        %4114 = vmatprep.subr.bf16.mxu0 %v2312
        %4115 = vmatpush1.bf16.msra.mxu0 %v2311
        %4116 = vmatprep.subr.bf16.mxu0 %v2318
        %4117 = vmatpush1.bf16.msra.mxu0 %v2317
        %4118 = vmatprep.subr.bf16.mxu0 %v2324
        %4119 = vmatpush1.bf16.msra.mxu0 %v2323
        %4120 = vmatprep.subr.bf16.mxu0 %v2330
        %4121 = vmatpush1.bf16.msra.mxu0 %v2329
        %4122 = vmatprep.subr.bf16.mxu0 %v2336
        %4123 = vmatpush1.bf16.msra.mxu0 %v2335
        %4124 = vmatprep.subr.bf16.mxu0 %v2342
        %4125 = vmatpush1.bf16.msra.mxu0 %v2341
        %4126 = vmatprep.subr.bf16.mxu0 %v2348
        %4127 = vmatpush1.bf16.msra.mxu0 %v2347
        %4128 = vmatprep.subr.bf16.mxu0 %v2354
        %4129 = vmatpush1.bf16.msra.mxu0 %v2353
        %4130 = vmatprep.subr.bf16.mxu0 %v2360
        %4131 = vmatpush1.bf16.msra.mxu0 %v2359
        %4132 = vmatprep.subr.bf16.mxu0 %v2366
        %4133 = vmatpush1.bf16.msra.mxu0 %v2365
        %4134 = vmatprep.mubr.bf16.mxu0 %v930
        %4135 = vmatmul.mubr.bf16.gmra.mrb[0].mxu0 %v929
        %v4136 = vpop.f32.mrb[0].mxu0
        %v4137 = vadd.f32 %v3944, %v4136
        %v4138 = vpop.f32.mrb[0].mxu0
        %v4139 = vadd.f32 %v3946, %v4138
        %v4140 = vpop.f32.mrb[0].mxu0
        %v4141 = vadd.f32 %v3948, %v4140
        %v4142 = vpop.f32.mrb[0].mxu0
        %v4143 = vadd.f32 %v3950, %v4142
        %4144 = vmatprep.mubr.bf16.mxu0 %v936
        %4145 = vmatmul.mubr.bf16.gmra.mrb[0].mxu0 %v935
        %v4146 = vpop.f32.mrb[0].mxu0
        %v4147 = vadd.f32 %v3954, %v4146
        %v4148 = vpop.f32.mrb[0].mxu0
        %v4149 = vadd.f32 %v3956, %v4148
        %v4150 = vpop.f32.mrb[0].mxu0
        %v4151 = vadd.f32 %v3958, %v4150
        %v4152 = vpop.f32.mrb[0].mxu0
        %v4153 = vadd.f32 %v3960, %v4152
        %4154 = vmatprep.mubr.bf16.mxu0 %v942
        %4155 = vmatmul.mubr.bf16.gmra.mrb[0].mxu0 %v941
        %v4156 = vpop.f32.mrb[0].mxu0
        %v4157 = vadd.f32 %v3964, %v4156
        %v4158 = vpop.f32.mrb[0].mxu0
        %v4159 = vadd.f32 %v3966, %v4158
        %v4160 = vpop.f32.mrb[0].mxu0
        %v4161 = vadd.f32 %v3968, %v4160
        %v4162 = vpop.f32.mrb[0].mxu0
        %v4163 = vadd.f32 %v3970, %v4162
        %4164 = vmatprep.mubr.bf16.mxu0 %v948
        %4165 = vmatmul.mubr.bf16.gmra.mrb[0].mxu0 %v947
        %v4166 = vpop.f32.mrb[0].mxu0
        %v4167 = vadd.f32 %v3974, %v4166
        %v4168 = vpop.f32.mrb[0].mxu0
        %v4169 = vadd.f32 %v3976, %v4168
        %v4170 = vpop.f32.mrb[0].mxu0
        %v4171 = vadd.f32 %v3978, %v4170
        %v4172 = vpop.f32.mrb[0].mxu0
        %v4173 = vadd.f32 %v3980, %v4172
        %4174 = vmatprep.mubr.bf16.mxu0 %v954
        %4175 = vmatmul.mubr.bf16.gmra.mrb[0].mxu0 %v953
        %v4176 = vpop.f32.mrb[0].mxu0
        %v4177 = vadd.f32 %v3984, %v4176
        %v4178 = vpop.f32.mrb[0].mxu0
        %v4179 = vadd.f32 %v3986, %v4178
        %v4180 = vpop.f32.mrb[0].mxu0
        %v4181 = vadd.f32 %v3988, %v4180
        %v4182 = vpop.f32.mrb[0].mxu0
        %v4183 = vadd.f32 %v3990, %v4182
        %4184 = vmatprep.mubr.bf16.mxu0 %v960
        %4185 = vmatmul.mubr.bf16.gmra.mrb[0].mxu0 %v959
        %v4186 = vpop.f32.mrb[0].mxu0
        %v4187 = vadd.f32 %v3994, %v4186
        %v4188 = vpop.f32.mrb[0].mxu0
        %v4189 = vadd.f32 %v3996, %v4188
        %v4190 = vpop.f32.mrb[0].mxu0
        %v4191 = vadd.f32 %v3998, %v4190
        %v4192 = vpop.f32.mrb[0].mxu0
        %v4193 = vadd.f32 %v4000, %v4192
        %4194 = vmatprep.mubr.bf16.mxu0 %v966
        %4195 = vmatmul.mubr.bf16.gmra.mrb[0].mxu0 %v965
        %v4196 = vpop.f32.mrb[0].mxu0
        %v4197 = vadd.f32 %v4004, %v4196
        %v4198 = vpop.f32.mrb[0].mxu0
        %v4199 = vadd.f32 %v4006, %v4198
        %v4200 = vpop.f32.mrb[0].mxu0
        %v4201 = vadd.f32 %v4008, %v4200
        %v4202 = vpop.f32.mrb[0].mxu0
        %v4203 = vadd.f32 %v4010, %v4202
        %4204 = vmatprep.mubr.bf16.mxu0 %v972
        %4205 = vmatmul.mubr.bf16.gmra.mrb[0].mxu0 %v971
        %v4206 = vpop.f32.mrb[0].mxu0
        %v4207 = vadd.f32 %v4014, %v4206
        %v4208 = vpop.f32.mrb[0].mxu0
        %v4209 = vadd.f32 %v4016, %v4208
        %v4210 = vpop.f32.mrb[0].mxu0
        %v4211 = vadd.f32 %v4018, %v4210
        %v4212 = vpop.f32.mrb[0].mxu0
        %v4213 = vadd.f32 %v4020, %v4212
        %4214 = vmatprep.mubr.bf16.mxu0 %v978
        %4215 = vmatmul.mubr.bf16.gmra.mrb[0].mxu0 %v977
        %v4216 = vpop.f32.mrb[0].mxu0
        %v4217 = vadd.f32 %v4024, %v4216
        %v4218 = vpop.f32.mrb[0].mxu0
        %v4219 = vadd.f32 %v4026, %v4218
        %v4220 = vpop.f32.mrb[0].mxu0
        %v4221 = vadd.f32 %v4028, %v4220
        %v4222 = vpop.f32.mrb[0].mxu0
        %v4223 = vadd.f32 %v4030, %v4222
        %4224 = vmatprep.mubr.bf16.mxu0 %v984
        %4225 = vmatmul.mubr.bf16.gmra.mrb[0].mxu0 %v983
        %v4226 = vpop.f32.mrb[0].mxu0
        %v4227 = vadd.f32 %v4034, %v4226
        %v4228 = vpop.f32.mrb[0].mxu0
        %v4229 = vadd.f32 %v4036, %v4228
        %v4230 = vpop.f32.mrb[0].mxu0
        %v4231 = vadd.f32 %v4038, %v4230
        %v4232 = vpop.f32.mrb[0].mxu0
        %v4233 = vadd.f32 %v4040, %v4232
        %4234 = vmatprep.mubr.bf16.mxu0 %v990
        %4235 = vmatmul.mubr.bf16.gmra.mrb[0].mxu0 %v989
        %v4236 = vpop.f32.mrb[0].mxu0
        %v4237 = vadd.f32 %v4044, %v4236
        %v4238 = vpop.f32.mrb[0].mxu0
        %v4239 = vadd.f32 %v4046, %v4238
        %v4240 = vpop.f32.mrb[0].mxu0
        %v4241 = vadd.f32 %v4048, %v4240
        %v4242 = vpop.f32.mrb[0].mxu0
        %v4243 = vadd.f32 %v4050, %v4242
        %4244 = vmatprep.mubr.bf16.mxu0 %v996
        %4245 = vmatmul.mubr.bf16.gmra.mrb[0].mxu0 %v995
        %v4246 = vpop.f32.mrb[0].mxu0
        %v4247 = vadd.f32 %v4054, %v4246
        %v4248 = vpop.f32.mrb[0].mxu0
        %v4249 = vadd.f32 %v4056, %v4248
        %v4250 = vpop.f32.mrb[0].mxu0
        %v4251 = vadd.f32 %v4058, %v4250
        %v4252 = vpop.f32.mrb[0].mxu0
        %v4253 = vadd.f32 %v4060, %v4252
        %4254 = vmatprep.mubr.bf16.mxu0 %v1002
        %4255 = vmatmul.mubr.bf16.gmra.mrb[0].mxu0 %v1001
        %v4256 = vpop.f32.mrb[0].mxu0
        %v4257 = vadd.f32 %v4064, %v4256
        %v4258 = vpop.f32.mrb[0].mxu0
        %v4259 = vadd.f32 %v4066, %v4258
        %v4260 = vpop.f32.mrb[0].mxu0
        %v4261 = vadd.f32 %v4068, %v4260
        %v4262 = vpop.f32.mrb[0].mxu0
        %v4263 = vadd.f32 %v4070, %v4262
        %4264 = vmatprep.mubr.bf16.mxu0 %v1008
        %4265 = vmatmul.mubr.bf16.gmra.mrb[0].mxu0 %v1007
        %v4266 = vpop.f32.mrb[0].mxu0
        %v4267 = vadd.f32 %v4074, %v4266
        %v4268 = vpop.f32.mrb[0].mxu0
        %v4269 = vadd.f32 %v4076, %v4268
        %v4270 = vpop.f32.mrb[0].mxu0
        %v4271 = vadd.f32 %v4078, %v4270
        %v4272 = vpop.f32.mrb[0].mxu0
        %v4273 = vadd.f32 %v4080, %v4272
        %4274 = vmatprep.mubr.bf16.mxu0 %v1014
        %4275 = vmatmul.mubr.bf16.gmra.mrb[0].mxu0 %v1013
        %v4276 = vpop.f32.mrb[0].mxu0
        %v4277 = vadd.f32 %v4084, %v4276
        %v4278 = vpop.f32.mrb[0].mxu0
        %v4279 = vadd.f32 %v4086, %v4278
        %v4280 = vpop.f32.mrb[0].mxu0
        %v4281 = vadd.f32 %v4088, %v4280
        %v4282 = vpop.f32.mrb[0].mxu0
        %v4283 = vadd.f32 %v4090, %v4282
        %4284 = vmatprep.mubr.bf16.mxu0 %v1020
        %4285 = vmatmul.mubr.bf16.gmra.mrb[0].mxu0 %v1019
        %v4286 = vpop.f32.mrb[0].mxu0
        %v4287 = vadd.f32 %v4094, %v4286
        %v4288 = vpop.f32.mrb[0].mxu0
        %v4289 = vadd.f32 %v4096, %v4288
        %v4290 = vpop.f32.mrb[0].mxu0
        %v4291 = vadd.f32 %v4098, %v4290
        %v4292 = vpop.f32.mrb[0].mxu0
        %v4293 = vadd.f32 %v4100, %v4292
        %4294 = vdwg.mxu0
        %4295 = vmatprep.subr.bf16.mxu0 %v2372
        %4296 = vmatpush1.bf16.msra.mxu0 %v2371
        %4297 = vmatprep.subr.bf16.mxu0 %v2378
        %4298 = vmatpush1.bf16.msra.mxu0 %v2377
        %4299 = vmatprep.subr.bf16.mxu0 %v2384
        %4300 = vmatpush1.bf16.msra.mxu0 %v2383
        %4301 = vmatprep.subr.bf16.mxu0 %v2390
        %4302 = vmatpush1.bf16.msra.mxu0 %v2389
        %4303 = vmatprep.subr.bf16.mxu0 %v2396
        %4304 = vmatpush1.bf16.msra.mxu0 %v2395
        %4305 = vmatprep.subr.bf16.mxu0 %v2402
        %4306 = vmatpush1.bf16.msra.mxu0 %v2401
        %4307 = vmatprep.subr.bf16.mxu0 %v2408
        %4308 = vmatpush1.bf16.msra.mxu0 %v2407
        %4309 = vmatprep.subr.bf16.mxu0 %v2414
        %4310 = vmatpush1.bf16.msra.mxu0 %v2413
        %4311 = vmatprep.subr.bf16.mxu0 %v2420
        %4312 = vmatpush1.bf16.msra.mxu0 %v2419
        %4313 = vmatprep.subr.bf16.mxu0 %v2426
        %4314 = vmatpush1.bf16.msra.mxu0 %v2425
        %4315 = vmatprep.subr.bf16.mxu0 %v2432
        %4316 = vmatpush1.bf16.msra.mxu0 %v2431
        %4317 = vmatprep.subr.bf16.mxu0 %v2438
        %4318 = vmatpush1.bf16.msra.mxu0 %v2437
        %4319 = vmatprep.subr.bf16.mxu0 %v2444
        %4320 = vmatpush1.bf16.msra.mxu0 %v2443
        %4321 = vmatprep.subr.bf16.mxu0 %v2450
        %4322 = vmatpush1.bf16.msra.mxu0 %v2449
        %4323 = vmatprep.subr.bf16.mxu0 %v2456
        %4324 = vmatpush1.bf16.msra.mxu0 %v2455
        %4325 = vmatprep.subr.bf16.mxu0 %v2462
        %4326 = vmatpush1.bf16.msra.mxu0 %v2461
        %4327 = vmatprep.mubr.bf16.mxu0 %v932
        %4328 = vmatmul.mubr.bf16.gmra.mrb[0].mxu0 %v931
        %v4329 = vpop.f32.mrb[0].mxu0
        %v4330 = vadd.f32 %v4137, %v4329
        %v4331 = vpop.f32.mrb[0].mxu0
        %v4332 = vadd.f32 %v4139, %v4331
        %v4333 = vpop.f32.mrb[0].mxu0
        %v4334 = vadd.f32 %v4141, %v4333
        %v4335 = vpop.f32.mrb[0].mxu0
        %v4336 = vadd.f32 %v4143, %v4335
        %4337 = vmatprep.mubr.bf16.mxu0 %v938
        %4338 = vmatmul.mubr.bf16.gmra.mrb[0].mxu0 %v937
        %v4339 = vpop.f32.mrb[0].mxu0
        %v4340 = vadd.f32 %v4147, %v4339
        %v4341 = vpop.f32.mrb[0].mxu0
        %v4342 = vadd.f32 %v4149, %v4341
        %v4343 = vpop.f32.mrb[0].mxu0
        %v4344 = vadd.f32 %v4151, %v4343
        %v4345 = vpop.f32.mrb[0].mxu0
        %v4346 = vadd.f32 %v4153, %v4345
        %4347 = vmatprep.mubr.bf16.mxu0 %v944
        %4348 = vmatmul.mubr.bf16.gmra.mrb[0].mxu0 %v943
        %v4349 = vpop.f32.mrb[0].mxu0
        %v4350 = vadd.f32 %v4157, %v4349
        %v4351 = vpop.f32.mrb[0].mxu0
        %v4352 = vadd.f32 %v4159, %v4351
        %v4353 = vpop.f32.mrb[0].mxu0
        %v4354 = vadd.f32 %v4161, %v4353
        %v4355 = vpop.f32.mrb[0].mxu0
        %v4356 = vadd.f32 %v4163, %v4355
        %4357 = vmatprep.mubr.bf16.mxu0 %v950
        %4358 = vmatmul.mubr.bf16.gmra.mrb[0].mxu0 %v949
        %v4359 = vpop.f32.mrb[0].mxu0
        %v4360 = vadd.f32 %v4167, %v4359
        %v4361 = vpop.f32.mrb[0].mxu0
        %v4362 = vadd.f32 %v4169, %v4361
        %v4363 = vpop.f32.mrb[0].mxu0
        %v4364 = vadd.f32 %v4171, %v4363
        %v4365 = vpop.f32.mrb[0].mxu0
        %v4366 = vadd.f32 %v4173, %v4365
        %4367 = vmatprep.mubr.bf16.mxu0 %v956
        %4368 = vmatmul.mubr.bf16.gmra.mrb[0].mxu0 %v955
        %v4369 = vpop.f32.mrb[0].mxu0
        %v4370 = vadd.f32 %v4177, %v4369
        %v4371 = vpop.f32.mrb[0].mxu0
        %v4372 = vadd.f32 %v4179, %v4371
        %v4373 = vpop.f32.mrb[0].mxu0
        %v4374 = vadd.f32 %v4181, %v4373
        %v4375 = vpop.f32.mrb[0].mxu0
        %v4376 = vadd.f32 %v4183, %v4375
        %4377 = vmatprep.mubr.bf16.mxu0 %v962
        %4378 = vmatmul.mubr.bf16.gmra.mrb[0].mxu0 %v961
        %v4379 = vpop.f32.mrb[0].mxu0
        %v4380 = vadd.f32 %v4187, %v4379
        %v4381 = vpop.f32.mrb[0].mxu0
        %v4382 = vadd.f32 %v4189, %v4381
        %v4383 = vpop.f32.mrb[0].mxu0
        %v4384 = vadd.f32 %v4191, %v4383
        %v4385 = vpop.f32.mrb[0].mxu0
        %v4386 = vadd.f32 %v4193, %v4385
        %4387 = vmatprep.mubr.bf16.mxu0 %v968
        %4388 = vmatmul.mubr.bf16.gmra.mrb[0].mxu0 %v967
        %v4389 = vpop.f32.mrb[0].mxu0
        %v4390 = vadd.f32 %v4197, %v4389
        %v4391 = vpop.f32.mrb[0].mxu0
        %v4392 = vadd.f32 %v4199, %v4391
        %v4393 = vpop.f32.mrb[0].mxu0
        %v4394 = vadd.f32 %v4201, %v4393
        %v4395 = vpop.f32.mrb[0].mxu0
        %v4396 = vadd.f32 %v4203, %v4395
        %4397 = vmatprep.mubr.bf16.mxu0 %v974
        %4398 = vmatmul.mubr.bf16.gmra.mrb[0].mxu0 %v973
        %v4399 = vpop.f32.mrb[0].mxu0
        %v4400 = vadd.f32 %v4207, %v4399
        %v4401 = vpop.f32.mrb[0].mxu0
        %v4402 = vadd.f32 %v4209, %v4401
        %v4403 = vpop.f32.mrb[0].mxu0
        %v4404 = vadd.f32 %v4211, %v4403
        %v4405 = vpop.f32.mrb[0].mxu0
        %v4406 = vadd.f32 %v4213, %v4405
        %4407 = vmatprep.mubr.bf16.mxu0 %v980
        %4408 = vmatmul.mubr.bf16.gmra.mrb[0].mxu0 %v979
        %v4409 = vpop.f32.mrb[0].mxu0
        %v4410 = vadd.f32 %v4217, %v4409
        %v4411 = vpop.f32.mrb[0].mxu0
        %v4412 = vadd.f32 %v4219, %v4411
        %v4413 = vpop.f32.mrb[0].mxu0
        %v4414 = vadd.f32 %v4221, %v4413
        %v4415 = vpop.f32.mrb[0].mxu0
        %v4416 = vadd.f32 %v4223, %v4415
        %4417 = vmatprep.mubr.bf16.mxu0 %v986
        %4418 = vmatmul.mubr.bf16.gmra.mrb[0].mxu0 %v985
        %v4419 = vpop.f32.mrb[0].mxu0
        %v4420 = vadd.f32 %v4227, %v4419
        %v4421 = vpop.f32.mrb[0].mxu0
        %v4422 = vadd.f32 %v4229, %v4421
        %v4423 = vpop.f32.mrb[0].mxu0
        %v4424 = vadd.f32 %v4231, %v4423
        %v4425 = vpop.f32.mrb[0].mxu0
        %v4426 = vadd.f32 %v4233, %v4425
        %4427 = vmatprep.mubr.bf16.mxu0 %v992
        %4428 = vmatmul.mubr.bf16.gmra.mrb[0].mxu0 %v991
        %v4429 = vpop.f32.mrb[0].mxu0
        %v4430 = vadd.f32 %v4237, %v4429
        %v4431 = vpop.f32.mrb[0].mxu0
        %v4432 = vadd.f32 %v4239, %v4431
        %v4433 = vpop.f32.mrb[0].mxu0
        %v4434 = vadd.f32 %v4241, %v4433
        %v4435 = vpop.f32.mrb[0].mxu0
        %v4436 = vadd.f32 %v4243, %v4435
        %4437 = vmatprep.mubr.bf16.mxu0 %v998
        %4438 = vmatmul.mubr.bf16.gmra.mrb[0].mxu0 %v997
        %v4439 = vpop.f32.mrb[0].mxu0
        %v4440 = vadd.f32 %v4247, %v4439
        %v4441 = vpop.f32.mrb[0].mxu0
        %v4442 = vadd.f32 %v4249, %v4441
        %v4443 = vpop.f32.mrb[0].mxu0
        %v4444 = vadd.f32 %v4251, %v4443
        %v4445 = vpop.f32.mrb[0].mxu0
        %v4446 = vadd.f32 %v4253, %v4445
        %4447 = vmatprep.mubr.bf16.mxu0 %v1004
        %4448 = vmatmul.mubr.bf16.gmra.mrb[0].mxu0 %v1003
        %v4449 = vpop.f32.mrb[0].mxu0
        %v4450 = vadd.f32 %v4257, %v4449
        %v4451 = vpop.f32.mrb[0].mxu0
        %v4452 = vadd.f32 %v4259, %v4451
        %v4453 = vpop.f32.mrb[0].mxu0
        %v4454 = vadd.f32 %v4261, %v4453
        %v4455 = vpop.f32.mrb[0].mxu0
        %v4456 = vadd.f32 %v4263, %v4455
        %4457 = vmatprep.mubr.bf16.mxu0 %v1010
        %4458 = vmatmul.mubr.bf16.gmra.mrb[0].mxu0 %v1009
        %v4459 = vpop.f32.mrb[0].mxu0
        %v4460 = vadd.f32 %v4267, %v4459
        %v4461 = vpop.f32.mrb[0].mxu0
        %v4462 = vadd.f32 %v4269, %v4461
        %v4463 = vpop.f32.mrb[0].mxu0
        %v4464 = vadd.f32 %v4271, %v4463
        %v4465 = vpop.f32.mrb[0].mxu0
        %v4466 = vadd.f32 %v4273, %v4465
        %4467 = vmatprep.mubr.bf16.mxu0 %v1016
        %4468 = vmatmul.mubr.bf16.gmra.mrb[0].mxu0 %v1015
        %v4469 = vpop.f32.mrb[0].mxu0
        %v4470 = vadd.f32 %v4277, %v4469
        %v4471 = vpop.f32.mrb[0].mxu0
        %v4472 = vadd.f32 %v4279, %v4471
        %v4473 = vpop.f32.mrb[0].mxu0
        %v4474 = vadd.f32 %v4281, %v4473
        %v4475 = vpop.f32.mrb[0].mxu0
        %v4476 = vadd.f32 %v4283, %v4475
        %4477 = vmatprep.mubr.bf16.mxu0 %v1022
        %4478 = vmatmul.mubr.bf16.gmra.mrb[0].mxu0 %v1021
        %v4479 = vpop.f32.mrb[0].mxu0
        %v4480 = vadd.f32 %v4287, %v4479
        %v4481 = vpop.f32.mrb[0].mxu0
        %v4482 = vadd.f32 %v4289, %v4481
        %v4483 = vpop.f32.mrb[0].mxu0
        %v4484 = vadd.f32 %v4291, %v4483
        %v4485 = vpop.f32.mrb[0].mxu0
        %v4486 = vadd.f32 %v4293, %v4485
        %4487 = vdwg.mxu0
        %v4488 = vld [vmem:[#allocation3] sm:$0xff]
        %v4489 = vld [vmem:[#allocation3 + $0x8] sm:$0xff]
        %v4490 = vld [vmem:[#allocation3 + $0x10] sm:$0xff]
        %v4491 = vld [vmem:[#allocation3 + $0x18] sm:$0xff]
        %v4492 = vld [vmem:[#allocation3 + $0x20] sm:$0xff]
        %v4493 = vld [vmem:[#allocation3 + $0x28] sm:$0xff]
        %v4494 = vld [vmem:[#allocation3 + $0x30] sm:$0xff]
        %v4495 = vld [vmem:[#allocation3 + $0x38] sm:$0xff]
        %v4496 = vld [vmem:[#allocation3 + $0x40] sm:$0xff]
        %v4497 = vld [vmem:[#allocation3 + $0x48] sm:$0xff]
        %v4498 = vld [vmem:[#allocation3 + $0x50] sm:$0xff]
        %v4499 = vld [vmem:[#allocation3 + $0x58] sm:$0xff]
        %v4500 = vld [vmem:[#allocation3 + $0x60] sm:$0xff]
        %v4501 = vld [vmem:[#allocation3 + $0x68] sm:$0xff]
        %v4502 = vld [vmem:[#allocation3 + $0x70] sm:$0xff]
        %v4503 = vld [vmem:[#allocation3 + $0x78] sm:$0xff]
        %v4504 = vld [vmem:[#allocation3 + $0x80] sm:$0xff]
        %v4505 = vld [vmem:[#allocation3 + $0x88] sm:$0xff]
        %v4506 = vld [vmem:[#allocation3 + $0x90] sm:$0xff]
        %v4507 = vld [vmem:[#allocation3 + $0x98] sm:$0xff]
        %v4508 = vld [vmem:[#allocation3 + $0xa0] sm:$0xff]
        %v4509 = vld [vmem:[#allocation3 + $0xa8] sm:$0xff]
        %v4510 = vld [vmem:[#allocation3 + $0xb0] sm:$0xff]
        %v4511 = vld [vmem:[#allocation3 + $0xb8] sm:$0xff]
        %v4512 = vld [vmem:[#allocation3 + $0xc0] sm:$0xff]
        %v4513 = vld [vmem:[#allocation3 + $0xc8] sm:$0xff]
        %v4514 = vld [vmem:[#allocation3 + $0xd0] sm:$0xff]
        %v4515 = vld [vmem:[#allocation3 + $0xd8] sm:$0xff]
        %v4516 = vld [vmem:[#allocation3 + $0xe0] sm:$0xff]
        %v4517 = vld [vmem:[#allocation3 + $0xe8] sm:$0xff]
        %v4518 = vld [vmem:[#allocation3 + $0xf0] sm:$0xff]
        %v4519 = vld [vmem:[#allocation3 + $0xf8] sm:$0xff]
        %v4520 = vpack.c.bf16 %v3176, %v3172
        %v4521 = vpack.c.bf16 %v3178, %v3174
        %v4522 = vpack.c.bf16 %v3755, %v3751
        %v4523 = vpack.c.bf16 %v3757, %v3753
        %v4524 = vpack.c.bf16 %v4334, %v4330
        %v4525 = vpack.c.bf16 %v4336, %v4332
        %v4526 = vpack.c.bf16 %v3186, %v3182
        %v4527 = vpack.c.bf16 %v3188, %v3184
        %v4528 = vpack.c.bf16 %v3765, %v3761
        %v4529 = vpack.c.bf16 %v3767, %v3763
        %v4530 = vpack.c.bf16 %v4344, %v4340
        %v4531 = vpack.c.bf16 %v4346, %v4342
        %v4532 = vpack.c.bf16 %v3196, %v3192
        %v4533 = vpack.c.bf16 %v3198, %v3194
        %v4534 = vpack.c.bf16 %v3775, %v3771
        %v4535 = vpack.c.bf16 %v3777, %v3773
        %v4536 = vpack.c.bf16 %v4354, %v4350
        %v4537 = vpack.c.bf16 %v4356, %v4352
        %v4538 = vpack.c.bf16 %v3206, %v3202
        %v4539 = vpack.c.bf16 %v3208, %v3204
        %v4540 = vpack.c.bf16 %v3785, %v3781
        %v4541 = vpack.c.bf16 %v3787, %v3783
        %v4542 = vpack.c.bf16 %v4364, %v4360
        %v4543 = vpack.c.bf16 %v4366, %v4362
        %v4544 = vpack.c.bf16 %v3216, %v3212
        %v4545 = vpack.c.bf16 %v3218, %v3214
        %v4546 = vpack.c.bf16 %v3795, %v3791
        %v4547 = vpack.c.bf16 %v3797, %v3793
        %v4548 = vpack.c.bf16 %v4374, %v4370
        %v4549 = vpack.c.bf16 %v4376, %v4372
        %v4550 = vpack.c.bf16 %v3226, %v3222
        %v4551 = vpack.c.bf16 %v3228, %v3224
        %v4552 = vpack.c.bf16 %v3805, %v3801
        %v4553 = vpack.c.bf16 %v3807, %v3803
        %v4554 = vpack.c.bf16 %v4384, %v4380
        %v4555 = vpack.c.bf16 %v4386, %v4382
        %v4556 = vpack.c.bf16 %v3236, %v3232
        %v4557 = vpack.c.bf16 %v3238, %v3234
        %v4558 = vpack.c.bf16 %v3815, %v3811
        %v4559 = vpack.c.bf16 %v3817, %v3813
        %v4560 = vpack.c.bf16 %v4394, %v4390
        %v4561 = vpack.c.bf16 %v4396, %v4392
        %v4562 = vpack.c.bf16 %v3246, %v3242
        %v4563 = vpack.c.bf16 %v3248, %v3244
        %v4564 = vpack.c.bf16 %v3825, %v3821
        %v4565 = vpack.c.bf16 %v3827, %v3823
        %v4566 = vpack.c.bf16 %v4404, %v4400
        %v4567 = vpack.c.bf16 %v4406, %v4402
        %v4568 = vpack.c.bf16 %v3256, %v3252
        %v4569 = vpack.c.bf16 %v3258, %v3254
        %v4570 = vpack.c.bf16 %v3835, %v3831
        %v4571 = vpack.c.bf16 %v3837, %v3833
        %v4572 = vpack.c.bf16 %v4414, %v4410
        %v4573 = vpack.c.bf16 %v4416, %v4412
        %v4574 = vpack.c.bf16 %v3266, %v3262
        %v4575 = vpack.c.bf16 %v3268, %v3264
        %v4576 = vpack.c.bf16 %v3845, %v3841
        %v4577 = vpack.c.bf16 %v3847, %v3843
        %v4578 = vpack.c.bf16 %v4424, %v4420
        %v4579 = vpack.c.bf16 %v4426, %v4422
        %v4580 = vpack.c.bf16 %v3276, %v3272
        %v4581 = vpack.c.bf16 %v3278, %v3274
        %v4582 = vpack.c.bf16 %v3855, %v3851
        %v4583 = vpack.c.bf16 %v3857, %v3853
        %v4584 = vpack.c.bf16 %v4434, %v4430
        %v4585 = vpack.c.bf16 %v4436, %v4432
        %v4586 = vpack.c.bf16 %v3286, %v3282
        %v4587 = vpack.c.bf16 %v3288, %v3284
        %v4588 = vpack.c.bf16 %v3865, %v3861
        %v4589 = vpack.c.bf16 %v3867, %v3863
        %v4590 = vpack.c.bf16 %v4444, %v4440
        %v4591 = vpack.c.bf16 %v4446, %v4442
        %v4592 = vpack.c.bf16 %v3296, %v3292
        %v4593 = vpack.c.bf16 %v3298, %v3294
        %v4594 = vpack.c.bf16 %v3875, %v3871
        %v4595 = vpack.c.bf16 %v3877, %v3873
        %v4596 = vpack.c.bf16 %v4454, %v4450
        %v4597 = vpack.c.bf16 %v4456, %v4452
        %v4598 = vpack.c.bf16 %v3306, %v3302
        %v4599 = vpack.c.bf16 %v3308, %v3304
        %v4600 = vpack.c.bf16 %v3885, %v3881
        %v4601 = vpack.c.bf16 %v3887, %v3883
        %v4602 = vpack.c.bf16 %v4464, %v4460
        %v4603 = vpack.c.bf16 %v4466, %v4462
        %v4604 = vpack.c.bf16 %v3316, %v3312
        %v4605 = vpack.c.bf16 %v3318, %v3314
        %v4606 = vpack.c.bf16 %v3895, %v3891
        %v4607 = vpack.c.bf16 %v3897, %v3893
        %v4608 = vpack.c.bf16 %v4474, %v4470
        %v4609 = vpack.c.bf16 %v4476, %v4472
        %v4610 = vpack.c.bf16 %v3326, %v3322
        %v4611 = vpack.c.bf16 %v3328, %v3324
        %v4612 = vpack.c.bf16 %v3905, %v3901
        %v4613 = vpack.c.bf16 %v3907, %v3903
        %v4614 = vpack.c.bf16 %v4484, %v4480
        %v4615 = vpack.c.bf16 %v4486, %v4482
        %v4616 = vld [vmem:[%s310] sm:$0x3f]
        %v4618 = vlaneseq
        %v4619 = vshrl.u32 %v4618, 7
        %v4620 = vsub.s32 0, %v4619
        %v4621 = vrot.slane %v4616, %v4620
        %v4622 = vlaneseq
        %v4623 = vshrl.u32 %v4622, 7
        %v4624 = vsub.s32 1, %v4623
        %v4625 = vrot.slane %v4616, %v4624
        %v4626 = vlaneseq
        %v4627 = vshrl.u32 %v4626, 7
        %v4628 = vsub.s32 2, %v4627
        %v4629 = vrot.slane %v4616, %v4628
        %v4630 = vlaneseq
        %v4631 = vshrl.u32 %v4630, 7
        %v4632 = vsub.s32 3, %v4631
        %v4633 = vrot.slane %v4616, %v4632
        %v4634 = vlaneseq
        %v4635 = vshrl.u32 %v4634, 7
        %v4636 = vsub.s32 4, %v4635
        %v4637 = vrot.slane %v4616, %v4636
        %v4638 = vlaneseq
        %v4639 = vshrl.u32 %v4638, 7
        %v4640 = vsub.s32 5, %v4639
        %v4641 = vrot.slane %v4616, %v4640
        %v4680 = vunpack.c.l.b16 %v4488
        %v4681 = vunpack.c.h.b16 %v4488
        %v4682 = vunpack.c.l.b16 %v4489
        %v4683 = vunpack.c.h.b16 %v4489
        %v4684 = vunpack.c.l.b16 %v4490
        %v4685 = vunpack.c.h.b16 %v4490
        %v4686 = vunpack.c.l.b16 %v4491
        %v4687 = vunpack.c.h.b16 %v4491
        %v4688 = vunpack.c.l.b16 %v4492
        %v4689 = vunpack.c.h.b16 %v4492
        %v4690 = vunpack.c.l.b16 %v4493
        %v4691 = vunpack.c.h.b16 %v4493
        %v4692 = vunpack.c.l.b16 %v4494
        %v4693 = vunpack.c.h.b16 %v4494
        %v4694 = vunpack.c.l.b16 %v4495
        %v4695 = vunpack.c.h.b16 %v4495
        %v4696 = vunpack.c.l.b16 %v4496
        %v4697 = vunpack.c.h.b16 %v4496
        %v4698 = vunpack.c.l.b16 %v4497
        %v4699 = vunpack.c.h.b16 %v4497
        %v4700 = vunpack.c.l.b16 %v4498
        %v4701 = vunpack.c.h.b16 %v4498
        %v4702 = vunpack.c.l.b16 %v4499
        %v4703 = vunpack.c.h.b16 %v4499
        %v4704 = vunpack.c.l.b16 %v4500
        %v4705 = vunpack.c.h.b16 %v4500
        %v4706 = vunpack.c.l.b16 %v4501
        %v4707 = vunpack.c.h.b16 %v4501
        %v4708 = vunpack.c.l.b16 %v4502
        %v4709 = vunpack.c.h.b16 %v4502
        %v4710 = vunpack.c.l.b16 %v4503
        %v4711 = vunpack.c.h.b16 %v4503
        %v4712 = vunpack.c.l.b16 %v4504
        %v4713 = vunpack.c.h.b16 %v4504
        %v4714 = vunpack.c.l.b16 %v4505
        %v4715 = vunpack.c.h.b16 %v4505
        %v4716 = vunpack.c.l.b16 %v4506
        %v4717 = vunpack.c.h.b16 %v4506
        %v4718 = vunpack.c.l.b16 %v4507
        %v4719 = vunpack.c.h.b16 %v4507
        %v4720 = vunpack.c.l.b16 %v4508
        %v4721 = vunpack.c.h.b16 %v4508
        %v4722 = vunpack.c.l.b16 %v4509
        %v4723 = vunpack.c.h.b16 %v4509
        %v4724 = vunpack.c.l.b16 %v4510
        %v4725 = vunpack.c.h.b16 %v4510
        %v4726 = vunpack.c.l.b16 %v4511
        %v4727 = vunpack.c.h.b16 %v4511
        %v4728 = vunpack.c.l.b16 %v4512
        %v4729 = vunpack.c.h.b16 %v4512
        %v4730 = vunpack.c.l.b16 %v4513
        %v4731 = vunpack.c.h.b16 %v4513
        %v4732 = vunpack.c.l.b16 %v4514
        %v4733 = vunpack.c.h.b16 %v4514
        %v4734 = vunpack.c.l.b16 %v4515
        %v4735 = vunpack.c.h.b16 %v4515
        %v4736 = vunpack.c.l.b16 %v4516
        %v4737 = vunpack.c.h.b16 %v4516
        %v4738 = vunpack.c.l.b16 %v4517
        %v4739 = vunpack.c.h.b16 %v4517
        %v4740 = vunpack.c.l.b16 %v4518
        %v4741 = vunpack.c.h.b16 %v4518
        %v4742 = vunpack.c.l.b16 %v4519
        %v4743 = vunpack.c.h.b16 %v4519
        %v4744 = vpack.c.b16 %v4682, %v4680
        %v4745 = vpack.c.b16 %v4683, %v4681
        %v4746 = vpack.c.b16 %v4686, %v4684
        %v4747 = vpack.c.b16 %v4687, %v4685
        %v4748 = vpack.c.b16 %v4690, %v4688
        %v4749 = vpack.c.b16 %v4691, %v4689
        %v4750 = vpack.c.b16 %v4694, %v4692
        %v4751 = vpack.c.b16 %v4695, %v4693
        %v4752 = vpack.c.b16 %v4698, %v4696
        %v4753 = vpack.c.b16 %v4699, %v4697
        %v4754 = vpack.c.b16 %v4702, %v4700
        %v4755 = vpack.c.b16 %v4703, %v4701
        %v4756 = vpack.c.b16 %v4706, %v4704
        %v4757 = vpack.c.b16 %v4707, %v4705
        %v4758 = vpack.c.b16 %v4710, %v4708
        %v4759 = vpack.c.b16 %v4711, %v4709
        %v4760 = vpack.c.b16 %v4714, %v4712
        %v4761 = vpack.c.b16 %v4715, %v4713
        %v4762 = vpack.c.b16 %v4718, %v4716
        %v4763 = vpack.c.b16 %v4719, %v4717
        %v4764 = vpack.c.b16 %v4722, %v4720
        %v4765 = vpack.c.b16 %v4723, %v4721
        %v4766 = vpack.c.b16 %v4726, %v4724
        %v4767 = vpack.c.b16 %v4727, %v4725
        %v4768 = vpack.c.b16 %v4730, %v4728
        %v4769 = vpack.c.b16 %v4731, %v4729
        %v4770 = vpack.c.b16 %v4734, %v4732
        %v4771 = vpack.c.b16 %v4735, %v4733
        %v4772 = vpack.c.b16 %v4738, %v4736
        %v4773 = vpack.c.b16 %v4739, %v4737
        %v4774 = vpack.c.b16 %v4742, %v4740
        %v4775 = vpack.c.b16 %v4743, %v4741
        %4808 = vmatprep.subr.bf16.mxu0 %v4521
        %4809 = vmatpush1.bf16.msra.mxu0 %v4520
        %4810 = vmatprep.subr.bf16.mxu0 %v4527
        %4811 = vmatpush1.bf16.msra.mxu0 %v4526
        %4812 = vmatprep.subr.bf16.mxu0 %v4533
        %4813 = vmatpush1.bf16.msra.mxu0 %v4532
        %4814 = vmatprep.subr.bf16.mxu0 %v4539
        %4815 = vmatpush1.bf16.msra.mxu0 %v4538
        %4816 = vmatprep.subr.bf16.mxu0 %v4545
        %4817 = vmatpush1.bf16.msra.mxu0 %v4544
        %4818 = vmatprep.subr.bf16.mxu0 %v4551
        %4819 = vmatpush1.bf16.msra.mxu0 %v4550
        %4820 = vmatprep.subr.bf16.mxu0 %v4557
        %4821 = vmatpush1.bf16.msra.mxu0 %v4556
        %4822 = vmatprep.subr.bf16.mxu0 %v4563
        %4823 = vmatpush1.bf16.msra.mxu0 %v4562
        %4824 = vmatprep.subr.bf16.mxu0 %v4569
        %4825 = vmatpush1.bf16.msra.mxu0 %v4568
        %4826 = vmatprep.subr.bf16.mxu0 %v4575
        %4827 = vmatpush1.bf16.msra.mxu0 %v4574
        %4828 = vmatprep.subr.bf16.mxu0 %v4581
        %4829 = vmatpush1.bf16.msra.mxu0 %v4580
        %4830 = vmatprep.subr.bf16.mxu0 %v4587
        %4831 = vmatpush1.bf16.msra.mxu0 %v4586
        %4832 = vmatprep.subr.bf16.mxu0 %v4593
        %4833 = vmatpush1.bf16.msra.mxu0 %v4592
        %4834 = vmatprep.subr.bf16.mxu0 %v4599
        %4835 = vmatpush1.bf16.msra.mxu0 %v4598
        %4836 = vmatprep.subr.bf16.mxu0 %v4605
        %4837 = vmatpush1.bf16.msra.mxu0 %v4604
        %4838 = vmatprep.subr.bf16.mxu0 %v4611
        %4839 = vmatpush1.bf16.msra.mxu0 %v4610
        %4840 = vmatprep.mubr.bf16.mxu0 %v4745
        %4841 = vmatmul.mubr.bf16.gmra.mrb[0].mxu0 %v4744
        %v4842 = vpop.f32.mrb[0].mxu0
        %v4843 = vadd.f32 %v4621, %v4842
        %v4844 = vpop.f32.mrb[0].mxu0
        %v4845 = vadd.f32 %v4625, %v4844
        %v4846 = vpop.f32.mrb[0].mxu0
        %v4847 = vadd.f32 %v4621, %v4846
        %v4848 = vpop.f32.mrb[0].mxu0
        %v4849 = vadd.f32 %v4625, %v4848
        %4850 = vmatprep.mubr.bf16.mxu0 %v4747
        %4851 = vmatmul.mubr.bf16.gmra.mrb[0].mxu0 %v4746
        %v4852 = vpop.f32.mrb[0].mxu0
        %v4853 = vadd.f32 %v4621, %v4852
        %v4854 = vpop.f32.mrb[0].mxu0
        %v4855 = vadd.f32 %v4625, %v4854
        %v4856 = vpop.f32.mrb[0].mxu0
        %v4857 = vadd.f32 %v4621, %v4856
        %v4858 = vpop.f32.mrb[0].mxu0
        %v4859 = vadd.f32 %v4625, %v4858
        %4860 = vmatprep.mubr.bf16.mxu0 %v4749
        %4861 = vmatmul.mubr.bf16.gmra.mrb[0].mxu0 %v4748
        %v4862 = vpop.f32.mrb[0].mxu0
        %v4863 = vadd.f32 %v4621, %v4862
        %v4864 = vpop.f32.mrb[0].mxu0
        %v4865 = vadd.f32 %v4625, %v4864
        %v4866 = vpop.f32.mrb[0].mxu0
        %v4867 = vadd.f32 %v4621, %v4866
        %v4868 = vpop.f32.mrb[0].mxu0
        %v4869 = vadd.f32 %v4625, %v4868
        %4870 = vmatprep.mubr.bf16.mxu0 %v4751
        %4871 = vmatmul.mubr.bf16.gmra.mrb[0].mxu0 %v4750
        %v4872 = vpop.f32.mrb[0].mxu0
        %v4873 = vadd.f32 %v4621, %v4872
        %v4874 = vpop.f32.mrb[0].mxu0
        %v4875 = vadd.f32 %v4625, %v4874
        %v4876 = vpop.f32.mrb[0].mxu0
        %v4877 = vadd.f32 %v4621, %v4876
        %v4878 = vpop.f32.mrb[0].mxu0
        %v4879 = vadd.f32 %v4625, %v4878
        %4880 = vmatprep.mubr.bf16.mxu0 %v4753
        %4881 = vmatmul.mubr.bf16.gmra.mrb[0].mxu0 %v4752
        %v4882 = vpop.f32.mrb[0].mxu0
        %v4883 = vadd.f32 %v4621, %v4882
        %v4884 = vpop.f32.mrb[0].mxu0
        %v4885 = vadd.f32 %v4625, %v4884
        %v4886 = vpop.f32.mrb[0].mxu0
        %v4887 = vadd.f32 %v4621, %v4886
        %v4888 = vpop.f32.mrb[0].mxu0
        %v4889 = vadd.f32 %v4625, %v4888
        %4890 = vmatprep.mubr.bf16.mxu0 %v4755
        %4891 = vmatmul.mubr.bf16.gmra.mrb[0].mxu0 %v4754
        %v4892 = vpop.f32.mrb[0].mxu0
        %v4893 = vadd.f32 %v4621, %v4892
        %v4894 = vpop.f32.mrb[0].mxu0
        %v4895 = vadd.f32 %v4625, %v4894
        %v4896 = vpop.f32.mrb[0].mxu0
        %v4897 = vadd.f32 %v4621, %v4896
        %v4898 = vpop.f32.mrb[0].mxu0
        %v4899 = vadd.f32 %v4625, %v4898
        %4900 = vmatprep.mubr.bf16.mxu0 %v4757
        %4901 = vmatmul.mubr.bf16.gmra.mrb[0].mxu0 %v4756
        %v4902 = vpop.f32.mrb[0].mxu0
        %v4903 = vadd.f32 %v4621, %v4902
        %v4904 = vpop.f32.mrb[0].mxu0
        %v4905 = vadd.f32 %v4625, %v4904
        %v4906 = vpop.f32.mrb[0].mxu0
        %v4907 = vadd.f32 %v4621, %v4906
        %v4908 = vpop.f32.mrb[0].mxu0
        %v4909 = vadd.f32 %v4625, %v4908
        %4910 = vmatprep.mubr.bf16.mxu0 %v4759
        %4911 = vmatmul.mubr.bf16.gmra.mrb[0].mxu0 %v4758
        %v4912 = vpop.f32.mrb[0].mxu0
        %v4913 = vadd.f32 %v4621, %v4912
        %v4914 = vpop.f32.mrb[0].mxu0
        %v4915 = vadd.f32 %v4625, %v4914
        %v4916 = vpop.f32.mrb[0].mxu0
        %v4917 = vadd.f32 %v4621, %v4916
        %v4918 = vpop.f32.mrb[0].mxu0
        %v4919 = vadd.f32 %v4625, %v4918
        %4920 = vmatprep.mubr.bf16.mxu0 %v4761
        %4921 = vmatmul.mubr.bf16.gmra.mrb[0].mxu0 %v4760
        %v4922 = vpop.f32.mrb[0].mxu0
        %v4923 = vadd.f32 %v4621, %v4922
        %v4924 = vpop.f32.mrb[0].mxu0
        %v4925 = vadd.f32 %v4625, %v4924
        %v4926 = vpop.f32.mrb[0].mxu0
        %v4927 = vadd.f32 %v4621, %v4926
        %v4928 = vpop.f32.mrb[0].mxu0
        %v4929 = vadd.f32 %v4625, %v4928
        %4930 = vmatprep.mubr.bf16.mxu0 %v4763
        %4931 = vmatmul.mubr.bf16.gmra.mrb[0].mxu0 %v4762
        %v4932 = vpop.f32.mrb[0].mxu0
        %v4933 = vadd.f32 %v4621, %v4932
        %v4934 = vpop.f32.mrb[0].mxu0
        %v4935 = vadd.f32 %v4625, %v4934
        %v4936 = vpop.f32.mrb[0].mxu0
        %v4937 = vadd.f32 %v4621, %v4936
        %v4938 = vpop.f32.mrb[0].mxu0
        %v4939 = vadd.f32 %v4625, %v4938
        %4940 = vmatprep.mubr.bf16.mxu0 %v4765
        %4941 = vmatmul.mubr.bf16.gmra.mrb[0].mxu0 %v4764
        %v4942 = vpop.f32.mrb[0].mxu0
        %v4943 = vadd.f32 %v4621, %v4942
        %v4944 = vpop.f32.mrb[0].mxu0
        %v4945 = vadd.f32 %v4625, %v4944
        %v4946 = vpop.f32.mrb[0].mxu0
        %v4947 = vadd.f32 %v4621, %v4946
        %v4948 = vpop.f32.mrb[0].mxu0
        %v4949 = vadd.f32 %v4625, %v4948
        %4950 = vmatprep.mubr.bf16.mxu0 %v4767
        %4951 = vmatmul.mubr.bf16.gmra.mrb[0].mxu0 %v4766
        %v4952 = vpop.f32.mrb[0].mxu0
        %v4953 = vadd.f32 %v4621, %v4952
        %v4954 = vpop.f32.mrb[0].mxu0
        %v4955 = vadd.f32 %v4625, %v4954
        %v4956 = vpop.f32.mrb[0].mxu0
        %v4957 = vadd.f32 %v4621, %v4956
        %v4958 = vpop.f32.mrb[0].mxu0
        %v4959 = vadd.f32 %v4625, %v4958
        %4960 = vmatprep.mubr.bf16.mxu0 %v4769
        %4961 = vmatmul.mubr.bf16.gmra.mrb[0].mxu0 %v4768
        %v4962 = vpop.f32.mrb[0].mxu0
        %v4963 = vadd.f32 %v4621, %v4962
        %v4964 = vpop.f32.mrb[0].mxu0
        %v4965 = vadd.f32 %v4625, %v4964
        %v4966 = vpop.f32.mrb[0].mxu0
        %v4967 = vadd.f32 %v4621, %v4966
        %v4968 = vpop.f32.mrb[0].mxu0
        %v4969 = vadd.f32 %v4625, %v4968
        %4970 = vmatprep.mubr.bf16.mxu0 %v4771
        %4971 = vmatmul.mubr.bf16.gmra.mrb[0].mxu0 %v4770
        %v4972 = vpop.f32.mrb[0].mxu0
        %v4973 = vadd.f32 %v4621, %v4972
        %v4974 = vpop.f32.mrb[0].mxu0
        %v4975 = vadd.f32 %v4625, %v4974
        %v4976 = vpop.f32.mrb[0].mxu0
        %v4977 = vadd.f32 %v4621, %v4976
        %v4978 = vpop.f32.mrb[0].mxu0
        %v4979 = vadd.f32 %v4625, %v4978
        %4980 = vmatprep.mubr.bf16.mxu0 %v4773
        %4981 = vmatmul.mubr.bf16.gmra.mrb[0].mxu0 %v4772
        %v4982 = vpop.f32.mrb[0].mxu0
        %v4983 = vadd.f32 %v4621, %v4982
        %v4984 = vpop.f32.mrb[0].mxu0
        %v4985 = vadd.f32 %v4625, %v4984
        %v4986 = vpop.f32.mrb[0].mxu0
        %v4987 = vadd.f32 %v4621, %v4986
        %v4988 = vpop.f32.mrb[0].mxu0
        %v4989 = vadd.f32 %v4625, %v4988
        %4990 = vmatprep.mubr.bf16.mxu0 %v4775
        %4991 = vmatmul.mubr.bf16.gmra.mrb[0].mxu0 %v4774
        %v4992 = vpop.f32.mrb[0].mxu0
        %v4993 = vadd.f32 %v4621, %v4992
        %v4994 = vpop.f32.mrb[0].mxu0
        %v4995 = vadd.f32 %v4625, %v4994
        %v4996 = vpop.f32.mrb[0].mxu0
        %v4997 = vadd.f32 %v4621, %v4996
        %v4998 = vpop.f32.mrb[0].mxu0
        %v4999 = vadd.f32 %v4625, %v4998
        %5000 = vdwg.mxu0
        %5001 = vmatprep.subr.bf16.mxu0 %v4523
        %5002 = vmatpush1.bf16.msra.mxu0 %v4522
        %5003 = vmatprep.subr.bf16.mxu0 %v4529
        %5004 = vmatpush1.bf16.msra.mxu0 %v4528
        %5005 = vmatprep.subr.bf16.mxu0 %v4535
        %5006 = vmatpush1.bf16.msra.mxu0 %v4534
        %5007 = vmatprep.subr.bf16.mxu0 %v4541
        %5008 = vmatpush1.bf16.msra.mxu0 %v4540
        %5009 = vmatprep.subr.bf16.mxu0 %v4547
        %5010 = vmatpush1.bf16.msra.mxu0 %v4546
        %5011 = vmatprep.subr.bf16.mxu0 %v4553
        %5012 = vmatpush1.bf16.msra.mxu0 %v4552
        %5013 = vmatprep.subr.bf16.mxu0 %v4559
        %5014 = vmatpush1.bf16.msra.mxu0 %v4558
        %5015 = vmatprep.subr.bf16.mxu0 %v4565
        %5016 = vmatpush1.bf16.msra.mxu0 %v4564
        %5017 = vmatprep.subr.bf16.mxu0 %v4571
        %5018 = vmatpush1.bf16.msra.mxu0 %v4570
        %5019 = vmatprep.subr.bf16.mxu0 %v4577
        %5020 = vmatpush1.bf16.msra.mxu0 %v4576
        %5021 = vmatprep.subr.bf16.mxu0 %v4583
        %5022 = vmatpush1.bf16.msra.mxu0 %v4582
        %5023 = vmatprep.subr.bf16.mxu0 %v4589
        %5024 = vmatpush1.bf16.msra.mxu0 %v4588
        %5025 = vmatprep.subr.bf16.mxu0 %v4595
        %5026 = vmatpush1.bf16.msra.mxu0 %v4594
        %5027 = vmatprep.subr.bf16.mxu0 %v4601
        %5028 = vmatpush1.bf16.msra.mxu0 %v4600
        %5029 = vmatprep.subr.bf16.mxu0 %v4607
        %5030 = vmatpush1.bf16.msra.mxu0 %v4606
        %5031 = vmatprep.subr.bf16.mxu0 %v4613
        %5032 = vmatpush1.bf16.msra.mxu0 %v4612
        %5033 = vmatprep.mubr.bf16.mxu0 %v4745
        %5034 = vmatmul.mubr.bf16.gmra.mrb[0].mxu0 %v4744
        %v5035 = vpop.f32.mrb[0].mxu0
        %v5036 = vadd.f32 %v4629, %v5035
        %v5037 = vpop.f32.mrb[0].mxu0
        %v5038 = vadd.f32 %v4633, %v5037
        %v5039 = vpop.f32.mrb[0].mxu0
        %v5040 = vadd.f32 %v4629, %v5039
        %v5041 = vpop.f32.mrb[0].mxu0
        %v5042 = vadd.f32 %v4633, %v5041
        %5043 = vmatprep.mubr.bf16.mxu0 %v4747
        %5044 = vmatmul.mubr.bf16.gmra.mrb[0].mxu0 %v4746
        %v5045 = vpop.f32.mrb[0].mxu0
        %v5046 = vadd.f32 %v4629, %v5045
        %v5047 = vpop.f32.mrb[0].mxu0
        %v5048 = vadd.f32 %v4633, %v5047
        %v5049 = vpop.f32.mrb[0].mxu0
        %v5050 = vadd.f32 %v4629, %v5049
        %v5051 = vpop.f32.mrb[0].mxu0
        %v5052 = vadd.f32 %v4633, %v5051
        %5053 = vmatprep.mubr.bf16.mxu0 %v4749
        %5054 = vmatmul.mubr.bf16.gmra.mrb[0].mxu0 %v4748
        %v5055 = vpop.f32.mrb[0].mxu0
        %v5056 = vadd.f32 %v4629, %v5055
        %v5057 = vpop.f32.mrb[0].mxu0
        %v5058 = vadd.f32 %v4633, %v5057
        %v5059 = vpop.f32.mrb[0].mxu0
        %v5060 = vadd.f32 %v4629, %v5059
        %v5061 = vpop.f32.mrb[0].mxu0
        %v5062 = vadd.f32 %v4633, %v5061
        %5063 = vmatprep.mubr.bf16.mxu0 %v4751
        %5064 = vmatmul.mubr.bf16.gmra.mrb[0].mxu0 %v4750
        %v5065 = vpop.f32.mrb[0].mxu0
        %v5066 = vadd.f32 %v4629, %v5065
        %v5067 = vpop.f32.mrb[0].mxu0
        %v5068 = vadd.f32 %v4633, %v5067
        %v5069 = vpop.f32.mrb[0].mxu0
        %v5070 = vadd.f32 %v4629, %v5069
        %v5071 = vpop.f32.mrb[0].mxu0
        %v5072 = vadd.f32 %v4633, %v5071
        %5073 = vmatprep.mubr.bf16.mxu0 %v4753
        %5074 = vmatmul.mubr.bf16.gmra.mrb[0].mxu0 %v4752
        %v5075 = vpop.f32.mrb[0].mxu0
        %v5076 = vadd.f32 %v4629, %v5075
        %v5077 = vpop.f32.mrb[0].mxu0
        %v5078 = vadd.f32 %v4633, %v5077
        %v5079 = vpop.f32.mrb[0].mxu0
        %v5080 = vadd.f32 %v4629, %v5079
        %v5081 = vpop.f32.mrb[0].mxu0
        %v5082 = vadd.f32 %v4633, %v5081
        %5083 = vmatprep.mubr.bf16.mxu0 %v4755
        %5084 = vmatmul.mubr.bf16.gmra.mrb[0].mxu0 %v4754
        %v5085 = vpop.f32.mrb[0].mxu0
        %v5086 = vadd.f32 %v4629, %v5085
        %v5087 = vpop.f32.mrb[0].mxu0
        %v5088 = vadd.f32 %v4633, %v5087
        %v5089 = vpop.f32.mrb[0].mxu0
        %v5090 = vadd.f32 %v4629, %v5089
        %v5091 = vpop.f32.mrb[0].mxu0
        %v5092 = vadd.f32 %v4633, %v5091
        %5093 = vmatprep.mubr.bf16.mxu0 %v4757
        %5094 = vmatmul.mubr.bf16.gmra.mrb[0].mxu0 %v4756
        %v5095 = vpop.f32.mrb[0].mxu0
        %v5096 = vadd.f32 %v4629, %v5095
        %v5097 = vpop.f32.mrb[0].mxu0
        %v5098 = vadd.f32 %v4633, %v5097
        %v5099 = vpop.f32.mrb[0].mxu0
        %v5100 = vadd.f32 %v4629, %v5099
        %v5101 = vpop.f32.mrb[0].mxu0
        %v5102 = vadd.f32 %v4633, %v5101
        %5103 = vmatprep.mubr.bf16.mxu0 %v4759
        %5104 = vmatmul.mubr.bf16.gmra.mrb[0].mxu0 %v4758
        %v5105 = vpop.f32.mrb[0].mxu0
        %v5106 = vadd.f32 %v4629, %v5105
        %v5107 = vpop.f32.mrb[0].mxu0
        %v5108 = vadd.f32 %v4633, %v5107
        %v5109 = vpop.f32.mrb[0].mxu0
        %v5110 = vadd.f32 %v4629, %v5109
        %v5111 = vpop.f32.mrb[0].mxu0
        %v5112 = vadd.f32 %v4633, %v5111
        %5113 = vmatprep.mubr.bf16.mxu0 %v4761
        %5114 = vmatmul.mubr.bf16.gmra.mrb[0].mxu0 %v4760
        %v5115 = vpop.f32.mrb[0].mxu0
        %v5116 = vadd.f32 %v4629, %v5115
        %v5117 = vpop.f32.mrb[0].mxu0
        %v5118 = vadd.f32 %v4633, %v5117
        %v5119 = vpop.f32.mrb[0].mxu0
        %v5120 = vadd.f32 %v4629, %v5119
        %v5121 = vpop.f32.mrb[0].mxu0
        %v5122 = vadd.f32 %v4633, %v5121
        %5123 = vmatprep.mubr.bf16.mxu0 %v4763
        %5124 = vmatmul.mubr.bf16.gmra.mrb[0].mxu0 %v4762
        %v5125 = vpop.f32.mrb[0].mxu0
        %v5126 = vadd.f32 %v4629, %v5125
        %v5127 = vpop.f32.mrb[0].mxu0
        %v5128 = vadd.f32 %v4633, %v5127
        %v5129 = vpop.f32.mrb[0].mxu0
        %v5130 = vadd.f32 %v4629, %v5129
        %v5131 = vpop.f32.mrb[0].mxu0
        %v5132 = vadd.f32 %v4633, %v5131
        %5133 = vmatprep.mubr.bf16.mxu0 %v4765
        %5134 = vmatmul.mubr.bf16.gmra.mrb[0].mxu0 %v4764
        %v5135 = vpop.f32.mrb[0].mxu0
        %v5136 = vadd.f32 %v4629, %v5135
        %v5137 = vpop.f32.mrb[0].mxu0
        %v5138 = vadd.f32 %v4633, %v5137
        %v5139 = vpop.f32.mrb[0].mxu0
        %v5140 = vadd.f32 %v4629, %v5139
        %v5141 = vpop.f32.mrb[0].mxu0
        %v5142 = vadd.f32 %v4633, %v5141
        %5143 = vmatprep.mubr.bf16.mxu0 %v4767
        %5144 = vmatmul.mubr.bf16.gmra.mrb[0].mxu0 %v4766
        %v5145 = vpop.f32.mrb[0].mxu0
        %v5146 = vadd.f32 %v4629, %v5145
        %v5147 = vpop.f32.mrb[0].mxu0
        %v5148 = vadd.f32 %v4633, %v5147
        %v5149 = vpop.f32.mrb[0].mxu0
        %v5150 = vadd.f32 %v4629, %v5149
        %v5151 = vpop.f32.mrb[0].mxu0
        %v5152 = vadd.f32 %v4633, %v5151
        %5153 = vmatprep.mubr.bf16.mxu0 %v4769
        %5154 = vmatmul.mubr.bf16.gmra.mrb[0].mxu0 %v4768
        %v5155 = vpop.f32.mrb[0].mxu0
        %v5156 = vadd.f32 %v4629, %v5155
        %v5157 = vpop.f32.mrb[0].mxu0
        %v5158 = vadd.f32 %v4633, %v5157
        %v5159 = vpop.f32.mrb[0].mxu0
        %v5160 = vadd.f32 %v4629, %v5159
        %v5161 = vpop.f32.mrb[0].mxu0
        %v5162 = vadd.f32 %v4633, %v5161
        %5163 = vmatprep.mubr.bf16.mxu0 %v4771
        %5164 = vmatmul.mubr.bf16.gmra.mrb[0].mxu0 %v4770
        %v5165 = vpop.f32.mrb[0].mxu0
        %v5166 = vadd.f32 %v4629, %v5165
        %v5167 = vpop.f32.mrb[0].mxu0
        %v5168 = vadd.f32 %v4633, %v5167
        %v5169 = vpop.f32.mrb[0].mxu0
        %v5170 = vadd.f32 %v4629, %v5169
        %v5171 = vpop.f32.mrb[0].mxu0
        %v5172 = vadd.f32 %v4633, %v5171
        %5173 = vmatprep.mubr.bf16.mxu0 %v4773
        %5174 = vmatmul.mubr.bf16.gmra.mrb[0].mxu0 %v4772
        %v5175 = vpop.f32.mrb[0].mxu0
        %v5176 = vadd.f32 %v4629, %v5175
        %v5177 = vpop.f32.mrb[0].mxu0
        %v5178 = vadd.f32 %v4633, %v5177
        %v5179 = vpop.f32.mrb[0].mxu0
        %v5180 = vadd.f32 %v4629, %v5179
        %v5181 = vpop.f32.mrb[0].mxu0
        %v5182 = vadd.f32 %v4633, %v5181
        %5183 = vmatprep.mubr.bf16.mxu0 %v4775
        %5184 = vmatmul.mubr.bf16.gmra.mrb[0].mxu0 %v4774
        %v5185 = vpop.f32.mrb[0].mxu0
        %v5186 = vadd.f32 %v4629, %v5185
        %v5187 = vpop.f32.mrb[0].mxu0
        %v5188 = vadd.f32 %v4633, %v5187
        %v5189 = vpop.f32.mrb[0].mxu0
        %v5190 = vadd.f32 %v4629, %v5189
        %v5191 = vpop.f32.mrb[0].mxu0
        %v5192 = vadd.f32 %v4633, %v5191
        %5193 = vdwg.mxu0
        %5194 = vmatprep.subr.bf16.mxu0 %v4525
        %5195 = vmatpush1.bf16.msra.mxu0 %v4524
        %5196 = vmatprep.subr.bf16.mxu0 %v4531
        %5197 = vmatpush1.bf16.msra.mxu0 %v4530
        %5198 = vmatprep.subr.bf16.mxu0 %v4537
        %5199 = vmatpush1.bf16.msra.mxu0 %v4536
        %5200 = vmatprep.subr.bf16.mxu0 %v4543
        %5201 = vmatpush1.bf16.msra.mxu0 %v4542
        %5202 = vmatprep.subr.bf16.mxu0 %v4549
        %5203 = vmatpush1.bf16.msra.mxu0 %v4548
        %5204 = vmatprep.subr.bf16.mxu0 %v4555
        %5205 = vmatpush1.bf16.msra.mxu0 %v4554
        %5206 = vmatprep.subr.bf16.mxu0 %v4561
        %5207 = vmatpush1.bf16.msra.mxu0 %v4560
        %5208 = vmatprep.subr.bf16.mxu0 %v4567
        %5209 = vmatpush1.bf16.msra.mxu0 %v4566
        %5210 = vmatprep.subr.bf16.mxu0 %v4573
        %5211 = vmatpush1.bf16.msra.mxu0 %v4572
        %5212 = vmatprep.subr.bf16.mxu0 %v4579
        %5213 = vmatpush1.bf16.msra.mxu0 %v4578
        %5214 = vmatprep.subr.bf16.mxu0 %v4585
        %5215 = vmatpush1.bf16.msra.mxu0 %v4584
        %5216 = vmatprep.subr.bf16.mxu0 %v4591
        %5217 = vmatpush1.bf16.msra.mxu0 %v4590
        %5218 = vmatprep.subr.bf16.mxu0 %v4597
        %5219 = vmatpush1.bf16.msra.mxu0 %v4596
        %5220 = vmatprep.subr.bf16.mxu0 %v4603
        %5221 = vmatpush1.bf16.msra.mxu0 %v4602
        %5222 = vmatprep.subr.bf16.mxu0 %v4609
        %5223 = vmatpush1.bf16.msra.mxu0 %v4608
        %5224 = vmatprep.subr.bf16.mxu0 %v4615
        %5225 = vmatpush1.bf16.msra.mxu0 %v4614
        %5226 = vmatprep.mubr.bf16.mxu0 %v4745
        %5227 = vmatmul.mubr.bf16.gmra.mrb[0].mxu0 %v4744
        %v5228 = vpop.f32.mrb[0].mxu0
        %v5229 = vadd.f32 %v4637, %v5228
        %v5230 = vpop.f32.mrb[0].mxu0
        %v5231 = vadd.f32 %v4641, %v5230
        %v5232 = vpop.f32.mrb[0].mxu0
        %v5233 = vadd.f32 %v4637, %v5232
        %v5234 = vpop.f32.mrb[0].mxu0
        %v5235 = vadd.f32 %v4641, %v5234
        %5236 = vmatprep.mubr.bf16.mxu0 %v4747
        %5237 = vmatmul.mubr.bf16.gmra.mrb[0].mxu0 %v4746
        %v5238 = vpop.f32.mrb[0].mxu0
        %v5239 = vadd.f32 %v4637, %v5238
        %v5240 = vpop.f32.mrb[0].mxu0
        %v5241 = vadd.f32 %v4641, %v5240
        %v5242 = vpop.f32.mrb[0].mxu0
        %v5243 = vadd.f32 %v4637, %v5242
        %v5244 = vpop.f32.mrb[0].mxu0
        %v5245 = vadd.f32 %v4641, %v5244
        %5246 = vmatprep.mubr.bf16.mxu0 %v4749
        %5247 = vmatmul.mubr.bf16.gmra.mrb[0].mxu0 %v4748
        %v5248 = vpop.f32.mrb[0].mxu0
        %v5249 = vadd.f32 %v4637, %v5248
        %v5250 = vpop.f32.mrb[0].mxu0
        %v5251 = vadd.f32 %v4641, %v5250
        %v5252 = vpop.f32.mrb[0].mxu0
        %v5253 = vadd.f32 %v4637, %v5252
        %v5254 = vpop.f32.mrb[0].mxu0
        %v5255 = vadd.f32 %v4641, %v5254
        %5256 = vmatprep.mubr.bf16.mxu0 %v4751
        %5257 = vmatmul.mubr.bf16.gmra.mrb[0].mxu0 %v4750
        %v5258 = vpop.f32.mrb[0].mxu0
        %v5259 = vadd.f32 %v4637, %v5258
        %v5260 = vpop.f32.mrb[0].mxu0
        %v5261 = vadd.f32 %v4641, %v5260
        %v5262 = vpop.f32.mrb[0].mxu0
        %v5263 = vadd.f32 %v4637, %v5262
        %v5264 = vpop.f32.mrb[0].mxu0
        %v5265 = vadd.f32 %v4641, %v5264
        %5266 = vmatprep.mubr.bf16.mxu0 %v4753
        %5267 = vmatmul.mubr.bf16.gmra.mrb[0].mxu0 %v4752
        %v5268 = vpop.f32.mrb[0].mxu0
        %v5269 = vadd.f32 %v4637, %v5268
        %v5270 = vpop.f32.mrb[0].mxu0
        %v5271 = vadd.f32 %v4641, %v5270
        %v5272 = vpop.f32.mrb[0].mxu0
        %v5273 = vadd.f32 %v4637, %v5272
        %v5274 = vpop.f32.mrb[0].mxu0
        %v5275 = vadd.f32 %v4641, %v5274
        %5276 = vmatprep.mubr.bf16.mxu0 %v4755
        %5277 = vmatmul.mubr.bf16.gmra.mrb[0].mxu0 %v4754
        %v5278 = vpop.f32.mrb[0].mxu0
        %v5279 = vadd.f32 %v4637, %v5278
        %v5280 = vpop.f32.mrb[0].mxu0
        %v5281 = vadd.f32 %v4641, %v5280
        %v5282 = vpop.f32.mrb[0].mxu0
        %v5283 = vadd.f32 %v4637, %v5282
        %v5284 = vpop.f32.mrb[0].mxu0
        %v5285 = vadd.f32 %v4641, %v5284
        %5286 = vmatprep.mubr.bf16.mxu0 %v4757
        %5287 = vmatmul.mubr.bf16.gmra.mrb[0].mxu0 %v4756
        %v5288 = vpop.f32.mrb[0].mxu0
        %v5289 = vadd.f32 %v4637, %v5288
        %v5290 = vpop.f32.mrb[0].mxu0
        %v5291 = vadd.f32 %v4641, %v5290
        %v5292 = vpop.f32.mrb[0].mxu0
        %v5293 = vadd.f32 %v4637, %v5292
        %v5294 = vpop.f32.mrb[0].mxu0
        %v5295 = vadd.f32 %v4641, %v5294
        %5296 = vmatprep.mubr.bf16.mxu0 %v4759
        %5297 = vmatmul.mubr.bf16.gmra.mrb[0].mxu0 %v4758
        %v5298 = vpop.f32.mrb[0].mxu0
        %v5299 = vadd.f32 %v4637, %v5298
        %v5300 = vpop.f32.mrb[0].mxu0
        %v5301 = vadd.f32 %v4641, %v5300
        %v5302 = vpop.f32.mrb[0].mxu0
        %v5303 = vadd.f32 %v4637, %v5302
        %v5304 = vpop.f32.mrb[0].mxu0
        %v5305 = vadd.f32 %v4641, %v5304
        %5306 = vmatprep.mubr.bf16.mxu0 %v4761
        %5307 = vmatmul.mubr.bf16.gmra.mrb[0].mxu0 %v4760
        %v5308 = vpop.f32.mrb[0].mxu0
        %v5309 = vadd.f32 %v4637, %v5308
        %v5310 = vpop.f32.mrb[0].mxu0
        %v5311 = vadd.f32 %v4641, %v5310
        %v5312 = vpop.f32.mrb[0].mxu0
        %v5313 = vadd.f32 %v4637, %v5312
        %v5314 = vpop.f32.mrb[0].mxu0
        %v5315 = vadd.f32 %v4641, %v5314
        %5316 = vmatprep.mubr.bf16.mxu0 %v4763
        %5317 = vmatmul.mubr.bf16.gmra.mrb[0].mxu0 %v4762
        %v5318 = vpop.f32.mrb[0].mxu0
        %v5319 = vadd.f32 %v4637, %v5318
        %v5320 = vpop.f32.mrb[0].mxu0
        %v5321 = vadd.f32 %v4641, %v5320
        %v5322 = vpop.f32.mrb[0].mxu0
        %v5323 = vadd.f32 %v4637, %v5322
        %v5324 = vpop.f32.mrb[0].mxu0
        %v5325 = vadd.f32 %v4641, %v5324
        %5326 = vmatprep.mubr.bf16.mxu0 %v4765
        %5327 = vmatmul.mubr.bf16.gmra.mrb[0].mxu0 %v4764
        %v5328 = vpop.f32.mrb[0].mxu0
        %v5329 = vadd.f32 %v4637, %v5328
        %v5330 = vpop.f32.mrb[0].mxu0
        %v5331 = vadd.f32 %v4641, %v5330
        %v5332 = vpop.f32.mrb[0].mxu0
        %v5333 = vadd.f32 %v4637, %v5332
        %v5334 = vpop.f32.mrb[0].mxu0
        %v5335 = vadd.f32 %v4641, %v5334
        %5336 = vmatprep.mubr.bf16.mxu0 %v4767
        %5337 = vmatmul.mubr.bf16.gmra.mrb[0].mxu0 %v4766
        %v5338 = vpop.f32.mrb[0].mxu0
        %v5339 = vadd.f32 %v4637, %v5338
        %v5340 = vpop.f32.mrb[0].mxu0
        %v5341 = vadd.f32 %v4641, %v5340
        %v5342 = vpop.f32.mrb[0].mxu0
        %v5343 = vadd.f32 %v4637, %v5342
        %v5344 = vpop.f32.mrb[0].mxu0
        %v5345 = vadd.f32 %v4641, %v5344
        %5346 = vmatprep.mubr.bf16.mxu0 %v4769
        %5347 = vmatmul.mubr.bf16.gmra.mrb[0].mxu0 %v4768
        %v5348 = vpop.f32.mrb[0].mxu0
        %v5349 = vadd.f32 %v4637, %v5348
        %v5350 = vpop.f32.mrb[0].mxu0
        %v5351 = vadd.f32 %v4641, %v5350
        %v5352 = vpop.f32.mrb[0].mxu0
        %v5353 = vadd.f32 %v4637, %v5352
        %v5354 = vpop.f32.mrb[0].mxu0
        %v5355 = vadd.f32 %v4641, %v5354
        %5356 = vmatprep.mubr.bf16.mxu0 %v4771
        %5357 = vmatmul.mubr.bf16.gmra.mrb[0].mxu0 %v4770
        %v5358 = vpop.f32.mrb[0].mxu0
        %v5359 = vadd.f32 %v4637, %v5358
        %v5360 = vpop.f32.mrb[0].mxu0
        %v5361 = vadd.f32 %v4641, %v5360
        %v5362 = vpop.f32.mrb[0].mxu0
        %v5363 = vadd.f32 %v4637, %v5362
        %v5364 = vpop.f32.mrb[0].mxu0
        %v5365 = vadd.f32 %v4641, %v5364
        %5366 = vmatprep.mubr.bf16.mxu0 %v4773
        %5367 = vmatmul.mubr.bf16.gmra.mrb[0].mxu0 %v4772
        %v5368 = vpop.f32.mrb[0].mxu0
        %v5369 = vadd.f32 %v4637, %v5368
        %v5370 = vpop.f32.mrb[0].mxu0
        %v5371 = vadd.f32 %v4641, %v5370
        %v5372 = vpop.f32.mrb[0].mxu0
        %v5373 = vadd.f32 %v4637, %v5372
        %v5374 = vpop.f32.mrb[0].mxu0
        %v5375 = vadd.f32 %v4641, %v5374
        %5376 = vmatprep.mubr.bf16.mxu0 %v4775
        %5377 = vmatmul.mubr.bf16.gmra.mrb[0].mxu0 %v4774
        %v5378 = vpop.f32.mrb[0].mxu0
        %v5379 = vadd.f32 %v4637, %v5378
        %v5380 = vpop.f32.mrb[0].mxu0
        %v5381 = vadd.f32 %v4641, %v5380
        %v5382 = vpop.f32.mrb[0].mxu0
        %v5383 = vadd.f32 %v4637, %v5382
        %v5384 = vpop.f32.mrb[0].mxu0
        %v5385 = vadd.f32 %v4641, %v5384
        %5386 = vdwg.mxu0
        %v5387 = vtanh.pop %v4843
        %v5388 = vtanh.pop %v4845
        %v5389 = vtanh.pop %v5036
        %v5390 = vtanh.pop %v5038
        %v5391 = vtanh.pop %v5229
        %v5392 = vtanh.pop %v5231
        %v5393 = vtanh.pop %v4847
        %v5394 = vtanh.pop %v4849
        %v5395 = vtanh.pop %v5040
        %v5396 = vtanh.pop %v5042
        %v5397 = vtanh.pop %v5233
        %v5398 = vtanh.pop %v5235
        %v5399 = vtanh.pop %v4853
        %v5400 = vtanh.pop %v4855
        %v5401 = vtanh.pop %v5046
        %v5402 = vtanh.pop %v5048
        %v5403 = vtanh.pop %v5239
        %v5404 = vtanh.pop %v5241
        %v5405 = vtanh.pop %v4857
        %v5406 = vtanh.pop %v4859
        %v5407 = vtanh.pop %v5050
        %v5408 = vtanh.pop %v5052
        %v5409 = vtanh.pop %v5243
        %v5410 = vtanh.pop %v5245
        %v5411 = vtanh.pop %v4863
        %v5412 = vtanh.pop %v4865
        %v5413 = vtanh.pop %v5056
        %v5414 = vtanh.pop %v5058
        %v5415 = vtanh.pop %v5249
        %v5416 = vtanh.pop %v5251
        %v5417 = vtanh.pop %v4867
        %v5418 = vtanh.pop %v4869
        %v5419 = vtanh.pop %v5060
        %v5420 = vtanh.pop %v5062
        %v5421 = vtanh.pop %v5253
        %v5422 = vtanh.pop %v5255
        %v5423 = vtanh.pop %v4873
        %v5424 = vtanh.pop %v4875
        %v5425 = vtanh.pop %v5066
        %v5426 = vtanh.pop %v5068
        %v5427 = vtanh.pop %v5259
        %v5428 = vtanh.pop %v5261
        %v5429 = vtanh.pop %v4877
        %v5430 = vtanh.pop %v4879
        %v5431 = vtanh.pop %v5070
        %v5432 = vtanh.pop %v5072
        %v5433 = vtanh.pop %v5263
        %v5434 = vtanh.pop %v5265
        %v5435 = vtanh.pop %v4883
        %v5436 = vtanh.pop %v4885
        %v5437 = vtanh.pop %v5076
        %v5438 = vtanh.pop %v5078
        %v5439 = vtanh.pop %v5269
        %v5440 = vtanh.pop %v5271
        %v5441 = vtanh.pop %v4887
        %v5442 = vtanh.pop %v4889
        %v5443 = vtanh.pop %v5080
        %v5444 = vtanh.pop %v5082
        %v5445 = vtanh.pop %v5273
        %v5446 = vtanh.pop %v5275
        %v5447 = vtanh.pop %v4893
        %v5448 = vtanh.pop %v4895
        %v5449 = vtanh.pop %v5086
        %v5450 = vtanh.pop %v5088
        %v5451 = vtanh.pop %v5279
        %v5452 = vtanh.pop %v5281
        %v5453 = vtanh.pop %v4897
        %v5454 = vtanh.pop %v4899
        %v5455 = vtanh.pop %v5090
        %v5456 = vtanh.pop %v5092
        %v5457 = vtanh.pop %v5283
        %v5458 = vtanh.pop %v5285
        %v5459 = vtanh.pop %v4903
        %v5460 = vtanh.pop %v4905
        %v5461 = vtanh.pop %v5096
        %v5462 = vtanh.pop %v5098
        %v5463 = vtanh.pop %v5289
        %v5464 = vtanh.pop %v5291
        %v5465 = vtanh.pop %v4907
        %v5466 = vtanh.pop %v4909
        %v5467 = vtanh.pop %v5100
        %v5468 = vtanh.pop %v5102
        %v5469 = vtanh.pop %v5293
        %v5470 = vtanh.pop %v5295
        %v5471 = vtanh.pop %v4913
        %v5472 = vtanh.pop %v4915
        %v5473 = vtanh.pop %v5106
        %v5474 = vtanh.pop %v5108
        %v5475 = vtanh.pop %v5299
        %v5476 = vtanh.pop %v5301
        %v5477 = vtanh.pop %v4917
        %v5478 = vtanh.pop %v4919
        %v5479 = vtanh.pop %v5110
        %v5480 = vtanh.pop %v5112
        %v5481 = vtanh.pop %v5303
        %v5482 = vtanh.pop %v5305
        %v5483 = vtanh.pop %v4923
        %v5484 = vtanh.pop %v4925
        %v5485 = vtanh.pop %v5116
        %v5486 = vtanh.pop %v5118
        %v5487 = vtanh.pop %v5309
        %v5488 = vtanh.pop %v5311
        %v5489 = vtanh.pop %v4927
        %v5490 = vtanh.pop %v4929
        %v5491 = vtanh.pop %v5120
        %v5492 = vtanh.pop %v5122
        %v5493 = vtanh.pop %v5313
        %v5494 = vtanh.pop %v5315
        %v5495 = vtanh.pop %v4933
        %v5496 = vtanh.pop %v4935
        %v5497 = vtanh.pop %v5126
        %v5498 = vtanh.pop %v5128
        %v5499 = vtanh.pop %v5319
        %v5500 = vtanh.pop %v5321
        %v5501 = vtanh.pop %v4937
        %v5502 = vtanh.pop %v4939
        %v5503 = vtanh.pop %v5130
        %v5504 = vtanh.pop %v5132
        %v5505 = vtanh.pop %v5323
        %v5506 = vtanh.pop %v5325
        %v5507 = vtanh.pop %v4943
        %v5508 = vtanh.pop %v4945
        %v5509 = vtanh.pop %v5136
        %v5510 = vtanh.pop %v5138
        %v5511 = vtanh.pop %v5329
        %v5512 = vtanh.pop %v5331
        %v5513 = vtanh.pop %v4947
        %v5514 = vtanh.pop %v4949
        %v5515 = vtanh.pop %v5140
        %v5516 = vtanh.pop %v5142
        %v5517 = vtanh.pop %v5333
        %v5518 = vtanh.pop %v5335
        %v5519 = vtanh.pop %v4953
        %v5520 = vtanh.pop %v4955
        %v5521 = vtanh.pop %v5146
        %v5522 = vtanh.pop %v5148
        %v5523 = vtanh.pop %v5339
        %v5524 = vtanh.pop %v5341
        %v5525 = vtanh.pop %v4957
        %v5526 = vtanh.pop %v4959
        %v5527 = vtanh.pop %v5150
        %v5528 = vtanh.pop %v5152
        %v5529 = vtanh.pop %v5343
        %v5530 = vtanh.pop %v5345
        %v5531 = vtanh.pop %v4963
        %v5532 = vtanh.pop %v4965
        %v5533 = vtanh.pop %v5156
        %v5534 = vtanh.pop %v5158
        %v5535 = vtanh.pop %v5349
        %v5536 = vtanh.pop %v5351
        %v5537 = vtanh.pop %v4967
        %v5538 = vtanh.pop %v4969
        %v5539 = vtanh.pop %v5160
        %v5540 = vtanh.pop %v5162
        %v5541 = vtanh.pop %v5353
        %v5542 = vtanh.pop %v5355
        %v5543 = vtanh.pop %v4973
        %v5544 = vtanh.pop %v4975
        %v5545 = vtanh.pop %v5166
        %v5546 = vtanh.pop %v5168
        %v5547 = vtanh.pop %v5359
        %v5548 = vtanh.pop %v5361
        %v5549 = vtanh.pop %v4977
        %v5550 = vtanh.pop %v4979
        %v5551 = vtanh.pop %v5170
        %v5552 = vtanh.pop %v5172
        %v5553 = vtanh.pop %v5363
        %v5554 = vtanh.pop %v5365
        %v5555 = vtanh.pop %v4983
        %v5556 = vtanh.pop %v4985
        %v5557 = vtanh.pop %v5176
        %v5558 = vtanh.pop %v5178
        %v5559 = vtanh.pop %v5369
        %v5560 = vtanh.pop %v5371
        %v5561 = vtanh.pop %v4987
        %v5562 = vtanh.pop %v4989
        %v5563 = vtanh.pop %v5180
        %v5564 = vtanh.pop %v5182
        %v5565 = vtanh.pop %v5373
        %v5566 = vtanh.pop %v5375
        %v5567 = vtanh.pop %v4993
        %v5568 = vtanh.pop %v4995
        %v5569 = vtanh.pop %v5186
        %v5570 = vtanh.pop %v5188
        %v5571 = vtanh.pop %v5379
        %v5572 = vtanh.pop %v5381
        %v5573 = vtanh.pop %v4997
        %v5574 = vtanh.pop %v4999
        %v5575 = vtanh.pop %v5190
        %v5576 = vtanh.pop %v5192
        %v5577 = vtanh.pop %v5383
        %v5578 = vtanh.pop %v5385
        %5579 = vst [vmem:[#allocation2] sm:$0xff] %v5387
        %5580 = vst [vmem:[#allocation2 + $0x8] sm:$0xff] %v5388
        %5581 = vst [vmem:[#allocation2 + $0x10] sm:$0xff] %v5389
        %5582 = vst [vmem:[#allocation2 + $0x18] sm:$0xff] %v5390
        %5583 = vst [vmem:[#allocation2 + $0x20] sm:$0xff] %v5391
        %5584 = vst [vmem:[#allocation2 + $0x28] sm:$0xff] %v5392
        %5585 = vst [vmem:[#allocation2 + $0x30] sm:$0xff] %v5393
        %5586 = vst [vmem:[#allocation2 + $0x38] sm:$0xff] %v5394
        %5587 = vst [vmem:[#allocation2 + $0x40] sm:$0xff] %v5395
        %5588 = vst [vmem:[#allocation2 + $0x48] sm:$0xff] %v5396
        %5589 = vst [vmem:[#allocation2 + $0x50] sm:$0xff] %v5397
        %5590 = vst [vmem:[#allocation2 + $0x58] sm:$0xff] %v5398
        %5591 = vst [vmem:[#allocation2 + $0x60] sm:$0xff] %v5399
        %5592 = vst [vmem:[#allocation2 + $0x68] sm:$0xff] %v5400
        %5593 = vst [vmem:[#allocation2 + $0x70] sm:$0xff] %v5401
        %5594 = vst [vmem:[#allocation2 + $0x78] sm:$0xff] %v5402
        %5595 = vst [vmem:[#allocation2 + $0x80] sm:$0xff] %v5403
        %5596 = vst [vmem:[#allocation2 + $0x88] sm:$0xff] %v5404
        %5597 = vst [vmem:[#allocation2 + $0x90] sm:$0xff] %v5405
        %5598 = vst [vmem:[#allocation2 + $0x98] sm:$0xff] %v5406
        %5599 = vst [vmem:[#allocation2 + $0xa0] sm:$0xff] %v5407
        %5600 = vst [vmem:[#allocation2 + $0xa8] sm:$0xff] %v5408
        %5601 = vst [vmem:[#allocation2 + $0xb0] sm:$0xff] %v5409
        %5602 = vst [vmem:[#allocation2 + $0xb8] sm:$0xff] %v5410
        %5603 = vst [vmem:[#allocation2 + $0xc0] sm:$0xff] %v5411
        %5604 = vst [vmem:[#allocation2 + $0xc8] sm:$0xff] %v5412
        %5605 = vst [vmem:[#allocation2 + $0xd0] sm:$0xff] %v5413
        %5606 = vst [vmem:[#allocation2 + $0xd8] sm:$0xff] %v5414
        %5607 = vst [vmem:[#allocation2 + $0xe0] sm:$0xff] %v5415
        %5608 = vst [vmem:[#allocation2 + $0xe8] sm:$0xff] %v5416
        %5609 = vst [vmem:[#allocation2 + $0xf0] sm:$0xff] %v5417
        %5610 = vst [vmem:[#allocation2 + $0xf8] sm:$0xff] %v5418
        %5611 = vst [vmem:[#allocation2 + $0x100] sm:$0xff] %v5419
        %5612 = vst [vmem:[#allocation2 + $0x108] sm:$0xff] %v5420
        %5613 = vst [vmem:[#allocation2 + $0x110] sm:$0xff] %v5421
        %5614 = vst [vmem:[#allocation2 + $0x118] sm:$0xff] %v5422
        %5615 = vst [vmem:[#allocation2 + $0x120] sm:$0xff] %v5423
        %5616 = vst [vmem:[#allocation2 + $0x128] sm:$0xff] %v5424
        %5617 = vst [vmem:[#allocation2 + $0x130] sm:$0xff] %v5425
        %5618 = vst [vmem:[#allocation2 + $0x138] sm:$0xff] %v5426
        %5619 = vst [vmem:[#allocation2 + $0x140] sm:$0xff] %v5427
        %5620 = vst [vmem:[#allocation2 + $0x148] sm:$0xff] %v5428
        %5621 = vst [vmem:[#allocation2 + $0x150] sm:$0xff] %v5429
        %5622 = vst [vmem:[#allocation2 + $0x158] sm:$0xff] %v5430
        %5623 = vst [vmem:[#allocation2 + $0x160] sm:$0xff] %v5431
        %5624 = vst [vmem:[#allocation2 + $0x168] sm:$0xff] %v5432
        %5625 = vst [vmem:[#allocation2 + $0x170] sm:$0xff] %v5433
        %5626 = vst [vmem:[#allocation2 + $0x178] sm:$0xff] %v5434
        %5627 = vst [vmem:[#allocation2 + $0x180] sm:$0xff] %v5435
        %5628 = vst [vmem:[#allocation2 + $0x188] sm:$0xff] %v5436
        %5629 = vst [vmem:[#allocation2 + $0x190] sm:$0xff] %v5437
        %5630 = vst [vmem:[#allocation2 + $0x198] sm:$0xff] %v5438
        %5631 = vst [vmem:[#allocation2 + $0x1a0] sm:$0xff] %v5439
        %5632 = vst [vmem:[#allocation2 + $0x1a8] sm:$0xff] %v5440
        %5633 = vst [vmem:[#allocation2 + $0x1b0] sm:$0xff] %v5441
        %5634 = vst [vmem:[#allocation2 + $0x1b8] sm:$0xff] %v5442
        %5635 = vst [vmem:[#allocation2 + $0x1c0] sm:$0xff] %v5443
        %5636 = vst [vmem:[#allocation2 + $0x1c8] sm:$0xff] %v5444
        %5637 = vst [vmem:[#allocation2 + $0x1d0] sm:$0xff] %v5445
        %5638 = vst [vmem:[#allocation2 + $0x1d8] sm:$0xff] %v5446
        %5639 = vst [vmem:[#allocation2 + $0x1e0] sm:$0xff] %v5447
        %5640 = vst [vmem:[#allocation2 + $0x1e8] sm:$0xff] %v5448
        %5641 = vst [vmem:[#allocation2 + $0x1f0] sm:$0xff] %v5449
        %5642 = vst [vmem:[#allocation2 + $0x1f8] sm:$0xff] %v5450
        %5643 = vst [vmem:[#allocation2 + $0x200] sm:$0xff] %v5451
        %5644 = vst [vmem:[#allocation2 + $0x208] sm:$0xff] %v5452
        %5645 = vst [vmem:[#allocation2 + $0x210] sm:$0xff] %v5453
        %5646 = vst [vmem:[#allocation2 + $0x218] sm:$0xff] %v5454
        %5647 = vst [vmem:[#allocation2 + $0x220] sm:$0xff] %v5455
        %5648 = vst [vmem:[#allocation2 + $0x228] sm:$0xff] %v5456
        %5649 = vst [vmem:[#allocation2 + $0x230] sm:$0xff] %v5457
        %5650 = vst [vmem:[#allocation2 + $0x238] sm:$0xff] %v5458
        %5651 = vst [vmem:[#allocation2 + $0x240] sm:$0xff] %v5459
        %5652 = vst [vmem:[#allocation2 + $0x248] sm:$0xff] %v5460
        %5653 = vst [vmem:[#allocation2 + $0x250] sm:$0xff] %v5461
        %5654 = vst [vmem:[#allocation2 + $0x258] sm:$0xff] %v5462
        %5655 = vst [vmem:[#allocation2 + $0x260] sm:$0xff] %v5463
        %5656 = vst [vmem:[#allocation2 + $0x268] sm:$0xff] %v5464
        %5657 = vst [vmem:[#allocation2 + $0x270] sm:$0xff] %v5465
        %5658 = vst [vmem:[#allocation2 + $0x278] sm:$0xff] %v5466
        %5659 = vst [vmem:[#allocation2 + $0x280] sm:$0xff] %v5467
        %5660 = vst [vmem:[#allocation2 + $0x288] sm:$0xff] %v5468
        %5661 = vst [vmem:[#allocation2 + $0x290] sm:$0xff] %v5469
        %5662 = vst [vmem:[#allocation2 + $0x298] sm:$0xff] %v5470
        %5663 = vst [vmem:[#allocation2 + $0x2a0] sm:$0xff] %v5471
        %5664 = vst [vmem:[#allocation2 + $0x2a8] sm:$0xff] %v5472
        %5665 = vst [vmem:[#allocation2 + $0x2b0] sm:$0xff] %v5473
        %5666 = vst [vmem:[#allocation2 + $0x2b8] sm:$0xff] %v5474
        %5667 = vst [vmem:[#allocation2 + $0x2c0] sm:$0xff] %v5475
        %5668 = vst [vmem:[#allocation2 + $0x2c8] sm:$0xff] %v5476
        %5669 = vst [vmem:[#allocation2 + $0x2d0] sm:$0xff] %v5477
        %5670 = vst [vmem:[#allocation2 + $0x2d8] sm:$0xff] %v5478
        %5671 = vst [vmem:[#allocation2 + $0x2e0] sm:$0xff] %v5479
        %5672 = vst [vmem:[#allocation2 + $0x2e8] sm:$0xff] %v5480
        %5673 = vst [vmem:[#allocation2 + $0x2f0] sm:$0xff] %v5481
        %5674 = vst [vmem:[#allocation2 + $0x2f8] sm:$0xff] %v5482
        %5675 = vst [vmem:[#allocation2 + $0x300] sm:$0xff] %v5483
        %5676 = vst [vmem:[#allocation2 + $0x308] sm:$0xff] %v5484
        %5677 = vst [vmem:[#allocation2 + $0x310] sm:$0xff] %v5485
        %5678 = vst [vmem:[#allocation2 + $0x318] sm:$0xff] %v5486
        %5679 = vst [vmem:[#allocation2 + $0x320] sm:$0xff] %v5487
        %5680 = vst [vmem:[#allocation2 + $0x328] sm:$0xff] %v5488
        %5681 = vst [vmem:[#allocation2 + $0x330] sm:$0xff] %v5489
        %5682 = vst [vmem:[#allocation2 + $0x338] sm:$0xff] %v5490
        %5683 = vst [vmem:[#allocation2 + $0x340] sm:$0xff] %v5491
        %5684 = vst [vmem:[#allocation2 + $0x348] sm:$0xff] %v5492
        %5685 = vst [vmem:[#allocation2 + $0x350] sm:$0xff] %v5493
        %5686 = vst [vmem:[#allocation2 + $0x358] sm:$0xff] %v5494
        %5687 = vst [vmem:[#allocation2 + $0x360] sm:$0xff] %v5495
        %5688 = vst [vmem:[#allocation2 + $0x368] sm:$0xff] %v5496
        %5689 = vst [vmem:[#allocation2 + $0x370] sm:$0xff] %v5497
        %5690 = vst [vmem:[#allocation2 + $0x378] sm:$0xff] %v5498
        %5691 = vst [vmem:[#allocation2 + $0x380] sm:$0xff] %v5499
        %5692 = vst [vmem:[#allocation2 + $0x388] sm:$0xff] %v5500
        %5693 = vst [vmem:[#allocation2 + $0x390] sm:$0xff] %v5501
        %5694 = vst [vmem:[#allocation2 + $0x398] sm:$0xff] %v5502
        %5695 = vst [vmem:[#allocation2 + $0x3a0] sm:$0xff] %v5503
        %5696 = vst [vmem:[#allocation2 + $0x3a8] sm:$0xff] %v5504
        %5697 = vst [vmem:[#allocation2 + $0x3b0] sm:$0xff] %v5505
        %5698 = vst [vmem:[#allocation2 + $0x3b8] sm:$0xff] %v5506
        %5699 = vst [vmem:[#allocation2 + $0x3c0] sm:$0xff] %v5507
        %5700 = vst [vmem:[#allocation2 + $0x3c8] sm:$0xff] %v5508
        %5701 = vst [vmem:[#allocation2 + $0x3d0] sm:$0xff] %v5509
        %5702 = vst [vmem:[#allocation2 + $0x3d8] sm:$0xff] %v5510
        %5703 = vst [vmem:[#allocation2 + $0x3e0] sm:$0xff] %v5511
        %5704 = vst [vmem:[#allocation2 + $0x3e8] sm:$0xff] %v5512
        %5705 = vst [vmem:[#allocation2 + $0x3f0] sm:$0xff] %v5513
        %5706 = vst [vmem:[#allocation2 + $0x3f8] sm:$0xff] %v5514
        %5707 = vst [vmem:[#allocation2 + $0x400] sm:$0xff] %v5515
        %5708 = vst [vmem:[#allocation2 + $0x408] sm:$0xff] %v5516
        %5709 = vst [vmem:[#allocation2 + $0x410] sm:$0xff] %v5517
        %5710 = vst [vmem:[#allocation2 + $0x418] sm:$0xff] %v5518
        %5711 = vst [vmem:[#allocation2 + $0x420] sm:$0xff] %v5519
        %5712 = vst [vmem:[#allocation2 + $0x428] sm:$0xff] %v5520
        %5713 = vst [vmem:[#allocation2 + $0x430] sm:$0xff] %v5521
        %5714 = vst [vmem:[#allocation2 + $0x438] sm:$0xff] %v5522
        %5715 = vst [vmem:[#allocation2 + $0x440] sm:$0xff] %v5523
        %5716 = vst [vmem:[#allocation2 + $0x448] sm:$0xff] %v5524
        %5717 = vst [vmem:[#allocation2 + $0x450] sm:$0xff] %v5525
        %5718 = vst [vmem:[#allocation2 + $0x458] sm:$0xff] %v5526
        %5719 = vst [vmem:[#allocation2 + $0x460] sm:$0xff] %v5527
        %5720 = vst [vmem:[#allocation2 + $0x468] sm:$0xff] %v5528
        %5721 = vst [vmem:[#allocation2 + $0x470] sm:$0xff] %v5529
        %5722 = vst [vmem:[#allocation2 + $0x478] sm:$0xff] %v5530
        %5723 = vst [vmem:[#allocation2 + $0x480] sm:$0xff] %v5531
        %5724 = vst [vmem:[#allocation2 + $0x488] sm:$0xff] %v5532
        %5725 = vst [vmem:[#allocation2 + $0x490] sm:$0xff] %v5533
        %5726 = vst [vmem:[#allocation2 + $0x498] sm:$0xff] %v5534
        %5727 = vst [vmem:[#allocation2 + $0x4a0] sm:$0xff] %v5535
        %5728 = vst [vmem:[#allocation2 + $0x4a8] sm:$0xff] %v5536
        %5729 = vst [vmem:[#allocation2 + $0x4b0] sm:$0xff] %v5537
        %5730 = vst [vmem:[#allocation2 + $0x4b8] sm:$0xff] %v5538
        %5731 = vst [vmem:[#allocation2 + $0x4c0] sm:$0xff] %v5539
        %5732 = vst [vmem:[#allocation2 + $0x4c8] sm:$0xff] %v5540
        %5733 = vst [vmem:[#allocation2 + $0x4d0] sm:$0xff] %v5541
        %5734 = vst [vmem:[#allocation2 + $0x4d8] sm:$0xff] %v5542
        %5735 = vst [vmem:[#allocation2 + $0x4e0] sm:$0xff] %v5543
        %5736 = vst [vmem:[#allocation2 + $0x4e8] sm:$0xff] %v5544
        %5737 = vst [vmem:[#allocation2 + $0x4f0] sm:$0xff] %v5545
        %5738 = vst [vmem:[#allocation2 + $0x4f8] sm:$0xff] %v5546
        %5739 = vst [vmem:[#allocation2 + $0x500] sm:$0xff] %v5547
        %5740 = vst [vmem:[#allocation2 + $0x508] sm:$0xff] %v5548
        %5741 = vst [vmem:[#allocation2 + $0x510] sm:$0xff] %v5549
        %5742 = vst [vmem:[#allocation2 + $0x518] sm:$0xff] %v5550
        %5743 = vst [vmem:[#allocation2 + $0x520] sm:$0xff] %v5551
        %5744 = vst [vmem:[#allocation2 + $0x528] sm:$0xff] %v5552
        %5745 = vst [vmem:[#allocation2 + $0x530] sm:$0xff] %v5553
        %5746 = vst [vmem:[#allocation2 + $0x538] sm:$0xff] %v5554
        %5747 = vst [vmem:[#allocation2 + $0x540] sm:$0xff] %v5555
        %5748 = vst [vmem:[#allocation2 + $0x548] sm:$0xff] %v5556
        %5749 = vst [vmem:[#allocation2 + $0x550] sm:$0xff] %v5557
        %5750 = vst [vmem:[#allocation2 + $0x558] sm:$0xff] %v5558
        %5751 = vst [vmem:[#allocation2 + $0x560] sm:$0xff] %v5559
        %5752 = vst [vmem:[#allocation2 + $0x568] sm:$0xff] %v5560
        %5753 = vst [vmem:[#allocation2 + $0x570] sm:$0xff] %v5561
        %5754 = vst [vmem:[#allocation2 + $0x578] sm:$0xff] %v5562
        %5755 = vst [vmem:[#allocation2 + $0x580] sm:$0xff] %v5563
        %5756 = vst [vmem:[#allocation2 + $0x588] sm:$0xff] %v5564
        %5757 = vst [vmem:[#allocation2 + $0x590] sm:$0xff] %v5565
        %5758 = vst [vmem:[#allocation2 + $0x598] sm:$0xff] %v5566
        %5759 = vst [vmem:[#allocation2 + $0x5a0] sm:$0xff] %v5567
        %5760 = vst [vmem:[#allocation2 + $0x5a8] sm:$0xff] %v5568
        %5761 = vst [vmem:[#allocation2 + $0x5b0] sm:$0xff] %v5569
        %5762 = vst [vmem:[#allocation2 + $0x5b8] sm:$0xff] %v5570
        %5763 = vst [vmem:[#allocation2 + $0x5c0] sm:$0xff] %v5571
        %5764 = vst [vmem:[#allocation2 + $0x5c8] sm:$0xff] %v5572
        %5765 = vst [vmem:[#allocation2 + $0x5d0] sm:$0xff] %v5573
        %5766 = vst [vmem:[#allocation2 + $0x5d8] sm:$0xff] %v5574
        %5767 = vst [vmem:[#allocation2 + $0x5e0] sm:$0xff] %v5575
        %5768 = vst [vmem:[#allocation2 + $0x5e8] sm:$0xff] %v5576
        %5769 = vst [vmem:[#allocation2 + $0x5f0] sm:$0xff] %v5577
        %5770 = vst [vmem:[#allocation2 + $0x5f8] sm:$0xff] %v5578
        %p5771 = scmp.eq.s32.totalorder %s21, 2
        // Predicated region
        $region73: #{tpu_custom_call.1} parent=43 // pred_check
          %p5772 = pneg %p5771
        $region74: #{tpu_custom_call.1} parent=43 // pred_check_branch
          %5774 = sbr.rel (%p5772) target = $region76
        $region75: #{tpu_custom_call.1} parent=43 // pred_region
          %v5775 = vpack.c.bf16 %v5393, %v5387
          %v5776 = vpack.c.bf16 %v5394, %v5388
          %v5777 = vpack.c.bf16 %v5395, %v5389
          %v5778 = vpack.c.bf16 %v5396, %v5390
          %v5779 = vpack.c.bf16 %v5397, %v5391
          %v5780 = vpack.c.bf16 %v5398, %v5392
          %v5781 = vpack.c.bf16 %v5405, %v5399
          %v5782 = vpack.c.bf16 %v5406, %v5400
          %v5783 = vpack.c.bf16 %v5407, %v5401
          %v5784 = vpack.c.bf16 %v5408, %v5402
          %v5785 = vpack.c.bf16 %v5409, %v5403
          %v5786 = vpack.c.bf16 %v5410, %v5404
          %v5787 = vpack.c.bf16 %v5417, %v5411
          %v5788 = vpack.c.bf16 %v5418, %v5412
          %v5789 = vpack.c.bf16 %v5419, %v5413
          %v5790 = vpack.c.bf16 %v5420, %v5414
          %v5791 = vpack.c.bf16 %v5421, %v5415
          %v5792 = vpack.c.bf16 %v5422, %v5416
          %v5793 = vpack.c.bf16 %v5429, %v5423
          %v5794 = vpack.c.bf16 %v5430, %v5424
          %v5795 = vpack.c.bf16 %v5431, %v5425
          %v5796 = vpack.c.bf16 %v5432, %v5426
          %v5797 = vpack.c.bf16 %v5433, %v5427
          %v5798 = vpack.c.bf16 %v5434, %v5428
          %v5799 = vpack.c.bf16 %v5441, %v5435
          %v5800 = vpack.c.bf16 %v5442, %v5436
          %v5801 = vpack.c.bf16 %v5443, %v5437
          %v5802 = vpack.c.bf16 %v5444, %v5438
          %v5803 = vpack.c.bf16 %v5445, %v5439
          %v5804 = vpack.c.bf16 %v5446, %v5440
          %v5805 = vpack.c.bf16 %v5453, %v5447
          %v5806 = vpack.c.bf16 %v5454, %v5448
          %v5807 = vpack.c.bf16 %v5455, %v5449
          %v5808 = vpack.c.bf16 %v5456, %v5450
          %v5809 = vpack.c.bf16 %v5457, %v5451
          %v5810 = vpack.c.bf16 %v5458, %v5452
          %v5811 = vpack.c.bf16 %v5465, %v5459
          %v5812 = vpack.c.bf16 %v5466, %v5460
          %v5813 = vpack.c.bf16 %v5467, %v5461
          %v5814 = vpack.c.bf16 %v5468, %v5462
          %v5815 = vpack.c.bf16 %v5469, %v5463
          %v5816 = vpack.c.bf16 %v5470, %v5464
          %v5817 = vpack.c.bf16 %v5477, %v5471
          %v5818 = vpack.c.bf16 %v5478, %v5472
          %v5819 = vpack.c.bf16 %v5479, %v5473
          %v5820 = vpack.c.bf16 %v5480, %v5474
          %v5821 = vpack.c.bf16 %v5481, %v5475
          %v5822 = vpack.c.bf16 %v5482, %v5476
          %v5823 = vpack.c.bf16 %v5489, %v5483
          %v5824 = vpack.c.bf16 %v5490, %v5484
          %v5825 = vpack.c.bf16 %v5491, %v5485
          %v5826 = vpack.c.bf16 %v5492, %v5486
          %v5827 = vpack.c.bf16 %v5493, %v5487
          %v5828 = vpack.c.bf16 %v5494, %v5488
          %v5829 = vpack.c.bf16 %v5501, %v5495
          %v5830 = vpack.c.bf16 %v5502, %v5496
          %v5831 = vpack.c.bf16 %v5503, %v5497
          %v5832 = vpack.c.bf16 %v5504, %v5498
          %v5833 = vpack.c.bf16 %v5505, %v5499
          %v5834 = vpack.c.bf16 %v5506, %v5500
          %v5835 = vpack.c.bf16 %v5513, %v5507
          %v5836 = vpack.c.bf16 %v5514, %v5508
          %v5837 = vpack.c.bf16 %v5515, %v5509
          %v5838 = vpack.c.bf16 %v5516, %v5510
          %v5839 = vpack.c.bf16 %v5517, %v5511
          %v5840 = vpack.c.bf16 %v5518, %v5512
          %v5841 = vpack.c.bf16 %v5525, %v5519
          %v5842 = vpack.c.bf16 %v5526, %v5520
          %v5843 = vpack.c.bf16 %v5527, %v5521
          %v5844 = vpack.c.bf16 %v5528, %v5522
          %v5845 = vpack.c.bf16 %v5529, %v5523
          %v5846 = vpack.c.bf16 %v5530, %v5524
          %v5847 = vpack.c.bf16 %v5537, %v5531
          %v5848 = vpack.c.bf16 %v5538, %v5532
          %v5849 = vpack.c.bf16 %v5539, %v5533
          %v5850 = vpack.c.bf16 %v5540, %v5534
          %v5851 = vpack.c.bf16 %v5541, %v5535
          %v5852 = vpack.c.bf16 %v5542, %v5536
          %v5853 = vpack.c.bf16 %v5549, %v5543
          %v5854 = vpack.c.bf16 %v5550, %v5544
          %v5855 = vpack.c.bf16 %v5551, %v5545
          %v5856 = vpack.c.bf16 %v5552, %v5546
          %v5857 = vpack.c.bf16 %v5553, %v5547
          %v5858 = vpack.c.bf16 %v5554, %v5548
          %v5859 = vpack.c.bf16 %v5561, %v5555
          %v5860 = vpack.c.bf16 %v5562, %v5556
          %v5861 = vpack.c.bf16 %v5563, %v5557
          %v5862 = vpack.c.bf16 %v5564, %v5558
          %v5863 = vpack.c.bf16 %v5565, %v5559
          %v5864 = vpack.c.bf16 %v5566, %v5560
          %v5865 = vpack.c.bf16 %v5573, %v5567
          %v5866 = vpack.c.bf16 %v5574, %v5568
          %v5867 = vpack.c.bf16 %v5575, %v5569
          %v5868 = vpack.c.bf16 %v5576, %v5570
          %v5869 = vpack.c.bf16 %v5577, %v5571
          %v5870 = vpack.c.bf16 %v5578, %v5572
          %v5871 = vld [vmem:[#allocation10] sm:$0xff]
          %v5872 = vld [vmem:[#allocation10 + $0x8] sm:$0xff]
          %v5873 = vld [vmem:[#allocation10 + $0x10] sm:$0xff]
          %v5874 = vld [vmem:[#allocation10 + $0x18] sm:$0xff]
          %v5875 = vld [vmem:[#allocation10 + $0x20] sm:$0xff]
          %v5876 = vld [vmem:[#allocation10 + $0x28] sm:$0xff]
          %v5877 = vld [vmem:[#allocation10 + $0x30] sm:$0xff]
          %v5878 = vld [vmem:[#allocation10 + $0x38] sm:$0xff]
          %v5879 = vld [vmem:[#allocation10 + $0x40] sm:$0xff]
          %v5880 = vld [vmem:[#allocation10 + $0x48] sm:$0xff]
          %v5881 = vld [vmem:[#allocation10 + $0x50] sm:$0xff]
          %v5882 = vld [vmem:[#allocation10 + $0x58] sm:$0xff]
          %v5883 = vld [vmem:[#allocation10 + $0x60] sm:$0xff]
          %v5884 = vld [vmem:[#allocation10 + $0x68] sm:$0xff]
          %v5885 = vld [vmem:[#allocation10 + $0x70] sm:$0xff]
          %v5886 = vld [vmem:[#allocation10 + $0x78] sm:$0xff]
          %v5887 = vld [vmem:[#allocation10 + $0x80] sm:$0xff]
          %v5888 = vld [vmem:[#allocation10 + $0x88] sm:$0xff]
          %v5889 = vld [vmem:[#allocation10 + $0x90] sm:$0xff]
          %v5890 = vld [vmem:[#allocation10 + $0x98] sm:$0xff]
          %v5891 = vld [vmem:[#allocation10 + $0xa0] sm:$0xff]
          %v5892 = vld [vmem:[#allocation10 + $0xa8] sm:$0xff]
          %v5893 = vld [vmem:[#allocation10 + $0xb0] sm:$0xff]
          %v5894 = vld [vmem:[#allocation10 + $0xb8] sm:$0xff]
          %v5895 = vld [vmem:[#allocation10 + $0xc0] sm:$0xff]
          %v5896 = vld [vmem:[#allocation10 + $0xc8] sm:$0xff]
          %v5897 = vld [vmem:[#allocation10 + $0xd0] sm:$0xff]
          %v5898 = vld [vmem:[#allocation10 + $0xd8] sm:$0xff]
          %v5899 = vld [vmem:[#allocation10 + $0xe0] sm:$0xff]
          %v5900 = vld [vmem:[#allocation10 + $0xe8] sm:$0xff]
          %v5901 = vld [vmem:[#allocation10 + $0xf0] sm:$0xff]
          %v5902 = vld [vmem:[#allocation10 + $0xf8] sm:$0xff]
          %v5903 = vld [vmem:[#allocation10 + $0x100] sm:$0xff]
          %v5904 = vld [vmem:[#allocation10 + $0x108] sm:$0xff]
          %v5905 = vld [vmem:[#allocation10 + $0x110] sm:$0xff]
          %v5906 = vld [vmem:[#allocation10 + $0x118] sm:$0xff]
          %v5907 = vld [vmem:[#allocation10 + $0x120] sm:$0xff]
          %v5908 = vld [vmem:[#allocation10 + $0x128] sm:$0xff]
          %v5909 = vld [vmem:[#allocation10 + $0x130] sm:$0xff]
          %v5910 = vld [vmem:[#allocation10 + $0x138] sm:$0xff]
          %v5911 = vld [vmem:[#allocation10 + $0x140] sm:$0xff]
          %v5912 = vld [vmem:[#allocation10 + $0x148] sm:$0xff]
          %v5913 = vld [vmem:[#allocation10 + $0x150] sm:$0xff]
          %v5914 = vld [vmem:[#allocation10 + $0x158] sm:$0xff]
          %v5915 = vld [vmem:[#allocation10 + $0x160] sm:$0xff]
          %v5916 = vld [vmem:[#allocation10 + $0x168] sm:$0xff]
          %v5917 = vld [vmem:[#allocation10 + $0x170] sm:$0xff]
          %v5918 = vld [vmem:[#allocation10 + $0x178] sm:$0xff]
          %v5919 = vld [vmem:[#allocation10 + $0x180] sm:$0xff]
          %v5920 = vld [vmem:[#allocation10 + $0x188] sm:$0xff]
          %v5921 = vld [vmem:[#allocation10 + $0x190] sm:$0xff]
          %v5922 = vld [vmem:[#allocation10 + $0x198] sm:$0xff]
          %v5923 = vld [vmem:[#allocation10 + $0x1a0] sm:$0xff]
          %v5924 = vld [vmem:[#allocation10 + $0x1a8] sm:$0xff]
          %v5925 = vld [vmem:[#allocation10 + $0x1b0] sm:$0xff]
          %v5926 = vld [vmem:[#allocation10 + $0x1b8] sm:$0xff]
          %v5927 = vld [vmem:[#allocation10 + $0x1c0] sm:$0xff]
          %v5928 = vld [vmem:[#allocation10 + $0x1c8] sm:$0xff]
          %v5929 = vld [vmem:[#allocation10 + $0x1d0] sm:$0xff]
          %v5930 = vld [vmem:[#allocation10 + $0x1d8] sm:$0xff]
          %v5931 = vld [vmem:[#allocation10 + $0x1e0] sm:$0xff]
          %v5932 = vld [vmem:[#allocation10 + $0x1e8] sm:$0xff]
          %v5933 = vld [vmem:[#allocation10 + $0x1f0] sm:$0xff]
          %v5934 = vld [vmem:[#allocation10 + $0x1f8] sm:$0xff]
          %v5935 = vld [vmem:[#allocation10 + $0x200] sm:$0xff]
          %v5936 = vld [vmem:[#allocation10 + $0x208] sm:$0xff]
          %v5937 = vld [vmem:[#allocation10 + $0x210] sm:$0xff]
          %v5938 = vld [vmem:[#allocation10 + $0x218] sm:$0xff]
          %v5939 = vld [vmem:[#allocation10 + $0x220] sm:$0xff]
          %v5940 = vld [vmem:[#allocation10 + $0x228] sm:$0xff]
          %v5941 = vld [vmem:[#allocation10 + $0x230] sm:$0xff]
          %v5942 = vld [vmem:[#allocation10 + $0x238] sm:$0xff]
          %v5943 = vld [vmem:[#allocation10 + $0x240] sm:$0xff]
          %v5944 = vld [vmem:[#allocation10 + $0x248] sm:$0xff]
          %v5945 = vld [vmem:[#allocation10 + $0x250] sm:$0xff]
          %v5946 = vld [vmem:[#allocation10 + $0x258] sm:$0xff]
          %v5947 = vld [vmem:[#allocation10 + $0x260] sm:$0xff]
          %v5948 = vld [vmem:[#allocation10 + $0x268] sm:$0xff]
          %v5949 = vld [vmem:[#allocation10 + $0x270] sm:$0xff]
          %v5950 = vld [vmem:[#allocation10 + $0x278] sm:$0xff]
          %v5951 = vld [vmem:[#allocation10 + $0x280] sm:$0xff]
          %v5952 = vld [vmem:[#allocation10 + $0x288] sm:$0xff]
          %v5953 = vld [vmem:[#allocation10 + $0x290] sm:$0xff]
          %v5954 = vld [vmem:[#allocation10 + $0x298] sm:$0xff]
          %v5955 = vld [vmem:[#allocation10 + $0x2a0] sm:$0xff]
          %v5956 = vld [vmem:[#allocation10 + $0x2a8] sm:$0xff]
          %v5957 = vld [vmem:[#allocation10 + $0x2b0] sm:$0xff]
          %v5958 = vld [vmem:[#allocation10 + $0x2b8] sm:$0xff]
          %v5959 = vld [vmem:[#allocation10 + $0x2c0] sm:$0xff]
          %v5960 = vld [vmem:[#allocation10 + $0x2c8] sm:$0xff]
          %v5961 = vld [vmem:[#allocation10 + $0x2d0] sm:$0xff]
          %v5962 = vld [vmem:[#allocation10 + $0x2d8] sm:$0xff]
          %v5963 = vld [vmem:[#allocation10 + $0x2e0] sm:$0xff]
          %v5964 = vld [vmem:[#allocation10 + $0x2e8] sm:$0xff]
          %v5965 = vld [vmem:[#allocation10 + $0x2f0] sm:$0xff]
          %v5966 = vld [vmem:[#allocation10 + $0x2f8] sm:$0xff]
          %v6063 = vunpack.c.l.b16 %v5871
          %v6064 = vunpack.c.h.b16 %v5871
          %v6065 = vunpack.c.l.b16 %v5872
          %v6066 = vunpack.c.h.b16 %v5872
          %v6067 = vunpack.c.l.b16 %v5873
          %v6068 = vunpack.c.h.b16 %v5873
          %v6069 = vunpack.c.l.b16 %v5874
          %v6070 = vunpack.c.h.b16 %v5874
          %v6071 = vunpack.c.l.b16 %v5875
          %v6072 = vunpack.c.h.b16 %v5875
          %v6073 = vunpack.c.l.b16 %v5876
          %v6074 = vunpack.c.h.b16 %v5876
          %v6075 = vunpack.c.l.b16 %v5877
          %v6076 = vunpack.c.h.b16 %v5877
          %v6077 = vunpack.c.l.b16 %v5878
          %v6078 = vunpack.c.h.b16 %v5878
          %v6079 = vunpack.c.l.b16 %v5879
          %v6080 = vunpack.c.h.b16 %v5879
          %v6081 = vunpack.c.l.b16 %v5880
          %v6082 = vunpack.c.h.b16 %v5880
          %v6083 = vunpack.c.l.b16 %v5881
          %v6084 = vunpack.c.h.b16 %v5881
          %v6085 = vunpack.c.l.b16 %v5882
          %v6086 = vunpack.c.h.b16 %v5882
          %v6087 = vunpack.c.l.b16 %v5883
          %v6088 = vunpack.c.h.b16 %v5883
          %v6089 = vunpack.c.l.b16 %v5884
          %v6090 = vunpack.c.h.b16 %v5884
          %v6091 = vunpack.c.l.b16 %v5885
          %v6092 = vunpack.c.h.b16 %v5885
          %v6093 = vunpack.c.l.b16 %v5886
          %v6094 = vunpack.c.h.b16 %v5886
          %v6095 = vunpack.c.l.b16 %v5887
          %v6096 = vunpack.c.h.b16 %v5887
          %v6097 = vunpack.c.l.b16 %v5888
          %v6098 = vunpack.c.h.b16 %v5888
          %v6099 = vunpack.c.l.b16 %v5889
          %v6100 = vunpack.c.h.b16 %v5889
          %v6101 = vunpack.c.l.b16 %v5890
          %v6102 = vunpack.c.h.b16 %v5890
          %v6103 = vunpack.c.l.b16 %v5891
          %v6104 = vunpack.c.h.b16 %v5891
          %v6105 = vunpack.c.l.b16 %v5892
          %v6106 = vunpack.c.h.b16 %v5892
          %v6107 = vunpack.c.l.b16 %v5893
          %v6108 = vunpack.c.h.b16 %v5893
          %v6109 = vunpack.c.l.b16 %v5894
          %v6110 = vunpack.c.h.b16 %v5894
          %v6111 = vunpack.c.l.b16 %v5895
          %v6112 = vunpack.c.h.b16 %v5895
          %v6113 = vunpack.c.l.b16 %v5896
          %v6114 = vunpack.c.h.b16 %v5896
          %v6115 = vunpack.c.l.b16 %v5897
          %v6116 = vunpack.c.h.b16 %v5897
          %v6117 = vunpack.c.l.b16 %v5898
          %v6118 = vunpack.c.h.b16 %v5898
          %v6119 = vunpack.c.l.b16 %v5899
          %v6120 = vunpack.c.h.b16 %v5899
          %v6121 = vunpack.c.l.b16 %v5900
          %v6122 = vunpack.c.h.b16 %v5900
          %v6123 = vunpack.c.l.b16 %v5901
          %v6124 = vunpack.c.h.b16 %v5901
          %v6125 = vunpack.c.l.b16 %v5902
          %v6126 = vunpack.c.h.b16 %v5902
          %v6127 = vunpack.c.l.b16 %v5903
          %v6128 = vunpack.c.h.b16 %v5903
          %v6129 = vunpack.c.l.b16 %v5904
          %v6130 = vunpack.c.h.b16 %v5904
          %v6131 = vunpack.c.l.b16 %v5905
          %v6132 = vunpack.c.h.b16 %v5905
          %v6133 = vunpack.c.l.b16 %v5906
          %v6134 = vunpack.c.h.b16 %v5906
          %v6135 = vunpack.c.l.b16 %v5907
          %v6136 = vunpack.c.h.b16 %v5907
          %v6137 = vunpack.c.l.b16 %v5908
          %v6138 = vunpack.c.h.b16 %v5908
          %v6139 = vunpack.c.l.b16 %v5909
          %v6140 = vunpack.c.h.b16 %v5909
          %v6141 = vunpack.c.l.b16 %v5910
          %v6142 = vunpack.c.h.b16 %v5910
          %v6143 = vunpack.c.l.b16 %v5911
          %v6144 = vunpack.c.h.b16 %v5911
          %v6145 = vunpack.c.l.b16 %v5912
          %v6146 = vunpack.c.h.b16 %v5912
          %v6147 = vunpack.c.l.b16 %v5913
          %v6148 = vunpack.c.h.b16 %v5913
          %v6149 = vunpack.c.l.b16 %v5914
          %v6150 = vunpack.c.h.b16 %v5914
          %v6151 = vunpack.c.l.b16 %v5915
          %v6152 = vunpack.c.h.b16 %v5915
          %v6153 = vunpack.c.l.b16 %v5916
          %v6154 = vunpack.c.h.b16 %v5916
          %v6155 = vunpack.c.l.b16 %v5917
          %v6156 = vunpack.c.h.b16 %v5917
          %v6157 = vunpack.c.l.b16 %v5918
          %v6158 = vunpack.c.h.b16 %v5918
          %v6159 = vunpack.c.l.b16 %v5919
          %v6160 = vunpack.c.h.b16 %v5919
          %v6161 = vunpack.c.l.b16 %v5920
          %v6162 = vunpack.c.h.b16 %v5920
          %v6163 = vunpack.c.l.b16 %v5921
          %v6164 = vunpack.c.h.b16 %v5921
          %v6165 = vunpack.c.l.b16 %v5922
          %v6166 = vunpack.c.h.b16 %v5922
          %v6167 = vunpack.c.l.b16 %v5923
          %v6168 = vunpack.c.h.b16 %v5923
          %v6169 = vunpack.c.l.b16 %v5924
          %v6170 = vunpack.c.h.b16 %v5924
          %v6171 = vunpack.c.l.b16 %v5925
          %v6172 = vunpack.c.h.b16 %v5925
          %v6173 = vunpack.c.l.b16 %v5926
          %v6174 = vunpack.c.h.b16 %v5926
          %v6175 = vunpack.c.l.b16 %v5927
          %v6176 = vunpack.c.h.b16 %v5927
          %v6177 = vunpack.c.l.b16 %v5928
          %v6178 = vunpack.c.h.b16 %v5928
          %v6179 = vunpack.c.l.b16 %v5929
          %v6180 = vunpack.c.h.b16 %v5929
          %v6181 = vunpack.c.l.b16 %v5930
          %v6182 = vunpack.c.h.b16 %v5930
          %v6183 = vunpack.c.l.b16 %v5931
          %v6184 = vunpack.c.h.b16 %v5931
          %v6185 = vunpack.c.l.b16 %v5932
          %v6186 = vunpack.c.h.b16 %v5932
          %v6187 = vunpack.c.l.b16 %v5933
          %v6188 = vunpack.c.h.b16 %v5933
          %v6189 = vunpack.c.l.b16 %v5934
          %v6190 = vunpack.c.h.b16 %v5934
          %v6191 = vunpack.c.l.b16 %v5935
          %v6192 = vunpack.c.h.b16 %v5935
          %v6193 = vunpack.c.l.b16 %v5936
          %v6194 = vunpack.c.h.b16 %v5936
          %v6195 = vunpack.c.l.b16 %v5937
          %v6196 = vunpack.c.h.b16 %v5937
          %v6197 = vunpack.c.l.b16 %v5938
          %v6198 = vunpack.c.h.b16 %v5938
          %v6199 = vunpack.c.l.b16 %v5939
          %v6200 = vunpack.c.h.b16 %v5939
          %v6201 = vunpack.c.l.b16 %v5940
          %v6202 = vunpack.c.h.b16 %v5940
          %v6203 = vunpack.c.l.b16 %v5941
          %v6204 = vunpack.c.h.b16 %v5941
          %v6205 = vunpack.c.l.b16 %v5942
          %v6206 = vunpack.c.h.b16 %v5942
          %v6207 = vunpack.c.l.b16 %v5943
          %v6208 = vunpack.c.h.b16 %v5943
          %v6209 = vunpack.c.l.b16 %v5944
          %v6210 = vunpack.c.h.b16 %v5944
          %v6211 = vunpack.c.l.b16 %v5945
          %v6212 = vunpack.c.h.b16 %v5945
          %v6213 = vunpack.c.l.b16 %v5946
          %v6214 = vunpack.c.h.b16 %v5946
          %v6215 = vunpack.c.l.b16 %v5947
          %v6216 = vunpack.c.h.b16 %v5947
          %v6217 = vunpack.c.l.b16 %v5948
          %v6218 = vunpack.c.h.b16 %v5948
          %v6219 = vunpack.c.l.b16 %v5949
          %v6220 = vunpack.c.h.b16 %v5949
          %v6221 = vunpack.c.l.b16 %v5950
          %v6222 = vunpack.c.h.b16 %v5950
          %v6223 = vunpack.c.l.b16 %v5951
          %v6224 = vunpack.c.h.b16 %v5951
          %v6225 = vunpack.c.l.b16 %v5952
          %v6226 = vunpack.c.h.b16 %v5952
          %v6227 = vunpack.c.l.b16 %v5953
          %v6228 = vunpack.c.h.b16 %v5953
          %v6229 = vunpack.c.l.b16 %v5954
          %v6230 = vunpack.c.h.b16 %v5954
          %v6231 = vunpack.c.l.b16 %v5955
          %v6232 = vunpack.c.h.b16 %v5955
          %v6233 = vunpack.c.l.b16 %v5956
          %v6234 = vunpack.c.h.b16 %v5956
          %v6235 = vunpack.c.l.b16 %v5957
          %v6236 = vunpack.c.h.b16 %v5957
          %v6237 = vunpack.c.l.b16 %v5958
          %v6238 = vunpack.c.h.b16 %v5958
          %v6239 = vunpack.c.l.b16 %v5959
          %v6240 = vunpack.c.h.b16 %v5959
          %v6241 = vunpack.c.l.b16 %v5960
          %v6242 = vunpack.c.h.b16 %v5960
          %v6243 = vunpack.c.l.b16 %v5961
          %v6244 = vunpack.c.h.b16 %v5961
          %v6245 = vunpack.c.l.b16 %v5962
          %v6246 = vunpack.c.h.b16 %v5962
          %v6247 = vunpack.c.l.b16 %v5963
          %v6248 = vunpack.c.h.b16 %v5963
          %v6249 = vunpack.c.l.b16 %v5964
          %v6250 = vunpack.c.h.b16 %v5964
          %v6251 = vunpack.c.l.b16 %v5965
          %v6252 = vunpack.c.h.b16 %v5965
          %v6253 = vunpack.c.l.b16 %v5966
          %v6254 = vunpack.c.h.b16 %v5966
          %v6255 = vpack.c.b16 %v6065, %v6063
          %v6256 = vpack.c.b16 %v6066, %v6064
          %v6257 = vpack.c.b16 %v6069, %v6067
          %v6258 = vpack.c.b16 %v6070, %v6068
          %v6259 = vpack.c.b16 %v6073, %v6071
          %v6260 = vpack.c.b16 %v6074, %v6072
          %v6261 = vpack.c.b16 %v6077, %v6075
          %v6262 = vpack.c.b16 %v6078, %v6076
          %v6263 = vpack.c.b16 %v6081, %v6079
          %v6264 = vpack.c.b16 %v6082, %v6080
          %v6265 = vpack.c.b16 %v6085, %v6083
          %v6266 = vpack.c.b16 %v6086, %v6084
          %v6267 = vpack.c.b16 %v6089, %v6087
          %v6268 = vpack.c.b16 %v6090, %v6088
          %v6269 = vpack.c.b16 %v6093, %v6091
          %v6270 = vpack.c.b16 %v6094, %v6092
          %v6271 = vpack.c.b16 %v6097, %v6095
          %v6272 = vpack.c.b16 %v6098, %v6096
          %v6273 = vpack.c.b16 %v6101, %v6099
          %v6274 = vpack.c.b16 %v6102, %v6100
          %v6275 = vpack.c.b16 %v6105, %v6103
          %v6276 = vpack.c.b16 %v6106, %v6104
          %v6277 = vpack.c.b16 %v6109, %v6107
          %v6278 = vpack.c.b16 %v6110, %v6108
          %v6279 = vpack.c.b16 %v6113, %v6111
          %v6280 = vpack.c.b16 %v6114, %v6112
          %v6281 = vpack.c.b16 %v6117, %v6115
          %v6282 = vpack.c.b16 %v6118, %v6116
          %v6283 = vpack.c.b16 %v6121, %v6119
          %v6284 = vpack.c.b16 %v6122, %v6120
          %v6285 = vpack.c.b16 %v6125, %v6123
          %v6286 = vpack.c.b16 %v6126, %v6124
          %v6287 = vpack.c.b16 %v6129, %v6127
          %v6288 = vpack.c.b16 %v6130, %v6128
          %v6289 = vpack.c.b16 %v6133, %v6131
          %v6290 = vpack.c.b16 %v6134, %v6132
          %v6291 = vpack.c.b16 %v6137, %v6135
          %v6292 = vpack.c.b16 %v6138, %v6136
          %v6293 = vpack.c.b16 %v6141, %v6139
          %v6294 = vpack.c.b16 %v6142, %v6140
          %v6295 = vpack.c.b16 %v6145, %v6143
          %v6296 = vpack.c.b16 %v6146, %v6144
          %v6297 = vpack.c.b16 %v6149, %v6147
          %v6298 = vpack.c.b16 %v6150, %v6148
          %v6299 = vpack.c.b16 %v6153, %v6151
          %v6300 = vpack.c.b16 %v6154, %v6152
          %v6301 = vpack.c.b16 %v6157, %v6155
          %v6302 = vpack.c.b16 %v6158, %v6156
          %v6303 = vpack.c.b16 %v6161, %v6159
          %v6304 = vpack.c.b16 %v6162, %v6160
          %v6305 = vpack.c.b16 %v6165, %v6163
          %v6306 = vpack.c.b16 %v6166, %v6164
          %v6307 = vpack.c.b16 %v6169, %v6167
          %v6308 = vpack.c.b16 %v6170, %v6168
          %v6309 = vpack.c.b16 %v6173, %v6171
          %v6310 = vpack.c.b16 %v6174, %v6172
          %v6311 = vpack.c.b16 %v6177, %v6175
          %v6312 = vpack.c.b16 %v6178, %v6176
          %v6313 = vpack.c.b16 %v6181, %v6179
          %v6314 = vpack.c.b16 %v6182, %v6180
          %v6315 = vpack.c.b16 %v6185, %v6183
          %v6316 = vpack.c.b16 %v6186, %v6184
          %v6317 = vpack.c.b16 %v6189, %v6187
          %v6318 = vpack.c.b16 %v6190, %v6188
          %v6319 = vpack.c.b16 %v6193, %v6191
          %v6320 = vpack.c.b16 %v6194, %v6192
          %v6321 = vpack.c.b16 %v6197, %v6195
          %v6322 = vpack.c.b16 %v6198, %v6196
          %v6323 = vpack.c.b16 %v6201, %v6199
          %v6324 = vpack.c.b16 %v6202, %v6200
          %v6325 = vpack.c.b16 %v6205, %v6203
          %v6326 = vpack.c.b16 %v6206, %v6204
          %v6327 = vpack.c.b16 %v6209, %v6207
          %v6328 = vpack.c.b16 %v6210, %v6208
          %v6329 = vpack.c.b16 %v6213, %v6211
          %v6330 = vpack.c.b16 %v6214, %v6212
          %v6331 = vpack.c.b16 %v6217, %v6215
          %v6332 = vpack.c.b16 %v6218, %v6216
          %v6333 = vpack.c.b16 %v6221, %v6219
          %v6334 = vpack.c.b16 %v6222, %v6220
          %v6335 = vpack.c.b16 %v6225, %v6223
          %v6336 = vpack.c.b16 %v6226, %v6224
          %v6337 = vpack.c.b16 %v6229, %v6227
          %v6338 = vpack.c.b16 %v6230, %v6228
          %v6339 = vpack.c.b16 %v6233, %v6231
          %v6340 = vpack.c.b16 %v6234, %v6232
          %v6341 = vpack.c.b16 %v6237, %v6235
          %v6342 = vpack.c.b16 %v6238, %v6236
          %v6343 = vpack.c.b16 %v6241, %v6239
          %v6344 = vpack.c.b16 %v6242, %v6240
          %v6345 = vpack.c.b16 %v6245, %v6243
          %v6346 = vpack.c.b16 %v6246, %v6244
          %v6347 = vpack.c.b16 %v6249, %v6247
          %v6348 = vpack.c.b16 %v6250, %v6248
          %v6349 = vpack.c.b16 %v6253, %v6251
          %v6350 = vpack.c.b16 %v6254, %v6252
          %6447 = vmatprep.subr.bf16.mxu0 %v6256
          %6448 = vmatpush1.bf16.msra.mxu0 %v6255
          %6449 = vmatprep.subr.bf16.mxu0 %v6258
          %6450 = vmatpush1.bf16.msra.mxu0 %v6257
          %6451 = vmatprep.subr.bf16.mxu0 %v6260
          %6452 = vmatpush1.bf16.msra.mxu0 %v6259
          %6453 = vmatprep.subr.bf16.mxu0 %v6262
          %6454 = vmatpush1.bf16.msra.mxu0 %v6261
          %6455 = vmatprep.subr.bf16.mxu0 %v6264
          %6456 = vmatpush1.bf16.msra.mxu0 %v6263
          %6457 = vmatprep.subr.bf16.mxu0 %v6266
          %6458 = vmatpush1.bf16.msra.mxu0 %v6265
          %6459 = vmatprep.subr.bf16.mxu0 %v6268
          %6460 = vmatpush1.bf16.msra.mxu0 %v6267
          %6461 = vmatprep.subr.bf16.mxu0 %v6270
          %6462 = vmatpush1.bf16.msra.mxu0 %v6269
          %6463 = vmatprep.subr.bf16.mxu0 %v6272
          %6464 = vmatpush1.bf16.msra.mxu0 %v6271
          %6465 = vmatprep.subr.bf16.mxu0 %v6274
          %6466 = vmatpush1.bf16.msra.mxu0 %v6273
          %6467 = vmatprep.subr.bf16.mxu0 %v6276
          %6468 = vmatpush1.bf16.msra.mxu0 %v6275
          %6469 = vmatprep.subr.bf16.mxu0 %v6278
          %6470 = vmatpush1.bf16.msra.mxu0 %v6277
          %6471 = vmatprep.subr.bf16.mxu0 %v6280
          %6472 = vmatpush1.bf16.msra.mxu0 %v6279
          %6473 = vmatprep.subr.bf16.mxu0 %v6282
          %6474 = vmatpush1.bf16.msra.mxu0 %v6281
          %6475 = vmatprep.subr.bf16.mxu0 %v6284
          %6476 = vmatpush1.bf16.msra.mxu0 %v6283
          %6477 = vmatprep.subr.bf16.mxu0 %v6286
          %6478 = vmatpush1.bf16.msra.mxu0 %v6285
          %6479 = vmatprep.mubr.bf16.mxu0 %v5776
          %6480 = vmatmul.mubr.bf16.gmra.mrb[0].mxu0 %v5775
          %v6481 = vpop.f32.mrb[0].mxu0
          %v6482 = vadd.f32 0.0, %v6481
          %v6483 = vpop.f32.mrb[0].mxu0
          %v6484 = vadd.f32 0.0, %v6483
          %v6485 = vpop.f32.mrb[0].mxu0
          %v6486 = vadd.f32 0.0, %v6485
          %v6487 = vpop.f32.mrb[0].mxu0
          %v6488 = vadd.f32 0.0, %v6487
          %6489 = vmatprep.mubr.bf16.mxu0 %v5782
          %6490 = vmatmul.mubr.bf16.gmra.mrb[0].mxu0 %v5781
          %v6491 = vpop.f32.mrb[0].mxu0
          %v6492 = vadd.f32 0.0, %v6491
          %v6493 = vpop.f32.mrb[0].mxu0
          %v6494 = vadd.f32 0.0, %v6493
          %v6495 = vpop.f32.mrb[0].mxu0
          %v6496 = vadd.f32 0.0, %v6495
          %v6497 = vpop.f32.mrb[0].mxu0
          %v6498 = vadd.f32 0.0, %v6497
          %6499 = vmatprep.mubr.bf16.mxu0 %v5788
          %6500 = vmatmul.mubr.bf16.gmra.mrb[0].mxu0 %v5787
          %v6501 = vpop.f32.mrb[0].mxu0
          %v6502 = vadd.f32 0.0, %v6501
          %v6503 = vpop.f32.mrb[0].mxu0
          %v6504 = vadd.f32 0.0, %v6503
          %v6505 = vpop.f32.mrb[0].mxu0
          %v6506 = vadd.f32 0.0, %v6505
          %v6507 = vpop.f32.mrb[0].mxu0
          %v6508 = vadd.f32 0.0, %v6507
          %6509 = vmatprep.mubr.bf16.mxu0 %v5794
          %6510 = vmatmul.mubr.bf16.gmra.mrb[0].mxu0 %v5793
          %v6511 = vpop.f32.mrb[0].mxu0
          %v6512 = vadd.f32 0.0, %v6511
          %v6513 = vpop.f32.mrb[0].mxu0
          %v6514 = vadd.f32 0.0, %v6513
          %v6515 = vpop.f32.mrb[0].mxu0
          %v6516 = vadd.f32 0.0, %v6515
          %v6517 = vpop.f32.mrb[0].mxu0
          %v6518 = vadd.f32 0.0, %v6517
          %6519 = vmatprep.mubr.bf16.mxu0 %v5800
          %6520 = vmatmul.mubr.bf16.gmra.mrb[0].mxu0 %v5799
          %v6521 = vpop.f32.mrb[0].mxu0
          %v6522 = vadd.f32 0.0, %v6521
          %v6523 = vpop.f32.mrb[0].mxu0
          %v6524 = vadd.f32 0.0, %v6523
          %v6525 = vpop.f32.mrb[0].mxu0
          %v6526 = vadd.f32 0.0, %v6525
          %v6527 = vpop.f32.mrb[0].mxu0
          %v6528 = vadd.f32 0.0, %v6527
          %6529 = vmatprep.mubr.bf16.mxu0 %v5806
          %6530 = vmatmul.mubr.bf16.gmra.mrb[0].mxu0 %v5805
          %v6531 = vpop.f32.mrb[0].mxu0
          %v6532 = vadd.f32 0.0, %v6531
          %v6533 = vpop.f32.mrb[0].mxu0
          %v6534 = vadd.f32 0.0, %v6533
          %v6535 = vpop.f32.mrb[0].mxu0
          %v6536 = vadd.f32 0.0, %v6535
          %v6537 = vpop.f32.mrb[0].mxu0
          %v6538 = vadd.f32 0.0, %v6537
          %6539 = vmatprep.mubr.bf16.mxu0 %v5812
          %6540 = vmatmul.mubr.bf16.gmra.mrb[0].mxu0 %v5811
          %v6541 = vpop.f32.mrb[0].mxu0
          %v6542 = vadd.f32 0.0, %v6541
          %v6543 = vpop.f32.mrb[0].mxu0
          %v6544 = vadd.f32 0.0, %v6543
          %v6545 = vpop.f32.mrb[0].mxu0
          %v6546 = vadd.f32 0.0, %v6545
          %v6547 = vpop.f32.mrb[0].mxu0
          %v6548 = vadd.f32 0.0, %v6547
          %6549 = vmatprep.mubr.bf16.mxu0 %v5818
          %6550 = vmatmul.mubr.bf16.gmra.mrb[0].mxu0 %v5817
          %v6551 = vpop.f32.mrb[0].mxu0
          %v6552 = vadd.f32 0.0, %v6551
          %v6553 = vpop.f32.mrb[0].mxu0
          %v6554 = vadd.f32 0.0, %v6553
          %v6555 = vpop.f32.mrb[0].mxu0
          %v6556 = vadd.f32 0.0, %v6555
          %v6557 = vpop.f32.mrb[0].mxu0
          %v6558 = vadd.f32 0.0, %v6557
          %6559 = vmatprep.mubr.bf16.mxu0 %v5824
          %6560 = vmatmul.mubr.bf16.gmra.mrb[0].mxu0 %v5823
          %v6561 = vpop.f32.mrb[0].mxu0
          %v6562 = vadd.f32 0.0, %v6561
          %v6563 = vpop.f32.mrb[0].mxu0
          %v6564 = vadd.f32 0.0, %v6563
          %v6565 = vpop.f32.mrb[0].mxu0
          %v6566 = vadd.f32 0.0, %v6565
          %v6567 = vpop.f32.mrb[0].mxu0
          %v6568 = vadd.f32 0.0, %v6567
          %6569 = vmatprep.mubr.bf16.mxu0 %v5830
          %6570 = vmatmul.mubr.bf16.gmra.mrb[0].mxu0 %v5829
          %v6571 = vpop.f32.mrb[0].mxu0
          %v6572 = vadd.f32 0.0, %v6571
          %v6573 = vpop.f32.mrb[0].mxu0
          %v6574 = vadd.f32 0.0, %v6573
          %v6575 = vpop.f32.mrb[0].mxu0
          %v6576 = vadd.f32 0.0, %v6575
          %v6577 = vpop.f32.mrb[0].mxu0
          %v6578 = vadd.f32 0.0, %v6577
          %6579 = vmatprep.mubr.bf16.mxu0 %v5836
          %6580 = vmatmul.mubr.bf16.gmra.mrb[0].mxu0 %v5835
          %v6581 = vpop.f32.mrb[0].mxu0
          %v6582 = vadd.f32 0.0, %v6581
          %v6583 = vpop.f32.mrb[0].mxu0
          %v6584 = vadd.f32 0.0, %v6583
          %v6585 = vpop.f32.mrb[0].mxu0
          %v6586 = vadd.f32 0.0, %v6585
          %v6587 = vpop.f32.mrb[0].mxu0
          %v6588 = vadd.f32 0.0, %v6587
          %6589 = vmatprep.mubr.bf16.mxu0 %v5842
          %6590 = vmatmul.mubr.bf16.gmra.mrb[0].mxu0 %v5841
          %v6591 = vpop.f32.mrb[0].mxu0
          %v6592 = vadd.f32 0.0, %v6591
          %v6593 = vpop.f32.mrb[0].mxu0
          %v6594 = vadd.f32 0.0, %v6593
          %v6595 = vpop.f32.mrb[0].mxu0
          %v6596 = vadd.f32 0.0, %v6595
          %v6597 = vpop.f32.mrb[0].mxu0
          %v6598 = vadd.f32 0.0, %v6597
          %6599 = vmatprep.mubr.bf16.mxu0 %v5848
          %6600 = vmatmul.mubr.bf16.gmra.mrb[0].mxu0 %v5847
          %v6601 = vpop.f32.mrb[0].mxu0
          %v6602 = vadd.f32 0.0, %v6601
          %v6603 = vpop.f32.mrb[0].mxu0
          %v6604 = vadd.f32 0.0, %v6603
          %v6605 = vpop.f32.mrb[0].mxu0
          %v6606 = vadd.f32 0.0, %v6605
          %v6607 = vpop.f32.mrb[0].mxu0
          %v6608 = vadd.f32 0.0, %v6607
          %6609 = vmatprep.mubr.bf16.mxu0 %v5854
          %6610 = vmatmul.mubr.bf16.gmra.mrb[0].mxu0 %v5853
          %v6611 = vpop.f32.mrb[0].mxu0
          %v6612 = vadd.f32 0.0, %v6611
          %v6613 = vpop.f32.mrb[0].mxu0
          %v6614 = vadd.f32 0.0, %v6613
          %v6615 = vpop.f32.mrb[0].mxu0
          %v6616 = vadd.f32 0.0, %v6615
          %v6617 = vpop.f32.mrb[0].mxu0
          %v6618 = vadd.f32 0.0, %v6617
          %6619 = vmatprep.mubr.bf16.mxu0 %v5860
          %6620 = vmatmul.mubr.bf16.gmra.mrb[0].mxu0 %v5859
          %v6621 = vpop.f32.mrb[0].mxu0
          %v6622 = vadd.f32 0.0, %v6621
          %v6623 = vpop.f32.mrb[0].mxu0
          %v6624 = vadd.f32 0.0, %v6623
          %v6625 = vpop.f32.mrb[0].mxu0
          %v6626 = vadd.f32 0.0, %v6625
          %v6627 = vpop.f32.mrb[0].mxu0
          %v6628 = vadd.f32 0.0, %v6627
          %6629 = vmatprep.mubr.bf16.mxu0 %v5866
          %6630 = vmatmul.mubr.bf16.gmra.mrb[0].mxu0 %v5865
          %v6631 = vpop.f32.mrb[0].mxu0
          %v6632 = vadd.f32 0.0, %v6631
          %v6633 = vpop.f32.mrb[0].mxu0
          %v6634 = vadd.f32 0.0, %v6633
          %v6635 = vpop.f32.mrb[0].mxu0
          %v6636 = vadd.f32 0.0, %v6635
          %v6637 = vpop.f32.mrb[0].mxu0
          %v6638 = vadd.f32 0.0, %v6637
          %6639 = vdwg.mxu0
          %6640 = vmatprep.subr.bf16.mxu0 %v6288
          %6641 = vmatpush1.bf16.msra.mxu0 %v6287
          %6642 = vmatprep.subr.bf16.mxu0 %v6290
          %6643 = vmatpush1.bf16.msra.mxu0 %v6289
          %6644 = vmatprep.subr.bf16.mxu0 %v6292
          %6645 = vmatpush1.bf16.msra.mxu0 %v6291
          %6646 = vmatprep.subr.bf16.mxu0 %v6294
          %6647 = vmatpush1.bf16.msra.mxu0 %v6293
          %6648 = vmatprep.subr.bf16.mxu0 %v6296
          %6649 = vmatpush1.bf16.msra.mxu0 %v6295
          %6650 = vmatprep.subr.bf16.mxu0 %v6298
          %6651 = vmatpush1.bf16.msra.mxu0 %v6297
          %6652 = vmatprep.subr.bf16.mxu0 %v6300
          %6653 = vmatpush1.bf16.msra.mxu0 %v6299
          %6654 = vmatprep.subr.bf16.mxu0 %v6302
          %6655 = vmatpush1.bf16.msra.mxu0 %v6301
          %6656 = vmatprep.subr.bf16.mxu0 %v6304
          %6657 = vmatpush1.bf16.msra.mxu0 %v6303
          %6658 = vmatprep.subr.bf16.mxu0 %v6306
          %6659 = vmatpush1.bf16.msra.mxu0 %v6305
          %6660 = vmatprep.subr.bf16.mxu0 %v6308
          %6661 = vmatpush1.bf16.msra.mxu0 %v6307
          %6662 = vmatprep.subr.bf16.mxu0 %v6310
          %6663 = vmatpush1.bf16.msra.mxu0 %v6309
          %6664 = vmatprep.subr.bf16.mxu0 %v6312
          %6665 = vmatpush1.bf16.msra.mxu0 %v6311
          %6666 = vmatprep.subr.bf16.mxu0 %v6314
          %6667 = vmatpush1.bf16.msra.mxu0 %v6313
          %6668 = vmatprep.subr.bf16.mxu0 %v6316
          %6669 = vmatpush1.bf16.msra.mxu0 %v6315
          %6670 = vmatprep.subr.bf16.mxu0 %v6318
          %6671 = vmatpush1.bf16.msra.mxu0 %v6317
          %6672 = vmatprep.mubr.bf16.mxu0 %v5778
          %6673 = vmatmul.mubr.bf16.gmra.mrb[0].mxu0 %v5777
          %v6674 = vpop.f32.mrb[0].mxu0
          %v6675 = vadd.f32 %v6482, %v6674
          %v6676 = vpop.f32.mrb[0].mxu0
          %v6677 = vadd.f32 %v6484, %v6676
          %v6678 = vpop.f32.mrb[0].mxu0
          %v6679 = vadd.f32 %v6486, %v6678
          %v6680 = vpop.f32.mrb[0].mxu0
          %v6681 = vadd.f32 %v6488, %v6680
          %6682 = vmatprep.mubr.bf16.mxu0 %v5784
          %6683 = vmatmul.mubr.bf16.gmra.mrb[0].mxu0 %v5783
          %v6684 = vpop.f32.mrb[0].mxu0
          %v6685 = vadd.f32 %v6492, %v6684
          %v6686 = vpop.f32.mrb[0].mxu0
          %v6687 = vadd.f32 %v6494, %v6686
          %v6688 = vpop.f32.mrb[0].mxu0
          %v6689 = vadd.f32 %v6496, %v6688
          %v6690 = vpop.f32.mrb[0].mxu0
          %v6691 = vadd.f32 %v6498, %v6690
          %6692 = vmatprep.mubr.bf16.mxu0 %v5790
          %6693 = vmatmul.mubr.bf16.gmra.mrb[0].mxu0 %v5789
          %v6694 = vpop.f32.mrb[0].mxu0
          %v6695 = vadd.f32 %v6502, %v6694
          %v6696 = vpop.f32.mrb[0].mxu0
          %v6697 = vadd.f32 %v6504, %v6696
          %v6698 = vpop.f32.mrb[0].mxu0
          %v6699 = vadd.f32 %v6506, %v6698
          %v6700 = vpop.f32.mrb[0].mxu0
          %v6701 = vadd.f32 %v6508, %v6700
          %6702 = vmatprep.mubr.bf16.mxu0 %v5796
          %6703 = vmatmul.mubr.bf16.gmra.mrb[0].mxu0 %v5795
          %v6704 = vpop.f32.mrb[0].mxu0
          %v6705 = vadd.f32 %v6512, %v6704
          %v6706 = vpop.f32.mrb[0].mxu0
          %v6707 = vadd.f32 %v6514, %v6706
          %v6708 = vpop.f32.mrb[0].mxu0
          %v6709 = vadd.f32 %v6516, %v6708
          %v6710 = vpop.f32.mrb[0].mxu0
          %v6711 = vadd.f32 %v6518, %v6710
          %6712 = vmatprep.mubr.bf16.mxu0 %v5802
          %6713 = vmatmul.mubr.bf16.gmra.mrb[0].mxu0 %v5801
          %v6714 = vpop.f32.mrb[0].mxu0
          %v6715 = vadd.f32 %v6522, %v6714
          %v6716 = vpop.f32.mrb[0].mxu0
          %v6717 = vadd.f32 %v6524, %v6716
          %v6718 = vpop.f32.mrb[0].mxu0
          %v6719 = vadd.f32 %v6526, %v6718
          %v6720 = vpop.f32.mrb[0].mxu0
          %v6721 = vadd.f32 %v6528, %v6720
          %6722 = vmatprep.mubr.bf16.mxu0 %v5808
          %6723 = vmatmul.mubr.bf16.gmra.mrb[0].mxu0 %v5807
          %v6724 = vpop.f32.mrb[0].mxu0
          %v6725 = vadd.f32 %v6532, %v6724
          %v6726 = vpop.f32.mrb[0].mxu0
          %v6727 = vadd.f32 %v6534, %v6726
          %v6728 = vpop.f32.mrb[0].mxu0
          %v6729 = vadd.f32 %v6536, %v6728
          %v6730 = vpop.f32.mrb[0].mxu0
          %v6731 = vadd.f32 %v6538, %v6730
          %6732 = vmatprep.mubr.bf16.mxu0 %v5814
          %6733 = vmatmul.mubr.bf16.gmra.mrb[0].mxu0 %v5813
          %v6734 = vpop.f32.mrb[0].mxu0
          %v6735 = vadd.f32 %v6542, %v6734
          %v6736 = vpop.f32.mrb[0].mxu0
          %v6737 = vadd.f32 %v6544, %v6736
          %v6738 = vpop.f32.mrb[0].mxu0
          %v6739 = vadd.f32 %v6546, %v6738
          %v6740 = vpop.f32.mrb[0].mxu0
          %v6741 = vadd.f32 %v6548, %v6740
          %6742 = vmatprep.mubr.bf16.mxu0 %v5820
          %6743 = vmatmul.mubr.bf16.gmra.mrb[0].mxu0 %v5819
          %v6744 = vpop.f32.mrb[0].mxu0
          %v6745 = vadd.f32 %v6552, %v6744
          %v6746 = vpop.f32.mrb[0].mxu0
          %v6747 = vadd.f32 %v6554, %v6746
          %v6748 = vpop.f32.mrb[0].mxu0
          %v6749 = vadd.f32 %v6556, %v6748
          %v6750 = vpop.f32.mrb[0].mxu0
          %v6751 = vadd.f32 %v6558, %v6750
          %6752 = vmatprep.mubr.bf16.mxu0 %v5826
          %6753 = vmatmul.mubr.bf16.gmra.mrb[0].mxu0 %v5825
          %v6754 = vpop.f32.mrb[0].mxu0
          %v6755 = vadd.f32 %v6562, %v6754
          %v6756 = vpop.f32.mrb[0].mxu0
          %v6757 = vadd.f32 %v6564, %v6756
          %v6758 = vpop.f32.mrb[0].mxu0
          %v6759 = vadd.f32 %v6566, %v6758
          %v6760 = vpop.f32.mrb[0].mxu0
          %v6761 = vadd.f32 %v6568, %v6760
          %6762 = vmatprep.mubr.bf16.mxu0 %v5832
          %6763 = vmatmul.mubr.bf16.gmra.mrb[0].mxu0 %v5831
          %v6764 = vpop.f32.mrb[0].mxu0
          %v6765 = vadd.f32 %v6572, %v6764
          %v6766 = vpop.f32.mrb[0].mxu0
          %v6767 = vadd.f32 %v6574, %v6766
          %v6768 = vpop.f32.mrb[0].mxu0
          %v6769 = vadd.f32 %v6576, %v6768
          %v6770 = vpop.f32.mrb[0].mxu0
          %v6771 = vadd.f32 %v6578, %v6770
          %6772 = vmatprep.mubr.bf16.mxu0 %v5838
          %6773 = vmatmul.mubr.bf16.gmra.mrb[0].mxu0 %v5837
          %v6774 = vpop.f32.mrb[0].mxu0
          %v6775 = vadd.f32 %v6582, %v6774
          %v6776 = vpop.f32.mrb[0].mxu0
          %v6777 = vadd.f32 %v6584, %v6776
          %v6778 = vpop.f32.mrb[0].mxu0
          %v6779 = vadd.f32 %v6586, %v6778
          %v6780 = vpop.f32.mrb[0].mxu0
          %v6781 = vadd.f32 %v6588, %v6780
          %6782 = vmatprep.mubr.bf16.mxu0 %v5844
          %6783 = vmatmul.mubr.bf16.gmra.mrb[0].mxu0 %v5843
          %v6784 = vpop.f32.mrb[0].mxu0
          %v6785 = vadd.f32 %v6592, %v6784
          %v6786 = vpop.f32.mrb[0].mxu0
          %v6787 = vadd.f32 %v6594, %v6786
          %v6788 = vpop.f32.mrb[0].mxu0
          %v6789 = vadd.f32 %v6596, %v6788
          %v6790 = vpop.f32.mrb[0].mxu0
          %v6791 = vadd.f32 %v6598, %v6790
          %6792 = vmatprep.mubr.bf16.mxu0 %v5850
          %6793 = vmatmul.mubr.bf16.gmra.mrb[0].mxu0 %v5849
          %v6794 = vpop.f32.mrb[0].mxu0
          %v6795 = vadd.f32 %v6602, %v6794
          %v6796 = vpop.f32.mrb[0].mxu0
          %v6797 = vadd.f32 %v6604, %v6796
          %v6798 = vpop.f32.mrb[0].mxu0
          %v6799 = vadd.f32 %v6606, %v6798
          %v6800 = vpop.f32.mrb[0].mxu0
          %v6801 = vadd.f32 %v6608, %v6800
          %6802 = vmatprep.mubr.bf16.mxu0 %v5856
          %6803 = vmatmul.mubr.bf16.gmra.mrb[0].mxu0 %v5855
          %v6804 = vpop.f32.mrb[0].mxu0
          %v6805 = vadd.f32 %v6612, %v6804
          %v6806 = vpop.f32.mrb[0].mxu0
          %v6807 = vadd.f32 %v6614, %v6806
          %v6808 = vpop.f32.mrb[0].mxu0
          %v6809 = vadd.f32 %v6616, %v6808
          %v6810 = vpop.f32.mrb[0].mxu0
          %v6811 = vadd.f32 %v6618, %v6810
          %6812 = vmatprep.mubr.bf16.mxu0 %v5862
          %6813 = vmatmul.mubr.bf16.gmra.mrb[0].mxu0 %v5861
          %v6814 = vpop.f32.mrb[0].mxu0
          %v6815 = vadd.f32 %v6622, %v6814
          %v6816 = vpop.f32.mrb[0].mxu0
          %v6817 = vadd.f32 %v6624, %v6816
          %v6818 = vpop.f32.mrb[0].mxu0
          %v6819 = vadd.f32 %v6626, %v6818
          %v6820 = vpop.f32.mrb[0].mxu0
          %v6821 = vadd.f32 %v6628, %v6820
          %6822 = vmatprep.mubr.bf16.mxu0 %v5868
          %6823 = vmatmul.mubr.bf16.gmra.mrb[0].mxu0 %v5867
          %v6824 = vpop.f32.mrb[0].mxu0
          %v6825 = vadd.f32 %v6632, %v6824
          %v6826 = vpop.f32.mrb[0].mxu0
          %v6827 = vadd.f32 %v6634, %v6826
          %v6828 = vpop.f32.mrb[0].mxu0
          %v6829 = vadd.f32 %v6636, %v6828
          %v6830 = vpop.f32.mrb[0].mxu0
          %v6831 = vadd.f32 %v6638, %v6830
          %6832 = vdwg.mxu0
          %6833 = vmatprep.subr.bf16.mxu0 %v6320
          %6834 = vmatpush1.bf16.msra.mxu0 %v6319
          %6835 = vmatprep.subr.bf16.mxu0 %v6322
          %6836 = vmatpush1.bf16.msra.mxu0 %v6321
          %6837 = vmatprep.subr.bf16.mxu0 %v6324
          %6838 = vmatpush1.bf16.msra.mxu0 %v6323
          %6839 = vmatprep.subr.bf16.mxu0 %v6326
          %6840 = vmatpush1.bf16.msra.mxu0 %v6325
          %6841 = vmatprep.subr.bf16.mxu0 %v6328
          %6842 = vmatpush1.bf16.msra.mxu0 %v6327
          %6843 = vmatprep.subr.bf16.mxu0 %v6330
          %6844 = vmatpush1.bf16.msra.mxu0 %v6329
          %6845 = vmatprep.subr.bf16.mxu0 %v6332
          %6846 = vmatpush1.bf16.msra.mxu0 %v6331
          %6847 = vmatprep.subr.bf16.mxu0 %v6334
          %6848 = vmatpush1.bf16.msra.mxu0 %v6333
          %6849 = vmatprep.subr.bf16.mxu0 %v6336
          %6850 = vmatpush1.bf16.msra.mxu0 %v6335
          %6851 = vmatprep.subr.bf16.mxu0 %v6338
          %6852 = vmatpush1.bf16.msra.mxu0 %v6337
          %6853 = vmatprep.subr.bf16.mxu0 %v6340
          %6854 = vmatpush1.bf16.msra.mxu0 %v6339
          %6855 = vmatprep.subr.bf16.mxu0 %v6342
          %6856 = vmatpush1.bf16.msra.mxu0 %v6341
          %6857 = vmatprep.subr.bf16.mxu0 %v6344
          %6858 = vmatpush1.bf16.msra.mxu0 %v6343
          %6859 = vmatprep.subr.bf16.mxu0 %v6346
          %6860 = vmatpush1.bf16.msra.mxu0 %v6345
          %6861 = vmatprep.subr.bf16.mxu0 %v6348
          %6862 = vmatpush1.bf16.msra.mxu0 %v6347
          %6863 = vmatprep.subr.bf16.mxu0 %v6350
          %6864 = vmatpush1.bf16.msra.mxu0 %v6349
          %6865 = vmatprep.mubr.bf16.mxu0 %v5780
          %6866 = vmatmul.mubr.bf16.gmra.mrb[0].mxu0 %v5779
          %v6867 = vpop.f32.mrb[0].mxu0
          %v6868 = vadd.f32 %v6675, %v6867
          %v6869 = vpop.f32.mrb[0].mxu0
          %v6870 = vadd.f32 %v6677, %v6869
          %v6871 = vpop.f32.mrb[0].mxu0
          %v6872 = vadd.f32 %v6679, %v6871
          %v6873 = vpop.f32.mrb[0].mxu0
          %v6874 = vadd.f32 %v6681, %v6873
          %6875 = vmatprep.mubr.bf16.mxu0 %v5786
          %6876 = vmatmul.mubr.bf16.gmra.mrb[0].mxu0 %v5785
          %v6877 = vpop.f32.mrb[0].mxu0
          %v6878 = vadd.f32 %v6685, %v6877
          %v6879 = vpop.f32.mrb[0].mxu0
          %v6880 = vadd.f32 %v6687, %v6879
          %v6881 = vpop.f32.mrb[0].mxu0
          %v6882 = vadd.f32 %v6689, %v6881
          %v6883 = vpop.f32.mrb[0].mxu0
          %v6884 = vadd.f32 %v6691, %v6883
          %6885 = vmatprep.mubr.bf16.mxu0 %v5792
          %6886 = vmatmul.mubr.bf16.gmra.mrb[0].mxu0 %v5791
          %v6887 = vpop.f32.mrb[0].mxu0
          %v6888 = vadd.f32 %v6695, %v6887
          %v6889 = vpop.f32.mrb[0].mxu0
          %v6890 = vadd.f32 %v6697, %v6889
          %v6891 = vpop.f32.mrb[0].mxu0
          %v6892 = vadd.f32 %v6699, %v6891
          %v6893 = vpop.f32.mrb[0].mxu0
          %v6894 = vadd.f32 %v6701, %v6893
          %6895 = vmatprep.mubr.bf16.mxu0 %v5798
          %6896 = vmatmul.mubr.bf16.gmra.mrb[0].mxu0 %v5797
          %v6897 = vpop.f32.mrb[0].mxu0
          %v6898 = vadd.f32 %v6705, %v6897
          %v6899 = vpop.f32.mrb[0].mxu0
          %v6900 = vadd.f32 %v6707, %v6899
          %v6901 = vpop.f32.mrb[0].mxu0
          %v6902 = vadd.f32 %v6709, %v6901
          %v6903 = vpop.f32.mrb[0].mxu0
          %v6904 = vadd.f32 %v6711, %v6903
          %6905 = vmatprep.mubr.bf16.mxu0 %v5804
          %6906 = vmatmul.mubr.bf16.gmra.mrb[0].mxu0 %v5803
          %v6907 = vpop.f32.mrb[0].mxu0
          %v6908 = vadd.f32 %v6715, %v6907
          %v6909 = vpop.f32.mrb[0].mxu0
          %v6910 = vadd.f32 %v6717, %v6909
          %v6911 = vpop.f32.mrb[0].mxu0
          %v6912 = vadd.f32 %v6719, %v6911
          %v6913 = vpop.f32.mrb[0].mxu0
          %v6914 = vadd.f32 %v6721, %v6913
          %6915 = vmatprep.mubr.bf16.mxu0 %v5810
          %6916 = vmatmul.mubr.bf16.gmra.mrb[0].mxu0 %v5809
          %v6917 = vpop.f32.mrb[0].mxu0
          %v6918 = vadd.f32 %v6725, %v6917
          %v6919 = vpop.f32.mrb[0].mxu0
          %v6920 = vadd.f32 %v6727, %v6919
          %v6921 = vpop.f32.mrb[0].mxu0
          %v6922 = vadd.f32 %v6729, %v6921
          %v6923 = vpop.f32.mrb[0].mxu0
          %v6924 = vadd.f32 %v6731, %v6923
          %6925 = vmatprep.mubr.bf16.mxu0 %v5816
          %6926 = vmatmul.mubr.bf16.gmra.mrb[0].mxu0 %v5815
          %v6927 = vpop.f32.mrb[0].mxu0
          %v6928 = vadd.f32 %v6735, %v6927
          %v6929 = vpop.f32.mrb[0].mxu0
          %v6930 = vadd.f32 %v6737, %v6929
          %v6931 = vpop.f32.mrb[0].mxu0
          %v6932 = vadd.f32 %v6739, %v6931
          %v6933 = vpop.f32.mrb[0].mxu0
          %v6934 = vadd.f32 %v6741, %v6933
          %6935 = vmatprep.mubr.bf16.mxu0 %v5822
          %6936 = vmatmul.mubr.bf16.gmra.mrb[0].mxu0 %v5821
          %v6937 = vpop.f32.mrb[0].mxu0
          %v6938 = vadd.f32 %v6745, %v6937
          %v6939 = vpop.f32.mrb[0].mxu0
          %v6940 = vadd.f32 %v6747, %v6939
          %v6941 = vpop.f32.mrb[0].mxu0
          %v6942 = vadd.f32 %v6749, %v6941
          %v6943 = vpop.f32.mrb[0].mxu0
          %v6944 = vadd.f32 %v6751, %v6943
          %6945 = vmatprep.mubr.bf16.mxu0 %v5828
          %6946 = vmatmul.mubr.bf16.gmra.mrb[0].mxu0 %v5827
          %v6947 = vpop.f32.mrb[0].mxu0
          %v6948 = vadd.f32 %v6755, %v6947
          %v6949 = vpop.f32.mrb[0].mxu0
          %v6950 = vadd.f32 %v6757, %v6949
          %v6951 = vpop.f32.mrb[0].mxu0
          %v6952 = vadd.f32 %v6759, %v6951
          %v6953 = vpop.f32.mrb[0].mxu0
          %v6954 = vadd.f32 %v6761, %v6953
          %6955 = vmatprep.mubr.bf16.mxu0 %v5834
          %6956 = vmatmul.mubr.bf16.gmra.mrb[0].mxu0 %v5833
          %v6957 = vpop.f32.mrb[0].mxu0
          %v6958 = vadd.f32 %v6765, %v6957
          %v6959 = vpop.f32.mrb[0].mxu0
          %v6960 = vadd.f32 %v6767, %v6959
          %v6961 = vpop.f32.mrb[0].mxu0
          %v6962 = vadd.f32 %v6769, %v6961
          %v6963 = vpop.f32.mrb[0].mxu0
          %v6964 = vadd.f32 %v6771, %v6963
          %6965 = vmatprep.mubr.bf16.mxu0 %v5840
          %6966 = vmatmul.mubr.bf16.gmra.mrb[0].mxu0 %v5839
          %v6967 = vpop.f32.mrb[0].mxu0
          %v6968 = vadd.f32 %v6775, %v6967
          %v6969 = vpop.f32.mrb[0].mxu0
          %v6970 = vadd.f32 %v6777, %v6969
          %v6971 = vpop.f32.mrb[0].mxu0
          %v6972 = vadd.f32 %v6779, %v6971
          %v6973 = vpop.f32.mrb[0].mxu0
          %v6974 = vadd.f32 %v6781, %v6973
          %6975 = vmatprep.mubr.bf16.mxu0 %v5846
          %6976 = vmatmul.mubr.bf16.gmra.mrb[0].mxu0 %v5845
          %v6977 = vpop.f32.mrb[0].mxu0
          %v6978 = vadd.f32 %v6785, %v6977
          %v6979 = vpop.f32.mrb[0].mxu0
          %v6980 = vadd.f32 %v6787, %v6979
          %v6981 = vpop.f32.mrb[0].mxu0
          %v6982 = vadd.f32 %v6789, %v6981
          %v6983 = vpop.f32.mrb[0].mxu0
          %v6984 = vadd.f32 %v6791, %v6983
          %6985 = vmatprep.mubr.bf16.mxu0 %v5852
          %6986 = vmatmul.mubr.bf16.gmra.mrb[0].mxu0 %v5851
          %v6987 = vpop.f32.mrb[0].mxu0
          %v6988 = vadd.f32 %v6795, %v6987
          %v6989 = vpop.f32.mrb[0].mxu0
          %v6990 = vadd.f32 %v6797, %v6989
          %v6991 = vpop.f32.mrb[0].mxu0
          %v6992 = vadd.f32 %v6799, %v6991
          %v6993 = vpop.f32.mrb[0].mxu0
          %v6994 = vadd.f32 %v6801, %v6993
          %6995 = vmatprep.mubr.bf16.mxu0 %v5858
          %6996 = vmatmul.mubr.bf16.gmra.mrb[0].mxu0 %v5857
          %v6997 = vpop.f32.mrb[0].mxu0
          %v6998 = vadd.f32 %v6805, %v6997
          %v6999 = vpop.f32.mrb[0].mxu0
          %v7000 = vadd.f32 %v6807, %v6999
          %v7001 = vpop.f32.mrb[0].mxu0
          %v7002 = vadd.f32 %v6809, %v7001
          %v7003 = vpop.f32.mrb[0].mxu0
          %v7004 = vadd.f32 %v6811, %v7003
          %7005 = vmatprep.mubr.bf16.mxu0 %v5864
          %7006 = vmatmul.mubr.bf16.gmra.mrb[0].mxu0 %v5863
          %v7007 = vpop.f32.mrb[0].mxu0
          %v7008 = vadd.f32 %v6815, %v7007
          %v7009 = vpop.f32.mrb[0].mxu0
          %v7010 = vadd.f32 %v6817, %v7009
          %v7011 = vpop.f32.mrb[0].mxu0
          %v7012 = vadd.f32 %v6819, %v7011
          %v7013 = vpop.f32.mrb[0].mxu0
          %v7014 = vadd.f32 %v6821, %v7013
          %7015 = vmatprep.mubr.bf16.mxu0 %v5870
          %7016 = vmatmul.mubr.bf16.gmra.mrb[0].mxu0 %v5869
          %v7017 = vpop.f32.mrb[0].mxu0
          %v7018 = vadd.f32 %v6825, %v7017
          %v7019 = vpop.f32.mrb[0].mxu0
          %v7020 = vadd.f32 %v6827, %v7019
          %v7021 = vpop.f32.mrb[0].mxu0
          %v7022 = vadd.f32 %v6829, %v7021
          %v7023 = vpop.f32.mrb[0].mxu0
          %v7024 = vadd.f32 %v6831, %v7023
          %7025 = vdwg.mxu0
          %v7026 = vrot.slane %v6870, 1
          %v7027 = vrot.slane %v6874, 1
          %v7028 = vrot.slane %v6880, 1
          %v7029 = vrot.slane %v6884, 1
          %v7030 = vrot.slane %v6890, 1
          %v7031 = vrot.slane %v6894, 1
          %v7032 = vrot.slane %v6900, 1
          %v7033 = vrot.slane %v6904, 1
          %v7034 = vrot.slane %v6910, 1
          %v7035 = vrot.slane %v6914, 1
          %v7036 = vrot.slane %v6920, 1
          %v7037 = vrot.slane %v6924, 1
          %v7038 = vrot.slane %v6930, 1
          %v7039 = vrot.slane %v6934, 1
          %v7040 = vrot.slane %v6940, 1
          %v7041 = vrot.slane %v6944, 1
          %v7042 = vrot.slane %v6950, 1
          %v7043 = vrot.slane %v6954, 1
          %v7044 = vrot.slane %v6960, 1
          %v7045 = vrot.slane %v6964, 1
          %v7046 = vrot.slane %v6970, 1
          %v7047 = vrot.slane %v6974, 1
          %v7048 = vrot.slane %v6980, 1
          %v7049 = vrot.slane %v6984, 1
          %v7050 = vrot.slane %v6990, 1
          %v7051 = vrot.slane %v6994, 1
          %v7052 = vrot.slane %v7000, 1
          %v7053 = vrot.slane %v7004, 1
          %v7054 = vrot.slane %v7010, 1
          %v7055 = vrot.slane %v7014, 1
          %v7056 = vrot.slane %v7020, 1
          %v7057 = vrot.slane %v7024, 1
          %v7058 = vlaneseq
          %v7059 = vshrl.u32 %v7058, 7
          %vm7060 = vcmp.lt.s32.totalorder %v7059, 7
          %v7061 = vsel %vm7060, %v7056, %v7057
          %v7062 = vsel %vm7060, %v7055, %v7056
          %v7063 = vsel %vm7060, %v7054, %v7055
          %v7064 = vsel %vm7060, %v7053, %v7054
          %v7065 = vsel %vm7060, %v7052, %v7053
          %v7066 = vsel %vm7060, %v7051, %v7052
          %v7067 = vsel %vm7060, %v7050, %v7051
          %v7068 = vsel %vm7060, %v7049, %v7050
          %v7069 = vsel %vm7060, %v7048, %v7049
          %v7070 = vsel %vm7060, %v7047, %v7048
          %v7071 = vsel %vm7060, %v7046, %v7047
          %v7072 = vsel %vm7060, %v7045, %v7046
          %v7073 = vsel %vm7060, %v7044, %v7045
          %v7074 = vsel %vm7060, %v7043, %v7044
          %v7075 = vsel %vm7060, %v7042, %v7043
          %v7076 = vsel %vm7060, %v7041, %v7042
          %v7077 = vsel %vm7060, %v7040, %v7041
          %v7078 = vsel %vm7060, %v7039, %v7040
          %v7079 = vsel %vm7060, %v7038, %v7039
          %v7080 = vsel %vm7060, %v7037, %v7038
          %v7081 = vsel %vm7060, %v7036, %v7037
          %v7082 = vsel %vm7060, %v7035, %v7036
          %v7083 = vsel %vm7060, %v7034, %v7035
          %v7084 = vsel %vm7060, %v7033, %v7034
          %v7085 = vsel %vm7060, %v7032, %v7033
          %v7086 = vsel %vm7060, %v7031, %v7032
          %v7087 = vsel %vm7060, %v7030, %v7031
          %v7088 = vsel %vm7060, %v7029, %v7030
          %v7089 = vsel %vm7060, %v7028, %v7029
          %v7090 = vsel %vm7060, %v7027, %v7028
          %v7091 = vsel %vm7060, %v7026, %v7027
          %v7092 = vsel %vm7060, %v7057, %v7026
          %v7093 = vadd.f32 %v6868, %v7091
          %v7094 = vadd.f32 %v6872, %v7090
          %v7095 = vadd.f32 %v6878, %v7089
          %v7096 = vadd.f32 %v6882, %v7088
          %v7097 = vadd.f32 %v6888, %v7087
          %v7098 = vadd.f32 %v6892, %v7086
          %v7099 = vadd.f32 %v6898, %v7085
          %v7100 = vadd.f32 %v6902, %v7084
          %v7101 = vadd.f32 %v6908, %v7083
          %v7102 = vadd.f32 %v6912, %v7082
          %v7103 = vadd.f32 %v6918, %v7081
          %v7104 = vadd.f32 %v6922, %v7080
          %v7105 = vadd.f32 %v6928, %v7079
          %v7106 = vadd.f32 %v6932, %v7078
          %v7107 = vadd.f32 %v6938, %v7077
          %v7108 = vadd.f32 %v6942, %v7076
          %v7109 = vadd.f32 %v6948, %v7075
          %v7110 = vadd.f32 %v6952, %v7074
          %v7111 = vadd.f32 %v6958, %v7073
          %v7112 = vadd.f32 %v6962, %v7072
          %v7113 = vadd.f32 %v6968, %v7071
          %v7114 = vadd.f32 %v6972, %v7070
          %v7115 = vadd.f32 %v6978, %v7069
          %v7116 = vadd.f32 %v6982, %v7068
          %v7117 = vadd.f32 %v6988, %v7067
          %v7118 = vadd.f32 %v6992, %v7066
          %v7119 = vadd.f32 %v6998, %v7065
          %v7120 = vadd.f32 %v7002, %v7064
          %v7121 = vadd.f32 %v7008, %v7063
          %v7122 = vadd.f32 %v7012, %v7062
          %v7123 = vadd.f32 %v7018, %v7061
          %v7124 = vadd.f32 %v7022, %v7092
          %v7125 = vld [vmem:[#allocation11] sm:$0x1]
          %v7127 = vlaneseq
          %v7128 = vshrl.u32 %v7127, 7
          %v7129 = vsub.s32 0, %v7128
          %v7130 = vrot.slane %v7125, %v7129
          %v7132 = vadd.f32 %v7093, %v7130
          %v7133 = vadd.f32 %v7094, %v7130
          %v7134 = vadd.f32 %v7095, %v7130
          %v7135 = vadd.f32 %v7096, %v7130
          %v7136 = vadd.f32 %v7097, %v7130
          %v7137 = vadd.f32 %v7098, %v7130
          %v7138 = vadd.f32 %v7099, %v7130
          %v7139 = vadd.f32 %v7100, %v7130
          %v7140 = vadd.f32 %v7101, %v7130
          %v7141 = vadd.f32 %v7102, %v7130
          %v7142 = vadd.f32 %v7103, %v7130
          %v7143 = vadd.f32 %v7104, %v7130
          %v7144 = vadd.f32 %v7105, %v7130
          %v7145 = vadd.f32 %v7106, %v7130
          %v7146 = vadd.f32 %v7107, %v7130
          %v7147 = vadd.f32 %v7108, %v7130
          %v7148 = vadd.f32 %v7109, %v7130
          %v7149 = vadd.f32 %v7110, %v7130
          %v7150 = vadd.f32 %v7111, %v7130
          %v7151 = vadd.f32 %v7112, %v7130
          %v7152 = vadd.f32 %v7113, %v7130
          %v7153 = vadd.f32 %v7114, %v7130
          %v7154 = vadd.f32 %v7115, %v7130
          %v7155 = vadd.f32 %v7116, %v7130
          %v7156 = vadd.f32 %v7117, %v7130
          %v7157 = vadd.f32 %v7118, %v7130
          %v7158 = vadd.f32 %v7119, %v7130
          %v7159 = vadd.f32 %v7120, %v7130
          %v7160 = vadd.f32 %v7121, %v7130
          %v7161 = vadd.f32 %v7122, %v7130
          %v7162 = vadd.f32 %v7123, %v7130
          %v7163 = vadd.f32 %v7124, %v7130
          %7164 = vst [vmem:[#allocation13] sm:$0xff] %v7132
          %7165 = vst [vmem:[#allocation13 + $0x8] sm:$0xff] %v7133
          %7166 = vst [vmem:[#allocation13 + $0x10] sm:$0xff] %v7134
          %7167 = vst [vmem:[#allocation13 + $0x18] sm:$0xff] %v7135
          %7168 = vst [vmem:[#allocation13 + $0x20] sm:$0xff] %v7136
          %7169 = vst [vmem:[#allocation13 + $0x28] sm:$0xff] %v7137
          %7170 = vst [vmem:[#allocation13 + $0x30] sm:$0xff] %v7138
          %7171 = vst [vmem:[#allocation13 + $0x38] sm:$0xff] %v7139
          %7172 = vst [vmem:[#allocation13 + $0x40] sm:$0xff] %v7140
          %7173 = vst [vmem:[#allocation13 + $0x48] sm:$0xff] %v7141
          %7174 = vst [vmem:[#allocation13 + $0x50] sm:$0xff] %v7142
          %7175 = vst [vmem:[#allocation13 + $0x58] sm:$0xff] %v7143
          %7176 = vst [vmem:[#allocation13 + $0x60] sm:$0xff] %v7144
          %7177 = vst [vmem:[#allocation13 + $0x68] sm:$0xff] %v7145
          %7178 = vst [vmem:[#allocation13 + $0x70] sm:$0xff] %v7146
          %7179 = vst [vmem:[#allocation13 + $0x78] sm:$0xff] %v7147
          %7180 = vst [vmem:[#allocation13 + $0x80] sm:$0xff] %v7148
          %7181 = vst [vmem:[#allocation13 + $0x88] sm:$0xff] %v7149
          %7182 = vst [vmem:[#allocation13 + $0x90] sm:$0xff] %v7150
          %7183 = vst [vmem:[#allocation13 + $0x98] sm:$0xff] %v7151
          %7184 = vst [vmem:[#allocation13 + $0xa0] sm:$0xff] %v7152
          %7185 = vst [vmem:[#allocation13 + $0xa8] sm:$0xff] %v7153
          %7186 = vst [vmem:[#allocation13 + $0xb0] sm:$0xff] %v7154
          %7187 = vst [vmem:[#allocation13 + $0xb8] sm:$0xff] %v7155
          %7188 = vst [vmem:[#allocation13 + $0xc0] sm:$0xff] %v7156
          %7189 = vst [vmem:[#allocation13 + $0xc8] sm:$0xff] %v7157
          %7190 = vst [vmem:[#allocation13 + $0xd0] sm:$0xff] %v7158
          %7191 = vst [vmem:[#allocation13 + $0xd8] sm:$0xff] %v7159
          %7192 = vst [vmem:[#allocation13 + $0xe0] sm:$0xff] %v7160
          %7193 = vst [vmem:[#allocation13 + $0xe8] sm:$0xff] %v7161
          %7194 = vst [vmem:[#allocation13 + $0xf0] sm:$0xff] %v7162
          %7195 = vst [vmem:[#allocation13 + $0xf8] sm:$0xff] %v7163
        $region76: #{tpu_custom_call.1} parent=43 // pred_fallthru
          _
        // Predicated region
        $region77: #{tpu_custom_call.1} parent=43 // pred_check
          %p7196 = pneg %p170
        $region78: #{tpu_custom_call.1} parent=43 // pred_check_branch
          %7198 = sbr.rel (%p7196) target = $region80
        $region79: #{tpu_custom_call.1} parent=43 // pred_region
          %s7200 = ssub.s32 4096, 4096
          %7201 = vsyncadd [#allocation5], %s7200
          %s7202 = sshll.u32 [#allocation13], 4
          %s7203 = int_to_ptr.vmem [resolvable:$true] %s7202
          %7208 = dma.vmem_to_hbm [thread:$0]  %s7203, 4096, %s6, [#allocation5], 128, 128, 8
        $region80: #{tpu_custom_call.1} parent=43 // pred_fallthru
          _
        // Predicated region
        $region81: #{tpu_custom_call.1} parent=43 // pred_check
          %p7209 = pneg %p170
        $region82: #{tpu_custom_call.1} parent=43 // pred_check_branch
          %7211 = sbr.rel (%p7209) target = $region84
        $region83: #{tpu_custom_call.1} parent=43 // pred_region
          %7212 = dma.done [#allocation5], 4096
        $region84: #{tpu_custom_call.1} parent=43 // pred_fallthru
          _
      $region44: #{tpu_custom_call.1} parent=5 // pred_fallthru
        _
      %p7213 = scmp.le.s32.totalorder 2, %s16
      // Predicated region
      $region85: #{tpu_custom_call.1} parent=5 // pred_check
        %p7214 = pneg %p7213
      $region86: #{tpu_custom_call.1} parent=5 // pred_check_branch
        %7216 = sbr.rel (%p7214) target = $region88
      $region87: #{tpu_custom_call.1} parent=5 // pred_region
        %s7217 = ssub.s32 %s16, 2
      $region88: #{tpu_custom_call.1} parent=5 // pred_fallthru
        _
    $region6: #{tpu_custom_call.1} parent=1 // loop_footer
      %s20 = sadd.s32 1, %s16
    $region7: #{tpu_custom_call.1} parent=1 // loop_footer_branch
      %15 = sbr.rel target = $region3
    $region8: #{tpu_custom_call.1} parent=1 // loop_exit
      _
    %7218 = vsyncpa [#allocation4], 1
    %s7219 = scalar_lea.sflag [#allocation4], 1
    %7220 = vsyncpa %s7219, 1
    %7221 = vsyncpa [#allocation7], 1
    %7222 = vsyncpa [#allocation12], 1
    %7223 = vsyncpa [#allocation5], 1
    %s7224 = scalar_lea.sflag [#allocation5], 1
    %7225 = vsyncpa %s7224, 1

</llo_original>
